<compile_context>
chip_gen: v7x
topology: tpu7x:2x2x1
jax: 0.10.0
libtpu: 0.0.40
codegen_flags: <defaults>
</compile_context>

<pallas_src>
import numpy as np
import jax
import jax.numpy as jnp
from jax.experimental import pallas as pl
from jax.experimental.pallas import tpu as pltpu

# ----------------------- static configuration (mirrors __init__) -----------------------
B        = 8            # num_batch
NVAR     = 8            # P.shape[1]
NUM      = 16           # P.shape[0]  (trajectory samples)
NUM_OBS  = 2
NUM_CIRC = 3
NB       = NUM_OBS * NUM_CIRC
NOC      = NB * NUM     # num * num_obs * num_circles = 96
T_FIN    = 10.0
MAXITER  = 5

RHO_OBS = 1.0; RHO_INEQ = 1.0; RHO_LANE = 1.0
WEIGHT_SMOOTH = 20.0; WEIGHT_Y_DES = 1.0
V_MIN = 0.001; V_MAX = 18.0; A_MAX = 6.0
A_EGO = 3.0; B_EGO = 1.5
MARGIN_LONG = 0.2; MARGIN_LAT = 0.2
assert RHO_OBS == RHO_INEQ == RHO_LANE == 1.0   # rho folding into G2 assumes this

INP_MEAN = 0.5; INP_STD = 2.0
MIN_PCD = -10.0; MAX_PCD = 10.0

# network sizes (point_net / mlp_init / gru_* are user-supplied submodules in the
# reference; implemented here as PointNet(max-pool) / 2-layer MLP / GRUCell+Linear)
INP_DIM = 8
NP_PTS  = 32            # points per point cloud
PD      = 2             # point dimension
PH      = 32            # point-net hidden
FP      = 16            # point-net feature
FIN     = INP_DIM + FP  # mlp_init / gru-init input dim (24)
MH      = 32            # mlp_init hidden
HGRU    = 32            # GRU hidden size
GRU_IN  = 12 * NVAR     # r = [r1, r2, r2 - r1] = 96

# clipped-heading constants for the velocity projection
COS_C = float(np.cos(0.41)); SIN_C = float(np.sin(0.41)); TAN_C = float(np.tan(0.41))

VM = pl.BlockSpec(memory_space=pltpu.MemorySpace.VMEM)


# ========================= packed layouts (static metadata) =========================

def _round8(n):
    return (n + 7) & ~7

# --- combined projection+trajectory output ("big") column layout, width 384 ---
BIGW      = 384
BC_PRIMAL = 0            # 16
BC_XDOT   = 16           # 16
BC_XDDOT  = 32           # 16
BC_YDOT   = 48           # 16
BC_YDDOT  = 64           # 16
BC_Y      = 80           # 16
BC_XEXT   = 128          # 96 (x replicated x NB, aligned with xobs)
BC_YEXT   = 256          # 96 (y replicated x NB, aligned with yobs)

# --- constant slabs, grouped by width (3 input DMAs) ---
CONST_LAYOUT = {
    "cw": [("MbigP",   (2 * NVAR, BIGW)),     # [Minit_p | Minit_p @ trajM_big]
           ("MbigBeq", (8, BIGW)),            # b_eq rows of the same map (row 7 = 0)
           ("WoutBig", (HGRU, BIGW)),         # gru_wout @ MbigP
           ("coutbig", (1, BIGW))],           # gru_bout @ MbigP
    "cg": [("Wgru",    (GRU_IN + HGRU, 256)), # blockdiag(gru_wih, gru_whh), gh at cols 128:224
           ("bgru",    (1, 256))],
    "cn": [("G2",       (288, 2 * NVAR)),     # blockdiag x/y stacked gradient (A_acc|A_vel|A_obs|A_lane)
           ("MxyP",     (2 * NVAR, 2 * NVAR)),
           ("MxyBeq",   (8, 2 * NVAR)),       # rows 0:7 b_eq part, row 7 = y_fin term @ MxyP
           ("Pblk2Mxy", (32, 2 * NVAR)),      # obstacle-centre gradient folded through MxyP
           ("mwh",      (FIN, MH + HGRU)),    # [mw1 | hw]
           ("mbh",      (1, MH + HGRU)),
           ("mw2",      (MH, 4 * NVAR)),
           ("mb2",      (1, 4 * NVAR)),
           ("pw1",      (PD, PH)),
           ("pb1",      (1, PH)),
           ("pw2",      (PH, FP)),
           ("pb2",      (1, FP))],
}
SLAB_WIDTH = {"cw": BIGW, "cg": 256, "cn": 64}
CONST_INDEX = {}
SLAB_ROWS = {}
for _slab, _entries in CONST_LAYOUT.items():
    _r = 0
    for _name, (_nr, _nc) in _entries:
        CONST_INDEX[_name] = (_slab, _r, _nr, _nc)
        _r += _round8(_nr)                           # 8-aligned row blocks
    SLAB_ROWS[_slab] = _r

# --- per-batch data slab: obstacle blocks start on 128-lane boundaries ---
DATA_OFF = {"inp": (0, INP_DIM), "beq8": (8, 8), "yub": (16, 1), "ylb": (17, 1),
            "xobs": (128, NOC), "yobs": (256, NOC), "aobs": (384, NOC), "bobs": (512, NOC)}
DATA_COLS = 640


# ========================= fused Pallas kernel =========================

def fused_kernel(data_ref, pcd_ref, cw_ref, cg_ref, cn_ref, out_ref):
    f32 = jnp.float32
    refs = {"cw": cw_ref, "cg": cg_ref, "cn": cn_ref}

    def C(name):
        slab, r0, nr, nc = CONST_INDEX[name]
        return refs[slab][r0:r0 + nr, 0:nc]

    def D(name):
        c0, nc = DATA_OFF[name]
        return data_ref[:, c0:c0 + nc]

    def dot(a, b):
        return jnp.dot(a, b, preferred_element_type=f32)

    # ---------------- encoder prologue: point-net -> max-pool -> heads ----------------
    pcd = pcd_ref[...]                                          # (NP_PTS*B, PD), point-major rows
    pw1 = C("pw1")
    h1 = jnp.maximum(pcd[:, 0:1] * pw1[0:1, :]                  # K=2 layer as broadcast FMAs
                     + pcd[:, 1:2] * pw1[1:2, :] + C("pb1"), 0.0)
    h2 = dot(h1, C("pw2")) + C("pb2")                           # (NP_PTS*B, FP)
    m = h2                                                      # log2 halving max-pool over points
    n = NP_PTS * B
    while n > B:
        n //= 2
        m = jnp.maximum(m[0:n], m[n:2 * n])
    pooled = m                                                  # (B, FP)

    feat = jnp.concatenate([D("inp"), pooled], axis=1)          # (B, FIN)
    mh = dot(feat, C("mwh")) + C("mbh")                         # one matmul -> [mlp1 | gru-init]
    m1 = jnp.maximum(mh[:, 0:MH], 0.0)
    h = jnp.tanh(mh[:, MH:MH + HGRU])                           # GRU hidden state h_0
    nn_out = dot(m1, C("mw2")) + C("mb2")                       # (B, 4*NVAR)
    c_guess = nn_out[:, 0:2 * NVAR]
    lam = nn_out[:, 2 * NVAR:4 * NVAR]                          # [lam_x | lam_y]

    # ---------------- loop-invariant problem data / hoisted linear terms ----------------
    beq8 = D("beq8")                                            # [b_eq_x(4) | b_eq_y(3) | y_fin]
    y_ub = D("yub"); y_lb = D("ylb")
    xobs = D("xobs"); yobs = D("yobs"); a_obs = D("aobs"); b_obs = D("bobs")
    a_sq = a_obs * a_obs
    b_sq = b_obs * b_obs

    def blocksum(v):                    # prologue-only: sum over the NB circle blocks
        s = v[:, 0:NUM]
        for k in range(1, NB):
            s = s + v[:, k * NUM:(k + 1) * NUM]
        return s

    lin32 = jnp.concatenate([blocksum(xobs), blocksum(yobs)], axis=1)      # (B, 32)
    # loop-invariant part of compute_x: obstacle centres + y_fin + b_eq folded through KKT inverse
    mxy_hoist = dot(lin32, C("Pblk2Mxy")) + dot(beq8, C("MxyBeq"))         # (B, 16)
    hoist_big = dot(beq8, C("MbigBeq"))                                    # (B, BIGW)
    hoist_big_loop = hoist_big + C("coutbig")                              # + gru_bout @ MbigP

    # compute_x_init + trajectory sampling fused: (B,16)@(16,384)
    big = dot(c_guess, C("MbigP")) + hoist_big

    acc_primal = jnp.zeros((B, 1), f32)
    acc_fp = jnp.zeros((B, 1), f32)

    for _ in range(MAXITER):                                    # static unroll (serial chain)
        primal_prev = big[:, BC_PRIMAL:BC_PRIMAL + 2 * NVAR]
        lam_prev = lam
        xdot  = big[:, BC_XDOT:BC_XDOT + NUM]
        xddot = big[:, BC_XDDOT:BC_XDDOT + NUM]
        ydot  = big[:, BC_YDOT:BC_YDOT + NUM]
        yddot = big[:, BC_YDDOT:BC_YDDOT + NUM]
        y     = big[:, BC_Y:BC_Y + NUM]
        x_ext = big[:, BC_XEXT:BC_XEXT + NOC]                   # already replicated x NB
        y_ext = big[:, BC_YEXT:BC_YEXT + NOC]

        # ---- obstacle terms: cos/sin(atan2) eliminated algebraically via rsqrt ----
        wc = x_ext - xobs
        ws = y_ext - yobs
        wcb = wc * b_obs
        wsa = ws * a_obs
        inv_r = jax.lax.rsqrt(wcb * wcb + wsa * wsa + 1e-20)
        cos_o = wcb * inv_r
        sin_o = wsa * inv_r
        c1 = a_sq * cos_o * cos_o + b_sq * sin_o * sin_o        # rho_obs = 1 folded
        c2 = a_obs * wc * cos_o + b_obs * ws * sin_o
        d_obs = jnp.maximum(1.0, c2 * pl.reciprocal(c1, approx=True))
        tx = a_obs * (d_obs * cos_o)
        ty = b_obs * (d_obs * sin_o)
        res_xo = wc - tx
        res_yo = ws - ty
        obs_sq = jnp.sum(res_xo * res_xo + res_yo * res_yo, axis=1, keepdims=True)

        # ---- velocity terms: clipped heading without atan2/cos/sin ----
        inv_rv = jax.lax.rsqrt(xdot * xdot + ydot * ydot + 1e-20)
        c0 = xdot * inv_rv
        s0 = ydot * inv_rv
        unclipped = jnp.logical_and(xdot > 0.0, jnp.abs(ydot) <= xdot * TAN_C)
        sgn = jnp.where(ydot >= 0.0, 1.0, -1.0)
        cos_v = jnp.where(unclipped, c0, COS_C)
        sin_v = jnp.where(unclipped, s0, sgn * SIN_C)
        d_v = jnp.clip(xdot * cos_v + ydot * sin_v, V_MIN, V_MAX)   # c1_v = rho*(cos^2+sin^2)=1
        b_vx = d_v * cos_v
        b_vy = d_v * sin_v
        res_vx = xdot - b_vx
        res_vy = ydot - b_vy

        # ---- acceleration terms (atan2/cos/sin eliminated; matches atan2(.+1e-4, .+1e-4)) ----
        axe = xddot + 1e-4
        aye = yddot + 1e-4
        inv_ra = jax.lax.rsqrt(axe * axe + aye * aye + 1e-20)
        cos_a = axe * inv_ra
        sin_a = aye * inv_ra
        d_a = jnp.clip(xddot * cos_a + yddot * sin_a, 0.0, A_MAX)   # c1_a = 1
        b_ax = d_a * cos_a
        b_ay = d_a * sin_a
        res_ax = xddot - b_ax
        res_ay = yddot - b_ay

        # ---- lane terms (A_lane = [P; -P]); closed forms identical to ref in fp32 ----
        res_up = jnp.maximum(y - y_ub, 0.0)
        res_lo = jnp.maximum(y_lb - y, 0.0)
        b_up_aug = jnp.minimum(y, y_ub)                         # b_up - s_up
        b_lo_aug = -jnp.maximum(y, y_lb)                        # b_lo - s_lo

        # ---- ONE stacked (2B,288)@(288,16) matmul for lambda-update and lincost gradients ----
        u = jnp.concatenate([res_ax, res_vx, res_xo,
                             res_ay, res_vy, res_yo, res_up, res_lo], axis=1)
        bbv = jnp.concatenate([b_ax, b_vx, tx,
                               b_ay, b_vy, ty, b_up_aug, b_lo_aug], axis=1)
        gg = dot(jnp.concatenate([u, bbv], axis=0), C("G2"))    # (2B, 16)
        lam = lam - gg[0:B]
        neg_lc = lam + gg[B:2 * B]

        res_norm = (
            jnp.sqrt(jnp.sum(res_ax * res_ax + res_ay * res_ay, axis=1, keepdims=True))
            + jnp.sqrt(jnp.sum(res_vx * res_vx + res_vy * res_vy, axis=1, keepdims=True))
            + jnp.sqrt(obs_sq)
            + jnp.sqrt(jnp.sum(res_up * res_up + res_lo * res_lo, axis=1, keepdims=True)))

        # ---- compute_x: fixed KKT inverse; b_eq / obstacle-centre / y_fin terms hoisted ----
        primal_mid = dot(neg_lc, C("MxyP")) + mxy_hoist

        # ---- GRU context: single block-diagonal matmul, tile-aligned gx/gh ----
        r = jnp.concatenate([primal_prev, lam_prev, primal_mid, lam,
                             primal_mid - primal_prev, lam - lam_prev, h], axis=1)   # (B, 128)
        gall = dot(r, C("Wgru")) + C("bgru")                    # (B, 256): [gx(96)|pad|gh(96)|pad]
        gx = gall[:, 0:3 * HGRU]
        gh = gall[:, 128:128 + 3 * HGRU]
        srz = gx + gh
        rg = jax.nn.sigmoid(srz[:, 0:HGRU])
        zg = jax.nn.sigmoid(srz[:, HGRU:2 * HGRU])
        ng = jnp.tanh(gx[:, 2 * HGRU:3 * HGRU] + rg * gh[:, 2 * HGRU:3 * HGRU])
        h = (1.0 - zg) * ng + zg * h

        # ---- learned correction + equality projection + next-iteration trajectory ----
        # proj(primal_mid + h@wout + bout) folded: wout/bout composed with MbigP as constants.
        big = dot(primal_mid, C("MbigP")) + dot(h, C("WoutBig")) + hoist_big_loop

        acc_primal = acc_primal + res_norm
        dp = big[:, BC_PRIMAL:BC_PRIMAL + 2 * NVAR] - primal_prev
        dl = lam - lam_prev
        acc_fp = acc_fp + (
            jnp.sqrt(jnp.sum(dp * dp, axis=1, keepdims=True))
            + jnp.sqrt(jnp.sum(dl[:, 0:NVAR] * dl[:, 0:NVAR], axis=1, keepdims=True))
            + jnp.sqrt(jnp.sum(dl[:, NVAR:2 * NVAR] * dl[:, NVAR:2 * NVAR],
                               axis=1, keepdims=True)))

    # merged output slab: [primal(16) | mean res_primal(1) | mean res_fp(1)]
    out_ref[...] = jnp.concatenate(
        [big[:, BC_PRIMAL:BC_PRIMAL + 2 * NVAR],
         acc_primal * (1.0 / MAXITER), acc_fp * (1.0 / MAXITER)], axis=1)


# ========================= constant / weight construction (host side) =========================

def build_weights(key):
    ks = jax.random.split(key, 16)
    w = lambda k, shp: 0.1 * jax.random.normal(k, shp, dtype=jnp.float32)
    return dict(
        pw1=w(ks[0], (PD, PH)), pb1=w(ks[1], (1, PH)),
        pw2=w(ks[2], (PH, FP)), pb2=w(ks[3], (1, FP)),
        mw1=w(ks[4], (FIN, MH)), mb1=w(ks[5], (1, MH)),
        mw2=w(ks[6], (MH, 4 * NVAR)), mb2=w(ks[7], (1, 4 * NVAR)),
        hw=w(ks[8], (FIN, HGRU)), hb=w(ks[9], (1, HGRU)),
        gru_wih=w(ks[10], (GRU_IN, 3 * HGRU)), gru_whh=w(ks[11], (HGRU, 3 * HGRU)),
        gru_bih=w(ks[12], (1, 3 * HGRU)), gru_bhh=w(ks[13], (1, 3 * HGRU)),
        gru_wout=w(ks[14], (HGRU, 2 * NVAR)), gru_bout=w(ks[15], (1, 2 * NVAR)),
    )


def build_constants(weights):
    g = lambda k: np.asarray(weights[k], np.float64)

    tot = np.linspace(0.0, T_FIN, NUM)
    s = tot / T_FIN
    P = np.stack([s ** j for j in range(NVAR)], axis=1)
    Pdot = np.stack([(j * s ** (j - 1) / T_FIN) if j >= 1 else np.zeros(NUM)
                     for j in range(NVAR)], axis=1)
    Pddot = np.stack([(j * (j - 1) * s ** (j - 2) / T_FIN ** 2) if j >= 2 else np.zeros(NUM)
                      for j in range(NVAR)], axis=1)

    A_eq_x = np.stack([P[0], Pdot[0], Pddot[0], P[-1]], axis=0)       # (4, 8)
    A_eq_y = np.stack([P[0], Pdot[0], Pddot[0]], axis=0)              # (3, 8)
    A_obs = np.tile(P, (NB, 1))                                       # (96, 8)
    A_lane = np.vstack([P, -P])                                       # (32, 8)

    cost_x = (WEIGHT_SMOOTH * np.eye(NVAR) + A_obs.T @ A_obs
              + Pddot.T @ Pddot + Pdot.T @ Pdot)
    cost_y = cost_x + A_lane.T @ A_lane + WEIGHT_Y_DES * (P.T @ P)

    # TODO(synk): torch.linalg.solve replaced by precomputed fixed-matrix inverses (float64).
    def kktinv_top(cost, Aeq):
        n, m = cost.shape[0], Aeq.shape[0]
        M = np.zeros((n + m, n + m))
        M[:n, :n] = cost
        M[:n, n:] = Aeq.T
        M[n:, :n] = Aeq
        return np.linalg.inv(M)[:n, :]

    Mx_T = kktinv_top(cost_x, A_eq_x).T                               # (12, 8)
    My_T = kktinv_top(cost_y, A_eq_y).T                               # (11, 8)
    A_eq = np.zeros((7, 2 * NVAR))
    A_eq[0:4, 0:NVAR] = A_eq_x
    A_eq[4:7, NVAR:2 * NVAR] = A_eq_y
    Minit_T = kktinv_top(np.eye(2 * NVAR), A_eq).T                    # (23, 16)

    MxyP = np.zeros((16, 16))
    MxyP[0:8, 0:8] = Mx_T[0:8]
    MxyP[8:16, 8:16] = My_T[0:8]
    MxyBeq7 = np.zeros((7, 16))
    MxyBeq7[0:4, 0:8] = Mx_T[8:12]
    MxyBeq7[4:7, 8:16] = My_T[8:11]

    wyfin = np.zeros((1, 16))
    wyfin[0, 8:16] = WEIGHT_Y_DES * np.sum(P, axis=0)                 # P^T @ (y_fin * ones)
    MxyBeq = np.zeros((8, 16))
    MxyBeq[0:7] = MxyBeq7
    MxyBeq[7:8] = wyfin @ MxyP

    Pblk2 = np.zeros((32, 16))
    Pblk2[0:16, 0:8] = P
    Pblk2[16:32, 8:16] = P
    Pblk2Mxy = Pblk2 @ MxyP

    # projection + trajectory map: primal -> [primal|xdot|xddot|ydot|yddot|y|x_ext|y_ext]
    BIGMAP = np.zeros((16, BIGW))
    BIGMAP[:, 0:16] = np.eye(16)
    BIGMAP[0:8, BC_XDOT:BC_XDOT + NUM] = Pdot.T
    BIGMAP[0:8, BC_XDDOT:BC_XDDOT + NUM] = Pddot.T
    BIGMAP[8:16, BC_YDOT:BC_YDOT + NUM] = Pdot.T
    BIGMAP[8:16, BC_YDDOT:BC_YDDOT + NUM] = Pddot.T
    BIGMAP[8:16, BC_Y:BC_Y + NUM] = P.T
    for k in range(NB):
        BIGMAP[0:8, BC_XEXT + k * NUM:BC_XEXT + (k + 1) * NUM] = P.T
        BIGMAP[8:16, BC_YEXT + k * NUM:BC_YEXT + (k + 1) * NUM] = P.T

    Minit_p = Minit_T[0:16]
    Minit_beq = Minit_T[16:23]
    MbigP = Minit_p @ BIGMAP                                          # (16, 384)
    MbigBeq = np.zeros((8, BIGW))
    MbigBeq[0:7] = Minit_beq @ BIGMAP

    # expanded stacked gradient matrix (rho_* = 1 folded)
    G2 = np.zeros((288, 16))
    G2[0:16, 0:8] = Pddot
    G2[16:32, 0:8] = Pdot
    G2[32:128, 0:8] = A_obs
    G2[128:144, 8:16] = Pddot
    G2[144:160, 8:16] = Pdot
    G2[160:256, 8:16] = A_obs
    G2[256:272, 8:16] = P
    G2[272:288, 8:16] = -P

    # GRU block-diagonal input matmul; gh block offset by 128 lanes for aligned gx+gh
    Wgru = np.zeros((GRU_IN + HGRU, 256))
    Wgru[0:GRU_IN, 0:3 * HGRU] = g("gru_wih")
    Wgru[GRU_IN:GRU_IN + HGRU, 128:128 + 3 * HGRU] = g("gru_whh")
    bgru = np.zeros((1, 256))
    bgru[0:1, 0:3 * HGRU] = g("gru_bih")
    bgru[0:1, 128:128 + 3 * HGRU] = g("gru_bhh")

    WoutBig = g("gru_wout") @ MbigP                                   # (32, 384)
    coutbig = g("gru_bout") @ MbigP                                   # (1, 384)

    mwh = np.concatenate([g("mw1"), g("hw")], axis=1)                 # (24, 64)
    mbh = np.concatenate([g("mb1"), g("hb")], axis=1)                 # (1, 64)

    return dict(MbigP=MbigP, MbigBeq=MbigBeq, WoutBig=WoutBig, coutbig=coutbig,
                Wgru=Wgru, bgru=bgru, G2=G2, MxyP=MxyP, MxyBeq=MxyBeq, Pblk2Mxy=Pblk2Mxy,
                mwh=mwh, mbh=mbh, mw2=g("mw2"), mb2=g("mb2"),
                pw1=g("pw1"), pb1=g("pb1"), pw2=g("pw2"), pb2=g("pb2"))


def pack_constants(vals):
    slabs = {}
    for slab, entries in CONST_LAYOUT.items():
        buf = np.zeros((SLAB_ROWS[slab], SLAB_WIDTH[slab]), np.float32)
        for name, (nr, nc) in entries:
            _, r0, _, _ = CONST_INDEX[name]
            a = np.asarray(vals[name], np.float32)
            assert a.shape == (nr, nc), (name, a.shape, (nr, nc))
            buf[r0:r0 + nr, 0:nc] = a
        slabs[slab] = jnp.asarray(buf)
    return slabs


# ========================= forward (thin packing wrapper + single kernel) =========================

def forward(const_slabs, inp, init_state_ego, param_des, pcd_data, closest_obs,
            psi_obs, dim_x_obs, dim_y_obs, y_ub, y_lb, goal_des):
    # param_des / P_diag / Pddot_diag / pcd_mean / pcd_std are unused in the reference forward.
    del param_des
    inp_norm = (inp - INP_MEAN) / INP_STD
    # point cloud: scale + point-major rows (p*B + b) so the in-kernel halving max-pool
    # reduces over sublane-aligned slices.
    pcd = ((pcd_data - MIN_PCD) / (MAX_PCD - MIN_PCD)).transpose(1, 0, 2).reshape(NP_PTS * B, PD)

    # compute_obs_trajectories_batch / compute_obs_ellipse_batch (static obstacles)
    x_o = closest_obs[:, :NUM_OBS]
    y_o = closest_obs[:, NUM_OBS:2 * NUM_OBS]
    r2 = (dim_x_obs - dim_y_obs) * 0.5
    dist_centre = jnp.stack([jnp.zeros_like(r2), r2, -r2], axis=2)              # (B, obs, 3)
    x_circ = x_o[:, :, None] + dist_centre * jnp.cos(psi_obs)[:, :, None]
    y_circ = y_o[:, :, None] + dist_centre * jnp.sin(psi_obs)[:, :, None]
    xobs = jnp.broadcast_to(x_circ[..., None], (B, NUM_OBS, NUM_CIRC, NUM)).reshape(B, NOC)
    yobs = jnp.broadcast_to(y_circ[..., None], (B, NUM_OBS, NUM_CIRC, NUM)).reshape(B, NOC)
    radius = dim_y_obs * 0.5
    a1 = A_EGO + radius + MARGIN_LONG
    b1 = B_EGO + radius + MARGIN_LAT
    aobs = jnp.broadcast_to(a1[:, :, None, None], (B, NUM_OBS, NUM_CIRC, NUM)).reshape(B, NOC)
    bobs = jnp.broadcast_to(b1[:, :, None, None], (B, NUM_OBS, NUM_CIRC, NUM)).reshape(B, NOC)

    # compute_boundary_layer_optim: b_eq7 = [x0, vx0, ax0, x_fin, y0, vy0, ay0]
    b_eq7 = jnp.stack([init_state_ego[:, 0], init_state_ego[:, 2], init_state_ego[:, 4],
                       goal_des[:, 0], init_state_ego[:, 1], init_state_ego[:, 3],
                       init_state_ego[:, 5]], axis=1)

    # packed per-batch data slab; obstacle blocks padded to 128-lane boundaries
    z = lambda n: jnp.zeros((B, n), jnp.float32)
    data = jnp.concatenate(
        [inp_norm, b_eq7, goal_des[:, 1:2], y_ub[:, None], y_lb[:, None], z(110),
         xobs, z(32), yobs, z(32), aobs, z(32), bobs, z(32)], axis=1).astype(jnp.float32)

    out = pl.pallas_call(
        fused_kernel,
        out_shape=jax.ShapeDtypeStruct((B, 2 * NVAR + 2), jnp.float32),
        in_specs=[VM, VM, VM, VM, VM],
        out_specs=VM,
    )(data, pcd.astype(jnp.float32), const_slabs["cw"], const_slabs["cg"], const_slabs["cn"])

    return out[:, 0:2 * NVAR], out[:, 2 * NVAR], out[:, 2 * NVAR + 1]


# ========================= main =========================

if __name__ == "__main__":
    key = jax.random.PRNGKey(0)
    keys = jax.random.split(key, 20)
    weights = build_weights(keys[0])
    const_slabs = pack_constants(build_constants(weights))

    inp = jax.random.normal(keys[1], (B, INP_DIM), jnp.float32)
    init_state_ego = jnp.concatenate([
        jax.random.normal(keys[2], (B, 2)),                                   # x, y
        jax.random.uniform(keys[3], (B, 1), minval=3.0, maxval=8.0),          # vx
        0.2 * jax.random.normal(keys[4], (B, 1)),                             # vy
        0.2 * jax.random.normal(keys[5], (B, 2)),                             # ax, ay
    ], axis=1).astype(jnp.float32)
    param_des = jax.random.normal(keys[6], (B, 2), jnp.float32)
    pcd_data = jax.random.uniform(keys[7], (B, NP_PTS, PD),
                                  minval=-10.0, maxval=10.0).astype(jnp.float32)
    closest_obs = jnp.concatenate([
        jax.random.uniform(keys[8], (B, NUM_OBS), minval=5.0, maxval=30.0),   # x of obstacles
        jax.random.uniform(keys[9], (B, NUM_OBS), minval=-3.0, maxval=3.0),   # y of obstacles
    ], axis=1).astype(jnp.float32)
    psi_obs = (0.2 * jax.random.normal(keys[10], (B, NUM_OBS))).astype(jnp.float32)
    dim_x_obs = jax.random.uniform(keys[11], (B, NUM_OBS), minval=4.0, maxval=5.0).astype(jnp.float32)
    dim_y_obs = jax.random.uniform(keys[12], (B, NUM_OBS), minval=1.5, maxval=2.5).astype(jnp.float32)
    y_ub = jnp.full((B,), 3.5, jnp.float32)
    y_lb = jnp.full((B,), -3.5, jnp.float32)
    goal_des = jnp.concatenate([
        jax.random.uniform(keys[13], (B, 1), minval=40.0, maxval=60.0),
        jax.random.normal(keys[14], (B, 1)),
    ], axis=1).astype(jnp.float32)

    fwd = jax.jit(forward)
    primal_sol, acc_res_primal, acc_res_fp = fwd(
        const_slabs, inp, init_state_ego, param_des, pcd_data, closest_obs,
        psi_obs, dim_x_obs, dim_y_obs, y_ub, y_lb, goal_des)
    jax.block_until_ready((primal_sol, acc_res_primal, acc_res_fp))
    assert primal_sol.shape == (B, 2 * NVAR)
    assert acc_res_primal.shape == (B,) and acc_res_fp.shape == (B,)
    assert bool(jnp.all(jnp.isfinite(primal_sol)))
    assert bool(jnp.all(jnp.isfinite(acc_res_primal))) and bool(jnp.all(jnp.isfinite(acc_res_fp)))
    print("KERNEL_OK")
</pallas_src>

<mosaic_0001>
module attributes {stable_mosaic.version = 11 : i64} {
  func.func @fused_kernel(%arg0: memref<8x640xf32, #tpu.memory_space<vmem>>, %arg1: memref<256x2xf32, #tpu.memory_space<vmem>>, %arg2: memref<64x384xf32, #tpu.memory_space<vmem>>, %arg3: memref<136x256xf32, #tpu.memory_space<vmem>>, %arg4: memref<472x64xf32, #tpu.memory_space<vmem>>, %arg5: memref<8x18xf32, #tpu.memory_space<vmem>>) attributes {dimension_semantics = [], scalar_prefetch = 0 : i64, scratch_operands = 0 : i64, tpu.core_type = #tpu.core_type<tc>} {
    %c0 = arith.constant 0 : index
    %c0_0 = arith.constant 0 : index
    %0 = vector.load %arg1[%c0, %c0_0] : memref<256x2xf32, #tpu.memory_space<vmem>>, vector<256x2xf32>
    %c416 = arith.constant 416 : index
    %c0_1 = arith.constant 0 : index
    %1 = vector.load %arg4[%c416, %c0_1] : memref<472x64xf32, #tpu.memory_space<vmem>>, vector<2x32xf32>
    %2 = vector.extract_strided_slice %0 {offsets = [0, 0], sizes = [256, 1], strides = [1, 1]} : vector<256x2xf32> to vector<256x1xf32>
    %3 = vector.extract_strided_slice %1 {offsets = [0, 0], sizes = [1, 32], strides = [1, 1]} : vector<2x32xf32> to vector<1x32xf32>
    %4 = vector.broadcast %2 : vector<256x1xf32> to vector<256x32xf32>
    %5 = vector.broadcast %3 : vector<1x32xf32> to vector<256x32xf32>
    %6 = arith.mulf %4, %5 : vector<256x32xf32>
    %7 = vector.extract_strided_slice %0 {offsets = [0, 1], sizes = [256, 1], strides = [1, 1]} : vector<256x2xf32> to vector<256x1xf32>
    %8 = vector.extract_strided_slice %1 {offsets = [1, 0], sizes = [1, 32], strides = [1, 1]} : vector<2x32xf32> to vector<1x32xf32>
    %9 = vector.broadcast %7 : vector<256x1xf32> to vector<256x32xf32>
    %10 = vector.broadcast %8 : vector<1x32xf32> to vector<256x32xf32>
    %11 = arith.mulf %9, %10 : vector<256x32xf32>
    %12 = arith.addf %6, %11 : vector<256x32xf32>
    %c424 = arith.constant 424 : index
    %c0_2 = arith.constant 0 : index
    %13 = vector.load %arg4[%c424, %c0_2] : memref<472x64xf32, #tpu.memory_space<vmem>>, vector<1x32xf32>
    %14 = vector.broadcast %13 : vector<1x32xf32> to vector<256x32xf32>
    %15 = arith.addf %12, %14 : vector<256x32xf32>
    %cst = arith.constant 0.000000e+00 : f32
    %16 = vector.broadcast %cst : f32 to vector<256x32xf32>
    %17 = arith.maximumf %15, %16 : vector<256x32xf32>
    %c432 = arith.constant 432 : index
    %c0_3 = arith.constant 0 : index
    %18 = vector.load %arg4[%c432, %c0_3] : memref<472x64xf32, #tpu.memory_space<vmem>>, vector<32x16xf32>
    %cst_4 = arith.constant dense<0.000000e+00> : vector<256x16xf32>
    %19 = tpu.matmul %17, %18, %cst_4 {dimension_numbers = #tpu.dot_dimension_numbers<[1], [0], [0], [1], [0, 0, 1, 1], [], []>} : vector<256x32xf32>, vector<32x16xf32>, vector<256x16xf32> -> vector<256x16xf32>
    %c464 = arith.constant 464 : index
    %c0_5 = arith.constant 0 : index
    %20 = vector.load %arg4[%c464, %c0_5] : memref<472x64xf32, #tpu.memory_space<vmem>>, vector<1x16xf32>
    %21 = vector.broadcast %20 : vector<1x16xf32> to vector<256x16xf32>
    %22 = arith.addf %19, %21 : vector<256x16xf32>
    %23 = vector.extract_strided_slice %22 {offsets = [0, 0], sizes = [128, 16], strides = [1, 1]} : vector<256x16xf32> to vector<128x16xf32>
    %24 = vector.extract_strided_slice %22 {offsets = [128, 0], sizes = [128, 16], strides = [1, 1]} : vector<256x16xf32> to vector<128x16xf32>
    %25 = arith.maximumf %23, %24 : vector<128x16xf32>
    %26 = vector.extract_strided_slice %25 {offsets = [0, 0], sizes = [64, 16], strides = [1, 1]} : vector<128x16xf32> to vector<64x16xf32>
    %27 = vector.extract_strided_slice %25 {offsets = [64, 0], sizes = [64, 16], strides = [1, 1]} : vector<128x16xf32> to vector<64x16xf32>
    %28 = arith.maximumf %26, %27 : vector<64x16xf32>
    %29 = vector.extract_strided_slice %28 {offsets = [0, 0], sizes = [32, 16], strides = [1, 1]} : vector<64x16xf32> to vector<32x16xf32>
    %30 = vector.extract_strided_slice %28 {offsets = [32, 0], sizes = [32, 16], strides = [1, 1]} : vector<64x16xf32> to vector<32x16xf32>
    %31 = arith.maximumf %29, %30 : vector<32x16xf32>
    %32 = vector.extract_strided_slice %31 {offsets = [0, 0], sizes = [16, 16], strides = [1, 1]} : vector<32x16xf32> to vector<16x16xf32>
    %33 = vector.extract_strided_slice %31 {offsets = [16, 0], sizes = [16, 16], strides = [1, 1]} : vector<32x16xf32> to vector<16x16xf32>
    %34 = arith.maximumf %32, %33 : vector<16x16xf32>
    %35 = vector.extract_strided_slice %34 {offsets = [0, 0], sizes = [8, 16], strides = [1, 1]} : vector<16x16xf32> to vector<8x16xf32>
    %36 = vector.extract_strided_slice %34 {offsets = [8, 0], sizes = [8, 16], strides = [1, 1]} : vector<16x16xf32> to vector<8x16xf32>
    %37 = arith.maximumf %35, %36 : vector<8x16xf32>
    %c0_6 = arith.constant 0 : index
    %c0_7 = arith.constant 0 : index
    %38 = vector.load %arg0[%c0_6, %c0_7] : memref<8x640xf32, #tpu.memory_space<vmem>>, vector<8x8xf32>
    %39 = tpu.concatenate %38, %37 in 1 : vector<8x8xf32>, vector<8x16xf32> -> vector<8x24xf32>
    %c344 = arith.constant 344 : index
    %c0_8 = arith.constant 0 : index
    %40 = vector.load %arg4[%c344, %c0_8] : memref<472x64xf32, #tpu.memory_space<vmem>>, vector<24x64xf32>
    %cst_9 = arith.constant dense<0.000000e+00> : vector<8x64xf32>
    %41 = tpu.matmul %39, %40, %cst_9 {dimension_numbers = #tpu.dot_dimension_numbers<[1], [0], [0], [1], [0, 0, 1, 1], [], []>} : vector<8x24xf32>, vector<24x64xf32>, vector<8x64xf32> -> vector<8x64xf32>
    %c368 = arith.constant 368 : index
    %c0_10 = arith.constant 0 : index
    %42 = vector.load %arg4[%c368, %c0_10] : memref<472x64xf32, #tpu.memory_space<vmem>>, vector<1x64xf32>
    %43 = vector.broadcast %42 : vector<1x64xf32> to vector<8x64xf32>
    %44 = arith.addf %41, %43 : vector<8x64xf32>
    %45 = vector.extract_strided_slice %44 {offsets = [0, 0], sizes = [8, 32], strides = [1, 1]} : vector<8x64xf32> to vector<8x32xf32>
    %cst_11 = arith.constant 0.000000e+00 : f32
    %46 = vector.broadcast %cst_11 : f32 to vector<8x32xf32>
    %47 = arith.maximumf %45, %46 : vector<8x32xf32>
    %48 = vector.extract_strided_slice %44 {offsets = [0, 32], sizes = [8, 32], strides = [1, 1]} : vector<8x64xf32> to vector<8x32xf32>
    %49 = math.tanh %48 : vector<8x32xf32>
    %c376 = arith.constant 376 : index
    %c0_12 = arith.constant 0 : index
    %50 = vector.load %arg4[%c376, %c0_12] : memref<472x64xf32, #tpu.memory_space<vmem>>, vector<32x32xf32>
    %cst_13 = arith.constant dense<0.000000e+00> : vector<8x32xf32>
    %51 = tpu.matmul %47, %50, %cst_13 {dimension_numbers = #tpu.dot_dimension_numbers<[1], [0], [0], [1], [0, 0, 1, 1], [], []>} : vector<8x32xf32>, vector<32x32xf32>, vector<8x32xf32> -> vector<8x32xf32>
    %c408 = arith.constant 408 : index
    %c0_14 = arith.constant 0 : index
    %52 = vector.load %arg4[%c408, %c0_14] : memref<472x64xf32, #tpu.memory_space<vmem>>, vector<1x32xf32>
    %53 = vector.broadcast %52 : vector<1x32xf32> to vector<8x32xf32>
    %54 = arith.addf %51, %53 : vector<8x32xf32>
    %55 = vector.extract_strided_slice %54 {offsets = [0, 0], sizes = [8, 16], strides = [1, 1]} : vector<8x32xf32> to vector<8x16xf32>
    %56 = vector.extract_strided_slice %54 {offsets = [0, 16], sizes = [8, 16], strides = [1, 1]} : vector<8x32xf32> to vector<8x16xf32>
    %c0_15 = arith.constant 0 : index
    %c8 = arith.constant 8 : index
    %57 = vector.load %arg0[%c0_15, %c8] : memref<8x640xf32, #tpu.memory_space<vmem>>, vector<8x8xf32>
    %c0_16 = arith.constant 0 : index
    %c16 = arith.constant 16 : index
    %58 = vector.load %arg0[%c0_16, %c16] : memref<8x640xf32, #tpu.memory_space<vmem>>, vector<8x1xf32>
    %c0_17 = arith.constant 0 : index
    %c17 = arith.constant 17 : index
    %59 = vector.load %arg0[%c0_17, %c17] : memref<8x640xf32, #tpu.memory_space<vmem>>, vector<8x1xf32>
    %c0_18 = arith.constant 0 : index
    %c128 = arith.constant 128 : index
    %60 = vector.load %arg0[%c0_18, %c128] : memref<8x640xf32, #tpu.memory_space<vmem>>, vector<8x96xf32>
    %c0_19 = arith.constant 0 : index
    %c256 = arith.constant 256 : index
    %61 = vector.load %arg0[%c0_19, %c256] : memref<8x640xf32, #tpu.memory_space<vmem>>, vector<8x96xf32>
    %c0_20 = arith.constant 0 : index
    %c384 = arith.constant 384 : index
    %62 = vector.load %arg0[%c0_20, %c384] : memref<8x640xf32, #tpu.memory_space<vmem>>, vector<8x96xf32>
    %c0_21 = arith.constant 0 : index
    %c512 = arith.constant 512 : index
    %63 = vector.load %arg0[%c0_21, %c512] : memref<8x640xf32, #tpu.memory_space<vmem>>, vector<8x96xf32>
    %64 = arith.mulf %62, %62 : vector<8x96xf32>
    %65 = arith.mulf %63, %63 : vector<8x96xf32>
    %66 = vector.extract_strided_slice %60 {offsets = [0, 0], sizes = [8, 16], strides = [1, 1]} : vector<8x96xf32> to vector<8x16xf32>
    %67 = vector.extract_strided_slice %60 {offsets = [0, 16], sizes = [8, 16], strides = [1, 1]} : vector<8x96xf32> to vector<8x16xf32>
    %68 = arith.addf %66, %67 : vector<8x16xf32>
    %69 = vector.extract_strided_slice %60 {offsets = [0, 32], sizes = [8, 16], strides = [1, 1]} : vector<8x96xf32> to vector<8x16xf32>
    %70 = arith.addf %68, %69 : vector<8x16xf32>
    %71 = vector.extract_strided_slice %60 {offsets = [0, 48], sizes = [8, 16], strides = [1, 1]} : vector<8x96xf32> to vector<8x16xf32>
    %72 = arith.addf %70, %71 : vector<8x16xf32>
    %73 = vector.extract_strided_slice %60 {offsets = [0, 64], sizes = [8, 16], strides = [1, 1]} : vector<8x96xf32> to vector<8x16xf32>
    %74 = arith.addf %72, %73 : vector<8x16xf32>
    %75 = vector.extract_strided_slice %60 {offsets = [0, 80], sizes = [8, 16], strides = [1, 1]} : vector<8x96xf32> to vector<8x16xf32>
    %76 = arith.addf %74, %75 : vector<8x16xf32>
    %77 = vector.extract_strided_slice %61 {offsets = [0, 0], sizes = [8, 16], strides = [1, 1]} : vector<8x96xf32> to vector<8x16xf32>
    %78 = vector.extract_strided_slice %61 {offsets = [0, 16], sizes = [8, 16], strides = [1, 1]} : vector<8x96xf32> to vector<8x16xf32>
    %79 = arith.addf %77, %78 : vector<8x16xf32>
    %80 = vector.extract_strided_slice %61 {offsets = [0, 32], sizes = [8, 16], strides = [1, 1]} : vector<8x96xf32> to vector<8x16xf32>
    %81 = arith.addf %79, %80 : vector<8x16xf32>
    %82 = vector.extract_strided_slice %61 {offsets = [0, 48], sizes = [8, 16], strides = [1, 1]} : vector<8x96xf32> to vector<8x16xf32>
    %83 = arith.addf %81, %82 : vector<8x16xf32>
    %84 = vector.extract_strided_slice %61 {offsets = [0, 64], sizes = [8, 16], strides = [1, 1]} : vector<8x96xf32> to vector<8x16xf32>
    %85 = arith.addf %83, %84 : vector<8x16xf32>
    %86 = vector.extract_strided_slice %61 {offsets = [0, 80], sizes = [8, 16], strides = [1, 1]} : vector<8x96xf32> to vector<8x16xf32>
    %87 = arith.addf %85, %86 : vector<8x16xf32>
    %88 = tpu.concatenate %76, %87 in 1 : vector<8x16xf32>, vector<8x16xf32> -> vector<8x32xf32>
    %c312 = arith.constant 312 : index
    %c0_22 = arith.constant 0 : index
    %89 = vector.load %arg4[%c312, %c0_22] : memref<472x64xf32, #tpu.memory_space<vmem>>, vector<32x16xf32>
    %cst_23 = arith.constant dense<0.000000e+00> : vector<8x16xf32>
    %90 = tpu.matmul %88, %89, %cst_23 {dimension_numbers = #tpu.dot_dimension_numbers<[1], [0], [0], [1], [0, 0, 1, 1], [], []>} : vector<8x32xf32>, vector<32x16xf32>, vector<8x16xf32> -> vector<8x16xf32>
    %c304 = arith.constant 304 : index
    %c0_24 = arith.constant 0 : index
    %91 = vector.load %arg4[%c304, %c0_24] : memref<472x64xf32, #tpu.memory_space<vmem>>, vector<8x16xf32>
    %cst_25 = arith.constant dense<0.000000e+00> : vector<8x16xf32>
    %92 = tpu.matmul %57, %91, %cst_25 {dimension_numbers = #tpu.dot_dimension_numbers<[1], [0], [0], [1], [0, 0, 1, 1], [], []>} : vector<8x8xf32>, vector<8x16xf32>, vector<8x16xf32> -> vector<8x16xf32>
    %93 = arith.addf %90, %92 : vector<8x16xf32>
    %c16_26 = arith.constant 16 : index
    %c0_27 = arith.constant 0 : index
    %94 = vector.load %arg2[%c16_26, %c0_27] : memref<64x384xf32, #tpu.memory_space<vmem>>, vector<8x384xf32>
    %cst_28 = arith.constant dense<0.000000e+00> : vector<8x384xf32>
    %95 = tpu.matmul %57, %94, %cst_28 {dimension_numbers = #tpu.dot_dimension_numbers<[1], [0], [0], [1], [0, 0, 1, 1], [], []>} : vector<8x8xf32>, vector<8x384xf32>, vector<8x384xf32> -> vector<8x384xf32>
    %c56 = arith.constant 56 : index
    %c0_29 = arith.constant 0 : index
    %96 = vector.load %arg2[%c56, %c0_29] : memref<64x384xf32, #tpu.memory_space<vmem>>, vector<1x384xf32>
    %97 = vector.broadcast %96 : vector<1x384xf32> to vector<8x384xf32>
    %98 = arith.addf %95, %97 : vector<8x384xf32>
    %c0_30 = arith.constant 0 : index
    %c0_31 = arith.constant 0 : index
    %99 = vector.load %arg2[%c0_30, %c0_31] : memref<64x384xf32, #tpu.memory_space<vmem>>, vector<16x384xf32>
    %cst_32 = arith.constant dense<0.000000e+00> : vector<8x384xf32>
    %100 = tpu.matmul %55, %99, %cst_32 {dimension_numbers = #tpu.dot_dimension_numbers<[1], [0], [0], [1], [0, 0, 1, 1], [], []>} : vector<8x16xf32>, vector<16x384xf32>, vector<8x384xf32> -> vector<8x384xf32>
    %101 = arith.addf %100, %95 : vector<8x384xf32>
    %cst_33 = arith.constant 0.000000e+00 : f32
    %102 = vector.broadcast %cst_33 : f32 to vector<8x1xf32>
    %cst_34 = arith.constant 0.000000e+00 : f32
    %103 = vector.broadcast %cst_34 : f32 to vector<8x1xf32>
    %104 = vector.extract_strided_slice %101 {offsets = [0, 0], sizes = [8, 16], strides = [1, 1]} : vector<8x384xf32> to vector<8x16xf32>
    %105 = vector.extract_strided_slice %101 {offsets = [0, 16], sizes = [8, 16], strides = [1, 1]} : vector<8x384xf32> to vector<8x16xf32>
    %106 = vector.extract_strided_slice %101 {offsets = [0, 32], sizes = [8, 16], strides = [1, 1]} : vector<8x384xf32> to vector<8x16xf32>
    %107 = vector.extract_strided_slice %101 {offsets = [0, 48], sizes = [8, 16], strides = [1, 1]} : vector<8x384xf32> to vector<8x16xf32>
    %108 = vector.extract_strided_slice %101 {offsets = [0, 64], sizes = [8, 16], strides = [1, 1]} : vector<8x384xf32> to vector<8x16xf32>
    %109 = vector.extract_strided_slice %101 {offsets = [0, 80], sizes = [8, 16], strides = [1, 1]} : vector<8x384xf32> to vector<8x16xf32>
    %110 = vector.extract_strided_slice %101 {offsets = [0, 128], sizes = [8, 96], strides = [1, 1]} : vector<8x384xf32> to vector<8x96xf32>
    %111 = vector.extract_strided_slice %101 {offsets = [0, 256], sizes = [8, 96], strides = [1, 1]} : vector<8x384xf32> to vector<8x96xf32>
    %112 = arith.subf %110, %60 : vector<8x96xf32>
    %113 = arith.subf %111, %61 : vector<8x96xf32>
    %114 = arith.mulf %112, %63 : vector<8x96xf32>
    %115 = arith.mulf %113, %62 : vector<8x96xf32>
    %116 = arith.mulf %114, %114 : vector<8x96xf32>
    %117 = arith.mulf %115, %115 : vector<8x96xf32>
    %118 = arith.addf %116, %117 : vector<8x96xf32>
    %cst_35 = arith.constant 9.99999968E-21 : f32
    %119 = vector.broadcast %cst_35 : f32 to vector<8x96xf32>
    %120 = arith.addf %118, %119 : vector<8x96xf32>
    %121 = math.rsqrt %120 : vector<8x96xf32>
    %122 = arith.mulf %114, %121 : vector<8x96xf32>
    %123 = arith.mulf %115, %121 : vector<8x96xf32>
    %124 = arith.mulf %64, %122 : vector<8x96xf32>
    %125 = arith.mulf %124, %122 : vector<8x96xf32>
    %126 = arith.mulf %65, %123 : vector<8x96xf32>
    %127 = arith.mulf %126, %123 : vector<8x96xf32>
    %128 = arith.addf %125, %127 : vector<8x96xf32>
    %129 = arith.mulf %62, %112 : vector<8x96xf32>
    %130 = arith.mulf %129, %122 : vector<8x96xf32>
    %131 = arith.mulf %63, %113 : vector<8x96xf32>
    %132 = arith.mulf %131, %123 : vector<8x96xf32>
    %133 = arith.addf %130, %132 : vector<8x96xf32>
    %134 = tpu.reciprocal %128 {approx = true} : vector<8x96xf32> -> vector<8x96xf32>
    %135 = arith.mulf %133, %134 : vector<8x96xf32>
    %cst_36 = arith.constant 1.000000e+00 : f32
    %136 = vector.broadcast %cst_36 : f32 to vector<8x96xf32>
    %137 = arith.maximumf %136, %135 : vector<8x96xf32>
    %138 = arith.mulf %137, %122 : vector<8x96xf32>
    %139 = arith.mulf %62, %138 : vector<8x96xf32>
    %140 = arith.mulf %137, %123 : vector<8x96xf32>
    %141 = arith.mulf %63, %140 : vector<8x96xf32>
    %142 = arith.subf %112, %139 : vector<8x96xf32>
    %143 = arith.subf %113, %141 : vector<8x96xf32>
    %144 = arith.mulf %142, %142 : vector<8x96xf32>
    %145 = arith.mulf %143, %143 : vector<8x96xf32>
    %146 = arith.addf %144, %145 : vector<8x96xf32>
    %cst_37 = arith.constant dense<0.000000e+00> : vector<8xf32>
    %147 = vector.multi_reduction <add>, %146, %cst_37 [1] : vector<8x96xf32> to vector<8xf32>
    %148 = vector.shape_cast %147 : vector<8xf32> to vector<8x1xf32>
    %149 = arith.mulf %105, %105 : vector<8x16xf32>
    %150 = arith.mulf %107, %107 : vector<8x16xf32>
    %151 = arith.addf %149, %150 : vector<8x16xf32>
    %cst_38 = arith.constant 9.99999968E-21 : f32
    %152 = vector.broadcast %cst_38 : f32 to vector<8x16xf32>
    %153 = arith.addf %151, %152 : vector<8x16xf32>
    %154 = math.rsqrt %153 : vector<8x16xf32>
    %155 = arith.mulf %105, %154 : vector<8x16xf32>
    %156 = arith.mulf %107, %154 : vector<8x16xf32>
    %cst_39 = arith.constant 0.000000e+00 : f32
    %157 = vector.broadcast %cst_39 : f32 to vector<8x16xf32>
    %158 = arith.cmpf ogt, %105, %157 : vector<8x16xf32>
    %159 = math.absf %107 : vector<8x16xf32>
    %cst_40 = arith.constant 0.434631199 : f32
    %160 = vector.broadcast %cst_40 : f32 to vector<8x16xf32>
    %161 = arith.mulf %105, %160 : vector<8x16xf32>
    %162 = arith.cmpf ole, %159, %161 : vector<8x16xf32>
    %163 = arith.andi %158, %162 : vector<8x16xi1>
    %cst_41 = arith.constant 0.000000e+00 : f32
    %164 = vector.broadcast %cst_41 : f32 to vector<8x16xf32>
    %165 = arith.cmpf oge, %107, %164 : vector<8x16xf32>
    %cst_42 = arith.constant 1.000000e+00 : f32
    %cst_43 = arith.constant -1.000000e+00 : f32
    %166 = vector.broadcast %cst_42 : f32 to vector<8x16xf32>
    %167 = vector.broadcast %cst_43 : f32 to vector<8x16xf32>
    %168 = arith.select %165, %166, %167 : vector<8x16xi1>, vector<8x16xf32>
    %cst_44 = arith.constant 0.917120814 : f32
    %169 = vector.broadcast %cst_44 : f32 to vector<8x16xf32>
    %170 = arith.select %163, %155, %169 : vector<8x16xi1>, vector<8x16xf32>
    %cst_45 = arith.constant 0.39860934 : f32
    %171 = vector.broadcast %cst_45 : f32 to vector<8x16xf32>
    %172 = arith.mulf %168, %171 : vector<8x16xf32>
    %173 = arith.select %163, %156, %172 : vector<8x16xi1>, vector<8x16xf32>
    %174 = arith.mulf %105, %170 : vector<8x16xf32>
    %175 = arith.mulf %107, %173 : vector<8x16xf32>
    %176 = arith.addf %174, %175 : vector<8x16xf32>
    %cst_46 = arith.constant 1.000000e-03 : f32
    %cst_47 = arith.constant 1.800000e+01 : f32
    %177 = vector.broadcast %cst_46 : f32 to vector<8x16xf32>
    %178 = arith.maximumf %177, %176 : vector<8x16xf32>
    %179 = vector.broadcast %cst_47 : f32 to vector<8x16xf32>
    %180 = arith.minimumf %179, %178 : vector<8x16xf32>
    %181 = arith.mulf %180, %170 : vector<8x16xf32>
    %182 = arith.mulf %180, %173 : vector<8x16xf32>
    %183 = arith.subf %105, %181 : vector<8x16xf32>
    %184 = arith.subf %107, %182 : vector<8x16xf32>
    %cst_48 = arith.constant 9.99999974E-5 : f32
    %185 = vector.broadcast %cst_48 : f32 to vector<8x16xf32>
    %186 = arith.addf %106, %185 : vector<8x16xf32>
    %cst_49 = arith.constant 9.99999974E-5 : f32
    %187 = vector.broadcast %cst_49 : f32 to vector<8x16xf32>
    %188 = arith.addf %108, %187 : vector<8x16xf32>
    %189 = arith.mulf %186, %186 : vector<8x16xf32>
    %190 = arith.mulf %188, %188 : vector<8x16xf32>
    %191 = arith.addf %189, %190 : vector<8x16xf32>
    %cst_50 = arith.constant 9.99999968E-21 : f32
    %192 = vector.broadcast %cst_50 : f32 to vector<8x16xf32>
    %193 = arith.addf %191, %192 : vector<8x16xf32>
    %194 = math.rsqrt %193 : vector<8x16xf32>
    %195 = arith.mulf %186, %194 : vector<8x16xf32>
    %196 = arith.mulf %188, %194 : vector<8x16xf32>
    %197 = arith.mulf %106, %195 : vector<8x16xf32>
    %198 = arith.mulf %108, %196 : vector<8x16xf32>
    %199 = arith.addf %197, %198 : vector<8x16xf32>
    %cst_51 = arith.constant 0.000000e+00 : f32
    %cst_52 = arith.constant 6.000000e+00 : f32
    %200 = vector.broadcast %cst_51 : f32 to vector<8x16xf32>
    %201 = arith.maximumf %200, %199 : vector<8x16xf32>
    %202 = vector.broadcast %cst_52 : f32 to vector<8x16xf32>
    %203 = arith.minimumf %202, %201 : vector<8x16xf32>
    %204 = arith.mulf %203, %195 : vector<8x16xf32>
    %205 = arith.mulf %203, %196 : vector<8x16xf32>
    %206 = arith.subf %106, %204 : vector<8x16xf32>
    %207 = arith.subf %108, %205 : vector<8x16xf32>
    %208 = vector.broadcast %58 : vector<8x1xf32> to vector<8x16xf32>
    %209 = arith.subf %109, %208 : vector<8x16xf32>
    %cst_53 = arith.constant 0.000000e+00 : f32
    %210 = vector.broadcast %cst_53 : f32 to vector<8x16xf32>
    %211 = arith.maximumf %209, %210 : vector<8x16xf32>
    %212 = vector.broadcast %59 : vector<8x1xf32> to vector<8x16xf32>
    %213 = arith.subf %212, %109 : vector<8x16xf32>
    %cst_54 = arith.constant 0.000000e+00 : f32
    %214 = vector.broadcast %cst_54 : f32 to vector<8x16xf32>
    %215 = arith.maximumf %213, %214 : vector<8x16xf32>
    %216 = vector.broadcast %58 : vector<8x1xf32> to vector<8x16xf32>
    %217 = arith.minimumf %109, %216 : vector<8x16xf32>
    %218 = vector.broadcast %59 : vector<8x1xf32> to vector<8x16xf32>
    %219 = arith.maximumf %109, %218 : vector<8x16xf32>
    %cst_55 = arith.constant 0.000000e+00 : f32
    %220 = vector.broadcast %cst_55 : f32 to vector<8x16xf32>
    %221 = arith.subf %220, %219 : vector<8x16xf32>
    %222 = tpu.concatenate %206, %183, %142, %207, %184, %143, %211, %215 in 1 : vector<8x16xf32>, vector<8x16xf32>, vector<8x96xf32>, vector<8x16xf32>, vector<8x16xf32>, vector<8x96xf32>, vector<8x16xf32>, vector<8x16xf32> -> vector<8x288xf32>
    %223 = tpu.concatenate %204, %181, %139, %205, %182, %141, %217, %221 in 1 : vector<8x16xf32>, vector<8x16xf32>, vector<8x96xf32>, vector<8x16xf32>, vector<8x16xf32>, vector<8x96xf32>, vector<8x16xf32>, vector<8x16xf32> -> vector<8x288xf32>
    %224 = tpu.concatenate %222, %223 in 0 : vector<8x288xf32>, vector<8x288xf32> -> vector<16x288xf32>
    %c0_56 = arith.constant 0 : index
    %c0_57 = arith.constant 0 : index
    %225 = vector.load %arg4[%c0_56, %c0_57] : memref<472x64xf32, #tpu.memory_space<vmem>>, vector<288x16xf32>
    %cst_58 = arith.constant dense<0.000000e+00> : vector<16x16xf32>
    %226 = tpu.matmul %224, %225, %cst_58 {dimension_numbers = #tpu.dot_dimension_numbers<[1], [0], [0], [1], [0, 0, 1, 1], [], []>} : vector<16x288xf32>, vector<288x16xf32>, vector<16x16xf32> -> vector<16x16xf32>
    %227 = vector.extract_strided_slice %226 {offsets = [0, 0], sizes = [8, 16], strides = [1, 1]} : vector<16x16xf32> to vector<8x16xf32>
    %228 = arith.subf %56, %227 : vector<8x16xf32>
    %229 = vector.extract_strided_slice %226 {offsets = [8, 0], sizes = [8, 16], strides = [1, 1]} : vector<16x16xf32> to vector<8x16xf32>
    %230 = arith.addf %228, %229 : vector<8x16xf32>
    %231 = arith.mulf %206, %206 : vector<8x16xf32>
    %232 = arith.mulf %207, %207 : vector<8x16xf32>
    %233 = arith.addf %231, %232 : vector<8x16xf32>
    %cst_59 = arith.constant dense<0.000000e+00> : vector<8xf32>
    %234 = vector.multi_reduction <add>, %233, %cst_59 [1] : vector<8x16xf32> to vector<8xf32>
    %235 = vector.shape_cast %234 : vector<8xf32> to vector<8x1xf32>
    %236 = math.sqrt %235 : vector<8x1xf32>
    %237 = arith.mulf %183, %183 : vector<8x16xf32>
    %238 = arith.mulf %184, %184 : vector<8x16xf32>
    %239 = arith.addf %237, %238 : vector<8x16xf32>
    %cst_60 = arith.constant dense<0.000000e+00> : vector<8xf32>
    %240 = vector.multi_reduction <add>, %239, %cst_60 [1] : vector<8x16xf32> to vector<8xf32>
    %241 = vector.shape_cast %240 : vector<8xf32> to vector<8x1xf32>
    %242 = math.sqrt %241 : vector<8x1xf32>
    %243 = arith.addf %236, %242 : vector<8x1xf32>
    %244 = math.sqrt %148 : vector<8x1xf32>
    %245 = arith.addf %243, %244 : vector<8x1xf32>
    %246 = arith.mulf %211, %211 : vector<8x16xf32>
    %247 = arith.mulf %215, %215 : vector<8x16xf32>
    %248 = arith.addf %246, %247 : vector<8x16xf32>
    %cst_61 = arith.constant dense<0.000000e+00> : vector<8xf32>
    %249 = vector.multi_reduction <add>, %248, %cst_61 [1] : vector<8x16xf32> to vector<8xf32>
    %250 = vector.shape_cast %249 : vector<8xf32> to vector<8x1xf32>
    %251 = math.sqrt %250 : vector<8x1xf32>
    %252 = arith.addf %245, %251 : vector<8x1xf32>
    %c288 = arith.constant 288 : index
    %c0_62 = arith.constant 0 : index
    %253 = vector.load %arg4[%c288, %c0_62] : memref<472x64xf32, #tpu.memory_space<vmem>>, vector<16x16xf32>
    %cst_63 = arith.constant dense<0.000000e+00> : vector<8x16xf32>
    %254 = tpu.matmul %230, %253, %cst_63 {dimension_numbers = #tpu.dot_dimension_numbers<[1], [0], [0], [1], [0, 0, 1, 1], [], []>} : vector<8x16xf32>, vector<16x16xf32>, vector<8x16xf32> -> vector<8x16xf32>
    %255 = arith.addf %254, %93 : vector<8x16xf32>
    %256 = arith.subf %255, %104 : vector<8x16xf32>
    %257 = arith.subf %228, %56 : vector<8x16xf32>
    %258 = tpu.concatenate %104, %56, %255, %228, %256, %257, %49 in 1 : vector<8x16xf32>, vector<8x16xf32>, vector<8x16xf32>, vector<8x16xf32>, vector<8x16xf32>, vector<8x16xf32>, vector<8x32xf32> -> vector<8x128xf32>
    %c0_64 = arith.constant 0 : index
    %c0_65 = arith.constant 0 : index
    %259 = vector.load %arg3[%c0_64, %c0_65] : memref<136x256xf32, #tpu.memory_space<vmem>>, vector<128x256xf32>
    %cst_66 = arith.constant dense<0.000000e+00> : vector<8x256xf32>
    %260 = tpu.matmul %258, %259, %cst_66 {dimension_numbers = #tpu.dot_dimension_numbers<[1], [0], [0], [1], [0, 0, 1, 1], [], []>} : vector<8x128xf32>, vector<128x256xf32>, vector<8x256xf32> -> vector<8x256xf32>
    %c128_67 = arith.constant 128 : index
    %c0_68 = arith.constant 0 : index
    %261 = vector.load %arg3[%c128_67, %c0_68] : memref<136x256xf32, #tpu.memory_space<vmem>>, vector<1x256xf32>
    %262 = vector.broadcast %261 : vector<1x256xf32> to vector<8x256xf32>
    %263 = arith.addf %260, %262 : vector<8x256xf32>
    %264 = vector.extract_strided_slice %263 {offsets = [0, 0], sizes = [8, 96], strides = [1, 1]} : vector<8x256xf32> to vector<8x96xf32>
    %265 = vector.extract_strided_slice %263 {offsets = [0, 128], sizes = [8, 96], strides = [1, 1]} : vector<8x256xf32> to vector<8x96xf32>
    %266 = arith.addf %264, %265 : vector<8x96xf32>
    %267 = vector.extract_strided_slice %266 {offsets = [0, 0], sizes = [8, 32], strides = [1, 1]} : vector<8x96xf32> to vector<8x32xf32>
    %268 = arith.negf %267 : vector<8x32xf32>
    %269 = math.exp %268 : vector<8x32xf32>
    %cst_69 = arith.constant 1.000000e+00 : f32
    %270 = vector.broadcast %cst_69 : f32 to vector<8x32xf32>
    %271 = arith.addf %270, %269 : vector<8x32xf32>
    %272 = arith.divf %270, %271 : vector<8x32xf32>
    %273 = vector.extract_strided_slice %266 {offsets = [0, 32], sizes = [8, 32], strides = [1, 1]} : vector<8x96xf32> to vector<8x32xf32>
    %274 = arith.negf %273 : vector<8x32xf32>
    %275 = math.exp %274 : vector<8x32xf32>
    %cst_70 = arith.constant 1.000000e+00 : f32
    %276 = vector.broadcast %cst_70 : f32 to vector<8x32xf32>
    %277 = arith.addf %276, %275 : vector<8x32xf32>
    %278 = arith.divf %276, %277 : vector<8x32xf32>
    %279 = vector.extract_strided_slice %264 {offsets = [0, 64], sizes = [8, 32], strides = [1, 1]} : vector<8x96xf32> to vector<8x32xf32>
    %280 = vector.extract_strided_slice %265 {offsets = [0, 64], sizes = [8, 32], strides = [1, 1]} : vector<8x96xf32> to vector<8x32xf32>
    %281 = arith.mulf %272, %280 : vector<8x32xf32>
    %282 = arith.addf %279, %281 : vector<8x32xf32>
    %283 = math.tanh %282 : vector<8x32xf32>
    %cst_71 = arith.constant 1.000000e+00 : f32
    %284 = vector.broadcast %cst_71 : f32 to vector<8x32xf32>
    %285 = arith.subf %284, %278 : vector<8x32xf32>
    %286 = arith.mulf %285, %283 : vector<8x32xf32>
    %287 = arith.mulf %278, %49 : vector<8x32xf32>
    %288 = arith.addf %286, %287 : vector<8x32xf32>
    %c0_72 = arith.constant 0 : index
    %c0_73 = arith.constant 0 : index
    %289 = vector.load %arg2[%c0_72, %c0_73] : memref<64x384xf32, #tpu.memory_space<vmem>>, vector<16x384xf32>
    %cst_74 = arith.constant dense<0.000000e+00> : vector<8x384xf32>
    %290 = tpu.matmul %255, %289, %cst_74 {dimension_numbers = #tpu.dot_dimension_numbers<[1], [0], [0], [1], [0, 0, 1, 1], [], []>} : vector<8x16xf32>, vector<16x384xf32>, vector<8x384xf32> -> vector<8x384xf32>
    %c24 = arith.constant 24 : index
    %c0_75 = arith.constant 0 : index
    %291 = vector.load %arg2[%c24, %c0_75] : memref<64x384xf32, #tpu.memory_space<vmem>>, vector<32x384xf32>
    %cst_76 = arith.constant dense<0.000000e+00> : vector<8x384xf32>
    %292 = tpu.matmul %288, %291, %cst_76 {dimension_numbers = #tpu.dot_dimension_numbers<[1], [0], [0], [1], [0, 0, 1, 1], [], []>} : vector<8x32xf32>, vector<32x384xf32>, vector<8x384xf32> -> vector<8x384xf32>
    %293 = arith.addf %290, %292 : vector<8x384xf32>
    %294 = arith.addf %293, %98 : vector<8x384xf32>
    %295 = arith.addf %102, %252 : vector<8x1xf32>
    %296 = vector.extract_strided_slice %294 {offsets = [0, 0], sizes = [8, 16], strides = [1, 1]} : vector<8x384xf32> to vector<8x16xf32>
    %297 = arith.subf %296, %104 : vector<8x16xf32>
    %298 = arith.subf %228, %56 : vector<8x16xf32>
    %299 = arith.mulf %297, %297 : vector<8x16xf32>
    %cst_77 = arith.constant dense<0.000000e+00> : vector<8xf32>
    %300 = vector.multi_reduction <add>, %299, %cst_77 [1] : vector<8x16xf32> to vector<8xf32>
    %301 = vector.shape_cast %300 : vector<8xf32> to vector<8x1xf32>
    %302 = math.sqrt %301 : vector<8x1xf32>
    %303 = vector.extract_strided_slice %298 {offsets = [0, 0], sizes = [8, 8], strides = [1, 1]} : vector<8x16xf32> to vector<8x8xf32>
    %304 = vector.extract_strided_slice %298 {offsets = [0, 0], sizes = [8, 8], strides = [1, 1]} : vector<8x16xf32> to vector<8x8xf32>
    %305 = arith.mulf %303, %304 : vector<8x8xf32>
    %cst_78 = arith.constant dense<0.000000e+00> : vector<8xf32>
    %306 = vector.multi_reduction <add>, %305, %cst_78 [1] : vector<8x8xf32> to vector<8xf32>
    %307 = vector.shape_cast %306 : vector<8xf32> to vector<8x1xf32>
    %308 = math.sqrt %307 : vector<8x1xf32>
    %309 = arith.addf %302, %308 : vector<8x1xf32>
    %310 = vector.extract_strided_slice %298 {offsets = [0, 8], sizes = [8, 8], strides = [1, 1]} : vector<8x16xf32> to vector<8x8xf32>
    %311 = vector.extract_strided_slice %298 {offsets = [0, 8], sizes = [8, 8], strides = [1, 1]} : vector<8x16xf32> to vector<8x8xf32>
    %312 = arith.mulf %310, %311 : vector<8x8xf32>
    %cst_79 = arith.constant dense<0.000000e+00> : vector<8xf32>
    %313 = vector.multi_reduction <add>, %312, %cst_79 [1] : vector<8x8xf32> to vector<8xf32>
    %314 = vector.shape_cast %313 : vector<8xf32> to vector<8x1xf32>
    %315 = math.sqrt %314 : vector<8x1xf32>
    %316 = arith.addf %309, %315 : vector<8x1xf32>
    %317 = arith.addf %103, %316 : vector<8x1xf32>
    %318 = vector.extract_strided_slice %294 {offsets = [0, 0], sizes = [8, 16], strides = [1, 1]} : vector<8x384xf32> to vector<8x16xf32>
    %319 = vector.extract_strided_slice %294 {offsets = [0, 16], sizes = [8, 16], strides = [1, 1]} : vector<8x384xf32> to vector<8x16xf32>
    %320 = vector.extract_strided_slice %294 {offsets = [0, 32], sizes = [8, 16], strides = [1, 1]} : vector<8x384xf32> to vector<8x16xf32>
    %321 = vector.extract_strided_slice %294 {offsets = [0, 48], sizes = [8, 16], strides = [1, 1]} : vector<8x384xf32> to vector<8x16xf32>
    %322 = vector.extract_strided_slice %294 {offsets = [0, 64], sizes = [8, 16], strides = [1, 1]} : vector<8x384xf32> to vector<8x16xf32>
    %323 = vector.extract_strided_slice %294 {offsets = [0, 80], sizes = [8, 16], strides = [1, 1]} : vector<8x384xf32> to vector<8x16xf32>
    %324 = vector.extract_strided_slice %294 {offsets = [0, 128], sizes = [8, 96], strides = [1, 1]} : vector<8x384xf32> to vector<8x96xf32>
    %325 = vector.extract_strided_slice %294 {offsets = [0, 256], sizes = [8, 96], strides = [1, 1]} : vector<8x384xf32> to vector<8x96xf32>
    %326 = arith.subf %324, %60 : vector<8x96xf32>
    %327 = arith.subf %325, %61 : vector<8x96xf32>
    %328 = arith.mulf %326, %63 : vector<8x96xf32>
    %329 = arith.mulf %327, %62 : vector<8x96xf32>
    %330 = arith.mulf %328, %328 : vector<8x96xf32>
    %331 = arith.mulf %329, %329 : vector<8x96xf32>
    %332 = arith.addf %330, %331 : vector<8x96xf32>
    %cst_80 = arith.constant 9.99999968E-21 : f32
    %333 = vector.broadcast %cst_80 : f32 to vector<8x96xf32>
    %334 = arith.addf %332, %333 : vector<8x96xf32>
    %335 = math.rsqrt %334 : vector<8x96xf32>
    %336 = arith.mulf %328, %335 : vector<8x96xf32>
    %337 = arith.mulf %329, %335 : vector<8x96xf32>
    %338 = arith.mulf %64, %336 : vector<8x96xf32>
    %339 = arith.mulf %338, %336 : vector<8x96xf32>
    %340 = arith.mulf %65, %337 : vector<8x96xf32>
    %341 = arith.mulf %340, %337 : vector<8x96xf32>
    %342 = arith.addf %339, %341 : vector<8x96xf32>
    %343 = arith.mulf %62, %326 : vector<8x96xf32>
    %344 = arith.mulf %343, %336 : vector<8x96xf32>
    %345 = arith.mulf %63, %327 : vector<8x96xf32>
    %346 = arith.mulf %345, %337 : vector<8x96xf32>
    %347 = arith.addf %344, %346 : vector<8x96xf32>
    %348 = tpu.reciprocal %342 {approx = true} : vector<8x96xf32> -> vector<8x96xf32>
    %349 = arith.mulf %347, %348 : vector<8x96xf32>
    %cst_81 = arith.constant 1.000000e+00 : f32
    %350 = vector.broadcast %cst_81 : f32 to vector<8x96xf32>
    %351 = arith.maximumf %350, %349 : vector<8x96xf32>
    %352 = arith.mulf %351, %336 : vector<8x96xf32>
    %353 = arith.mulf %62, %352 : vector<8x96xf32>
    %354 = arith.mulf %351, %337 : vector<8x96xf32>
    %355 = arith.mulf %63, %354 : vector<8x96xf32>
    %356 = arith.subf %326, %353 : vector<8x96xf32>
    %357 = arith.subf %327, %355 : vector<8x96xf32>
    %358 = arith.mulf %356, %356 : vector<8x96xf32>
    %359 = arith.mulf %357, %357 : vector<8x96xf32>
    %360 = arith.addf %358, %359 : vector<8x96xf32>
    %cst_82 = arith.constant dense<0.000000e+00> : vector<8xf32>
    %361 = vector.multi_reduction <add>, %360, %cst_82 [1] : vector<8x96xf32> to vector<8xf32>
    %362 = vector.shape_cast %361 : vector<8xf32> to vector<8x1xf32>
    %363 = arith.mulf %319, %319 : vector<8x16xf32>
    %364 = arith.mulf %321, %321 : vector<8x16xf32>
    %365 = arith.addf %363, %364 : vector<8x16xf32>
    %cst_83 = arith.constant 9.99999968E-21 : f32
    %366 = vector.broadcast %cst_83 : f32 to vector<8x16xf32>
    %367 = arith.addf %365, %366 : vector<8x16xf32>
    %368 = math.rsqrt %367 : vector<8x16xf32>
    %369 = arith.mulf %319, %368 : vector<8x16xf32>
    %370 = arith.mulf %321, %368 : vector<8x16xf32>
    %cst_84 = arith.constant 0.000000e+00 : f32
    %371 = vector.broadcast %cst_84 : f32 to vector<8x16xf32>
    %372 = arith.cmpf ogt, %319, %371 : vector<8x16xf32>
    %373 = math.absf %321 : vector<8x16xf32>
    %cst_85 = arith.constant 0.434631199 : f32
    %374 = vector.broadcast %cst_85 : f32 to vector<8x16xf32>
    %375 = arith.mulf %319, %374 : vector<8x16xf32>
    %376 = arith.cmpf ole, %373, %375 : vector<8x16xf32>
    %377 = arith.andi %372, %376 : vector<8x16xi1>
    %cst_86 = arith.constant 0.000000e+00 : f32
    %378 = vector.broadcast %cst_86 : f32 to vector<8x16xf32>
    %379 = arith.cmpf oge, %321, %378 : vector<8x16xf32>
    %cst_87 = arith.constant 1.000000e+00 : f32
    %cst_88 = arith.constant -1.000000e+00 : f32
    %380 = vector.broadcast %cst_87 : f32 to vector<8x16xf32>
    %381 = vector.broadcast %cst_88 : f32 to vector<8x16xf32>
    %382 = arith.select %379, %380, %381 : vector<8x16xi1>, vector<8x16xf32>
    %cst_89 = arith.constant 0.917120814 : f32
    %383 = vector.broadcast %cst_89 : f32 to vector<8x16xf32>
    %384 = arith.select %377, %369, %383 : vector<8x16xi1>, vector<8x16xf32>
    %cst_90 = arith.constant 0.39860934 : f32
    %385 = vector.broadcast %cst_90 : f32 to vector<8x16xf32>
    %386 = arith.mulf %382, %385 : vector<8x16xf32>
    %387 = arith.select %377, %370, %386 : vector<8x16xi1>, vector<8x16xf32>
    %388 = arith.mulf %319, %384 : vector<8x16xf32>
    %389 = arith.mulf %321, %387 : vector<8x16xf32>
    %390 = arith.addf %388, %389 : vector<8x16xf32>
    %cst_91 = arith.constant 1.000000e-03 : f32
    %cst_92 = arith.constant 1.800000e+01 : f32
    %391 = vector.broadcast %cst_91 : f32 to vector<8x16xf32>
    %392 = arith.maximumf %391, %390 : vector<8x16xf32>
    %393 = vector.broadcast %cst_92 : f32 to vector<8x16xf32>
    %394 = arith.minimumf %393, %392 : vector<8x16xf32>
    %395 = arith.mulf %394, %384 : vector<8x16xf32>
    %396 = arith.mulf %394, %387 : vector<8x16xf32>
    %397 = arith.subf %319, %395 : vector<8x16xf32>
    %398 = arith.subf %321, %396 : vector<8x16xf32>
    %cst_93 = arith.constant 9.99999974E-5 : f32
    %399 = vector.broadcast %cst_93 : f32 to vector<8x16xf32>
    %400 = arith.addf %320, %399 : vector<8x16xf32>
    %cst_94 = arith.constant 9.99999974E-5 : f32
    %401 = vector.broadcast %cst_94 : f32 to vector<8x16xf32>
    %402 = arith.addf %322, %401 : vector<8x16xf32>
    %403 = arith.mulf %400, %400 : vector<8x16xf32>
    %404 = arith.mulf %402, %402 : vector<8x16xf32>
    %405 = arith.addf %403, %404 : vector<8x16xf32>
    %cst_95 = arith.constant 9.99999968E-21 : f32
    %406 = vector.broadcast %cst_95 : f32 to vector<8x16xf32>
    %407 = arith.addf %405, %406 : vector<8x16xf32>
    %408 = math.rsqrt %407 : vector<8x16xf32>
    %409 = arith.mulf %400, %408 : vector<8x16xf32>
    %410 = arith.mulf %402, %408 : vector<8x16xf32>
    %411 = arith.mulf %320, %409 : vector<8x16xf32>
    %412 = arith.mulf %322, %410 : vector<8x16xf32>
    %413 = arith.addf %411, %412 : vector<8x16xf32>
    %cst_96 = arith.constant 0.000000e+00 : f32
    %cst_97 = arith.constant 6.000000e+00 : f32
    %414 = vector.broadcast %cst_96 : f32 to vector<8x16xf32>
    %415 = arith.maximumf %414, %413 : vector<8x16xf32>
    %416 = vector.broadcast %cst_97 : f32 to vector<8x16xf32>
    %417 = arith.minimumf %416, %415 : vector<8x16xf32>
    %418 = arith.mulf %417, %409 : vector<8x16xf32>
    %419 = arith.mulf %417, %410 : vector<8x16xf32>
    %420 = arith.subf %320, %418 : vector<8x16xf32>
    %421 = arith.subf %322, %419 : vector<8x16xf32>
    %422 = vector.broadcast %58 : vector<8x1xf32> to vector<8x16xf32>
    %423 = arith.subf %323, %422 : vector<8x16xf32>
    %cst_98 = arith.constant 0.000000e+00 : f32
    %424 = vector.broadcast %cst_98 : f32 to vector<8x16xf32>
    %425 = arith.maximumf %423, %424 : vector<8x16xf32>
    %426 = vector.broadcast %59 : vector<8x1xf32> to vector<8x16xf32>
    %427 = arith.subf %426, %323 : vector<8x16xf32>
    %cst_99 = arith.constant 0.000000e+00 : f32
    %428 = vector.broadcast %cst_99 : f32 to vector<8x16xf32>
    %429 = arith.maximumf %427, %428 : vector<8x16xf32>
    %430 = vector.broadcast %58 : vector<8x1xf32> to vector<8x16xf32>
    %431 = arith.minimumf %323, %430 : vector<8x16xf32>
    %432 = vector.broadcast %59 : vector<8x1xf32> to vector<8x16xf32>
    %433 = arith.maximumf %323, %432 : vector<8x16xf32>
    %cst_100 = arith.constant 0.000000e+00 : f32
    %434 = vector.broadcast %cst_100 : f32 to vector<8x16xf32>
    %435 = arith.subf %434, %433 : vector<8x16xf32>
    %436 = tpu.concatenate %420, %397, %356, %421, %398, %357, %425, %429 in 1 : vector<8x16xf32>, vector<8x16xf32>, vector<8x96xf32>, vector<8x16xf32>, vector<8x16xf32>, vector<8x96xf32>, vector<8x16xf32>, vector<8x16xf32> -> vector<8x288xf32>
    %437 = tpu.concatenate %418, %395, %353, %419, %396, %355, %431, %435 in 1 : vector<8x16xf32>, vector<8x16xf32>, vector<8x96xf32>, vector<8x16xf32>, vector<8x16xf32>, vector<8x96xf32>, vector<8x16xf32>, vector<8x16xf32> -> vector<8x288xf32>
    %438 = tpu.concatenate %436, %437 in 0 : vector<8x288xf32>, vector<8x288xf32> -> vector<16x288xf32>
    %c0_101 = arith.constant 0 : index
    %c0_102 = arith.constant 0 : index
    %439 = vector.load %arg4[%c0_101, %c0_102] : memref<472x64xf32, #tpu.memory_space<vmem>>, vector<288x16xf32>
    %cst_103 = arith.constant dense<0.000000e+00> : vector<16x16xf32>
    %440 = tpu.matmul %438, %439, %cst_103 {dimension_numbers = #tpu.dot_dimension_numbers<[1], [0], [0], [1], [0, 0, 1, 1], [], []>} : vector<16x288xf32>, vector<288x16xf32>, vector<16x16xf32> -> vector<16x16xf32>
    %441 = vector.extract_strided_slice %440 {offsets = [0, 0], sizes = [8, 16], strides = [1, 1]} : vector<16x16xf32> to vector<8x16xf32>
    %442 = arith.subf %228, %441 : vector<8x16xf32>
    %443 = vector.extract_strided_slice %440 {offsets = [8, 0], sizes = [8, 16], strides = [1, 1]} : vector<16x16xf32> to vector<8x16xf32>
    %444 = arith.addf %442, %443 : vector<8x16xf32>
    %445 = arith.mulf %420, %420 : vector<8x16xf32>
    %446 = arith.mulf %421, %421 : vector<8x16xf32>
    %447 = arith.addf %445, %446 : vector<8x16xf32>
    %cst_104 = arith.constant dense<0.000000e+00> : vector<8xf32>
    %448 = vector.multi_reduction <add>, %447, %cst_104 [1] : vector<8x16xf32> to vector<8xf32>
    %449 = vector.shape_cast %448 : vector<8xf32> to vector<8x1xf32>
    %450 = math.sqrt %449 : vector<8x1xf32>
    %451 = arith.mulf %397, %397 : vector<8x16xf32>
    %452 = arith.mulf %398, %398 : vector<8x16xf32>
    %453 = arith.addf %451, %452 : vector<8x16xf32>
    %cst_105 = arith.constant dense<0.000000e+00> : vector<8xf32>
    %454 = vector.multi_reduction <add>, %453, %cst_105 [1] : vector<8x16xf32> to vector<8xf32>
    %455 = vector.shape_cast %454 : vector<8xf32> to vector<8x1xf32>
    %456 = math.sqrt %455 : vector<8x1xf32>
    %457 = arith.addf %450, %456 : vector<8x1xf32>
    %458 = math.sqrt %362 : vector<8x1xf32>
    %459 = arith.addf %457, %458 : vector<8x1xf32>
    %460 = arith.mulf %425, %425 : vector<8x16xf32>
    %461 = arith.mulf %429, %429 : vector<8x16xf32>
    %462 = arith.addf %460, %461 : vector<8x16xf32>
    %cst_106 = arith.constant dense<0.000000e+00> : vector<8xf32>
    %463 = vector.multi_reduction <add>, %462, %cst_106 [1] : vector<8x16xf32> to vector<8xf32>
    %464 = vector.shape_cast %463 : vector<8xf32> to vector<8x1xf32>
    %465 = math.sqrt %464 : vector<8x1xf32>
    %466 = arith.addf %459, %465 : vector<8x1xf32>
    %c288_107 = arith.constant 288 : index
    %c0_108 = arith.constant 0 : index
    %467 = vector.load %arg4[%c288_107, %c0_108] : memref<472x64xf32, #tpu.memory_space<vmem>>, vector<16x16xf32>
    %cst_109 = arith.constant dense<0.000000e+00> : vector<8x16xf32>
    %468 = tpu.matmul %444, %467, %cst_109 {dimension_numbers = #tpu.dot_dimension_numbers<[1], [0], [0], [1], [0, 0, 1, 1], [], []>} : vector<8x16xf32>, vector<16x16xf32>, vector<8x16xf32> -> vector<8x16xf32>
    %469 = arith.addf %468, %93 : vector<8x16xf32>
    %470 = arith.subf %469, %318 : vector<8x16xf32>
    %471 = arith.subf %442, %228 : vector<8x16xf32>
    %472 = tpu.concatenate %318, %228, %469, %442, %470, %471, %288 in 1 : vector<8x16xf32>, vector<8x16xf32>, vector<8x16xf32>, vector<8x16xf32>, vector<8x16xf32>, vector<8x16xf32>, vector<8x32xf32> -> vector<8x128xf32>
    %c0_110 = arith.constant 0 : index
    %c0_111 = arith.constant 0 : index
    %473 = vector.load %arg3[%c0_110, %c0_111] : memref<136x256xf32, #tpu.memory_space<vmem>>, vector<128x256xf32>
    %cst_112 = arith.constant dense<0.000000e+00> : vector<8x256xf32>
    %474 = tpu.matmul %472, %473, %cst_112 {dimension_numbers = #tpu.dot_dimension_numbers<[1], [0], [0], [1], [0, 0, 1, 1], [], []>} : vector<8x128xf32>, vector<128x256xf32>, vector<8x256xf32> -> vector<8x256xf32>
    %c128_113 = arith.constant 128 : index
    %c0_114 = arith.constant 0 : index
    %475 = vector.load %arg3[%c128_113, %c0_114] : memref<136x256xf32, #tpu.memory_space<vmem>>, vector<1x256xf32>
    %476 = vector.broadcast %475 : vector<1x256xf32> to vector<8x256xf32>
    %477 = arith.addf %474, %476 : vector<8x256xf32>
    %478 = vector.extract_strided_slice %477 {offsets = [0, 0], sizes = [8, 96], strides = [1, 1]} : vector<8x256xf32> to vector<8x96xf32>
    %479 = vector.extract_strided_slice %477 {offsets = [0, 128], sizes = [8, 96], strides = [1, 1]} : vector<8x256xf32> to vector<8x96xf32>
    %480 = arith.addf %478, %479 : vector<8x96xf32>
    %481 = vector.extract_strided_slice %480 {offsets = [0, 0], sizes = [8, 32], strides = [1, 1]} : vector<8x96xf32> to vector<8x32xf32>
    %482 = arith.negf %481 : vector<8x32xf32>
    %483 = math.exp %482 : vector<8x32xf32>
    %cst_115 = arith.constant 1.000000e+00 : f32
    %484 = vector.broadcast %cst_115 : f32 to vector<8x32xf32>
    %485 = arith.addf %484, %483 : vector<8x32xf32>
    %486 = arith.divf %484, %485 : vector<8x32xf32>
    %487 = vector.extract_strided_slice %480 {offsets = [0, 32], sizes = [8, 32], strides = [1, 1]} : vector<8x96xf32> to vector<8x32xf32>
    %488 = arith.negf %487 : vector<8x32xf32>
    %489 = math.exp %488 : vector<8x32xf32>
    %cst_116 = arith.constant 1.000000e+00 : f32
    %490 = vector.broadcast %cst_116 : f32 to vector<8x32xf32>
    %491 = arith.addf %490, %489 : vector<8x32xf32>
    %492 = arith.divf %490, %491 : vector<8x32xf32>
    %493 = vector.extract_strided_slice %478 {offsets = [0, 64], sizes = [8, 32], strides = [1, 1]} : vector<8x96xf32> to vector<8x32xf32>
    %494 = vector.extract_strided_slice %479 {offsets = [0, 64], sizes = [8, 32], strides = [1, 1]} : vector<8x96xf32> to vector<8x32xf32>
    %495 = arith.mulf %486, %494 : vector<8x32xf32>
    %496 = arith.addf %493, %495 : vector<8x32xf32>
    %497 = math.tanh %496 : vector<8x32xf32>
    %cst_117 = arith.constant 1.000000e+00 : f32
    %498 = vector.broadcast %cst_117 : f32 to vector<8x32xf32>
    %499 = arith.subf %498, %492 : vector<8x32xf32>
    %500 = arith.mulf %499, %497 : vector<8x32xf32>
    %501 = arith.mulf %492, %288 : vector<8x32xf32>
    %502 = arith.addf %500, %501 : vector<8x32xf32>
    %c0_118 = arith.constant 0 : index
    %c0_119 = arith.constant 0 : index
    %503 = vector.load %arg2[%c0_118, %c0_119] : memref<64x384xf32, #tpu.memory_space<vmem>>, vector<16x384xf32>
    %cst_120 = arith.constant dense<0.000000e+00> : vector<8x384xf32>
    %504 = tpu.matmul %469, %503, %cst_120 {dimension_numbers = #tpu.dot_dimension_numbers<[1], [0], [0], [1], [0, 0, 1, 1], [], []>} : vector<8x16xf32>, vector<16x384xf32>, vector<8x384xf32> -> vector<8x384xf32>
    %c24_121 = arith.constant 24 : index
    %c0_122 = arith.constant 0 : index
    %505 = vector.load %arg2[%c24_121, %c0_122] : memref<64x384xf32, #tpu.memory_space<vmem>>, vector<32x384xf32>
    %cst_123 = arith.constant dense<0.000000e+00> : vector<8x384xf32>
    %506 = tpu.matmul %502, %505, %cst_123 {dimension_numbers = #tpu.dot_dimension_numbers<[1], [0], [0], [1], [0, 0, 1, 1], [], []>} : vector<8x32xf32>, vector<32x384xf32>, vector<8x384xf32> -> vector<8x384xf32>
    %507 = arith.addf %504, %506 : vector<8x384xf32>
    %508 = arith.addf %507, %98 : vector<8x384xf32>
    %509 = arith.addf %295, %466 : vector<8x1xf32>
    %510 = vector.extract_strided_slice %508 {offsets = [0, 0], sizes = [8, 16], strides = [1, 1]} : vector<8x384xf32> to vector<8x16xf32>
    %511 = arith.subf %510, %318 : vector<8x16xf32>
    %512 = arith.subf %442, %228 : vector<8x16xf32>
    %513 = arith.mulf %511, %511 : vector<8x16xf32>
    %cst_124 = arith.constant dense<0.000000e+00> : vector<8xf32>
    %514 = vector.multi_reduction <add>, %513, %cst_124 [1] : vector<8x16xf32> to vector<8xf32>
    %515 = vector.shape_cast %514 : vector<8xf32> to vector<8x1xf32>
    %516 = math.sqrt %515 : vector<8x1xf32>
    %517 = vector.extract_strided_slice %512 {offsets = [0, 0], sizes = [8, 8], strides = [1, 1]} : vector<8x16xf32> to vector<8x8xf32>
    %518 = vector.extract_strided_slice %512 {offsets = [0, 0], sizes = [8, 8], strides = [1, 1]} : vector<8x16xf32> to vector<8x8xf32>
    %519 = arith.mulf %517, %518 : vector<8x8xf32>
    %cst_125 = arith.constant dense<0.000000e+00> : vector<8xf32>
    %520 = vector.multi_reduction <add>, %519, %cst_125 [1] : vector<8x8xf32> to vector<8xf32>
    %521 = vector.shape_cast %520 : vector<8xf32> to vector<8x1xf32>
    %522 = math.sqrt %521 : vector<8x1xf32>
    %523 = arith.addf %516, %522 : vector<8x1xf32>
    %524 = vector.extract_strided_slice %512 {offsets = [0, 8], sizes = [8, 8], strides = [1, 1]} : vector<8x16xf32> to vector<8x8xf32>
    %525 = vector.extract_strided_slice %512 {offsets = [0, 8], sizes = [8, 8], strides = [1, 1]} : vector<8x16xf32> to vector<8x8xf32>
    %526 = arith.mulf %524, %525 : vector<8x8xf32>
    %cst_126 = arith.constant dense<0.000000e+00> : vector<8xf32>
    %527 = vector.multi_reduction <add>, %526, %cst_126 [1] : vector<8x8xf32> to vector<8xf32>
    %528 = vector.shape_cast %527 : vector<8xf32> to vector<8x1xf32>
    %529 = math.sqrt %528 : vector<8x1xf32>
    %530 = arith.addf %523, %529 : vector<8x1xf32>
    %531 = arith.addf %317, %530 : vector<8x1xf32>
    %532 = vector.extract_strided_slice %508 {offsets = [0, 0], sizes = [8, 16], strides = [1, 1]} : vector<8x384xf32> to vector<8x16xf32>
    %533 = vector.extract_strided_slice %508 {offsets = [0, 16], sizes = [8, 16], strides = [1, 1]} : vector<8x384xf32> to vector<8x16xf32>
    %534 = vector.extract_strided_slice %508 {offsets = [0, 32], sizes = [8, 16], strides = [1, 1]} : vector<8x384xf32> to vector<8x16xf32>
    %535 = vector.extract_strided_slice %508 {offsets = [0, 48], sizes = [8, 16], strides = [1, 1]} : vector<8x384xf32> to vector<8x16xf32>
    %536 = vector.extract_strided_slice %508 {offsets = [0, 64], sizes = [8, 16], strides = [1, 1]} : vector<8x384xf32> to vector<8x16xf32>
    %537 = vector.extract_strided_slice %508 {offsets = [0, 80], sizes = [8, 16], strides = [1, 1]} : vector<8x384xf32> to vector<8x16xf32>
    %538 = vector.extract_strided_slice %508 {offsets = [0, 128], sizes = [8, 96], strides = [1, 1]} : vector<8x384xf32> to vector<8x96xf32>
    %539 = vector.extract_strided_slice %508 {offsets = [0, 256], sizes = [8, 96], strides = [1, 1]} : vector<8x384xf32> to vector<8x96xf32>
    %540 = arith.subf %538, %60 : vector<8x96xf32>
    %541 = arith.subf %539, %61 : vector<8x96xf32>
    %542 = arith.mulf %540, %63 : vector<8x96xf32>
    %543 = arith.mulf %541, %62 : vector<8x96xf32>
    %544 = arith.mulf %542, %542 : vector<8x96xf32>
    %545 = arith.mulf %543, %543 : vector<8x96xf32>
    %546 = arith.addf %544, %545 : vector<8x96xf32>
    %cst_127 = arith.constant 9.99999968E-21 : f32
    %547 = vector.broadcast %cst_127 : f32 to vector<8x96xf32>
    %548 = arith.addf %546, %547 : vector<8x96xf32>
    %549 = math.rsqrt %548 : vector<8x96xf32>
    %550 = arith.mulf %542, %549 : vector<8x96xf32>
    %551 = arith.mulf %543, %549 : vector<8x96xf32>
    %552 = arith.mulf %64, %550 : vector<8x96xf32>
    %553 = arith.mulf %552, %550 : vector<8x96xf32>
    %554 = arith.mulf %65, %551 : vector<8x96xf32>
    %555 = arith.mulf %554, %551 : vector<8x96xf32>
    %556 = arith.addf %553, %555 : vector<8x96xf32>
    %557 = arith.mulf %62, %540 : vector<8x96xf32>
    %558 = arith.mulf %557, %550 : vector<8x96xf32>
    %559 = arith.mulf %63, %541 : vector<8x96xf32>
    %560 = arith.mulf %559, %551 : vector<8x96xf32>
    %561 = arith.addf %558, %560 : vector<8x96xf32>
    %562 = tpu.reciprocal %556 {approx = true} : vector<8x96xf32> -> vector<8x96xf32>
    %563 = arith.mulf %561, %562 : vector<8x96xf32>
    %cst_128 = arith.constant 1.000000e+00 : f32
    %564 = vector.broadcast %cst_128 : f32 to vector<8x96xf32>
    %565 = arith.maximumf %564, %563 : vector<8x96xf32>
    %566 = arith.mulf %565, %550 : vector<8x96xf32>
    %567 = arith.mulf %62, %566 : vector<8x96xf32>
    %568 = arith.mulf %565, %551 : vector<8x96xf32>
    %569 = arith.mulf %63, %568 : vector<8x96xf32>
    %570 = arith.subf %540, %567 : vector<8x96xf32>
    %571 = arith.subf %541, %569 : vector<8x96xf32>
    %572 = arith.mulf %570, %570 : vector<8x96xf32>
    %573 = arith.mulf %571, %571 : vector<8x96xf32>
    %574 = arith.addf %572, %573 : vector<8x96xf32>
    %cst_129 = arith.constant dense<0.000000e+00> : vector<8xf32>
    %575 = vector.multi_reduction <add>, %574, %cst_129 [1] : vector<8x96xf32> to vector<8xf32>
    %576 = vector.shape_cast %575 : vector<8xf32> to vector<8x1xf32>
    %577 = arith.mulf %533, %533 : vector<8x16xf32>
    %578 = arith.mulf %535, %535 : vector<8x16xf32>
    %579 = arith.addf %577, %578 : vector<8x16xf32>
    %cst_130 = arith.constant 9.99999968E-21 : f32
    %580 = vector.broadcast %cst_130 : f32 to vector<8x16xf32>
    %581 = arith.addf %579, %580 : vector<8x16xf32>
    %582 = math.rsqrt %581 : vector<8x16xf32>
    %583 = arith.mulf %533, %582 : vector<8x16xf32>
    %584 = arith.mulf %535, %582 : vector<8x16xf32>
    %cst_131 = arith.constant 0.000000e+00 : f32
    %585 = vector.broadcast %cst_131 : f32 to vector<8x16xf32>
    %586 = arith.cmpf ogt, %533, %585 : vector<8x16xf32>
    %587 = math.absf %535 : vector<8x16xf32>
    %cst_132 = arith.constant 0.434631199 : f32
    %588 = vector.broadcast %cst_132 : f32 to vector<8x16xf32>
    %589 = arith.mulf %533, %588 : vector<8x16xf32>
    %590 = arith.cmpf ole, %587, %589 : vector<8x16xf32>
    %591 = arith.andi %586, %590 : vector<8x16xi1>
    %cst_133 = arith.constant 0.000000e+00 : f32
    %592 = vector.broadcast %cst_133 : f32 to vector<8x16xf32>
    %593 = arith.cmpf oge, %535, %592 : vector<8x16xf32>
    %cst_134 = arith.constant 1.000000e+00 : f32
    %cst_135 = arith.constant -1.000000e+00 : f32
    %594 = vector.broadcast %cst_134 : f32 to vector<8x16xf32>
    %595 = vector.broadcast %cst_135 : f32 to vector<8x16xf32>
    %596 = arith.select %593, %594, %595 : vector<8x16xi1>, vector<8x16xf32>
    %cst_136 = arith.constant 0.917120814 : f32
    %597 = vector.broadcast %cst_136 : f32 to vector<8x16xf32>
    %598 = arith.select %591, %583, %597 : vector<8x16xi1>, vector<8x16xf32>
    %cst_137 = arith.constant 0.39860934 : f32
    %599 = vector.broadcast %cst_137 : f32 to vector<8x16xf32>
    %600 = arith.mulf %596, %599 : vector<8x16xf32>
    %601 = arith.select %591, %584, %600 : vector<8x16xi1>, vector<8x16xf32>
    %602 = arith.mulf %533, %598 : vector<8x16xf32>
    %603 = arith.mulf %535, %601 : vector<8x16xf32>
    %604 = arith.addf %602, %603 : vector<8x16xf32>
    %cst_138 = arith.constant 1.000000e-03 : f32
    %cst_139 = arith.constant 1.800000e+01 : f32
    %605 = vector.broadcast %cst_138 : f32 to vector<8x16xf32>
    %606 = arith.maximumf %605, %604 : vector<8x16xf32>
    %607 = vector.broadcast %cst_139 : f32 to vector<8x16xf32>
    %608 = arith.minimumf %607, %606 : vector<8x16xf32>
    %609 = arith.mulf %608, %598 : vector<8x16xf32>
    %610 = arith.mulf %608, %601 : vector<8x16xf32>
    %611 = arith.subf %533, %609 : vector<8x16xf32>
    %612 = arith.subf %535, %610 : vector<8x16xf32>
    %cst_140 = arith.constant 9.99999974E-5 : f32
    %613 = vector.broadcast %cst_140 : f32 to vector<8x16xf32>
    %614 = arith.addf %534, %613 : vector<8x16xf32>
    %cst_141 = arith.constant 9.99999974E-5 : f32
    %615 = vector.broadcast %cst_141 : f32 to vector<8x16xf32>
    %616 = arith.addf %536, %615 : vector<8x16xf32>
    %617 = arith.mulf %614, %614 : vector<8x16xf32>
    %618 = arith.mulf %616, %616 : vector<8x16xf32>
    %619 = arith.addf %617, %618 : vector<8x16xf32>
    %cst_142 = arith.constant 9.99999968E-21 : f32
    %620 = vector.broadcast %cst_142 : f32 to vector<8x16xf32>
    %621 = arith.addf %619, %620 : vector<8x16xf32>
    %622 = math.rsqrt %621 : vector<8x16xf32>
    %623 = arith.mulf %614, %622 : vector<8x16xf32>
    %624 = arith.mulf %616, %622 : vector<8x16xf32>
    %625 = arith.mulf %534, %623 : vector<8x16xf32>
    %626 = arith.mulf %536, %624 : vector<8x16xf32>
    %627 = arith.addf %625, %626 : vector<8x16xf32>
    %cst_143 = arith.constant 0.000000e+00 : f32
    %cst_144 = arith.constant 6.000000e+00 : f32
    %628 = vector.broadcast %cst_143 : f32 to vector<8x16xf32>
    %629 = arith.maximumf %628, %627 : vector<8x16xf32>
    %630 = vector.broadcast %cst_144 : f32 to vector<8x16xf32>
    %631 = arith.minimumf %630, %629 : vector<8x16xf32>
    %632 = arith.mulf %631, %623 : vector<8x16xf32>
    %633 = arith.mulf %631, %624 : vector<8x16xf32>
    %634 = arith.subf %534, %632 : vector<8x16xf32>
    %635 = arith.subf %536, %633 : vector<8x16xf32>
    %636 = vector.broadcast %58 : vector<8x1xf32> to vector<8x16xf32>
    %637 = arith.subf %537, %636 : vector<8x16xf32>
    %cst_145 = arith.constant 0.000000e+00 : f32
    %638 = vector.broadcast %cst_145 : f32 to vector<8x16xf32>
    %639 = arith.maximumf %637, %638 : vector<8x16xf32>
    %640 = vector.broadcast %59 : vector<8x1xf32> to vector<8x16xf32>
    %641 = arith.subf %640, %537 : vector<8x16xf32>
    %cst_146 = arith.constant 0.000000e+00 : f32
    %642 = vector.broadcast %cst_146 : f32 to vector<8x16xf32>
    %643 = arith.maximumf %641, %642 : vector<8x16xf32>
    %644 = vector.broadcast %58 : vector<8x1xf32> to vector<8x16xf32>
    %645 = arith.minimumf %537, %644 : vector<8x16xf32>
    %646 = vector.broadcast %59 : vector<8x1xf32> to vector<8x16xf32>
    %647 = arith.maximumf %537, %646 : vector<8x16xf32>
    %cst_147 = arith.constant 0.000000e+00 : f32
    %648 = vector.broadcast %cst_147 : f32 to vector<8x16xf32>
    %649 = arith.subf %648, %647 : vector<8x16xf32>
    %650 = tpu.concatenate %634, %611, %570, %635, %612, %571, %639, %643 in 1 : vector<8x16xf32>, vector<8x16xf32>, vector<8x96xf32>, vector<8x16xf32>, vector<8x16xf32>, vector<8x96xf32>, vector<8x16xf32>, vector<8x16xf32> -> vector<8x288xf32>
    %651 = tpu.concatenate %632, %609, %567, %633, %610, %569, %645, %649 in 1 : vector<8x16xf32>, vector<8x16xf32>, vector<8x96xf32>, vector<8x16xf32>, vector<8x16xf32>, vector<8x96xf32>, vector<8x16xf32>, vector<8x16xf32> -> vector<8x288xf32>
    %652 = tpu.concatenate %650, %651 in 0 : vector<8x288xf32>, vector<8x288xf32> -> vector<16x288xf32>
    %c0_148 = arith.constant 0 : index
    %c0_149 = arith.constant 0 : index
    %653 = vector.load %arg4[%c0_148, %c0_149] : memref<472x64xf32, #tpu.memory_space<vmem>>, vector<288x16xf32>
    %cst_150 = arith.constant dense<0.000000e+00> : vector<16x16xf32>
    %654 = tpu.matmul %652, %653, %cst_150 {dimension_numbers = #tpu.dot_dimension_numbers<[1], [0], [0], [1], [0, 0, 1, 1], [], []>} : vector<16x288xf32>, vector<288x16xf32>, vector<16x16xf32> -> vector<16x16xf32>
    %655 = vector.extract_strided_slice %654 {offsets = [0, 0], sizes = [8, 16], strides = [1, 1]} : vector<16x16xf32> to vector<8x16xf32>
    %656 = arith.subf %442, %655 : vector<8x16xf32>
    %657 = vector.extract_strided_slice %654 {offsets = [8, 0], sizes = [8, 16], strides = [1, 1]} : vector<16x16xf32> to vector<8x16xf32>
    %658 = arith.addf %656, %657 : vector<8x16xf32>
    %659 = arith.mulf %634, %634 : vector<8x16xf32>
    %660 = arith.mulf %635, %635 : vector<8x16xf32>
    %661 = arith.addf %659, %660 : vector<8x16xf32>
    %cst_151 = arith.constant dense<0.000000e+00> : vector<8xf32>
    %662 = vector.multi_reduction <add>, %661, %cst_151 [1] : vector<8x16xf32> to vector<8xf32>
    %663 = vector.shape_cast %662 : vector<8xf32> to vector<8x1xf32>
    %664 = math.sqrt %663 : vector<8x1xf32>
    %665 = arith.mulf %611, %611 : vector<8x16xf32>
    %666 = arith.mulf %612, %612 : vector<8x16xf32>
    %667 = arith.addf %665, %666 : vector<8x16xf32>
    %cst_152 = arith.constant dense<0.000000e+00> : vector<8xf32>
    %668 = vector.multi_reduction <add>, %667, %cst_152 [1] : vector<8x16xf32> to vector<8xf32>
    %669 = vector.shape_cast %668 : vector<8xf32> to vector<8x1xf32>
    %670 = math.sqrt %669 : vector<8x1xf32>
    %671 = arith.addf %664, %670 : vector<8x1xf32>
    %672 = math.sqrt %576 : vector<8x1xf32>
    %673 = arith.addf %671, %672 : vector<8x1xf32>
    %674 = arith.mulf %639, %639 : vector<8x16xf32>
    %675 = arith.mulf %643, %643 : vector<8x16xf32>
    %676 = arith.addf %674, %675 : vector<8x16xf32>
    %cst_153 = arith.constant dense<0.000000e+00> : vector<8xf32>
    %677 = vector.multi_reduction <add>, %676, %cst_153 [1] : vector<8x16xf32> to vector<8xf32>
    %678 = vector.shape_cast %677 : vector<8xf32> to vector<8x1xf32>
    %679 = math.sqrt %678 : vector<8x1xf32>
    %680 = arith.addf %673, %679 : vector<8x1xf32>
    %c288_154 = arith.constant 288 : index
    %c0_155 = arith.constant 0 : index
    %681 = vector.load %arg4[%c288_154, %c0_155] : memref<472x64xf32, #tpu.memory_space<vmem>>, vector<16x16xf32>
    %cst_156 = arith.constant dense<0.000000e+00> : vector<8x16xf32>
    %682 = tpu.matmul %658, %681, %cst_156 {dimension_numbers = #tpu.dot_dimension_numbers<[1], [0], [0], [1], [0, 0, 1, 1], [], []>} : vector<8x16xf32>, vector<16x16xf32>, vector<8x16xf32> -> vector<8x16xf32>
    %683 = arith.addf %682, %93 : vector<8x16xf32>
    %684 = arith.subf %683, %532 : vector<8x16xf32>
    %685 = arith.subf %656, %442 : vector<8x16xf32>
    %686 = tpu.concatenate %532, %442, %683, %656, %684, %685, %502 in 1 : vector<8x16xf32>, vector<8x16xf32>, vector<8x16xf32>, vector<8x16xf32>, vector<8x16xf32>, vector<8x16xf32>, vector<8x32xf32> -> vector<8x128xf32>
    %c0_157 = arith.constant 0 : index
    %c0_158 = arith.constant 0 : index
    %687 = vector.load %arg3[%c0_157, %c0_158] : memref<136x256xf32, #tpu.memory_space<vmem>>, vector<128x256xf32>
    %cst_159 = arith.constant dense<0.000000e+00> : vector<8x256xf32>
    %688 = tpu.matmul %686, %687, %cst_159 {dimension_numbers = #tpu.dot_dimension_numbers<[1], [0], [0], [1], [0, 0, 1, 1], [], []>} : vector<8x128xf32>, vector<128x256xf32>, vector<8x256xf32> -> vector<8x256xf32>
    %c128_160 = arith.constant 128 : index
    %c0_161 = arith.constant 0 : index
    %689 = vector.load %arg3[%c128_160, %c0_161] : memref<136x256xf32, #tpu.memory_space<vmem>>, vector<1x256xf32>
    %690 = vector.broadcast %689 : vector<1x256xf32> to vector<8x256xf32>
    %691 = arith.addf %688, %690 : vector<8x256xf32>
    %692 = vector.extract_strided_slice %691 {offsets = [0, 0], sizes = [8, 96], strides = [1, 1]} : vector<8x256xf32> to vector<8x96xf32>
    %693 = vector.extract_strided_slice %691 {offsets = [0, 128], sizes = [8, 96], strides = [1, 1]} : vector<8x256xf32> to vector<8x96xf32>
    %694 = arith.addf %692, %693 : vector<8x96xf32>
    %695 = vector.extract_strided_slice %694 {offsets = [0, 0], sizes = [8, 32], strides = [1, 1]} : vector<8x96xf32> to vector<8x32xf32>
    %696 = arith.negf %695 : vector<8x32xf32>
    %697 = math.exp %696 : vector<8x32xf32>
    %cst_162 = arith.constant 1.000000e+00 : f32
    %698 = vector.broadcast %cst_162 : f32 to vector<8x32xf32>
    %699 = arith.addf %698, %697 : vector<8x32xf32>
    %700 = arith.divf %698, %699 : vector<8x32xf32>
    %701 = vector.extract_strided_slice %694 {offsets = [0, 32], sizes = [8, 32], strides = [1, 1]} : vector<8x96xf32> to vector<8x32xf32>
    %702 = arith.negf %701 : vector<8x32xf32>
    %703 = math.exp %702 : vector<8x32xf32>
    %cst_163 = arith.constant 1.000000e+00 : f32
    %704 = vector.broadcast %cst_163 : f32 to vector<8x32xf32>
    %705 = arith.addf %704, %703 : vector<8x32xf32>
    %706 = arith.divf %704, %705 : vector<8x32xf32>
    %707 = vector.extract_strided_slice %692 {offsets = [0, 64], sizes = [8, 32], strides = [1, 1]} : vector<8x96xf32> to vector<8x32xf32>
    %708 = vector.extract_strided_slice %693 {offsets = [0, 64], sizes = [8, 32], strides = [1, 1]} : vector<8x96xf32> to vector<8x32xf32>
    %709 = arith.mulf %700, %708 : vector<8x32xf32>
    %710 = arith.addf %707, %709 : vector<8x32xf32>
    %711 = math.tanh %710 : vector<8x32xf32>
    %cst_164 = arith.constant 1.000000e+00 : f32
    %712 = vector.broadcast %cst_164 : f32 to vector<8x32xf32>
    %713 = arith.subf %712, %706 : vector<8x32xf32>
    %714 = arith.mulf %713, %711 : vector<8x32xf32>
    %715 = arith.mulf %706, %502 : vector<8x32xf32>
    %716 = arith.addf %714, %715 : vector<8x32xf32>
    %c0_165 = arith.constant 0 : index
    %c0_166 = arith.constant 0 : index
    %717 = vector.load %arg2[%c0_165, %c0_166] : memref<64x384xf32, #tpu.memory_space<vmem>>, vector<16x384xf32>
    %cst_167 = arith.constant dense<0.000000e+00> : vector<8x384xf32>
    %718 = tpu.matmul %683, %717, %cst_167 {dimension_numbers = #tpu.dot_dimension_numbers<[1], [0], [0], [1], [0, 0, 1, 1], [], []>} : vector<8x16xf32>, vector<16x384xf32>, vector<8x384xf32> -> vector<8x384xf32>
    %c24_168 = arith.constant 24 : index
    %c0_169 = arith.constant 0 : index
    %719 = vector.load %arg2[%c24_168, %c0_169] : memref<64x384xf32, #tpu.memory_space<vmem>>, vector<32x384xf32>
    %cst_170 = arith.constant dense<0.000000e+00> : vector<8x384xf32>
    %720 = tpu.matmul %716, %719, %cst_170 {dimension_numbers = #tpu.dot_dimension_numbers<[1], [0], [0], [1], [0, 0, 1, 1], [], []>} : vector<8x32xf32>, vector<32x384xf32>, vector<8x384xf32> -> vector<8x384xf32>
    %721 = arith.addf %718, %720 : vector<8x384xf32>
    %722 = arith.addf %721, %98 : vector<8x384xf32>
    %723 = arith.addf %509, %680 : vector<8x1xf32>
    %724 = vector.extract_strided_slice %722 {offsets = [0, 0], sizes = [8, 16], strides = [1, 1]} : vector<8x384xf32> to vector<8x16xf32>
    %725 = arith.subf %724, %532 : vector<8x16xf32>
    %726 = arith.subf %656, %442 : vector<8x16xf32>
    %727 = arith.mulf %725, %725 : vector<8x16xf32>
    %cst_171 = arith.constant dense<0.000000e+00> : vector<8xf32>
    %728 = vector.multi_reduction <add>, %727, %cst_171 [1] : vector<8x16xf32> to vector<8xf32>
    %729 = vector.shape_cast %728 : vector<8xf32> to vector<8x1xf32>
    %730 = math.sqrt %729 : vector<8x1xf32>
    %731 = vector.extract_strided_slice %726 {offsets = [0, 0], sizes = [8, 8], strides = [1, 1]} : vector<8x16xf32> to vector<8x8xf32>
    %732 = vector.extract_strided_slice %726 {offsets = [0, 0], sizes = [8, 8], strides = [1, 1]} : vector<8x16xf32> to vector<8x8xf32>
    %733 = arith.mulf %731, %732 : vector<8x8xf32>
    %cst_172 = arith.constant dense<0.000000e+00> : vector<8xf32>
    %734 = vector.multi_reduction <add>, %733, %cst_172 [1] : vector<8x8xf32> to vector<8xf32>
    %735 = vector.shape_cast %734 : vector<8xf32> to vector<8x1xf32>
    %736 = math.sqrt %735 : vector<8x1xf32>
    %737 = arith.addf %730, %736 : vector<8x1xf32>
    %738 = vector.extract_strided_slice %726 {offsets = [0, 8], sizes = [8, 8], strides = [1, 1]} : vector<8x16xf32> to vector<8x8xf32>
    %739 = vector.extract_strided_slice %726 {offsets = [0, 8], sizes = [8, 8], strides = [1, 1]} : vector<8x16xf32> to vector<8x8xf32>
    %740 = arith.mulf %738, %739 : vector<8x8xf32>
    %cst_173 = arith.constant dense<0.000000e+00> : vector<8xf32>
    %741 = vector.multi_reduction <add>, %740, %cst_173 [1] : vector<8x8xf32> to vector<8xf32>
    %742 = vector.shape_cast %741 : vector<8xf32> to vector<8x1xf32>
    %743 = math.sqrt %742 : vector<8x1xf32>
    %744 = arith.addf %737, %743 : vector<8x1xf32>
    %745 = arith.addf %531, %744 : vector<8x1xf32>
    %746 = vector.extract_strided_slice %722 {offsets = [0, 0], sizes = [8, 16], strides = [1, 1]} : vector<8x384xf32> to vector<8x16xf32>
    %747 = vector.extract_strided_slice %722 {offsets = [0, 16], sizes = [8, 16], strides = [1, 1]} : vector<8x384xf32> to vector<8x16xf32>
    %748 = vector.extract_strided_slice %722 {offsets = [0, 32], sizes = [8, 16], strides = [1, 1]} : vector<8x384xf32> to vector<8x16xf32>
    %749 = vector.extract_strided_slice %722 {offsets = [0, 48], sizes = [8, 16], strides = [1, 1]} : vector<8x384xf32> to vector<8x16xf32>
    %750 = vector.extract_strided_slice %722 {offsets = [0, 64], sizes = [8, 16], strides = [1, 1]} : vector<8x384xf32> to vector<8x16xf32>
    %751 = vector.extract_strided_slice %722 {offsets = [0, 80], sizes = [8, 16], strides = [1, 1]} : vector<8x384xf32> to vector<8x16xf32>
    %752 = vector.extract_strided_slice %722 {offsets = [0, 128], sizes = [8, 96], strides = [1, 1]} : vector<8x384xf32> to vector<8x96xf32>
    %753 = vector.extract_strided_slice %722 {offsets = [0, 256], sizes = [8, 96], strides = [1, 1]} : vector<8x384xf32> to vector<8x96xf32>
    %754 = arith.subf %752, %60 : vector<8x96xf32>
    %755 = arith.subf %753, %61 : vector<8x96xf32>
    %756 = arith.mulf %754, %63 : vector<8x96xf32>
    %757 = arith.mulf %755, %62 : vector<8x96xf32>
    %758 = arith.mulf %756, %756 : vector<8x96xf32>
    %759 = arith.mulf %757, %757 : vector<8x96xf32>
    %760 = arith.addf %758, %759 : vector<8x96xf32>
    %cst_174 = arith.constant 9.99999968E-21 : f32
    %761 = vector.broadcast %cst_174 : f32 to vector<8x96xf32>
    %762 = arith.addf %760, %761 : vector<8x96xf32>
    %763 = math.rsqrt %762 : vector<8x96xf32>
    %764 = arith.mulf %756, %763 : vector<8x96xf32>
    %765 = arith.mulf %757, %763 : vector<8x96xf32>
    %766 = arith.mulf %64, %764 : vector<8x96xf32>
    %767 = arith.mulf %766, %764 : vector<8x96xf32>
    %768 = arith.mulf %65, %765 : vector<8x96xf32>
    %769 = arith.mulf %768, %765 : vector<8x96xf32>
    %770 = arith.addf %767, %769 : vector<8x96xf32>
    %771 = arith.mulf %62, %754 : vector<8x96xf32>
    %772 = arith.mulf %771, %764 : vector<8x96xf32>
    %773 = arith.mulf %63, %755 : vector<8x96xf32>
    %774 = arith.mulf %773, %765 : vector<8x96xf32>
    %775 = arith.addf %772, %774 : vector<8x96xf32>
    %776 = tpu.reciprocal %770 {approx = true} : vector<8x96xf32> -> vector<8x96xf32>
    %777 = arith.mulf %775, %776 : vector<8x96xf32>
    %cst_175 = arith.constant 1.000000e+00 : f32
    %778 = vector.broadcast %cst_175 : f32 to vector<8x96xf32>
    %779 = arith.maximumf %778, %777 : vector<8x96xf32>
    %780 = arith.mulf %779, %764 : vector<8x96xf32>
    %781 = arith.mulf %62, %780 : vector<8x96xf32>
    %782 = arith.mulf %779, %765 : vector<8x96xf32>
    %783 = arith.mulf %63, %782 : vector<8x96xf32>
    %784 = arith.subf %754, %781 : vector<8x96xf32>
    %785 = arith.subf %755, %783 : vector<8x96xf32>
    %786 = arith.mulf %784, %784 : vector<8x96xf32>
    %787 = arith.mulf %785, %785 : vector<8x96xf32>
    %788 = arith.addf %786, %787 : vector<8x96xf32>
    %cst_176 = arith.constant dense<0.000000e+00> : vector<8xf32>
    %789 = vector.multi_reduction <add>, %788, %cst_176 [1] : vector<8x96xf32> to vector<8xf32>
    %790 = vector.shape_cast %789 : vector<8xf32> to vector<8x1xf32>
    %791 = arith.mulf %747, %747 : vector<8x16xf32>
    %792 = arith.mulf %749, %749 : vector<8x16xf32>
    %793 = arith.addf %791, %792 : vector<8x16xf32>
    %cst_177 = arith.constant 9.99999968E-21 : f32
    %794 = vector.broadcast %cst_177 : f32 to vector<8x16xf32>
    %795 = arith.addf %793, %794 : vector<8x16xf32>
    %796 = math.rsqrt %795 : vector<8x16xf32>
    %797 = arith.mulf %747, %796 : vector<8x16xf32>
    %798 = arith.mulf %749, %796 : vector<8x16xf32>
    %cst_178 = arith.constant 0.000000e+00 : f32
    %799 = vector.broadcast %cst_178 : f32 to vector<8x16xf32>
    %800 = arith.cmpf ogt, %747, %799 : vector<8x16xf32>
    %801 = math.absf %749 : vector<8x16xf32>
    %cst_179 = arith.constant 0.434631199 : f32
    %802 = vector.broadcast %cst_179 : f32 to vector<8x16xf32>
    %803 = arith.mulf %747, %802 : vector<8x16xf32>
    %804 = arith.cmpf ole, %801, %803 : vector<8x16xf32>
    %805 = arith.andi %800, %804 : vector<8x16xi1>
    %cst_180 = arith.constant 0.000000e+00 : f32
    %806 = vector.broadcast %cst_180 : f32 to vector<8x16xf32>
    %807 = arith.cmpf oge, %749, %806 : vector<8x16xf32>
    %cst_181 = arith.constant 1.000000e+00 : f32
    %cst_182 = arith.constant -1.000000e+00 : f32
    %808 = vector.broadcast %cst_181 : f32 to vector<8x16xf32>
    %809 = vector.broadcast %cst_182 : f32 to vector<8x16xf32>
    %810 = arith.select %807, %808, %809 : vector<8x16xi1>, vector<8x16xf32>
    %cst_183 = arith.constant 0.917120814 : f32
    %811 = vector.broadcast %cst_183 : f32 to vector<8x16xf32>
    %812 = arith.select %805, %797, %811 : vector<8x16xi1>, vector<8x16xf32>
    %cst_184 = arith.constant 0.39860934 : f32
    %813 = vector.broadcast %cst_184 : f32 to vector<8x16xf32>
    %814 = arith.mulf %810, %813 : vector<8x16xf32>
    %815 = arith.select %805, %798, %814 : vector<8x16xi1>, vector<8x16xf32>
    %816 = arith.mulf %747, %812 : vector<8x16xf32>
    %817 = arith.mulf %749, %815 : vector<8x16xf32>
    %818 = arith.addf %816, %817 : vector<8x16xf32>
    %cst_185 = arith.constant 1.000000e-03 : f32
    %cst_186 = arith.constant 1.800000e+01 : f32
    %819 = vector.broadcast %cst_185 : f32 to vector<8x16xf32>
    %820 = arith.maximumf %819, %818 : vector<8x16xf32>
    %821 = vector.broadcast %cst_186 : f32 to vector<8x16xf32>
    %822 = arith.minimumf %821, %820 : vector<8x16xf32>
    %823 = arith.mulf %822, %812 : vector<8x16xf32>
    %824 = arith.mulf %822, %815 : vector<8x16xf32>
    %825 = arith.subf %747, %823 : vector<8x16xf32>
    %826 = arith.subf %749, %824 : vector<8x16xf32>
    %cst_187 = arith.constant 9.99999974E-5 : f32
    %827 = vector.broadcast %cst_187 : f32 to vector<8x16xf32>
    %828 = arith.addf %748, %827 : vector<8x16xf32>
    %cst_188 = arith.constant 9.99999974E-5 : f32
    %829 = vector.broadcast %cst_188 : f32 to vector<8x16xf32>
    %830 = arith.addf %750, %829 : vector<8x16xf32>
    %831 = arith.mulf %828, %828 : vector<8x16xf32>
    %832 = arith.mulf %830, %830 : vector<8x16xf32>
    %833 = arith.addf %831, %832 : vector<8x16xf32>
    %cst_189 = arith.constant 9.99999968E-21 : f32
    %834 = vector.broadcast %cst_189 : f32 to vector<8x16xf32>
    %835 = arith.addf %833, %834 : vector<8x16xf32>
    %836 = math.rsqrt %835 : vector<8x16xf32>
    %837 = arith.mulf %828, %836 : vector<8x16xf32>
    %838 = arith.mulf %830, %836 : vector<8x16xf32>
    %839 = arith.mulf %748, %837 : vector<8x16xf32>
    %840 = arith.mulf %750, %838 : vector<8x16xf32>
    %841 = arith.addf %839, %840 : vector<8x16xf32>
    %cst_190 = arith.constant 0.000000e+00 : f32
    %cst_191 = arith.constant 6.000000e+00 : f32
    %842 = vector.broadcast %cst_190 : f32 to vector<8x16xf32>
    %843 = arith.maximumf %842, %841 : vector<8x16xf32>
    %844 = vector.broadcast %cst_191 : f32 to vector<8x16xf32>
    %845 = arith.minimumf %844, %843 : vector<8x16xf32>
    %846 = arith.mulf %845, %837 : vector<8x16xf32>
    %847 = arith.mulf %845, %838 : vector<8x16xf32>
    %848 = arith.subf %748, %846 : vector<8x16xf32>
    %849 = arith.subf %750, %847 : vector<8x16xf32>
    %850 = vector.broadcast %58 : vector<8x1xf32> to vector<8x16xf32>
    %851 = arith.subf %751, %850 : vector<8x16xf32>
    %cst_192 = arith.constant 0.000000e+00 : f32
    %852 = vector.broadcast %cst_192 : f32 to vector<8x16xf32>
    %853 = arith.maximumf %851, %852 : vector<8x16xf32>
    %854 = vector.broadcast %59 : vector<8x1xf32> to vector<8x16xf32>
    %855 = arith.subf %854, %751 : vector<8x16xf32>
    %cst_193 = arith.constant 0.000000e+00 : f32
    %856 = vector.broadcast %cst_193 : f32 to vector<8x16xf32>
    %857 = arith.maximumf %855, %856 : vector<8x16xf32>
    %858 = vector.broadcast %58 : vector<8x1xf32> to vector<8x16xf32>
    %859 = arith.minimumf %751, %858 : vector<8x16xf32>
    %860 = vector.broadcast %59 : vector<8x1xf32> to vector<8x16xf32>
    %861 = arith.maximumf %751, %860 : vector<8x16xf32>
    %cst_194 = arith.constant 0.000000e+00 : f32
    %862 = vector.broadcast %cst_194 : f32 to vector<8x16xf32>
    %863 = arith.subf %862, %861 : vector<8x16xf32>
    %864 = tpu.concatenate %848, %825, %784, %849, %826, %785, %853, %857 in 1 : vector<8x16xf32>, vector<8x16xf32>, vector<8x96xf32>, vector<8x16xf32>, vector<8x16xf32>, vector<8x96xf32>, vector<8x16xf32>, vector<8x16xf32> -> vector<8x288xf32>
    %865 = tpu.concatenate %846, %823, %781, %847, %824, %783, %859, %863 in 1 : vector<8x16xf32>, vector<8x16xf32>, vector<8x96xf32>, vector<8x16xf32>, vector<8x16xf32>, vector<8x96xf32>, vector<8x16xf32>, vector<8x16xf32> -> vector<8x288xf32>
    %866 = tpu.concatenate %864, %865 in 0 : vector<8x288xf32>, vector<8x288xf32> -> vector<16x288xf32>
    %c0_195 = arith.constant 0 : index
    %c0_196 = arith.constant 0 : index
    %867 = vector.load %arg4[%c0_195, %c0_196] : memref<472x64xf32, #tpu.memory_space<vmem>>, vector<288x16xf32>
    %cst_197 = arith.constant dense<0.000000e+00> : vector<16x16xf32>
    %868 = tpu.matmul %866, %867, %cst_197 {dimension_numbers = #tpu.dot_dimension_numbers<[1], [0], [0], [1], [0, 0, 1, 1], [], []>} : vector<16x288xf32>, vector<288x16xf32>, vector<16x16xf32> -> vector<16x16xf32>
    %869 = vector.extract_strided_slice %868 {offsets = [0, 0], sizes = [8, 16], strides = [1, 1]} : vector<16x16xf32> to vector<8x16xf32>
    %870 = arith.subf %656, %869 : vector<8x16xf32>
    %871 = vector.extract_strided_slice %868 {offsets = [8, 0], sizes = [8, 16], strides = [1, 1]} : vector<16x16xf32> to vector<8x16xf32>
    %872 = arith.addf %870, %871 : vector<8x16xf32>
    %873 = arith.mulf %848, %848 : vector<8x16xf32>
    %874 = arith.mulf %849, %849 : vector<8x16xf32>
    %875 = arith.addf %873, %874 : vector<8x16xf32>
    %cst_198 = arith.constant dense<0.000000e+00> : vector<8xf32>
    %876 = vector.multi_reduction <add>, %875, %cst_198 [1] : vector<8x16xf32> to vector<8xf32>
    %877 = vector.shape_cast %876 : vector<8xf32> to vector<8x1xf32>
    %878 = math.sqrt %877 : vector<8x1xf32>
    %879 = arith.mulf %825, %825 : vector<8x16xf32>
    %880 = arith.mulf %826, %826 : vector<8x16xf32>
    %881 = arith.addf %879, %880 : vector<8x16xf32>
    %cst_199 = arith.constant dense<0.000000e+00> : vector<8xf32>
    %882 = vector.multi_reduction <add>, %881, %cst_199 [1] : vector<8x16xf32> to vector<8xf32>
    %883 = vector.shape_cast %882 : vector<8xf32> to vector<8x1xf32>
    %884 = math.sqrt %883 : vector<8x1xf32>
    %885 = arith.addf %878, %884 : vector<8x1xf32>
    %886 = math.sqrt %790 : vector<8x1xf32>
    %887 = arith.addf %885, %886 : vector<8x1xf32>
    %888 = arith.mulf %853, %853 : vector<8x16xf32>
    %889 = arith.mulf %857, %857 : vector<8x16xf32>
    %890 = arith.addf %888, %889 : vector<8x16xf32>
    %cst_200 = arith.constant dense<0.000000e+00> : vector<8xf32>
    %891 = vector.multi_reduction <add>, %890, %cst_200 [1] : vector<8x16xf32> to vector<8xf32>
    %892 = vector.shape_cast %891 : vector<8xf32> to vector<8x1xf32>
    %893 = math.sqrt %892 : vector<8x1xf32>
    %894 = arith.addf %887, %893 : vector<8x1xf32>
    %c288_201 = arith.constant 288 : index
    %c0_202 = arith.constant 0 : index
    %895 = vector.load %arg4[%c288_201, %c0_202] : memref<472x64xf32, #tpu.memory_space<vmem>>, vector<16x16xf32>
    %cst_203 = arith.constant dense<0.000000e+00> : vector<8x16xf32>
    %896 = tpu.matmul %872, %895, %cst_203 {dimension_numbers = #tpu.dot_dimension_numbers<[1], [0], [0], [1], [0, 0, 1, 1], [], []>} : vector<8x16xf32>, vector<16x16xf32>, vector<8x16xf32> -> vector<8x16xf32>
    %897 = arith.addf %896, %93 : vector<8x16xf32>
    %898 = arith.subf %897, %746 : vector<8x16xf32>
    %899 = arith.subf %870, %656 : vector<8x16xf32>
    %900 = tpu.concatenate %746, %656, %897, %870, %898, %899, %716 in 1 : vector<8x16xf32>, vector<8x16xf32>, vector<8x16xf32>, vector<8x16xf32>, vector<8x16xf32>, vector<8x16xf32>, vector<8x32xf32> -> vector<8x128xf32>
    %c0_204 = arith.constant 0 : index
    %c0_205 = arith.constant 0 : index
    %901 = vector.load %arg3[%c0_204, %c0_205] : memref<136x256xf32, #tpu.memory_space<vmem>>, vector<128x256xf32>
    %cst_206 = arith.constant dense<0.000000e+00> : vector<8x256xf32>
    %902 = tpu.matmul %900, %901, %cst_206 {dimension_numbers = #tpu.dot_dimension_numbers<[1], [0], [0], [1], [0, 0, 1, 1], [], []>} : vector<8x128xf32>, vector<128x256xf32>, vector<8x256xf32> -> vector<8x256xf32>
    %c128_207 = arith.constant 128 : index
    %c0_208 = arith.constant 0 : index
    %903 = vector.load %arg3[%c128_207, %c0_208] : memref<136x256xf32, #tpu.memory_space<vmem>>, vector<1x256xf32>
    %904 = vector.broadcast %903 : vector<1x256xf32> to vector<8x256xf32>
    %905 = arith.addf %902, %904 : vector<8x256xf32>
    %906 = vector.extract_strided_slice %905 {offsets = [0, 0], sizes = [8, 96], strides = [1, 1]} : vector<8x256xf32> to vector<8x96xf32>
    %907 = vector.extract_strided_slice %905 {offsets = [0, 128], sizes = [8, 96], strides = [1, 1]} : vector<8x256xf32> to vector<8x96xf32>
    %908 = arith.addf %906, %907 : vector<8x96xf32>
    %909 = vector.extract_strided_slice %908 {offsets = [0, 0], sizes = [8, 32], strides = [1, 1]} : vector<8x96xf32> to vector<8x32xf32>
    %910 = arith.negf %909 : vector<8x32xf32>
    %911 = math.exp %910 : vector<8x32xf32>
    %cst_209 = arith.constant 1.000000e+00 : f32
    %912 = vector.broadcast %cst_209 : f32 to vector<8x32xf32>
    %913 = arith.addf %912, %911 : vector<8x32xf32>
    %914 = arith.divf %912, %913 : vector<8x32xf32>
    %915 = vector.extract_strided_slice %908 {offsets = [0, 32], sizes = [8, 32], strides = [1, 1]} : vector<8x96xf32> to vector<8x32xf32>
    %916 = arith.negf %915 : vector<8x32xf32>
    %917 = math.exp %916 : vector<8x32xf32>
    %cst_210 = arith.constant 1.000000e+00 : f32
    %918 = vector.broadcast %cst_210 : f32 to vector<8x32xf32>
    %919 = arith.addf %918, %917 : vector<8x32xf32>
    %920 = arith.divf %918, %919 : vector<8x32xf32>
    %921 = vector.extract_strided_slice %906 {offsets = [0, 64], sizes = [8, 32], strides = [1, 1]} : vector<8x96xf32> to vector<8x32xf32>
    %922 = vector.extract_strided_slice %907 {offsets = [0, 64], sizes = [8, 32], strides = [1, 1]} : vector<8x96xf32> to vector<8x32xf32>
    %923 = arith.mulf %914, %922 : vector<8x32xf32>
    %924 = arith.addf %921, %923 : vector<8x32xf32>
    %925 = math.tanh %924 : vector<8x32xf32>
    %cst_211 = arith.constant 1.000000e+00 : f32
    %926 = vector.broadcast %cst_211 : f32 to vector<8x32xf32>
    %927 = arith.subf %926, %920 : vector<8x32xf32>
    %928 = arith.mulf %927, %925 : vector<8x32xf32>
    %929 = arith.mulf %920, %716 : vector<8x32xf32>
    %930 = arith.addf %928, %929 : vector<8x32xf32>
    %c0_212 = arith.constant 0 : index
    %c0_213 = arith.constant 0 : index
    %931 = vector.load %arg2[%c0_212, %c0_213] : memref<64x384xf32, #tpu.memory_space<vmem>>, vector<16x384xf32>
    %cst_214 = arith.constant dense<0.000000e+00> : vector<8x384xf32>
    %932 = tpu.matmul %897, %931, %cst_214 {dimension_numbers = #tpu.dot_dimension_numbers<[1], [0], [0], [1], [0, 0, 1, 1], [], []>} : vector<8x16xf32>, vector<16x384xf32>, vector<8x384xf32> -> vector<8x384xf32>
    %c24_215 = arith.constant 24 : index
    %c0_216 = arith.constant 0 : index
    %933 = vector.load %arg2[%c24_215, %c0_216] : memref<64x384xf32, #tpu.memory_space<vmem>>, vector<32x384xf32>
    %cst_217 = arith.constant dense<0.000000e+00> : vector<8x384xf32>
    %934 = tpu.matmul %930, %933, %cst_217 {dimension_numbers = #tpu.dot_dimension_numbers<[1], [0], [0], [1], [0, 0, 1, 1], [], []>} : vector<8x32xf32>, vector<32x384xf32>, vector<8x384xf32> -> vector<8x384xf32>
    %935 = arith.addf %932, %934 : vector<8x384xf32>
    %936 = arith.addf %935, %98 : vector<8x384xf32>
    %937 = arith.addf %723, %894 : vector<8x1xf32>
    %938 = vector.extract_strided_slice %936 {offsets = [0, 0], sizes = [8, 16], strides = [1, 1]} : vector<8x384xf32> to vector<8x16xf32>
    %939 = arith.subf %938, %746 : vector<8x16xf32>
    %940 = arith.subf %870, %656 : vector<8x16xf32>
    %941 = arith.mulf %939, %939 : vector<8x16xf32>
    %cst_218 = arith.constant dense<0.000000e+00> : vector<8xf32>
    %942 = vector.multi_reduction <add>, %941, %cst_218 [1] : vector<8x16xf32> to vector<8xf32>
    %943 = vector.shape_cast %942 : vector<8xf32> to vector<8x1xf32>
    %944 = math.sqrt %943 : vector<8x1xf32>
    %945 = vector.extract_strided_slice %940 {offsets = [0, 0], sizes = [8, 8], strides = [1, 1]} : vector<8x16xf32> to vector<8x8xf32>
    %946 = vector.extract_strided_slice %940 {offsets = [0, 0], sizes = [8, 8], strides = [1, 1]} : vector<8x16xf32> to vector<8x8xf32>
    %947 = arith.mulf %945, %946 : vector<8x8xf32>
    %cst_219 = arith.constant dense<0.000000e+00> : vector<8xf32>
    %948 = vector.multi_reduction <add>, %947, %cst_219 [1] : vector<8x8xf32> to vector<8xf32>
    %949 = vector.shape_cast %948 : vector<8xf32> to vector<8x1xf32>
    %950 = math.sqrt %949 : vector<8x1xf32>
    %951 = arith.addf %944, %950 : vector<8x1xf32>
    %952 = vector.extract_strided_slice %940 {offsets = [0, 8], sizes = [8, 8], strides = [1, 1]} : vector<8x16xf32> to vector<8x8xf32>
    %953 = vector.extract_strided_slice %940 {offsets = [0, 8], sizes = [8, 8], strides = [1, 1]} : vector<8x16xf32> to vector<8x8xf32>
    %954 = arith.mulf %952, %953 : vector<8x8xf32>
    %cst_220 = arith.constant dense<0.000000e+00> : vector<8xf32>
    %955 = vector.multi_reduction <add>, %954, %cst_220 [1] : vector<8x8xf32> to vector<8xf32>
    %956 = vector.shape_cast %955 : vector<8xf32> to vector<8x1xf32>
    %957 = math.sqrt %956 : vector<8x1xf32>
    %958 = arith.addf %951, %957 : vector<8x1xf32>
    %959 = arith.addf %745, %958 : vector<8x1xf32>
    %960 = vector.extract_strided_slice %936 {offsets = [0, 0], sizes = [8, 16], strides = [1, 1]} : vector<8x384xf32> to vector<8x16xf32>
    %961 = vector.extract_strided_slice %936 {offsets = [0, 16], sizes = [8, 16], strides = [1, 1]} : vector<8x384xf32> to vector<8x16xf32>
    %962 = vector.extract_strided_slice %936 {offsets = [0, 32], sizes = [8, 16], strides = [1, 1]} : vector<8x384xf32> to vector<8x16xf32>
    %963 = vector.extract_strided_slice %936 {offsets = [0, 48], sizes = [8, 16], strides = [1, 1]} : vector<8x384xf32> to vector<8x16xf32>
    %964 = vector.extract_strided_slice %936 {offsets = [0, 64], sizes = [8, 16], strides = [1, 1]} : vector<8x384xf32> to vector<8x16xf32>
    %965 = vector.extract_strided_slice %936 {offsets = [0, 80], sizes = [8, 16], strides = [1, 1]} : vector<8x384xf32> to vector<8x16xf32>
    %966 = vector.extract_strided_slice %936 {offsets = [0, 128], sizes = [8, 96], strides = [1, 1]} : vector<8x384xf32> to vector<8x96xf32>
    %967 = vector.extract_strided_slice %936 {offsets = [0, 256], sizes = [8, 96], strides = [1, 1]} : vector<8x384xf32> to vector<8x96xf32>
    %968 = arith.subf %966, %60 : vector<8x96xf32>
    %969 = arith.subf %967, %61 : vector<8x96xf32>
    %970 = arith.mulf %968, %63 : vector<8x96xf32>
    %971 = arith.mulf %969, %62 : vector<8x96xf32>
    %972 = arith.mulf %970, %970 : vector<8x96xf32>
    %973 = arith.mulf %971, %971 : vector<8x96xf32>
    %974 = arith.addf %972, %973 : vector<8x96xf32>
    %cst_221 = arith.constant 9.99999968E-21 : f32
    %975 = vector.broadcast %cst_221 : f32 to vector<8x96xf32>
    %976 = arith.addf %974, %975 : vector<8x96xf32>
    %977 = math.rsqrt %976 : vector<8x96xf32>
    %978 = arith.mulf %970, %977 : vector<8x96xf32>
    %979 = arith.mulf %971, %977 : vector<8x96xf32>
    %980 = arith.mulf %64, %978 : vector<8x96xf32>
    %981 = arith.mulf %980, %978 : vector<8x96xf32>
    %982 = arith.mulf %65, %979 : vector<8x96xf32>
    %983 = arith.mulf %982, %979 : vector<8x96xf32>
    %984 = arith.addf %981, %983 : vector<8x96xf32>
    %985 = arith.mulf %62, %968 : vector<8x96xf32>
    %986 = arith.mulf %985, %978 : vector<8x96xf32>
    %987 = arith.mulf %63, %969 : vector<8x96xf32>
    %988 = arith.mulf %987, %979 : vector<8x96xf32>
    %989 = arith.addf %986, %988 : vector<8x96xf32>
    %990 = tpu.reciprocal %984 {approx = true} : vector<8x96xf32> -> vector<8x96xf32>
    %991 = arith.mulf %989, %990 : vector<8x96xf32>
    %cst_222 = arith.constant 1.000000e+00 : f32
    %992 = vector.broadcast %cst_222 : f32 to vector<8x96xf32>
    %993 = arith.maximumf %992, %991 : vector<8x96xf32>
    %994 = arith.mulf %993, %978 : vector<8x96xf32>
    %995 = arith.mulf %62, %994 : vector<8x96xf32>
    %996 = arith.mulf %993, %979 : vector<8x96xf32>
    %997 = arith.mulf %63, %996 : vector<8x96xf32>
    %998 = arith.subf %968, %995 : vector<8x96xf32>
    %999 = arith.subf %969, %997 : vector<8x96xf32>
    %1000 = arith.mulf %998, %998 : vector<8x96xf32>
    %1001 = arith.mulf %999, %999 : vector<8x96xf32>
    %1002 = arith.addf %1000, %1001 : vector<8x96xf32>
    %cst_223 = arith.constant dense<0.000000e+00> : vector<8xf32>
    %1003 = vector.multi_reduction <add>, %1002, %cst_223 [1] : vector<8x96xf32> to vector<8xf32>
    %1004 = vector.shape_cast %1003 : vector<8xf32> to vector<8x1xf32>
    %1005 = arith.mulf %961, %961 : vector<8x16xf32>
    %1006 = arith.mulf %963, %963 : vector<8x16xf32>
    %1007 = arith.addf %1005, %1006 : vector<8x16xf32>
    %cst_224 = arith.constant 9.99999968E-21 : f32
    %1008 = vector.broadcast %cst_224 : f32 to vector<8x16xf32>
    %1009 = arith.addf %1007, %1008 : vector<8x16xf32>
    %1010 = math.rsqrt %1009 : vector<8x16xf32>
    %1011 = arith.mulf %961, %1010 : vector<8x16xf32>
    %1012 = arith.mulf %963, %1010 : vector<8x16xf32>
    %cst_225 = arith.constant 0.000000e+00 : f32
    %1013 = vector.broadcast %cst_225 : f32 to vector<8x16xf32>
    %1014 = arith.cmpf ogt, %961, %1013 : vector<8x16xf32>
    %1015 = math.absf %963 : vector<8x16xf32>
    %cst_226 = arith.constant 0.434631199 : f32
    %1016 = vector.broadcast %cst_226 : f32 to vector<8x16xf32>
    %1017 = arith.mulf %961, %1016 : vector<8x16xf32>
    %1018 = arith.cmpf ole, %1015, %1017 : vector<8x16xf32>
    %1019 = arith.andi %1014, %1018 : vector<8x16xi1>
    %cst_227 = arith.constant 0.000000e+00 : f32
    %1020 = vector.broadcast %cst_227 : f32 to vector<8x16xf32>
    %1021 = arith.cmpf oge, %963, %1020 : vector<8x16xf32>
    %cst_228 = arith.constant 1.000000e+00 : f32
    %cst_229 = arith.constant -1.000000e+00 : f32
    %1022 = vector.broadcast %cst_228 : f32 to vector<8x16xf32>
    %1023 = vector.broadcast %cst_229 : f32 to vector<8x16xf32>
    %1024 = arith.select %1021, %1022, %1023 : vector<8x16xi1>, vector<8x16xf32>
    %cst_230 = arith.constant 0.917120814 : f32
    %1025 = vector.broadcast %cst_230 : f32 to vector<8x16xf32>
    %1026 = arith.select %1019, %1011, %1025 : vector<8x16xi1>, vector<8x16xf32>
    %cst_231 = arith.constant 0.39860934 : f32
    %1027 = vector.broadcast %cst_231 : f32 to vector<8x16xf32>
    %1028 = arith.mulf %1024, %1027 : vector<8x16xf32>
    %1029 = arith.select %1019, %1012, %1028 : vector<8x16xi1>, vector<8x16xf32>
    %1030 = arith.mulf %961, %1026 : vector<8x16xf32>
    %1031 = arith.mulf %963, %1029 : vector<8x16xf32>
    %1032 = arith.addf %1030, %1031 : vector<8x16xf32>
    %cst_232 = arith.constant 1.000000e-03 : f32
    %cst_233 = arith.constant 1.800000e+01 : f32
    %1033 = vector.broadcast %cst_232 : f32 to vector<8x16xf32>
    %1034 = arith.maximumf %1033, %1032 : vector<8x16xf32>
    %1035 = vector.broadcast %cst_233 : f32 to vector<8x16xf32>
    %1036 = arith.minimumf %1035, %1034 : vector<8x16xf32>
    %1037 = arith.mulf %1036, %1026 : vector<8x16xf32>
    %1038 = arith.mulf %1036, %1029 : vector<8x16xf32>
    %1039 = arith.subf %961, %1037 : vector<8x16xf32>
    %1040 = arith.subf %963, %1038 : vector<8x16xf32>
    %cst_234 = arith.constant 9.99999974E-5 : f32
    %1041 = vector.broadcast %cst_234 : f32 to vector<8x16xf32>
    %1042 = arith.addf %962, %1041 : vector<8x16xf32>
    %cst_235 = arith.constant 9.99999974E-5 : f32
    %1043 = vector.broadcast %cst_235 : f32 to vector<8x16xf32>
    %1044 = arith.addf %964, %1043 : vector<8x16xf32>
    %1045 = arith.mulf %1042, %1042 : vector<8x16xf32>
    %1046 = arith.mulf %1044, %1044 : vector<8x16xf32>
    %1047 = arith.addf %1045, %1046 : vector<8x16xf32>
    %cst_236 = arith.constant 9.99999968E-21 : f32
    %1048 = vector.broadcast %cst_236 : f32 to vector<8x16xf32>
    %1049 = arith.addf %1047, %1048 : vector<8x16xf32>
    %1050 = math.rsqrt %1049 : vector<8x16xf32>
    %1051 = arith.mulf %1042, %1050 : vector<8x16xf32>
    %1052 = arith.mulf %1044, %1050 : vector<8x16xf32>
    %1053 = arith.mulf %962, %1051 : vector<8x16xf32>
    %1054 = arith.mulf %964, %1052 : vector<8x16xf32>
    %1055 = arith.addf %1053, %1054 : vector<8x16xf32>
    %cst_237 = arith.constant 0.000000e+00 : f32
    %cst_238 = arith.constant 6.000000e+00 : f32
    %1056 = vector.broadcast %cst_237 : f32 to vector<8x16xf32>
    %1057 = arith.maximumf %1056, %1055 : vector<8x16xf32>
    %1058 = vector.broadcast %cst_238 : f32 to vector<8x16xf32>
    %1059 = arith.minimumf %1058, %1057 : vector<8x16xf32>
    %1060 = arith.mulf %1059, %1051 : vector<8x16xf32>
    %1061 = arith.mulf %1059, %1052 : vector<8x16xf32>
    %1062 = arith.subf %962, %1060 : vector<8x16xf32>
    %1063 = arith.subf %964, %1061 : vector<8x16xf32>
    %1064 = vector.broadcast %58 : vector<8x1xf32> to vector<8x16xf32>
    %1065 = arith.subf %965, %1064 : vector<8x16xf32>
    %cst_239 = arith.constant 0.000000e+00 : f32
    %1066 = vector.broadcast %cst_239 : f32 to vector<8x16xf32>
    %1067 = arith.maximumf %1065, %1066 : vector<8x16xf32>
    %1068 = vector.broadcast %59 : vector<8x1xf32> to vector<8x16xf32>
    %1069 = arith.subf %1068, %965 : vector<8x16xf32>
    %cst_240 = arith.constant 0.000000e+00 : f32
    %1070 = vector.broadcast %cst_240 : f32 to vector<8x16xf32>
    %1071 = arith.maximumf %1069, %1070 : vector<8x16xf32>
    %1072 = vector.broadcast %58 : vector<8x1xf32> to vector<8x16xf32>
    %1073 = arith.minimumf %965, %1072 : vector<8x16xf32>
    %1074 = vector.broadcast %59 : vector<8x1xf32> to vector<8x16xf32>
    %1075 = arith.maximumf %965, %1074 : vector<8x16xf32>
    %cst_241 = arith.constant 0.000000e+00 : f32
    %1076 = vector.broadcast %cst_241 : f32 to vector<8x16xf32>
    %1077 = arith.subf %1076, %1075 : vector<8x16xf32>
    %1078 = tpu.concatenate %1062, %1039, %998, %1063, %1040, %999, %1067, %1071 in 1 : vector<8x16xf32>, vector<8x16xf32>, vector<8x96xf32>, vector<8x16xf32>, vector<8x16xf32>, vector<8x96xf32>, vector<8x16xf32>, vector<8x16xf32> -> vector<8x288xf32>
    %1079 = tpu.concatenate %1060, %1037, %995, %1061, %1038, %997, %1073, %1077 in 1 : vector<8x16xf32>, vector<8x16xf32>, vector<8x96xf32>, vector<8x16xf32>, vector<8x16xf32>, vector<8x96xf32>, vector<8x16xf32>, vector<8x16xf32> -> vector<8x288xf32>
    %1080 = tpu.concatenate %1078, %1079 in 0 : vector<8x288xf32>, vector<8x288xf32> -> vector<16x288xf32>
    %c0_242 = arith.constant 0 : index
    %c0_243 = arith.constant 0 : index
    %1081 = vector.load %arg4[%c0_242, %c0_243] : memref<472x64xf32, #tpu.memory_space<vmem>>, vector<288x16xf32>
    %cst_244 = arith.constant dense<0.000000e+00> : vector<16x16xf32>
    %1082 = tpu.matmul %1080, %1081, %cst_244 {dimension_numbers = #tpu.dot_dimension_numbers<[1], [0], [0], [1], [0, 0, 1, 1], [], []>} : vector<16x288xf32>, vector<288x16xf32>, vector<16x16xf32> -> vector<16x16xf32>
    %1083 = vector.extract_strided_slice %1082 {offsets = [0, 0], sizes = [8, 16], strides = [1, 1]} : vector<16x16xf32> to vector<8x16xf32>
    %1084 = arith.subf %870, %1083 : vector<8x16xf32>
    %1085 = vector.extract_strided_slice %1082 {offsets = [8, 0], sizes = [8, 16], strides = [1, 1]} : vector<16x16xf32> to vector<8x16xf32>
    %1086 = arith.addf %1084, %1085 : vector<8x16xf32>
    %1087 = arith.mulf %1062, %1062 : vector<8x16xf32>
    %1088 = arith.mulf %1063, %1063 : vector<8x16xf32>
    %1089 = arith.addf %1087, %1088 : vector<8x16xf32>
    %cst_245 = arith.constant dense<0.000000e+00> : vector<8xf32>
    %1090 = vector.multi_reduction <add>, %1089, %cst_245 [1] : vector<8x16xf32> to vector<8xf32>
    %1091 = vector.shape_cast %1090 : vector<8xf32> to vector<8x1xf32>
    %1092 = math.sqrt %1091 : vector<8x1xf32>
    %1093 = arith.mulf %1039, %1039 : vector<8x16xf32>
    %1094 = arith.mulf %1040, %1040 : vector<8x16xf32>
    %1095 = arith.addf %1093, %1094 : vector<8x16xf32>
    %cst_246 = arith.constant dense<0.000000e+00> : vector<8xf32>
    %1096 = vector.multi_reduction <add>, %1095, %cst_246 [1] : vector<8x16xf32> to vector<8xf32>
    %1097 = vector.shape_cast %1096 : vector<8xf32> to vector<8x1xf32>
    %1098 = math.sqrt %1097 : vector<8x1xf32>
    %1099 = arith.addf %1092, %1098 : vector<8x1xf32>
    %1100 = math.sqrt %1004 : vector<8x1xf32>
    %1101 = arith.addf %1099, %1100 : vector<8x1xf32>
    %1102 = arith.mulf %1067, %1067 : vector<8x16xf32>
    %1103 = arith.mulf %1071, %1071 : vector<8x16xf32>
    %1104 = arith.addf %1102, %1103 : vector<8x16xf32>
    %cst_247 = arith.constant dense<0.000000e+00> : vector<8xf32>
    %1105 = vector.multi_reduction <add>, %1104, %cst_247 [1] : vector<8x16xf32> to vector<8xf32>
    %1106 = vector.shape_cast %1105 : vector<8xf32> to vector<8x1xf32>
    %1107 = math.sqrt %1106 : vector<8x1xf32>
    %1108 = arith.addf %1101, %1107 : vector<8x1xf32>
    %c288_248 = arith.constant 288 : index
    %c0_249 = arith.constant 0 : index
    %1109 = vector.load %arg4[%c288_248, %c0_249] : memref<472x64xf32, #tpu.memory_space<vmem>>, vector<16x16xf32>
    %cst_250 = arith.constant dense<0.000000e+00> : vector<8x16xf32>
    %1110 = tpu.matmul %1086, %1109, %cst_250 {dimension_numbers = #tpu.dot_dimension_numbers<[1], [0], [0], [1], [0, 0, 1, 1], [], []>} : vector<8x16xf32>, vector<16x16xf32>, vector<8x16xf32> -> vector<8x16xf32>
    %1111 = arith.addf %1110, %93 : vector<8x16xf32>
    %1112 = arith.subf %1111, %960 : vector<8x16xf32>
    %1113 = arith.subf %1084, %870 : vector<8x16xf32>
    %1114 = tpu.concatenate %960, %870, %1111, %1084, %1112, %1113, %930 in 1 : vector<8x16xf32>, vector<8x16xf32>, vector<8x16xf32>, vector<8x16xf32>, vector<8x16xf32>, vector<8x16xf32>, vector<8x32xf32> -> vector<8x128xf32>
    %c0_251 = arith.constant 0 : index
    %c0_252 = arith.constant 0 : index
    %1115 = vector.load %arg3[%c0_251, %c0_252] : memref<136x256xf32, #tpu.memory_space<vmem>>, vector<128x256xf32>
    %cst_253 = arith.constant dense<0.000000e+00> : vector<8x256xf32>
    %1116 = tpu.matmul %1114, %1115, %cst_253 {dimension_numbers = #tpu.dot_dimension_numbers<[1], [0], [0], [1], [0, 0, 1, 1], [], []>} : vector<8x128xf32>, vector<128x256xf32>, vector<8x256xf32> -> vector<8x256xf32>
    %c128_254 = arith.constant 128 : index
    %c0_255 = arith.constant 0 : index
    %1117 = vector.load %arg3[%c128_254, %c0_255] : memref<136x256xf32, #tpu.memory_space<vmem>>, vector<1x256xf32>
    %1118 = vector.broadcast %1117 : vector<1x256xf32> to vector<8x256xf32>
    %1119 = arith.addf %1116, %1118 : vector<8x256xf32>
    %1120 = vector.extract_strided_slice %1119 {offsets = [0, 0], sizes = [8, 96], strides = [1, 1]} : vector<8x256xf32> to vector<8x96xf32>
    %1121 = vector.extract_strided_slice %1119 {offsets = [0, 128], sizes = [8, 96], strides = [1, 1]} : vector<8x256xf32> to vector<8x96xf32>
    %1122 = arith.addf %1120, %1121 : vector<8x96xf32>
    %1123 = vector.extract_strided_slice %1122 {offsets = [0, 0], sizes = [8, 32], strides = [1, 1]} : vector<8x96xf32> to vector<8x32xf32>
    %1124 = arith.negf %1123 : vector<8x32xf32>
    %1125 = math.exp %1124 : vector<8x32xf32>
    %cst_256 = arith.constant 1.000000e+00 : f32
    %1126 = vector.broadcast %cst_256 : f32 to vector<8x32xf32>
    %1127 = arith.addf %1126, %1125 : vector<8x32xf32>
    %1128 = arith.divf %1126, %1127 : vector<8x32xf32>
    %1129 = vector.extract_strided_slice %1122 {offsets = [0, 32], sizes = [8, 32], strides = [1, 1]} : vector<8x96xf32> to vector<8x32xf32>
    %1130 = arith.negf %1129 : vector<8x32xf32>
    %1131 = math.exp %1130 : vector<8x32xf32>
    %cst_257 = arith.constant 1.000000e+00 : f32
    %1132 = vector.broadcast %cst_257 : f32 to vector<8x32xf32>
    %1133 = arith.addf %1132, %1131 : vector<8x32xf32>
    %1134 = arith.divf %1132, %1133 : vector<8x32xf32>
    %1135 = vector.extract_strided_slice %1120 {offsets = [0, 64], sizes = [8, 32], strides = [1, 1]} : vector<8x96xf32> to vector<8x32xf32>
    %1136 = vector.extract_strided_slice %1121 {offsets = [0, 64], sizes = [8, 32], strides = [1, 1]} : vector<8x96xf32> to vector<8x32xf32>
    %1137 = arith.mulf %1128, %1136 : vector<8x32xf32>
    %1138 = arith.addf %1135, %1137 : vector<8x32xf32>
    %1139 = math.tanh %1138 : vector<8x32xf32>
    %cst_258 = arith.constant 1.000000e+00 : f32
    %1140 = vector.broadcast %cst_258 : f32 to vector<8x32xf32>
    %1141 = arith.subf %1140, %1134 : vector<8x32xf32>
    %1142 = arith.mulf %1141, %1139 : vector<8x32xf32>
    %1143 = arith.mulf %1134, %930 : vector<8x32xf32>
    %1144 = arith.addf %1142, %1143 : vector<8x32xf32>
    %c0_259 = arith.constant 0 : index
    %c0_260 = arith.constant 0 : index
    %1145 = vector.load %arg2[%c0_259, %c0_260] : memref<64x384xf32, #tpu.memory_space<vmem>>, vector<16x384xf32>
    %cst_261 = arith.constant dense<0.000000e+00> : vector<8x384xf32>
    %1146 = tpu.matmul %1111, %1145, %cst_261 {dimension_numbers = #tpu.dot_dimension_numbers<[1], [0], [0], [1], [0, 0, 1, 1], [], []>} : vector<8x16xf32>, vector<16x384xf32>, vector<8x384xf32> -> vector<8x384xf32>
    %c24_262 = arith.constant 24 : index
    %c0_263 = arith.constant 0 : index
    %1147 = vector.load %arg2[%c24_262, %c0_263] : memref<64x384xf32, #tpu.memory_space<vmem>>, vector<32x384xf32>
    %cst_264 = arith.constant dense<0.000000e+00> : vector<8x384xf32>
    %1148 = tpu.matmul %1144, %1147, %cst_264 {dimension_numbers = #tpu.dot_dimension_numbers<[1], [0], [0], [1], [0, 0, 1, 1], [], []>} : vector<8x32xf32>, vector<32x384xf32>, vector<8x384xf32> -> vector<8x384xf32>
    %1149 = arith.addf %1146, %1148 : vector<8x384xf32>
    %1150 = arith.addf %1149, %98 : vector<8x384xf32>
    %1151 = arith.addf %937, %1108 : vector<8x1xf32>
    %1152 = vector.extract_strided_slice %1150 {offsets = [0, 0], sizes = [8, 16], strides = [1, 1]} : vector<8x384xf32> to vector<8x16xf32>
    %1153 = arith.subf %1152, %960 : vector<8x16xf32>
    %1154 = arith.subf %1084, %870 : vector<8x16xf32>
    %1155 = arith.mulf %1153, %1153 : vector<8x16xf32>
    %cst_265 = arith.constant dense<0.000000e+00> : vector<8xf32>
    %1156 = vector.multi_reduction <add>, %1155, %cst_265 [1] : vector<8x16xf32> to vector<8xf32>
    %1157 = vector.shape_cast %1156 : vector<8xf32> to vector<8x1xf32>
    %1158 = math.sqrt %1157 : vector<8x1xf32>
    %1159 = vector.extract_strided_slice %1154 {offsets = [0, 0], sizes = [8, 8], strides = [1, 1]} : vector<8x16xf32> to vector<8x8xf32>
    %1160 = vector.extract_strided_slice %1154 {offsets = [0, 0], sizes = [8, 8], strides = [1, 1]} : vector<8x16xf32> to vector<8x8xf32>
    %1161 = arith.mulf %1159, %1160 : vector<8x8xf32>
    %cst_266 = arith.constant dense<0.000000e+00> : vector<8xf32>
    %1162 = vector.multi_reduction <add>, %1161, %cst_266 [1] : vector<8x8xf32> to vector<8xf32>
    %1163 = vector.shape_cast %1162 : vector<8xf32> to vector<8x1xf32>
    %1164 = math.sqrt %1163 : vector<8x1xf32>
    %1165 = arith.addf %1158, %1164 : vector<8x1xf32>
    %1166 = vector.extract_strided_slice %1154 {offsets = [0, 8], sizes = [8, 8], strides = [1, 1]} : vector<8x16xf32> to vector<8x8xf32>
    %1167 = vector.extract_strided_slice %1154 {offsets = [0, 8], sizes = [8, 8], strides = [1, 1]} : vector<8x16xf32> to vector<8x8xf32>
    %1168 = arith.mulf %1166, %1167 : vector<8x8xf32>
    %cst_267 = arith.constant dense<0.000000e+00> : vector<8xf32>
    %1169 = vector.multi_reduction <add>, %1168, %cst_267 [1] : vector<8x8xf32> to vector<8xf32>
    %1170 = vector.shape_cast %1169 : vector<8xf32> to vector<8x1xf32>
    %1171 = math.sqrt %1170 : vector<8x1xf32>
    %1172 = arith.addf %1165, %1171 : vector<8x1xf32>
    %1173 = arith.addf %959, %1172 : vector<8x1xf32>
    %1174 = vector.extract_strided_slice %1150 {offsets = [0, 0], sizes = [8, 16], strides = [1, 1]} : vector<8x384xf32> to vector<8x16xf32>
    %cst_268 = arith.constant 2.000000e-01 : f32
    %1175 = vector.broadcast %cst_268 : f32 to vector<8x1xf32>
    %1176 = arith.mulf %1151, %1175 : vector<8x1xf32>
    %cst_269 = arith.constant 2.000000e-01 : f32
    %1177 = vector.broadcast %cst_269 : f32 to vector<8x1xf32>
    %1178 = arith.mulf %1173, %1177 : vector<8x1xf32>
    %1179 = tpu.concatenate %1174, %1176, %1178 in 1 : vector<8x16xf32>, vector<8x1xf32>, vector<8x1xf32> -> vector<8x18xf32>
    %c0_270 = arith.constant 0 : index
    %c0_271 = arith.constant 0 : index
    %1180 = vector.load %arg5[%c0_270, %c0_271] : memref<8x18xf32, #tpu.memory_space<vmem>>, vector<8x18xf32>
    tpu.vector_store %arg5[%c0_270, %c0_271], %1179 {strides = array<i32>} : memref<8x18xf32, #tpu.memory_space<vmem>>, vector<8x18xf32>,
    return
  }
}

</mosaic_0001>

<llo_original>
// kernel: forward.1
$region0: #{forward.1}
  #allocation0 [shape = 'u32[]', space=smem, size = 0x4, offset = 0x4, fixed_abs, tag = 'smem constant byte address 0x4 - core index']
  #allocation1 [shape = 'u32[144,128]{1,0:T(1,128)}', space=vmem, size = 0x12000, scoped, tag = 'internal scratch']
  %s0 = inlined_call_operand.vmem [shape: f32[8,640], index: 0, kind: input, shape index: {}]
  %s1 = inlined_call_operand.vmem [shape: f32[256,2], index: 1, kind: input, shape index: {}]
  %s2 = inlined_call_operand.vmem [shape: f32[64,384], index: 2, kind: input, shape index: {}]
  %s3 = inlined_call_operand.vmem [shape: f32[136,256], index: 3, kind: input, shape index: {}]
  %s4 = inlined_call_operand.vmem [shape: f32[472,64], index: 4, kind: input, shape index: {}]
  %s5 = inlined_call_operand.vmem [shape: f32[8,18], index: 5, kind: output, shape index: {}]
  %s6 = sld [smem:[#allocation0]]
  $region30: #{forward.1} parent=0
    _
  %s8 = ssub.s32 1, %s6
  %s9 = scalar_select 0, %s8, %s6
  // Predicated region
  $region2: #{forward.1} parent=0 // pred_check
    _
  $region3: #{forward.1} parent=0 // pred_check_branch
    %11 = sbr.rel (0) target = $region5
  $region4: #{forward.1} parent=0 // pred_region
    _
  $region5: #{forward.1} parent=0 // pred_fallthru
    _
  // Predicated region
  $region6: #{forward.1} parent=0 // pred_check
    _
  $region7: #{forward.1} parent=0 // pred_check_branch
    %13 = sbr.rel (0) target = $region9
  $region8: #{forward.1} parent=0 // pred_region
    _
  $region9: #{forward.1} parent=0 // pred_fallthru
    _
  // Predicated region
  $region10: #{forward.1} parent=0 // pred_check
    _
  $region11: #{forward.1} parent=0 // pred_check_branch
    %15 = sbr.rel (0) target = $region13
  $region12: #{forward.1} parent=0 // pred_region
    _
  $region13: #{forward.1} parent=0 // pred_fallthru
    _
  // Predicated region
  $region14: #{forward.1} parent=0 // pred_check
    _
  $region15: #{forward.1} parent=0 // pred_check_branch
    %17 = sbr.rel (0) target = $region17
  $region16: #{forward.1} parent=0 // pred_region
    _
  $region17: #{forward.1} parent=0 // pred_fallthru
    _
  // Predicated region
  $region18: #{forward.1} parent=0 // pred_check
    _
  $region19: #{forward.1} parent=0 // pred_check_branch
    %19 = sbr.rel (0) target = $region21
  $region20: #{forward.1} parent=0 // pred_region
    _
  $region21: #{forward.1} parent=0 // pred_fallthru
    _
  %v20 = vld [vmem:[%s1] sm:$0xff]
  %v21 = vld [vmem:[%s1 + $0x8] sm:$0xff]
  %v22 = vld [vmem:[%s1 + $0x10] sm:$0xff]
  %v23 = vld [vmem:[%s1 + $0x18] sm:$0xff]
  %v24 = vld [vmem:[%s1 + $0x20] sm:$0xff]
  %v25 = vld [vmem:[%s1 + $0x28] sm:$0xff]
  %v26 = vld [vmem:[%s1 + $0x30] sm:$0xff]
  %v27 = vld [vmem:[%s1 + $0x38] sm:$0xff]
  %v28 = vld [vmem:[%s1 + $0x40] sm:$0xff]
  %v29 = vld [vmem:[%s1 + $0x48] sm:$0xff]
  %v30 = vld [vmem:[%s1 + $0x50] sm:$0xff]
  %v31 = vld [vmem:[%s1 + $0x58] sm:$0xff]
  %v32 = vld [vmem:[%s1 + $0x60] sm:$0xff]
  %v33 = vld [vmem:[%s1 + $0x68] sm:$0xff]
  %v34 = vld [vmem:[%s1 + $0x70] sm:$0xff]
  %v35 = vld [vmem:[%s1 + $0x78] sm:$0xff]
  %v36 = vld [vmem:[%s1 + $0x80] sm:$0xff]
  %v37 = vld [vmem:[%s1 + $0x88] sm:$0xff]
  %v38 = vld [vmem:[%s1 + $0x90] sm:$0xff]
  %v39 = vld [vmem:[%s1 + $0x98] sm:$0xff]
  %v40 = vld [vmem:[%s1 + $0xa0] sm:$0xff]
  %v41 = vld [vmem:[%s1 + $0xa8] sm:$0xff]
  %v42 = vld [vmem:[%s1 + $0xb0] sm:$0xff]
  %v43 = vld [vmem:[%s1 + $0xb8] sm:$0xff]
  %v44 = vld [vmem:[%s1 + $0xc0] sm:$0xff]
  %v45 = vld [vmem:[%s1 + $0xc8] sm:$0xff]
  %v46 = vld [vmem:[%s1 + $0xd0] sm:$0xff]
  %v47 = vld [vmem:[%s1 + $0xd8] sm:$0xff]
  %v48 = vld [vmem:[%s1 + $0xe0] sm:$0xff]
  %v49 = vld [vmem:[%s1 + $0xe8] sm:$0xff]
  %v50 = vld [vmem:[%s1 + $0xf0] sm:$0xff]
  %v51 = vld [vmem:[%s1 + $0xf8] sm:$0xff]
  %v52 = vld [vmem:[%s4 + $0x1a0] sm:$0x3]
  %54 = vset.pattern.permute.xlu0 0
  %55 = vperm.xlu0 %54, %v20
  %v56 = vpop.permute.xlu0 %55
  %59 = vset.pattern.permute.xlu0 0
  %60 = vperm.xlu0 %59, %v21
  %v61 = vpop.permute.xlu0 %60
  %64 = vset.pattern.permute.xlu0 0
  %65 = vperm.xlu0 %64, %v22
  %v66 = vpop.permute.xlu0 %65
  %69 = vset.pattern.permute.xlu0 0
  %70 = vperm.xlu0 %69, %v23
  %v71 = vpop.permute.xlu0 %70
  %74 = vset.pattern.permute.xlu0 0
  %75 = vperm.xlu0 %74, %v24
  %v76 = vpop.permute.xlu0 %75
  %79 = vset.pattern.permute.xlu0 0
  %80 = vperm.xlu0 %79, %v25
  %v81 = vpop.permute.xlu0 %80
  %84 = vset.pattern.permute.xlu0 0
  %85 = vperm.xlu0 %84, %v26
  %v86 = vpop.permute.xlu0 %85
  %89 = vset.pattern.permute.xlu0 0
  %90 = vperm.xlu0 %89, %v27
  %v91 = vpop.permute.xlu0 %90
  %94 = vset.pattern.permute.xlu0 0
  %95 = vperm.xlu0 %94, %v28
  %v96 = vpop.permute.xlu0 %95
  %99 = vset.pattern.permute.xlu0 0
  %100 = vperm.xlu0 %99, %v29
  %v101 = vpop.permute.xlu0 %100
  %104 = vset.pattern.permute.xlu0 0
  %105 = vperm.xlu0 %104, %v30
  %v106 = vpop.permute.xlu0 %105
  %109 = vset.pattern.permute.xlu0 0
  %110 = vperm.xlu0 %109, %v31
  %v111 = vpop.permute.xlu0 %110
  %114 = vset.pattern.permute.xlu0 0
  %115 = vperm.xlu0 %114, %v32
  %v116 = vpop.permute.xlu0 %115
  %119 = vset.pattern.permute.xlu0 0
  %120 = vperm.xlu0 %119, %v33
  %v121 = vpop.permute.xlu0 %120
  %124 = vset.pattern.permute.xlu0 0
  %125 = vperm.xlu0 %124, %v34
  %v126 = vpop.permute.xlu0 %125
  %129 = vset.pattern.permute.xlu0 0
  %130 = vperm.xlu0 %129, %v35
  %v131 = vpop.permute.xlu0 %130
  %134 = vset.pattern.permute.xlu0 0
  %135 = vperm.xlu0 %134, %v36
  %v136 = vpop.permute.xlu0 %135
  %139 = vset.pattern.permute.xlu0 0
  %140 = vperm.xlu0 %139, %v37
  %v141 = vpop.permute.xlu0 %140
  %144 = vset.pattern.permute.xlu0 0
  %145 = vperm.xlu0 %144, %v38
  %v146 = vpop.permute.xlu0 %145
  %149 = vset.pattern.permute.xlu0 0
  %150 = vperm.xlu0 %149, %v39
  %v151 = vpop.permute.xlu0 %150
  %154 = vset.pattern.permute.xlu0 0
  %155 = vperm.xlu0 %154, %v40
  %v156 = vpop.permute.xlu0 %155
  %159 = vset.pattern.permute.xlu0 0
  %160 = vperm.xlu0 %159, %v41
  %v161 = vpop.permute.xlu0 %160
  %164 = vset.pattern.permute.xlu0 0
  %165 = vperm.xlu0 %164, %v42
  %v166 = vpop.permute.xlu0 %165
  %169 = vset.pattern.permute.xlu0 0
  %170 = vperm.xlu0 %169, %v43
  %v171 = vpop.permute.xlu0 %170
  %174 = vset.pattern.permute.xlu0 0
  %175 = vperm.xlu0 %174, %v44
  %v176 = vpop.permute.xlu0 %175
  %179 = vset.pattern.permute.xlu0 0
  %180 = vperm.xlu0 %179, %v45
  %v181 = vpop.permute.xlu0 %180
  %184 = vset.pattern.permute.xlu0 0
  %185 = vperm.xlu0 %184, %v46
  %v186 = vpop.permute.xlu0 %185
  %189 = vset.pattern.permute.xlu0 0
  %190 = vperm.xlu0 %189, %v47
  %v191 = vpop.permute.xlu0 %190
  %194 = vset.pattern.permute.xlu0 0
  %195 = vperm.xlu0 %194, %v48
  %v196 = vpop.permute.xlu0 %195
  %199 = vset.pattern.permute.xlu0 0
  %200 = vperm.xlu0 %199, %v49
  %v201 = vpop.permute.xlu0 %200
  %204 = vset.pattern.permute.xlu0 0
  %205 = vperm.xlu0 %204, %v50
  %v206 = vpop.permute.xlu0 %205
  %209 = vset.pattern.permute.xlu0 0
  %210 = vperm.xlu0 %209, %v51
  %v211 = vpop.permute.xlu0 %210
  %v213 = vlaneseq
  %v214 = vshrl.u32 %v213, 7
  %v215 = vsub.s32 0, %v214
  %v216 = vrot.slane %v52, %v215
  %v217 = vmul.f32 %v56, %v216
  %v218 = vmul.f32 %v61, %v216
  %v219 = vmul.f32 %v66, %v216
  %v220 = vmul.f32 %v71, %v216
  %v221 = vmul.f32 %v76, %v216
  %v222 = vmul.f32 %v81, %v216
  %v223 = vmul.f32 %v86, %v216
  %v224 = vmul.f32 %v91, %v216
  %v225 = vmul.f32 %v96, %v216
  %v226 = vmul.f32 %v101, %v216
  %v227 = vmul.f32 %v106, %v216
  %v228 = vmul.f32 %v111, %v216
  %v229 = vmul.f32 %v116, %v216
  %v230 = vmul.f32 %v121, %v216
  %v231 = vmul.f32 %v126, %v216
  %v232 = vmul.f32 %v131, %v216
  %v233 = vmul.f32 %v136, %v216
  %v234 = vmul.f32 %v141, %v216
  %v235 = vmul.f32 %v146, %v216
  %v236 = vmul.f32 %v151, %v216
  %v237 = vmul.f32 %v156, %v216
  %v238 = vmul.f32 %v161, %v216
  %v239 = vmul.f32 %v166, %v216
  %v240 = vmul.f32 %v171, %v216
  %v241 = vmul.f32 %v176, %v216
  %v242 = vmul.f32 %v181, %v216
  %v243 = vmul.f32 %v186, %v216
  %v244 = vmul.f32 %v191, %v216
  %v245 = vmul.f32 %v196, %v216
  %v246 = vmul.f32 %v201, %v216
  %v247 = vmul.f32 %v206, %v216
  %v248 = vmul.f32 %v211, %v216
  %249 = vset.pattern.permute.xlu0 1
  %250 = vperm.xlu0 %249, %v20
  %v251 = vpop.permute.xlu0 %250
  %253 = vset.pattern.permute.xlu0 1
  %254 = vperm.xlu0 %253, %v21
  %v255 = vpop.permute.xlu0 %254
  %257 = vset.pattern.permute.xlu0 1
  %258 = vperm.xlu0 %257, %v22
  %v259 = vpop.permute.xlu0 %258
  %261 = vset.pattern.permute.xlu0 1
  %262 = vperm.xlu0 %261, %v23
  %v263 = vpop.permute.xlu0 %262
  %265 = vset.pattern.permute.xlu0 1
  %266 = vperm.xlu0 %265, %v24
  %v267 = vpop.permute.xlu0 %266
  %269 = vset.pattern.permute.xlu0 1
  %270 = vperm.xlu0 %269, %v25
  %v271 = vpop.permute.xlu0 %270
  %273 = vset.pattern.permute.xlu0 1
  %274 = vperm.xlu0 %273, %v26
  %v275 = vpop.permute.xlu0 %274
  %277 = vset.pattern.permute.xlu0 1
  %278 = vperm.xlu0 %277, %v27
  %v279 = vpop.permute.xlu0 %278
  %281 = vset.pattern.permute.xlu0 1
  %282 = vperm.xlu0 %281, %v28
  %v283 = vpop.permute.xlu0 %282
  %285 = vset.pattern.permute.xlu0 1
  %286 = vperm.xlu0 %285, %v29
  %v287 = vpop.permute.xlu0 %286
  %289 = vset.pattern.permute.xlu0 1
  %290 = vperm.xlu0 %289, %v30
  %v291 = vpop.permute.xlu0 %290
  %293 = vset.pattern.permute.xlu0 1
  %294 = vperm.xlu0 %293, %v31
  %v295 = vpop.permute.xlu0 %294
  %297 = vset.pattern.permute.xlu0 1
  %298 = vperm.xlu0 %297, %v32
  %v299 = vpop.permute.xlu0 %298
  %301 = vset.pattern.permute.xlu0 1
  %302 = vperm.xlu0 %301, %v33
  %v303 = vpop.permute.xlu0 %302
  %305 = vset.pattern.permute.xlu0 1
  %306 = vperm.xlu0 %305, %v34
  %v307 = vpop.permute.xlu0 %306
  %309 = vset.pattern.permute.xlu0 1
  %310 = vperm.xlu0 %309, %v35
  %v311 = vpop.permute.xlu0 %310
  %313 = vset.pattern.permute.xlu0 1
  %314 = vperm.xlu0 %313, %v36
  %v315 = vpop.permute.xlu0 %314
  %317 = vset.pattern.permute.xlu0 1
  %318 = vperm.xlu0 %317, %v37
  %v319 = vpop.permute.xlu0 %318
  %321 = vset.pattern.permute.xlu0 1
  %322 = vperm.xlu0 %321, %v38
  %v323 = vpop.permute.xlu0 %322
  %325 = vset.pattern.permute.xlu0 1
  %326 = vperm.xlu0 %325, %v39
  %v327 = vpop.permute.xlu0 %326
  %329 = vset.pattern.permute.xlu0 1
  %330 = vperm.xlu0 %329, %v40
  %v331 = vpop.permute.xlu0 %330
  %333 = vset.pattern.permute.xlu0 1
  %334 = vperm.xlu0 %333, %v41
  %v335 = vpop.permute.xlu0 %334
  %337 = vset.pattern.permute.xlu0 1
  %338 = vperm.xlu0 %337, %v42
  %v339 = vpop.permute.xlu0 %338
  %341 = vset.pattern.permute.xlu0 1
  %342 = vperm.xlu0 %341, %v43
  %v343 = vpop.permute.xlu0 %342
  %345 = vset.pattern.permute.xlu0 1
  %346 = vperm.xlu0 %345, %v44
  %v347 = vpop.permute.xlu0 %346
  %349 = vset.pattern.permute.xlu0 1
  %350 = vperm.xlu0 %349, %v45
  %v351 = vpop.permute.xlu0 %350
  %353 = vset.pattern.permute.xlu0 1
  %354 = vperm.xlu0 %353, %v46
  %v355 = vpop.permute.xlu0 %354
  %357 = vset.pattern.permute.xlu0 1
  %358 = vperm.xlu0 %357, %v47
  %v359 = vpop.permute.xlu0 %358
  %361 = vset.pattern.permute.xlu0 1
  %362 = vperm.xlu0 %361, %v48
  %v363 = vpop.permute.xlu0 %362
  %365 = vset.pattern.permute.xlu0 1
  %366 = vperm.xlu0 %365, %v49
  %v367 = vpop.permute.xlu0 %366
  %369 = vset.pattern.permute.xlu0 1
  %370 = vperm.xlu0 %369, %v50
  %v371 = vpop.permute.xlu0 %370
  %373 = vset.pattern.permute.xlu0 1
  %374 = vperm.xlu0 %373, %v51
  %v375 = vpop.permute.xlu0 %374
  %v377 = vlaneseq
  %v378 = vshrl.u32 %v377, 7
  %v379 = vsub.s32 1, %v378
  %v380 = vrot.slane %v52, %v379
  %v381 = vmul.f32 %v251, %v380
  %v382 = vmul.f32 %v255, %v380
  %v383 = vmul.f32 %v259, %v380
  %v384 = vmul.f32 %v263, %v380
  %v385 = vmul.f32 %v267, %v380
  %v386 = vmul.f32 %v271, %v380
  %v387 = vmul.f32 %v275, %v380
  %v388 = vmul.f32 %v279, %v380
  %v389 = vmul.f32 %v283, %v380
  %v390 = vmul.f32 %v287, %v380
  %v391 = vmul.f32 %v291, %v380
  %v392 = vmul.f32 %v295, %v380
  %v393 = vmul.f32 %v299, %v380
  %v394 = vmul.f32 %v303, %v380
  %v395 = vmul.f32 %v307, %v380
  %v396 = vmul.f32 %v311, %v380
  %v397 = vmul.f32 %v315, %v380
  %v398 = vmul.f32 %v319, %v380
  %v399 = vmul.f32 %v323, %v380
  %v400 = vmul.f32 %v327, %v380
  %v401 = vmul.f32 %v331, %v380
  %v402 = vmul.f32 %v335, %v380
  %v403 = vmul.f32 %v339, %v380
  %v404 = vmul.f32 %v343, %v380
  %v405 = vmul.f32 %v347, %v380
  %v406 = vmul.f32 %v351, %v380
  %v407 = vmul.f32 %v355, %v380
  %v408 = vmul.f32 %v359, %v380
  %v409 = vmul.f32 %v363, %v380
  %v410 = vmul.f32 %v367, %v380
  %v411 = vmul.f32 %v371, %v380
  %v412 = vmul.f32 %v375, %v380
  %v413 = vadd.f32 %v217, %v381
  %v414 = vadd.f32 %v218, %v382
  %v415 = vadd.f32 %v219, %v383
  %v416 = vadd.f32 %v220, %v384
  %v417 = vadd.f32 %v221, %v385
  %v418 = vadd.f32 %v222, %v386
  %v419 = vadd.f32 %v223, %v387
  %v420 = vadd.f32 %v224, %v388
  %v421 = vadd.f32 %v225, %v389
  %v422 = vadd.f32 %v226, %v390
  %v423 = vadd.f32 %v227, %v391
  %v424 = vadd.f32 %v228, %v392
  %v425 = vadd.f32 %v229, %v393
  %v426 = vadd.f32 %v230, %v394
  %v427 = vadd.f32 %v231, %v395
  %v428 = vadd.f32 %v232, %v396
  %v429 = vadd.f32 %v233, %v397
  %v430 = vadd.f32 %v234, %v398
  %v431 = vadd.f32 %v235, %v399
  %v432 = vadd.f32 %v236, %v400
  %v433 = vadd.f32 %v237, %v401
  %v434 = vadd.f32 %v238, %v402
  %v435 = vadd.f32 %v239, %v403
  %v436 = vadd.f32 %v240, %v404
  %v437 = vadd.f32 %v241, %v405
  %v438 = vadd.f32 %v242, %v406
  %v439 = vadd.f32 %v243, %v407
  %v440 = vadd.f32 %v244, %v408
  %v441 = vadd.f32 %v245, %v409
  %v442 = vadd.f32 %v246, %v410
  %v443 = vadd.f32 %v247, %v411
  %v444 = vadd.f32 %v248, %v412
  %v445 = vld [vmem:[%s4 + $0x1a8] sm:$0x1]
  %v446 = vlaneseq
  %v447 = vshrl.u32 %v446, 7
  %v448 = vsub.s32 0, %v447
  %v449 = vrot.slane %v445, %v448
  %v450 = vadd.f32 %v413, %v449
  %v451 = vadd.f32 %v414, %v449
  %v452 = vadd.f32 %v415, %v449
  %v453 = vadd.f32 %v416, %v449
  %v454 = vadd.f32 %v417, %v449
  %v455 = vadd.f32 %v418, %v449
  %v456 = vadd.f32 %v419, %v449
  %v457 = vadd.f32 %v420, %v449
  %v458 = vadd.f32 %v421, %v449
  %v459 = vadd.f32 %v422, %v449
  %v460 = vadd.f32 %v423, %v449
  %v461 = vadd.f32 %v424, %v449
  %v462 = vadd.f32 %v425, %v449
  %v463 = vadd.f32 %v426, %v449
  %v464 = vadd.f32 %v427, %v449
  %v465 = vadd.f32 %v428, %v449
  %v466 = vadd.f32 %v429, %v449
  %v467 = vadd.f32 %v430, %v449
  %v468 = vadd.f32 %v431, %v449
  %v469 = vadd.f32 %v432, %v449
  %v470 = vadd.f32 %v433, %v449
  %v471 = vadd.f32 %v434, %v449
  %v472 = vadd.f32 %v435, %v449
  %v473 = vadd.f32 %v436, %v449
  %v474 = vadd.f32 %v437, %v449
  %v475 = vadd.f32 %v438, %v449
  %v476 = vadd.f32 %v439, %v449
  %v477 = vadd.f32 %v440, %v449
  %v478 = vadd.f32 %v441, %v449
  %v479 = vadd.f32 %v442, %v449
  %v480 = vadd.f32 %v443, %v449
  %v481 = vadd.f32 %v444, %v449
  %v482 = vmax.f32 %v450, 0.0
  %v483 = vmax.f32 %v451, 0.0
  %v484 = vmax.f32 %v452, 0.0
  %v485 = vmax.f32 %v453, 0.0
  %v486 = vmax.f32 %v454, 0.0
  %v487 = vmax.f32 %v455, 0.0
  %v488 = vmax.f32 %v456, 0.0
  %v489 = vmax.f32 %v457, 0.0
  %v490 = vmax.f32 %v458, 0.0
  %v491 = vmax.f32 %v459, 0.0
  %v492 = vmax.f32 %v460, 0.0
  %v493 = vmax.f32 %v461, 0.0
  %v494 = vmax.f32 %v462, 0.0
  %v495 = vmax.f32 %v463, 0.0
  %v496 = vmax.f32 %v464, 0.0
  %v497 = vmax.f32 %v465, 0.0
  %v498 = vmax.f32 %v466, 0.0
  %v499 = vmax.f32 %v467, 0.0
  %v500 = vmax.f32 %v468, 0.0
  %v501 = vmax.f32 %v469, 0.0
  %v502 = vmax.f32 %v470, 0.0
  %v503 = vmax.f32 %v471, 0.0
  %v504 = vmax.f32 %v472, 0.0
  %v505 = vmax.f32 %v473, 0.0
  %v506 = vmax.f32 %v474, 0.0
  %v507 = vmax.f32 %v475, 0.0
  %v508 = vmax.f32 %v476, 0.0
  %v509 = vmax.f32 %v477, 0.0
  %v510 = vmax.f32 %v478, 0.0
  %v511 = vmax.f32 %v479, 0.0
  %v512 = vmax.f32 %v480, 0.0
  %v513 = vmax.f32 %v481, 0.0
  %v514 = vld [vmem:[%s4 + $0x1b0] sm:$0xff]
  %v515 = vld [vmem:[%s4 + $0x1b8] sm:$0xff]
  %v516 = vld [vmem:[%s4 + $0x1c0] sm:$0xff]
  %v517 = vld [vmem:[%s4 + $0x1c8] sm:$0xff]
  %v518 = vld [vmem:[%s4 + $0x1d0] sm:$0x1]
  %v519 = vlaneseq
  %v520 = vshrl.u32 %v519, 7
  %v521 = vsub.s32 0, %v520
  %v522 = vrot.slane %v518, %v521
  %vm523 = vcmask 261120
  %v525 = vsel %vm523, %v482, 0
  %v528 = vsel %vm523, %v483, 0
  %v531 = vsel %vm523, %v484, 0
  %v534 = vsel %vm523, %v485, 0
  %v537 = vsel %vm523, %v486, 0
  %v540 = vsel %vm523, %v487, 0
  %v543 = vsel %vm523, %v488, 0
  %v546 = vsel %vm523, %v489, 0
  %v549 = vsel %vm523, %v490, 0
  %v552 = vsel %vm523, %v491, 0
  %v555 = vsel %vm523, %v492, 0
  %v558 = vsel %vm523, %v493, 0
  %v561 = vsel %vm523, %v494, 0
  %v564 = vsel %vm523, %v495, 0
  %v567 = vsel %vm523, %v496, 0
  %v570 = vsel %vm523, %v497, 0
  %v573 = vsel %vm523, %v498, 0
  %v576 = vsel %vm523, %v499, 0
  %v579 = vsel %vm523, %v500, 0
  %v582 = vsel %vm523, %v501, 0
  %v585 = vsel %vm523, %v502, 0
  %v588 = vsel %vm523, %v503, 0
  %v591 = vsel %vm523, %v504, 0
  %v594 = vsel %vm523, %v505, 0
  %v597 = vsel %vm523, %v506, 0
  %v600 = vsel %vm523, %v507, 0
  %v603 = vsel %vm523, %v508, 0
  %v606 = vsel %vm523, %v509, 0
  %v609 = vsel %vm523, %v510, 0
  %v612 = vsel %vm523, %v511, 0
  %v615 = vsel %vm523, %v512, 0
  %v618 = vsel %vm523, %v513, 0
  %620 = vmatprep.subr.mxu0 0.0
  %621 = vmatpush1.msra.mxu0 %v514
  %622 = vmatprep.subr.mxu0 0.0
  %623 = vmatpush1.msra.mxu0 %v515
  %624 = vmatprep.subr.mxu0 0.0
  %625 = vmatpush1.msra.mxu0 %v516
  %626 = vmatprep.subr.mxu0 0.0
  %627 = vmatpush1.msra.mxu0 %v517
  %628 = vmatprep.subr.mxu0 0.0
  %629 = vmatpush1.msra.mxu0 0.0
  %630 = vmatprep.subr.mxu0 0.0
  %631 = vmatpush1.msra.mxu0 0.0
  %632 = vmatprep.subr.mxu0 0.0
  %633 = vmatpush1.msra.mxu0 0.0
  %634 = vmatprep.subr.mxu0 0.0
  %635 = vmatpush1.msra.mxu0 0.0
  %636 = vmatprep.subr.mxu0 0.0
  %637 = vmatpush1.msra.mxu0 0.0
  %638 = vmatprep.subr.mxu0 0.0
  %639 = vmatpush1.msra.mxu0 0.0
  %640 = vmatprep.subr.mxu0 0.0
  %641 = vmatpush1.msra.mxu0 0.0
  %642 = vmatprep.subr.mxu0 0.0
  %643 = vmatpush1.msra.mxu0 0.0
  %644 = vmatprep.subr.mxu0 0.0
  %645 = vmatpush1.msra.mxu0 0.0
  %646 = vmatprep.subr.mxu0 0.0
  %647 = vmatpush1.msra.mxu0 0.0
  %648 = vmatprep.subr.mxu0 0.0
  %649 = vmatpush1.msra.mxu0 0.0
  %650 = vmatprep.subr.mxu0 0.0
  %651 = vmatpush1.msra.mxu0 0.0
  %652 = vmatprep.subr.mxu0 0.0
  %653 = vmatpush1.msra.mxu0 0.0
  %654 = vmatprep.subr.mxu0 0.0
  %655 = vmatpush1.msra.mxu0 0.0
  %656 = vmatprep.subr.mxu0 0.0
  %657 = vmatpush1.msra.mxu0 0.0
  %658 = vmatprep.subr.mxu0 0.0
  %659 = vmatpush1.msra.mxu0 0.0
  %660 = vmatprep.subr.mxu0 0.0
  %661 = vmatpush1.msra.mxu0 0.0
  %662 = vmatprep.subr.mxu0 0.0
  %663 = vmatpush1.msra.mxu0 0.0
  %664 = vmatprep.subr.mxu0 0.0
  %665 = vmatpush1.msra.mxu0 0.0
  %666 = vmatprep.subr.mxu0 0.0
  %667 = vmatpush1.msra.mxu0 0.0
  %668 = vmatprep.subr.mxu0 0.0
  %669 = vmatpush1.msra.mxu0 0.0
  %670 = vmatprep.subr.mxu0 0.0
  %671 = vmatpush1.msra.mxu0 0.0
  %672 = vmatprep.subr.mxu0 0.0
  %673 = vmatpush1.msra.mxu0 0.0
  %674 = vmatprep.subr.mxu0 0.0
  %675 = vmatpush1.msra.mxu0 0.0
  %676 = vmatprep.subr.mxu0 0.0
  %677 = vmatpush1.msra.mxu0 0.0
  %678 = vmatprep.subr.mxu0 0.0
  %679 = vmatpush1.msra.mxu0 0.0
  %680 = vmatprep.subr.mxu0 0.0
  %681 = vmatpush1.msra.mxu0 0.0
  %682 = vmatprep.subr.mxu0 0.0
  %683 = vmatpush1.msra.mxu0 0.0
  %684 = vmatprep.mubr.f32.mxu0 0.0
  %685 = vmatmul.mubr.f32.gmra.mrb[0].mxu0 %v525
  %v686 = vpop.f32.mrb[0].mxu0
  %v687 = vadd.f32 %v522, %v686
  %v688 = vpop.f32.mrb[0].mxu0
  %689 = vmatprep.mubr.f32.mxu0 0.0
  %690 = vmatmul.mubr.f32.gmra.mrb[0].mxu0 %v528
  %v691 = vpop.f32.mrb[0].mxu0
  %v692 = vadd.f32 %v522, %v691
  %v693 = vpop.f32.mrb[0].mxu0
  %694 = vmatprep.mubr.f32.mxu0 0.0
  %695 = vmatmul.mubr.f32.gmra.mrb[0].mxu0 %v531
  %v696 = vpop.f32.mrb[0].mxu0
  %v697 = vadd.f32 %v522, %v696
  %v698 = vpop.f32.mrb[0].mxu0
  %699 = vmatprep.mubr.f32.mxu0 0.0
  %700 = vmatmul.mubr.f32.gmra.mrb[0].mxu0 %v534
  %v701 = vpop.f32.mrb[0].mxu0
  %v702 = vadd.f32 %v522, %v701
  %v703 = vpop.f32.mrb[0].mxu0
  %704 = vmatprep.mubr.f32.mxu0 0.0
  %705 = vmatmul.mubr.f32.gmra.mrb[0].mxu0 %v537
  %v706 = vpop.f32.mrb[0].mxu0
  %v707 = vadd.f32 %v522, %v706
  %v708 = vpop.f32.mrb[0].mxu0
  %709 = vmatprep.mubr.f32.mxu0 0.0
  %710 = vmatmul.mubr.f32.gmra.mrb[0].mxu0 %v540
  %v711 = vpop.f32.mrb[0].mxu0
  %v712 = vadd.f32 %v522, %v711
  %v713 = vpop.f32.mrb[0].mxu0
  %714 = vmatprep.mubr.f32.mxu0 0.0
  %715 = vmatmul.mubr.f32.gmra.mrb[0].mxu0 %v543
  %v716 = vpop.f32.mrb[0].mxu0
  %v717 = vadd.f32 %v522, %v716
  %v718 = vpop.f32.mrb[0].mxu0
  %719 = vmatprep.mubr.f32.mxu0 0.0
  %720 = vmatmul.mubr.f32.gmra.mrb[0].mxu0 %v546
  %v721 = vpop.f32.mrb[0].mxu0
  %v722 = vadd.f32 %v522, %v721
  %v723 = vpop.f32.mrb[0].mxu0
  %724 = vmatprep.mubr.f32.mxu0 0.0
  %725 = vmatmul.mubr.f32.gmra.mrb[0].mxu0 %v549
  %v726 = vpop.f32.mrb[0].mxu0
  %v727 = vadd.f32 %v522, %v726
  %v728 = vpop.f32.mrb[0].mxu0
  %729 = vmatprep.mubr.f32.mxu0 0.0
  %730 = vmatmul.mubr.f32.gmra.mrb[0].mxu0 %v552
  %v731 = vpop.f32.mrb[0].mxu0
  %v732 = vadd.f32 %v522, %v731
  %v733 = vpop.f32.mrb[0].mxu0
  %734 = vmatprep.mubr.f32.mxu0 0.0
  %735 = vmatmul.mubr.f32.gmra.mrb[0].mxu0 %v555
  %v736 = vpop.f32.mrb[0].mxu0
  %v737 = vadd.f32 %v522, %v736
  %v738 = vpop.f32.mrb[0].mxu0
  %739 = vmatprep.mubr.f32.mxu0 0.0
  %740 = vmatmul.mubr.f32.gmra.mrb[0].mxu0 %v558
  %v741 = vpop.f32.mrb[0].mxu0
  %v742 = vadd.f32 %v522, %v741
  %v743 = vpop.f32.mrb[0].mxu0
  %744 = vmatprep.mubr.f32.mxu0 0.0
  %745 = vmatmul.mubr.f32.gmra.mrb[0].mxu0 %v561
  %v746 = vpop.f32.mrb[0].mxu0
  %v747 = vadd.f32 %v522, %v746
  %v748 = vpop.f32.mrb[0].mxu0
  %749 = vmatprep.mubr.f32.mxu0 0.0
  %750 = vmatmul.mubr.f32.gmra.mrb[0].mxu0 %v564
  %v751 = vpop.f32.mrb[0].mxu0
  %v752 = vadd.f32 %v522, %v751
  %v753 = vpop.f32.mrb[0].mxu0
  %754 = vmatprep.mubr.f32.mxu0 0.0
  %755 = vmatmul.mubr.f32.gmra.mrb[0].mxu0 %v567
  %v756 = vpop.f32.mrb[0].mxu0
  %v757 = vadd.f32 %v522, %v756
  %v758 = vpop.f32.mrb[0].mxu0
  %759 = vmatprep.mubr.f32.mxu0 0.0
  %760 = vmatmul.mubr.f32.gmra.mrb[0].mxu0 %v570
  %v761 = vpop.f32.mrb[0].mxu0
  %v762 = vadd.f32 %v522, %v761
  %v763 = vpop.f32.mrb[0].mxu0
  %764 = vmatprep.mubr.f32.mxu0 0.0
  %765 = vmatmul.mubr.f32.gmra.mrb[0].mxu0 %v573
  %v766 = vpop.f32.mrb[0].mxu0
  %v767 = vadd.f32 %v522, %v766
  %v768 = vpop.f32.mrb[0].mxu0
  %769 = vmatprep.mubr.f32.mxu0 0.0
  %770 = vmatmul.mubr.f32.gmra.mrb[0].mxu0 %v576
  %v771 = vpop.f32.mrb[0].mxu0
  %v772 = vadd.f32 %v522, %v771
  %v773 = vpop.f32.mrb[0].mxu0
  %774 = vmatprep.mubr.f32.mxu0 0.0
  %775 = vmatmul.mubr.f32.gmra.mrb[0].mxu0 %v579
  %v776 = vpop.f32.mrb[0].mxu0
  %v777 = vadd.f32 %v522, %v776
  %v778 = vpop.f32.mrb[0].mxu0
  %779 = vmatprep.mubr.f32.mxu0 0.0
  %780 = vmatmul.mubr.f32.gmra.mrb[0].mxu0 %v582
  %v781 = vpop.f32.mrb[0].mxu0
  %v782 = vadd.f32 %v522, %v781
  %v783 = vpop.f32.mrb[0].mxu0
  %784 = vmatprep.mubr.f32.mxu0 0.0
  %785 = vmatmul.mubr.f32.gmra.mrb[0].mxu0 %v585
  %v786 = vpop.f32.mrb[0].mxu0
  %v787 = vadd.f32 %v522, %v786
  %v788 = vpop.f32.mrb[0].mxu0
  %789 = vmatprep.mubr.f32.mxu0 0.0
  %790 = vmatmul.mubr.f32.gmra.mrb[0].mxu0 %v588
  %v791 = vpop.f32.mrb[0].mxu0
  %v792 = vadd.f32 %v522, %v791
  %v793 = vpop.f32.mrb[0].mxu0
  %794 = vmatprep.mubr.f32.mxu0 0.0
  %795 = vmatmul.mubr.f32.gmra.mrb[0].mxu0 %v591
  %v796 = vpop.f32.mrb[0].mxu0
  %v797 = vadd.f32 %v522, %v796
  %v798 = vpop.f32.mrb[0].mxu0
  %799 = vmatprep.mubr.f32.mxu0 0.0
  %800 = vmatmul.mubr.f32.gmra.mrb[0].mxu0 %v594
  %v801 = vpop.f32.mrb[0].mxu0
  %v802 = vadd.f32 %v522, %v801
  %v803 = vpop.f32.mrb[0].mxu0
  %804 = vmatprep.mubr.f32.mxu0 0.0
  %805 = vmatmul.mubr.f32.gmra.mrb[0].mxu0 %v597
  %v806 = vpop.f32.mrb[0].mxu0
  %v807 = vadd.f32 %v522, %v806
  %v808 = vpop.f32.mrb[0].mxu0
  %809 = vmatprep.mubr.f32.mxu0 0.0
  %810 = vmatmul.mubr.f32.gmra.mrb[0].mxu0 %v600
  %v811 = vpop.f32.mrb[0].mxu0
  %v812 = vadd.f32 %v522, %v811
  %v813 = vpop.f32.mrb[0].mxu0
  %814 = vmatprep.mubr.f32.mxu0 0.0
  %815 = vmatmul.mubr.f32.gmra.mrb[0].mxu0 %v603
  %v816 = vpop.f32.mrb[0].mxu0
  %v817 = vadd.f32 %v522, %v816
  %v818 = vpop.f32.mrb[0].mxu0
  %819 = vmatprep.mubr.f32.mxu0 0.0
  %820 = vmatmul.mubr.f32.gmra.mrb[0].mxu0 %v606
  %v821 = vpop.f32.mrb[0].mxu0
  %v822 = vadd.f32 %v522, %v821
  %v823 = vpop.f32.mrb[0].mxu0
  %824 = vmatprep.mubr.f32.mxu0 0.0
  %825 = vmatmul.mubr.f32.gmra.mrb[0].mxu0 %v609
  %v826 = vpop.f32.mrb[0].mxu0
  %v827 = vadd.f32 %v522, %v826
  %v828 = vpop.f32.mrb[0].mxu0
  %829 = vmatprep.mubr.f32.mxu0 0.0
  %830 = vmatmul.mubr.f32.gmra.mrb[0].mxu0 %v612
  %v831 = vpop.f32.mrb[0].mxu0
  %v832 = vadd.f32 %v522, %v831
  %v833 = vpop.f32.mrb[0].mxu0
  %834 = vmatprep.mubr.f32.mxu0 0.0
  %835 = vmatmul.mubr.f32.gmra.mrb[0].mxu0 %v615
  %v836 = vpop.f32.mrb[0].mxu0
  %v837 = vadd.f32 %v522, %v836
  %v838 = vpop.f32.mrb[0].mxu0
  %839 = vmatprep.mubr.f32.mxu0 0.0
  %840 = vmatmul.mubr.f32.gmra.mrb[0].mxu0 %v618
  %v841 = vpop.f32.mrb[0].mxu0
  %v842 = vadd.f32 %v522, %v841
  %v843 = vpop.f32.mrb[0].mxu0
  %844 = vdwg.mxu0
  %v845 = vmax.f32 %v687, %v767
  %v846 = vmax.f32 %v692, %v772
  %v847 = vmax.f32 %v697, %v777
  %v848 = vmax.f32 %v702, %v782
  %v849 = vmax.f32 %v707, %v787
  %v850 = vmax.f32 %v712, %v792
  %v851 = vmax.f32 %v717, %v797
  %v852 = vmax.f32 %v722, %v802
  %v853 = vmax.f32 %v727, %v807
  %v854 = vmax.f32 %v732, %v812
  %v855 = vmax.f32 %v737, %v817
  %v856 = vmax.f32 %v742, %v822
  %v857 = vmax.f32 %v747, %v827
  %v858 = vmax.f32 %v752, %v832
  %v859 = vmax.f32 %v757, %v837
  %v860 = vmax.f32 %v762, %v842
  %v861 = vmax.f32 %v845, %v853
  %v862 = vmax.f32 %v846, %v854
  %v863 = vmax.f32 %v847, %v855
  %v864 = vmax.f32 %v848, %v856
  %v865 = vmax.f32 %v849, %v857
  %v866 = vmax.f32 %v850, %v858
  %v867 = vmax.f32 %v851, %v859
  %v868 = vmax.f32 %v852, %v860
  %v869 = vmax.f32 %v861, %v865
  %v870 = vmax.f32 %v862, %v866
  %v871 = vmax.f32 %v863, %v867
  %v872 = vmax.f32 %v864, %v868
  %v873 = vmax.f32 %v869, %v871
  %v874 = vmax.f32 %v870, %v872
  %v875 = vmax.f32 %v873, %v874
  %v876 = vld [vmem:[%s0] sm:$0xff]
  %878 = vrot.lane.b32.xlu0 %v875, 8
  %v879 = vpop.permute.xlu0 %878
  %vm881 = vcmask 64512
  %v882 = vsel %vm881, %v876, %v879
  %v883 = vld [vmem:[%s4 + $0x158] sm:$0xff]
  %v884 = vld [vmem:[%s4 + $0x160] sm:$0xff]
  %v885 = vld [vmem:[%s4 + $0x168] sm:$0xff]
  %v886 = vld [vmem:[%s4 + $0x170] sm:$0x1]
  %v887 = vlaneseq
  %v888 = vshrl.u32 %v887, 7
  %v889 = vsub.s32 0, %v888
  %v890 = vrot.slane %v886, %v889
  %vm891 = vcmask 195584
  %v893 = vsel %vm891, %v882, 0
  %895 = vmatprep.subr.mxu0 0.0
  %896 = vmatpush1.msra.mxu0 %v883
  %897 = vmatprep.subr.mxu0 0.0
  %898 = vmatpush1.msra.mxu0 %v884
  %899 = vmatprep.subr.mxu0 0.0
  %900 = vmatpush1.msra.mxu0 %v885
  %901 = vmatprep.subr.mxu0 0.0
  %902 = vmatpush1.msra.mxu0 0.0
  %903 = vmatprep.subr.mxu0 0.0
  %904 = vmatpush1.msra.mxu0 0.0
  %905 = vmatprep.subr.mxu0 0.0
  %906 = vmatpush1.msra.mxu0 0.0
  %907 = vmatprep.subr.mxu0 0.0
  %908 = vmatpush1.msra.mxu0 0.0
  %909 = vmatprep.subr.mxu0 0.0
  %910 = vmatpush1.msra.mxu0 0.0
  %911 = vmatprep.subr.mxu0 0.0
  %912 = vmatpush1.msra.mxu0 0.0
  %913 = vmatprep.subr.mxu0 0.0
  %914 = vmatpush1.msra.mxu0 0.0
  %915 = vmatprep.subr.mxu0 0.0
  %916 = vmatpush1.msra.mxu0 0.0
  %917 = vmatprep.subr.mxu0 0.0
  %918 = vmatpush1.msra.mxu0 0.0
  %919 = vmatprep.subr.mxu0 0.0
  %920 = vmatpush1.msra.mxu0 0.0
  %921 = vmatprep.subr.mxu0 0.0
  %922 = vmatpush1.msra.mxu0 0.0
  %923 = vmatprep.subr.mxu0 0.0
  %924 = vmatpush1.msra.mxu0 0.0
  %925 = vmatprep.subr.mxu0 0.0
  %926 = vmatpush1.msra.mxu0 0.0
  %927 = vmatprep.subr.mxu0 0.0
  %928 = vmatpush1.msra.mxu0 0.0
  %929 = vmatprep.subr.mxu0 0.0
  %930 = vmatpush1.msra.mxu0 0.0
  %931 = vmatprep.subr.mxu0 0.0
  %932 = vmatpush1.msra.mxu0 0.0
  %933 = vmatprep.subr.mxu0 0.0
  %934 = vmatpush1.msra.mxu0 0.0
  %935 = vmatprep.subr.mxu0 0.0
  %936 = vmatpush1.msra.mxu0 0.0
  %937 = vmatprep.subr.mxu0 0.0
  %938 = vmatpush1.msra.mxu0 0.0
  %939 = vmatprep.subr.mxu0 0.0
  %940 = vmatpush1.msra.mxu0 0.0
  %941 = vmatprep.subr.mxu0 0.0
  %942 = vmatpush1.msra.mxu0 0.0
  %943 = vmatprep.subr.mxu0 0.0
  %944 = vmatpush1.msra.mxu0 0.0
  %945 = vmatprep.subr.mxu0 0.0
  %946 = vmatpush1.msra.mxu0 0.0
  %947 = vmatprep.subr.mxu0 0.0
  %948 = vmatpush1.msra.mxu0 0.0
  %949 = vmatprep.subr.mxu0 0.0
  %950 = vmatpush1.msra.mxu0 0.0
  %951 = vmatprep.subr.mxu0 0.0
  %952 = vmatpush1.msra.mxu0 0.0
  %953 = vmatprep.subr.mxu0 0.0
  %954 = vmatpush1.msra.mxu0 0.0
  %955 = vmatprep.subr.mxu0 0.0
  %956 = vmatpush1.msra.mxu0 0.0
  %957 = vmatprep.subr.mxu0 0.0
  %958 = vmatpush1.msra.mxu0 0.0
  %959 = vmatprep.mubr.f32.mxu0 0.0
  %960 = vmatmul.mubr.f32.gmra.mrb[0].mxu0 %v893
  %v961 = vpop.f32.mrb[0].mxu0
  %v962 = vadd.f32 %v890, %v961
  %v963 = vpop.f32.mrb[0].mxu0
  %964 = vdwg.mxu0
  %v965 = vmax.f32 %v962, 0.0
  %v966 = vtanh.pop %v962
  %v967 = vld [vmem:[%s4 + $0x178] sm:$0xff]
  %v968 = vld [vmem:[%s4 + $0x180] sm:$0xff]
  %v969 = vld [vmem:[%s4 + $0x188] sm:$0xff]
  %v970 = vld [vmem:[%s4 + $0x190] sm:$0xff]
  %v971 = vld [vmem:[%s4 + $0x198] sm:$0x1]
  %v972 = vlaneseq
  %v973 = vshrl.u32 %v972, 7
  %v974 = vsub.s32 0, %v973
  %v975 = vrot.slane %v971, %v974
  %v977 = vsel %vm523, %v965, 0
  %979 = vmatprep.subr.mxu0 0.0
  %980 = vmatpush1.msra.mxu0 %v967
  %981 = vmatprep.subr.mxu0 0.0
  %982 = vmatpush1.msra.mxu0 %v968
  %983 = vmatprep.subr.mxu0 0.0
  %984 = vmatpush1.msra.mxu0 %v969
  %985 = vmatprep.subr.mxu0 0.0
  %986 = vmatpush1.msra.mxu0 %v970
  %987 = vmatprep.subr.mxu0 0.0
  %988 = vmatpush1.msra.mxu0 0.0
  %989 = vmatprep.subr.mxu0 0.0
  %990 = vmatpush1.msra.mxu0 0.0
  %991 = vmatprep.subr.mxu0 0.0
  %992 = vmatpush1.msra.mxu0 0.0
  %993 = vmatprep.subr.mxu0 0.0
  %994 = vmatpush1.msra.mxu0 0.0
  %995 = vmatprep.subr.mxu0 0.0
  %996 = vmatpush1.msra.mxu0 0.0
  %997 = vmatprep.subr.mxu0 0.0
  %998 = vmatpush1.msra.mxu0 0.0
  %999 = vmatprep.subr.mxu0 0.0
  %1000 = vmatpush1.msra.mxu0 0.0
  %1001 = vmatprep.subr.mxu0 0.0
  %1002 = vmatpush1.msra.mxu0 0.0
  %1003 = vmatprep.subr.mxu0 0.0
  %1004 = vmatpush1.msra.mxu0 0.0
  %1005 = vmatprep.subr.mxu0 0.0
  %1006 = vmatpush1.msra.mxu0 0.0
  %1007 = vmatprep.subr.mxu0 0.0
  %1008 = vmatpush1.msra.mxu0 0.0
  %1009 = vmatprep.subr.mxu0 0.0
  %1010 = vmatpush1.msra.mxu0 0.0
  %1011 = vmatprep.subr.mxu0 0.0
  %1012 = vmatpush1.msra.mxu0 0.0
  %1013 = vmatprep.subr.mxu0 0.0
  %1014 = vmatpush1.msra.mxu0 0.0
  %1015 = vmatprep.subr.mxu0 0.0
  %1016 = vmatpush1.msra.mxu0 0.0
  %1017 = vmatprep.subr.mxu0 0.0
  %1018 = vmatpush1.msra.mxu0 0.0
  %1019 = vmatprep.subr.mxu0 0.0
  %1020 = vmatpush1.msra.mxu0 0.0
  %1021 = vmatprep.subr.mxu0 0.0
  %1022 = vmatpush1.msra.mxu0 0.0
  %1023 = vmatprep.subr.mxu0 0.0
  %1024 = vmatpush1.msra.mxu0 0.0
  %1025 = vmatprep.subr.mxu0 0.0
  %1026 = vmatpush1.msra.mxu0 0.0
  %1027 = vmatprep.subr.mxu0 0.0
  %1028 = vmatpush1.msra.mxu0 0.0
  %1029 = vmatprep.subr.mxu0 0.0
  %1030 = vmatpush1.msra.mxu0 0.0
  %1031 = vmatprep.subr.mxu0 0.0
  %1032 = vmatpush1.msra.mxu0 0.0
  %1033 = vmatprep.subr.mxu0 0.0
  %1034 = vmatpush1.msra.mxu0 0.0
  %1035 = vmatprep.subr.mxu0 0.0
  %1036 = vmatpush1.msra.mxu0 0.0
  %1037 = vmatprep.subr.mxu0 0.0
  %1038 = vmatpush1.msra.mxu0 0.0
  %1039 = vmatprep.subr.mxu0 0.0
  %1040 = vmatpush1.msra.mxu0 0.0
  %1041 = vmatprep.subr.mxu0 0.0
  %1042 = vmatpush1.msra.mxu0 0.0
  %1043 = vmatprep.mubr.f32.mxu0 0.0
  %1044 = vmatmul.mubr.f32.gmra.mrb[0].mxu0 %v977
  %v1045 = vpop.f32.mrb[0].mxu0
  %v1046 = vadd.f32 %v975, %v1045
  %v1047 = vpop.f32.mrb[0].mxu0
  %1048 = vdwg.mxu0
  %v1049 = vld [vmem:[%s0 + $0x8] sm:$0xff]
  %v1050 = vld [vmem:[%s0 + $0x10] sm:$0xff]
  %v1051 = vld [vmem:[%s0 + $0x18] sm:$0xff]
  %v1052 = vld [vmem:[%s0 + $0x20] sm:$0xff]
  %v1053 = vmul.f32 %v1051, %v1051
  %v1054 = vmul.f32 %v1052, %v1052
  %1056 = vrot.lane.b32.xlu0 %v1049, 112
  %v1057 = vpop.permute.xlu0 %1056
  %v1059 = vadd.f32 %v1049, %v1057
  %1060 = vrot.lane.b32.xlu0 %v1049, 96
  %v1061 = vpop.permute.xlu0 %1060
  %v1063 = vadd.f32 %v1059, %v1061
  %1064 = vrot.lane.b32.xlu0 %v1049, 80
  %v1065 = vpop.permute.xlu0 %1064
  %v1067 = vadd.f32 %v1063, %v1065
  %1068 = vrot.lane.b32.xlu0 %v1049, 64
  %v1069 = vpop.permute.xlu0 %1068
  %v1071 = vadd.f32 %v1067, %v1069
  %1072 = vrot.lane.b32.xlu0 %v1049, 48
  %v1073 = vpop.permute.xlu0 %1072
  %v1075 = vadd.f32 %v1071, %v1073
  %1077 = vrot.lane.b32.xlu0 %v1050, 112
  %v1078 = vpop.permute.xlu0 %1077
  %v1080 = vadd.f32 %v1050, %v1078
  %1081 = vrot.lane.b32.xlu0 %v1050, 96
  %v1082 = vpop.permute.xlu0 %1081
  %v1084 = vadd.f32 %v1080, %v1082
  %1085 = vrot.lane.b32.xlu0 %v1050, 80
  %v1086 = vpop.permute.xlu0 %1085
  %v1088 = vadd.f32 %v1084, %v1086
  %1089 = vrot.lane.b32.xlu0 %v1050, 64
  %v1090 = vpop.permute.xlu0 %1089
  %v1092 = vadd.f32 %v1088, %v1090
  %1093 = vrot.lane.b32.xlu0 %v1050, 48
  %v1094 = vpop.permute.xlu0 %1093
  %v1096 = vadd.f32 %v1092, %v1094
  %1098 = vrot.lane.b32.xlu0 %v1096, 16
  %v1099 = vpop.permute.xlu0 %1098
  %vm1101 = vcmask 130048
  %v1102 = vsel %vm1101, %v1075, %v1099
  %v1103 = vld [vmem:[%s4 + $0x138] sm:$0xff]
  %v1104 = vld [vmem:[%s4 + $0x140] sm:$0xff]
  %v1105 = vld [vmem:[%s4 + $0x148] sm:$0xff]
  %v1106 = vld [vmem:[%s4 + $0x150] sm:$0xff]
  %v1107 = vld [vmem:[%s4 + $0x130] sm:$0xff]
  %1109 = vrot.lane.b32.xlu0 %v876, 120
  %v1110 = vpop.permute.xlu0 %1109
  %v1111 = vsel %vm881, %v1110, 0
  %1113 = vmatprep.subr.mxu0 0.0
  %1114 = vmatpush1.msra.mxu0 %v1107
  %1115 = vmatprep.subr.mxu0 0.0
  %1116 = vmatpush1.msra.mxu0 0.0
  %1117 = vmatprep.subr.mxu0 0.0
  %1118 = vmatpush1.msra.mxu0 0.0
  %1119 = vmatprep.subr.mxu0 0.0
  %1120 = vmatpush1.msra.mxu0 0.0
  %1121 = vmatprep.subr.mxu0 0.0
  %1122 = vmatpush1.msra.mxu0 0.0
  %1123 = vmatprep.subr.mxu0 0.0
  %1124 = vmatpush1.msra.mxu0 0.0
  %1125 = vmatprep.subr.mxu0 0.0
  %1126 = vmatpush1.msra.mxu0 0.0
  %1127 = vmatprep.subr.mxu0 0.0
  %1128 = vmatpush1.msra.mxu0 0.0
  %1129 = vmatprep.subr.mxu0 0.0
  %1130 = vmatpush1.msra.mxu0 0.0
  %1131 = vmatprep.subr.mxu0 0.0
  %1132 = vmatpush1.msra.mxu0 0.0
  %1133 = vmatprep.subr.mxu0 0.0
  %1134 = vmatpush1.msra.mxu0 0.0
  %1135 = vmatprep.subr.mxu0 0.0
  %1136 = vmatpush1.msra.mxu0 0.0
  %1137 = vmatprep.subr.mxu0 0.0
  %1138 = vmatpush1.msra.mxu0 0.0
  %1139 = vmatprep.subr.mxu0 0.0
  %1140 = vmatpush1.msra.mxu0 0.0
  %1141 = vmatprep.subr.mxu0 0.0
  %1142 = vmatpush1.msra.mxu0 0.0
  %1143 = vmatprep.subr.mxu0 0.0
  %1144 = vmatpush1.msra.mxu0 0.0
  %1145 = vmatprep.subr.mxu0 0.0
  %1146 = vmatpush1.msra.mxu0 0.0
  %1147 = vmatprep.subr.mxu0 0.0
  %1148 = vmatpush1.msra.mxu0 0.0
  %1149 = vmatprep.subr.mxu0 0.0
  %1150 = vmatpush1.msra.mxu0 0.0
  %1151 = vmatprep.subr.mxu0 0.0
  %1152 = vmatpush1.msra.mxu0 0.0
  %1153 = vmatprep.subr.mxu0 0.0
  %1154 = vmatpush1.msra.mxu0 0.0
  %1155 = vmatprep.subr.mxu0 0.0
  %1156 = vmatpush1.msra.mxu0 0.0
  %1157 = vmatprep.subr.mxu0 0.0
  %1158 = vmatpush1.msra.mxu0 0.0
  %1159 = vmatprep.subr.mxu0 0.0
  %1160 = vmatpush1.msra.mxu0 0.0
  %1161 = vmatprep.subr.mxu0 0.0
  %1162 = vmatpush1.msra.mxu0 0.0
  %1163 = vmatprep.subr.mxu0 0.0
  %1164 = vmatpush1.msra.mxu0 0.0
  %1165 = vmatprep.subr.mxu0 0.0
  %1166 = vmatpush1.msra.mxu0 0.0
  %1167 = vmatprep.subr.mxu0 0.0
  %1168 = vmatpush1.msra.mxu0 0.0
  %1169 = vmatprep.subr.mxu0 0.0
  %1170 = vmatpush1.msra.mxu0 0.0
  %1171 = vmatprep.subr.mxu0 0.0
  %1172 = vmatpush1.msra.mxu0 0.0
  %1173 = vmatprep.subr.mxu0 0.0
  %1174 = vmatpush1.msra.mxu0 0.0
  %1175 = vmatprep.subr.mxu0 0.0
  %1176 = vmatpush1.msra.mxu0 0.0
  %1177 = vmatprep.mubr.f32.mxu0 0.0
  %1178 = vmatmul.mubr.f32.gmra.mrb[0].mxu0 %v1111
  %v1179 = vpop.f32.mrb[0].mxu0
  %v1180 = vadd.f32 0.0, %v1179
  %v1181 = vpop.f32.mrb[0].mxu0
  %1182 = vdwg.mxu0
  %v1184 = vsel %vm523, %v1102, 0
  %1186 = vmatprep.subr.mxu0 0.0
  %1187 = vmatpush1.msra.mxu0 %v1103
  %1188 = vmatprep.subr.mxu0 0.0
  %1189 = vmatpush1.msra.mxu0 %v1104
  %1190 = vmatprep.subr.mxu0 0.0
  %1191 = vmatpush1.msra.mxu0 %v1105
  %1192 = vmatprep.subr.mxu0 0.0
  %1193 = vmatpush1.msra.mxu0 %v1106
  %1194 = vmatprep.subr.mxu0 0.0
  %1195 = vmatpush1.msra.mxu0 0.0
  %1196 = vmatprep.subr.mxu0 0.0
  %1197 = vmatpush1.msra.mxu0 0.0
  %1198 = vmatprep.subr.mxu0 0.0
  %1199 = vmatpush1.msra.mxu0 0.0
  %1200 = vmatprep.subr.mxu0 0.0
  %1201 = vmatpush1.msra.mxu0 0.0
  %1202 = vmatprep.subr.mxu0 0.0
  %1203 = vmatpush1.msra.mxu0 0.0
  %1204 = vmatprep.subr.mxu0 0.0
  %1205 = vmatpush1.msra.mxu0 0.0
  %1206 = vmatprep.subr.mxu0 0.0
  %1207 = vmatpush1.msra.mxu0 0.0
  %1208 = vmatprep.subr.mxu0 0.0
  %1209 = vmatpush1.msra.mxu0 0.0
  %1210 = vmatprep.subr.mxu0 0.0
  %1211 = vmatpush1.msra.mxu0 0.0
  %1212 = vmatprep.subr.mxu0 0.0
  %1213 = vmatpush1.msra.mxu0 0.0
  %1214 = vmatprep.subr.mxu0 0.0
  %1215 = vmatpush1.msra.mxu0 0.0
  %1216 = vmatprep.subr.mxu0 0.0
  %1217 = vmatpush1.msra.mxu0 0.0
  %1218 = vmatprep.subr.mxu0 0.0
  %1219 = vmatpush1.msra.mxu0 0.0
  %1220 = vmatprep.subr.mxu0 0.0
  %1221 = vmatpush1.msra.mxu0 0.0
  %1222 = vmatprep.subr.mxu0 0.0
  %1223 = vmatpush1.msra.mxu0 0.0
  %1224 = vmatprep.subr.mxu0 0.0
  %1225 = vmatpush1.msra.mxu0 0.0
  %1226 = vmatprep.subr.mxu0 0.0
  %1227 = vmatpush1.msra.mxu0 0.0
  %1228 = vmatprep.subr.mxu0 0.0
  %1229 = vmatpush1.msra.mxu0 0.0
  %1230 = vmatprep.subr.mxu0 0.0
  %1231 = vmatpush1.msra.mxu0 0.0
  %1232 = vmatprep.subr.mxu0 0.0
  %1233 = vmatpush1.msra.mxu0 0.0
  %1234 = vmatprep.subr.mxu0 0.0
  %1235 = vmatpush1.msra.mxu0 0.0
  %1236 = vmatprep.subr.mxu0 0.0
  %1237 = vmatpush1.msra.mxu0 0.0
  %1238 = vmatprep.subr.mxu0 0.0
  %1239 = vmatpush1.msra.mxu0 0.0
  %1240 = vmatprep.subr.mxu0 0.0
  %1241 = vmatpush1.msra.mxu0 0.0
  %1242 = vmatprep.subr.mxu0 0.0
  %1243 = vmatpush1.msra.mxu0 0.0
  %1244 = vmatprep.subr.mxu0 0.0
  %1245 = vmatpush1.msra.mxu0 0.0
  %1246 = vmatprep.subr.mxu0 0.0
  %1247 = vmatpush1.msra.mxu0 0.0
  %1248 = vmatprep.subr.mxu0 0.0
  %1249 = vmatpush1.msra.mxu0 0.0
  %1250 = vmatprep.mubr.f32.mxu0 0.0
  %1251 = vmatmul.mubr.f32.gmra.mrb[0].mxu0 %v1184
  %v1252 = vpop.f32.mrb[0].mxu0
  %v1253 = vadd.f32 %v1180, %v1252
  %v1254 = vpop.f32.mrb[0].mxu0
  %1255 = vdwg.mxu0
  %v1256 = vld [vmem:[%s2 + $0x30] sm:$0xff]
  %v1257 = vld [vmem:[%s2 + $0x38] sm:$0xff]
  %v1258 = vld [vmem:[%s2 + $0x40] sm:$0xff]
  %1259 = vmatprep.subr.mxu0 %v1257
  %1260 = vmatpush1.msra.mxu0 %v1256
  %1261 = vmatprep.subr.mxu0 0.0
  %1262 = vmatpush1.msra.mxu0 0.0
  %1263 = vmatprep.subr.mxu0 0.0
  %1264 = vmatpush1.msra.mxu0 0.0
  %1265 = vmatprep.subr.mxu0 0.0
  %1266 = vmatpush1.msra.mxu0 0.0
  %1267 = vmatprep.subr.mxu0 0.0
  %1268 = vmatpush1.msra.mxu0 0.0
  %1269 = vmatprep.subr.mxu0 0.0
  %1270 = vmatpush1.msra.mxu0 0.0
  %1271 = vmatprep.subr.mxu0 0.0
  %1272 = vmatpush1.msra.mxu0 0.0
  %1273 = vmatprep.subr.mxu0 0.0
  %1274 = vmatpush1.msra.mxu0 0.0
  %1275 = vmatprep.subr.mxu0 0.0
  %1276 = vmatpush1.msra.mxu0 0.0
  %1277 = vmatprep.subr.mxu0 0.0
  %1278 = vmatpush1.msra.mxu0 0.0
  %1279 = vmatprep.subr.mxu0 0.0
  %1280 = vmatpush1.msra.mxu0 0.0
  %1281 = vmatprep.subr.mxu0 0.0
  %1282 = vmatpush1.msra.mxu0 0.0
  %1283 = vmatprep.subr.mxu0 0.0
  %1284 = vmatpush1.msra.mxu0 0.0
  %1285 = vmatprep.subr.mxu0 0.0
  %1286 = vmatpush1.msra.mxu0 0.0
  %1287 = vmatprep.subr.mxu0 0.0
  %1288 = vmatpush1.msra.mxu0 0.0
  %1289 = vmatprep.subr.mxu0 0.0
  %1290 = vmatpush1.msra.mxu0 0.0
  %1291 = vmatprep.subr.mxu0 0.0
  %1292 = vmatpush1.msra.mxu0 0.0
  %1293 = vmatprep.subr.mxu0 0.0
  %1294 = vmatpush1.msra.mxu0 0.0
  %1295 = vmatprep.subr.mxu0 0.0
  %1296 = vmatpush1.msra.mxu0 0.0
  %1297 = vmatprep.subr.mxu0 0.0
  %1298 = vmatpush1.msra.mxu0 0.0
  %1299 = vmatprep.subr.mxu0 0.0
  %1300 = vmatpush1.msra.mxu0 0.0
  %1301 = vmatprep.subr.mxu0 0.0
  %1302 = vmatpush1.msra.mxu0 0.0
  %1303 = vmatprep.subr.mxu0 0.0
  %1304 = vmatpush1.msra.mxu0 0.0
  %1305 = vmatprep.subr.mxu0 0.0
  %1306 = vmatpush1.msra.mxu0 0.0
  %1307 = vmatprep.subr.mxu0 0.0
  %1308 = vmatpush1.msra.mxu0 0.0
  %1309 = vmatprep.subr.mxu0 0.0
  %1310 = vmatpush1.msra.mxu0 0.0
  %1311 = vmatprep.subr.mxu0 0.0
  %1312 = vmatpush1.msra.mxu0 0.0
  %1313 = vmatprep.subr.mxu0 0.0
  %1314 = vmatpush1.msra.mxu0 0.0
  %1315 = vmatprep.subr.mxu0 0.0
  %1316 = vmatpush1.msra.mxu0 0.0
  %1317 = vmatprep.subr.mxu0 0.0
  %1318 = vmatpush1.msra.mxu0 0.0
  %1319 = vmatprep.subr.mxu0 0.0
  %1320 = vmatpush1.msra.mxu0 0.0
  %1321 = vmatprep.subr.mxu0 0.0
  %1322 = vmatpush1.msra.mxu0 0.0
  %1323 = vmatprep.mubr.f32.mxu0 0.0
  %1324 = vmatmul.mubr.f32.gmra.mrb[0].mxu0 %v1111
  %v1325 = vpop.f32.mrb[0].mxu0
  %v1326 = vadd.f32 0.0, %v1325
  %v1327 = vpop.f32.mrb[0].mxu0
  %v1328 = vadd.f32 0.0, %v1327
  %1329 = vdwg.mxu0
  %1330 = vmatprep.subr.mxu0 0.0
  %1331 = vmatpush1.msra.mxu0 %v1258
  %1332 = vmatprep.subr.mxu0 0.0
  %1333 = vmatpush1.msra.mxu0 0.0
  %1334 = vmatprep.subr.mxu0 0.0
  %1335 = vmatpush1.msra.mxu0 0.0
  %1336 = vmatprep.subr.mxu0 0.0
  %1337 = vmatpush1.msra.mxu0 0.0
  %1338 = vmatprep.subr.mxu0 0.0
  %1339 = vmatpush1.msra.mxu0 0.0
  %1340 = vmatprep.subr.mxu0 0.0
  %1341 = vmatpush1.msra.mxu0 0.0
  %1342 = vmatprep.subr.mxu0 0.0
  %1343 = vmatpush1.msra.mxu0 0.0
  %1344 = vmatprep.subr.mxu0 0.0
  %1345 = vmatpush1.msra.mxu0 0.0
  %1346 = vmatprep.subr.mxu0 0.0
  %1347 = vmatpush1.msra.mxu0 0.0
  %1348 = vmatprep.subr.mxu0 0.0
  %1349 = vmatpush1.msra.mxu0 0.0
  %1350 = vmatprep.subr.mxu0 0.0
  %1351 = vmatpush1.msra.mxu0 0.0
  %1352 = vmatprep.subr.mxu0 0.0
  %1353 = vmatpush1.msra.mxu0 0.0
  %1354 = vmatprep.subr.mxu0 0.0
  %1355 = vmatpush1.msra.mxu0 0.0
  %1356 = vmatprep.subr.mxu0 0.0
  %1357 = vmatpush1.msra.mxu0 0.0
  %1358 = vmatprep.subr.mxu0 0.0
  %1359 = vmatpush1.msra.mxu0 0.0
  %1360 = vmatprep.subr.mxu0 0.0
  %1361 = vmatpush1.msra.mxu0 0.0
  %1362 = vmatprep.subr.mxu0 0.0
  %1363 = vmatpush1.msra.mxu0 0.0
  %1364 = vmatprep.subr.mxu0 0.0
  %1365 = vmatpush1.msra.mxu0 0.0
  %1366 = vmatprep.subr.mxu0 0.0
  %1367 = vmatpush1.msra.mxu0 0.0
  %1368 = vmatprep.subr.mxu0 0.0
  %1369 = vmatpush1.msra.mxu0 0.0
  %1370 = vmatprep.subr.mxu0 0.0
  %1371 = vmatpush1.msra.mxu0 0.0
  %1372 = vmatprep.subr.mxu0 0.0
  %1373 = vmatpush1.msra.mxu0 0.0
  %1374 = vmatprep.subr.mxu0 0.0
  %1375 = vmatpush1.msra.mxu0 0.0
  %1376 = vmatprep.subr.mxu0 0.0
  %1377 = vmatpush1.msra.mxu0 0.0
  %1378 = vmatprep.subr.mxu0 0.0
  %1379 = vmatpush1.msra.mxu0 0.0
  %1380 = vmatprep.subr.mxu0 0.0
  %1381 = vmatpush1.msra.mxu0 0.0
  %1382 = vmatprep.subr.mxu0 0.0
  %1383 = vmatpush1.msra.mxu0 0.0
  %1384 = vmatprep.subr.mxu0 0.0
  %1385 = vmatpush1.msra.mxu0 0.0
  %1386 = vmatprep.subr.mxu0 0.0
  %1387 = vmatpush1.msra.mxu0 0.0
  %1388 = vmatprep.subr.mxu0 0.0
  %1389 = vmatpush1.msra.mxu0 0.0
  %1390 = vmatprep.subr.mxu0 0.0
  %1391 = vmatpush1.msra.mxu0 0.0
  %1392 = vmatprep.subr.mxu0 0.0
  %1393 = vmatpush1.msra.mxu0 0.0
  %1394 = vmatprep.mubr.f32.mxu0 0.0
  %1395 = vmatmul.mubr.f32.gmra.mrb[0].mxu0 %v1111
  %v1396 = vpop.f32.mrb[0].mxu0
  %v1397 = vadd.f32 0.0, %v1396
  %v1398 = vpop.f32.mrb[0].mxu0
  %1399 = vdwg.mxu0
  %s1400 = scalar_lea.vmem %s2, 168
  %v1401 = vld [vmem:[%s1400] ss:$8 sm:$0x7]
  %v1403 = vlaneseq
  %v1404 = vshrl.u32 %v1403, 7
  %v1405 = vsub.s32 0, %v1404
  %v1406 = vrot.slane %v1401, %v1405
  %v1407 = vlaneseq
  %v1408 = vshrl.u32 %v1407, 7
  %v1409 = vsub.s32 1, %v1408
  %v1410 = vrot.slane %v1401, %v1409
  %v1411 = vlaneseq
  %v1412 = vshrl.u32 %v1411, 7
  %v1413 = vsub.s32 2, %v1412
  %v1414 = vrot.slane %v1401, %v1413
  %v1418 = vadd.f32 %v1326, %v1406
  %v1419 = vadd.f32 %v1328, %v1410
  %v1420 = vadd.f32 %v1397, %v1414
  %v1421 = vld [vmem:[%s2] sm:$0xff]
  %v1422 = vld [vmem:[%s2 + $0x8] sm:$0xff]
  %v1423 = vld [vmem:[%s2 + $0x10] sm:$0xff]
  %v1424 = vld [vmem:[%s2 + $0x18] sm:$0xff]
  %v1425 = vld [vmem:[%s2 + $0x20] sm:$0xff]
  %v1426 = vld [vmem:[%s2 + $0x28] sm:$0xff]
  %v1428 = vsel %vm1101, %v1046, 0
  %1430 = vmatprep.subr.mxu0 %v1422
  %1431 = vmatpush1.msra.mxu0 %v1421
  %1432 = vmatprep.subr.mxu0 %v1425
  %1433 = vmatpush1.msra.mxu0 %v1424
  %1434 = vmatprep.subr.mxu0 0.0
  %1435 = vmatpush1.msra.mxu0 0.0
  %1436 = vmatprep.subr.mxu0 0.0
  %1437 = vmatpush1.msra.mxu0 0.0
  %1438 = vmatprep.subr.mxu0 0.0
  %1439 = vmatpush1.msra.mxu0 0.0
  %1440 = vmatprep.subr.mxu0 0.0
  %1441 = vmatpush1.msra.mxu0 0.0
  %1442 = vmatprep.subr.mxu0 0.0
  %1443 = vmatpush1.msra.mxu0 0.0
  %1444 = vmatprep.subr.mxu0 0.0
  %1445 = vmatpush1.msra.mxu0 0.0
  %1446 = vmatprep.subr.mxu0 0.0
  %1447 = vmatpush1.msra.mxu0 0.0
  %1448 = vmatprep.subr.mxu0 0.0
  %1449 = vmatpush1.msra.mxu0 0.0
  %1450 = vmatprep.subr.mxu0 0.0
  %1451 = vmatpush1.msra.mxu0 0.0
  %1452 = vmatprep.subr.mxu0 0.0
  %1453 = vmatpush1.msra.mxu0 0.0
  %1454 = vmatprep.subr.mxu0 0.0
  %1455 = vmatpush1.msra.mxu0 0.0
  %1456 = vmatprep.subr.mxu0 0.0
  %1457 = vmatpush1.msra.mxu0 0.0
  %1458 = vmatprep.subr.mxu0 0.0
  %1459 = vmatpush1.msra.mxu0 0.0
  %1460 = vmatprep.subr.mxu0 0.0
  %1461 = vmatpush1.msra.mxu0 0.0
  %1462 = vmatprep.subr.mxu0 0.0
  %1463 = vmatpush1.msra.mxu0 0.0
  %1464 = vmatprep.subr.mxu0 0.0
  %1465 = vmatpush1.msra.mxu0 0.0
  %1466 = vmatprep.subr.mxu0 0.0
  %1467 = vmatpush1.msra.mxu0 0.0
  %1468 = vmatprep.subr.mxu0 0.0
  %1469 = vmatpush1.msra.mxu0 0.0
  %1470 = vmatprep.subr.mxu0 0.0
  %1471 = vmatpush1.msra.mxu0 0.0
  %1472 = vmatprep.subr.mxu0 0.0
  %1473 = vmatpush1.msra.mxu0 0.0
  %1474 = vmatprep.subr.mxu0 0.0
  %1475 = vmatpush1.msra.mxu0 0.0
  %1476 = vmatprep.subr.mxu0 0.0
  %1477 = vmatpush1.msra.mxu0 0.0
  %1478 = vmatprep.subr.mxu0 0.0
  %1479 = vmatpush1.msra.mxu0 0.0
  %1480 = vmatprep.subr.mxu0 0.0
  %1481 = vmatpush1.msra.mxu0 0.0
  %1482 = vmatprep.subr.mxu0 0.0
  %1483 = vmatpush1.msra.mxu0 0.0
  %1484 = vmatprep.subr.mxu0 0.0
  %1485 = vmatpush1.msra.mxu0 0.0
  %1486 = vmatprep.subr.mxu0 0.0
  %1487 = vmatpush1.msra.mxu0 0.0
  %1488 = vmatprep.subr.mxu0 0.0
  %1489 = vmatpush1.msra.mxu0 0.0
  %1490 = vmatprep.subr.mxu0 0.0
  %1491 = vmatpush1.msra.mxu0 0.0
  %1492 = vmatprep.subr.mxu0 0.0
  %1493 = vmatpush1.msra.mxu0 0.0
  %1494 = vmatprep.mubr.f32.mxu0 0.0
  %1495 = vmatmul.mubr.f32.gmra.mrb[0].mxu0 %v1428
  %v1496 = vpop.f32.mrb[0].mxu0
  %v1497 = vadd.f32 %v1326, %v1496
  %v1498 = vpop.f32.mrb[0].mxu0
  %v1499 = vadd.f32 %v1328, %v1498
  %1500 = vdwg.mxu0
  %1501 = vmatprep.subr.mxu0 0.0
  %1502 = vmatpush1.msra.mxu0 %v1423
  %1503 = vmatprep.subr.mxu0 0.0
  %1504 = vmatpush1.msra.mxu0 %v1426
  %1505 = vmatprep.subr.mxu0 0.0
  %1506 = vmatpush1.msra.mxu0 0.0
  %1507 = vmatprep.subr.mxu0 0.0
  %1508 = vmatpush1.msra.mxu0 0.0
  %1509 = vmatprep.subr.mxu0 0.0
  %1510 = vmatpush1.msra.mxu0 0.0
  %1511 = vmatprep.subr.mxu0 0.0
  %1512 = vmatpush1.msra.mxu0 0.0
  %1513 = vmatprep.subr.mxu0 0.0
  %1514 = vmatpush1.msra.mxu0 0.0
  %1515 = vmatprep.subr.mxu0 0.0
  %1516 = vmatpush1.msra.mxu0 0.0
  %1517 = vmatprep.subr.mxu0 0.0
  %1518 = vmatpush1.msra.mxu0 0.0
  %1519 = vmatprep.subr.mxu0 0.0
  %1520 = vmatpush1.msra.mxu0 0.0
  %1521 = vmatprep.subr.mxu0 0.0
  %1522 = vmatpush1.msra.mxu0 0.0
  %1523 = vmatprep.subr.mxu0 0.0
  %1524 = vmatpush1.msra.mxu0 0.0
  %1525 = vmatprep.subr.mxu0 0.0
  %1526 = vmatpush1.msra.mxu0 0.0
  %1527 = vmatprep.subr.mxu0 0.0
  %1528 = vmatpush1.msra.mxu0 0.0
  %1529 = vmatprep.subr.mxu0 0.0
  %1530 = vmatpush1.msra.mxu0 0.0
  %1531 = vmatprep.subr.mxu0 0.0
  %1532 = vmatpush1.msra.mxu0 0.0
  %1533 = vmatprep.subr.mxu0 0.0
  %1534 = vmatpush1.msra.mxu0 0.0
  %1535 = vmatprep.subr.mxu0 0.0
  %1536 = vmatpush1.msra.mxu0 0.0
  %1537 = vmatprep.subr.mxu0 0.0
  %1538 = vmatpush1.msra.mxu0 0.0
  %1539 = vmatprep.subr.mxu0 0.0
  %1540 = vmatpush1.msra.mxu0 0.0
  %1541 = vmatprep.subr.mxu0 0.0
  %1542 = vmatpush1.msra.mxu0 0.0
  %1543 = vmatprep.subr.mxu0 0.0
  %1544 = vmatpush1.msra.mxu0 0.0
  %1545 = vmatprep.subr.mxu0 0.0
  %1546 = vmatpush1.msra.mxu0 0.0
  %1547 = vmatprep.subr.mxu0 0.0
  %1548 = vmatpush1.msra.mxu0 0.0
  %1549 = vmatprep.subr.mxu0 0.0
  %1550 = vmatpush1.msra.mxu0 0.0
  %1551 = vmatprep.subr.mxu0 0.0
  %1552 = vmatpush1.msra.mxu0 0.0
  %1553 = vmatprep.subr.mxu0 0.0
  %1554 = vmatpush1.msra.mxu0 0.0
  %1555 = vmatprep.subr.mxu0 0.0
  %1556 = vmatpush1.msra.mxu0 0.0
  %1557 = vmatprep.subr.mxu0 0.0
  %1558 = vmatpush1.msra.mxu0 0.0
  %1559 = vmatprep.subr.mxu0 0.0
  %1560 = vmatpush1.msra.mxu0 0.0
  %1561 = vmatprep.subr.mxu0 0.0
  %1562 = vmatpush1.msra.mxu0 0.0
  %1563 = vmatprep.subr.mxu0 0.0
  %1564 = vmatpush1.msra.mxu0 0.0
  %1565 = vmatprep.mubr.f32.mxu0 0.0
  %1566 = vmatmul.mubr.f32.gmra.mrb[0].mxu0 %v1428
  %v1567 = vpop.f32.mrb[0].mxu0
  %v1568 = vadd.f32 %v1397, %v1567
  %v1569 = vpop.f32.mrb[0].mxu0
  %1570 = vdwg.mxu0
  %v1571 = vsub.f32 %v1499, %v1049
  %v1572 = vsub.f32 %v1568, %v1050
  %v1573 = vmul.f32 %v1571, %v1052
  %v1574 = vmul.f32 %v1572, %v1051
  %v1575 = vmul.f32 %v1573, %v1573
  %v1576 = vmul.f32 %v1574, %v1574
  %v1577 = vadd.f32 %v1575, %v1576
  %v1578 = vadd.f32 %v1577, 1e-20
  %v1579 = vrsqrt.pop %v1578
  %v1580 = vmul.f32 %v1573, %v1579
  %v1581 = vmul.f32 %v1574, %v1579
  %v1582 = vmul.f32 %v1053, %v1580
  %v1583 = vmul.f32 %v1582, %v1580
  %v1584 = vmul.f32 %v1054, %v1581
  %v1585 = vmul.f32 %v1584, %v1581
  %v1586 = vadd.f32 %v1583, %v1585
  %v1587 = vmul.f32 %v1051, %v1571
  %v1588 = vmul.f32 %v1587, %v1580
  %v1589 = vmul.f32 %v1052, %v1572
  %v1590 = vmul.f32 %v1589, %v1581
  %v1591 = vadd.f32 %v1588, %v1590
  %v1592 = vrcp.pop %v1586
  %v1593 = vmul.f32 %v1591, %v1592
  %v1594 = vmax.f32 %v1593, 1.0
  %v1595 = vmul.f32 %v1594, %v1580
  %v1596 = vmul.f32 %v1051, %v1595
  %v1597 = vmul.f32 %v1594, %v1581
  %v1598 = vmul.f32 %v1052, %v1597
  %v1599 = vsub.f32 %v1571, %v1596
  %v1600 = vsub.f32 %v1572, %v1598
  %v1601 = vmul.f32 %v1599, %v1599
  %v1602 = vmul.f32 %v1600, %v1600
  %v1603 = vadd.f32 %v1601, %v1602
  %vm1604 = vcmask 785408
  %v1605 = vsel %vm1604, %v1603, 0.0
  %1606 = vadd.xlane.f32.xlu0 %v1605
  %v1607 = vpop.xlane.xlu0 %1606
  %v1608 = vmul.f32 %v1497, %v1497
  %1610 = vrot.lane.b32.xlu0 %v1608, 96
  %v1611 = vpop.permute.xlu0 %1610
  %v1613 = vadd.f32 %v1608, %v1611
  %v1614 = vadd.f32 %v1613, 1e-20
  %v1615 = vrsqrt.pop %v1614
  %v1616 = vmul.f32 %v1497, %v1615
  %1618 = vrot.lane.b32.xlu0 %v1615, 32
  %v1619 = vpop.permute.xlu0 %1618
  %v1621 = vmul.f32 %v1497, %v1619
  %vm1622 = vcmp.gt.f32.partialorder %v1497, 0.0
  %v1623 = vand.u32 2147483647, %v1497
  %v1624 = vmul.f32 %v1497, 0.4346312
  %1626 = vrot.lane.b32.xlu0 %v1624, 32
  %v1627 = vpop.permute.xlu0 %1626
  %vm1629 = vcmp.le.f32.partialorder %v1623, %v1627
  %v1630 = vsel %vm1629, 1, 0
  %1631 = vrot.lane.b32.xlu0 %v1630, 96
  %v1632 = vpop.permute.xlu0 %1631
  %vm1633 = vcmp.ne.s32.totalorder %v1632, 0
  %vm1634 = vmand %vm1622, %vm1633
  %vm1635 = vcmp.ge.f32.partialorder %v1497, 0.0
  %v1636 = vsel %vm1635, 1.0, -1.0
  %v1637 = vsel %vm1634, %v1616, 0.9171208
  %v1638 = vmul.f32 %v1636, 0.39860934
  %1640 = vrot.lane.b32.xlu0 %v1621, 96
  %v1641 = vpop.permute.xlu0 %1640
  %1644 = vrot.lane.b32.xlu0 %v1638, 96
  %v1645 = vpop.permute.xlu0 %1644
  %v1647 = vsel %vm1634, %v1641, %v1645
  %v1648 = vmul.f32 %v1497, %v1637
  %1650 = vrot.lane.b32.xlu0 %v1647, 32
  %v1651 = vpop.permute.xlu0 %1650
  %v1653 = vmul.f32 %v1497, %v1651
  %1655 = vrot.lane.b32.xlu0 %v1653, 96
  %v1656 = vpop.permute.xlu0 %1655
  %v1658 = vadd.f32 %v1648, %v1656
  %v1659 = vmax.f32 %v1658, 0.001
  %v1660 = vmin.f32 %v1659, 18.0
  %v1661 = vmul.f32 %v1660, %v1637
  %v1662 = vmul.f32 %v1660, %v1647
  %v1663 = vsub.f32 %v1497, %v1661
  %1665 = vrot.lane.b32.xlu0 %v1662, 32
  %v1666 = vpop.permute.xlu0 %1665
  %v1668 = vsub.f32 %v1497, %v1666
  %v1669 = vadd.f32 %v1497, 0.0001
  %v1670 = vmul.f32 %v1669, %v1669
  %1672 = vrot.lane.b32.xlu0 %v1670, 96
  %v1673 = vpop.permute.xlu0 %1672
  %v1675 = vadd.f32 %v1670, %v1673
  %v1676 = vadd.f32 %v1675, 1e-20
  %v1677 = vrsqrt.pop %v1676
  %v1678 = vmul.f32 %v1669, %v1677
  %1680 = vrot.lane.b32.xlu0 %v1677, 32
  %v1681 = vpop.permute.xlu0 %1680
  %v1683 = vmul.f32 %v1669, %v1681
  %v1684 = vmul.f32 %v1497, %v1678
  %v1685 = vmul.f32 %v1497, %v1683
  %1687 = vrot.lane.b32.xlu0 %v1685, 96
  %v1688 = vpop.permute.xlu0 %1687
  %v1690 = vadd.f32 %v1684, %v1688
  %v1691 = vmax.f32 %v1690, 0.0
  %v1692 = vmin.f32 %v1691, 6.0
  %v1693 = vmul.f32 %v1692, %v1678
  %1695 = vrot.lane.b32.xlu0 %v1683, 96
  %v1696 = vpop.permute.xlu0 %1695
  %v1698 = vmul.f32 %v1692, %v1696
  %v1699 = vsub.f32 %v1497, %v1693
  %1701 = vrot.lane.b32.xlu0 %v1698, 32
  %v1702 = vpop.permute.xlu0 %1701
  %v1704 = vsub.f32 %v1497, %v1702
  %1705 = vset.pattern.permute.xlu0 16
  %1706 = vperm.xlu0 %1705, %v876
  %v1707 = vpop.permute.xlu0 %1706
  %v1709 = vsub.f32 %v1497, %v1707
  %v1710 = vmax.f32 %v1709, 0.0
  %1711 = vset.pattern.permute.xlu0 17
  %1712 = vperm.xlu0 %1711, %v876
  %v1713 = vpop.permute.xlu0 %1712
  %v1715 = vsub.f32 %v1713, %v1497
  %v1716 = vmax.f32 %v1715, 0.0
  %v1717 = vmin.f32 %v1497, %v1707
  %v1718 = vmax.f32 %v1497, %v1713
  %v1719 = vsub.f32 0.0, %v1718
  %1721 = vrot.lane.b32.xlu0 %v1699, 96
  %v1722 = vpop.permute.xlu0 %1721
  %1725 = vrot.lane.b32.xlu0 %v1599, 32
  %v1726 = vpop.permute.xlu0 %1725
  %1729 = vrot.lane.b32.xlu0 %v1704, 64
  %v1730 = vpop.permute.xlu0 %1729
  %1733 = vrot.lane.b32.xlu0 %v1668, 96
  %v1734 = vpop.permute.xlu0 %1733
  %1737 = vrot.lane.b32.xlu0 %v1600, 32
  %v1738 = vpop.permute.xlu0 %1737
  %1741 = vrot.lane.b32.xlu0 %v1710, 48
  %v1742 = vpop.permute.xlu0 %1741
  %1745 = vrot.lane.b32.xlu0 %v1716, 64
  %v1746 = vpop.permute.xlu0 %1745
  %v1748 = vsel %vm1101, %v1722, %v1663
  %v1749 = vsel %vm523, %v1748, %v1726
  %v1750 = vsel %vm1101, %v1730, %v1734
  %v1751 = vsel %vm523, %v1750, %v1738
  %v1752 = vsel %vm1101, %v1742, %v1746
  %1754 = vrot.lane.b32.xlu0 %v1693, 96
  %v1755 = vpop.permute.xlu0 %1754
  %1758 = vrot.lane.b32.xlu0 %v1596, 32
  %v1759 = vpop.permute.xlu0 %1758
  %1761 = vrot.lane.b32.xlu0 %v1698, 96
  %v1762 = vpop.permute.xlu0 %1761
  %1765 = vrot.lane.b32.xlu0 %v1598, 32
  %v1766 = vpop.permute.xlu0 %1765
  %1769 = vrot.lane.b32.xlu0 %v1717, 48
  %v1770 = vpop.permute.xlu0 %1769
  %1773 = vrot.lane.b32.xlu0 %v1719, 64
  %v1774 = vpop.permute.xlu0 %1773
  %v1776 = vsel %vm1101, %v1755, %v1661
  %v1777 = vsel %vm523, %v1776, %v1759
  %v1778 = vsel %vm1101, %v1762, %v1662
  %v1779 = vsel %vm523, %v1778, %v1766
  %v1780 = vsel %vm1101, %v1770, %v1774
  %v1781 = vld [vmem:[%s4] sm:$0xff]
  %v1782 = vld [vmem:[%s4 + $0x8] sm:$0xff]
  %v1783 = vld [vmem:[%s4 + $0x10] sm:$0xff]
  %v1784 = vld [vmem:[%s4 + $0x18] sm:$0xff]
  %v1785 = vld [vmem:[%s4 + $0x20] sm:$0xff]
  %v1786 = vld [vmem:[%s4 + $0x28] sm:$0xff]
  %v1787 = vld [vmem:[%s4 + $0x30] sm:$0xff]
  %v1788 = vld [vmem:[%s4 + $0x38] sm:$0xff]
  %v1789 = vld [vmem:[%s4 + $0x40] sm:$0xff]
  %v1790 = vld [vmem:[%s4 + $0x48] sm:$0xff]
  %v1791 = vld [vmem:[%s4 + $0x50] sm:$0xff]
  %v1792 = vld [vmem:[%s4 + $0x58] sm:$0xff]
  %v1793 = vld [vmem:[%s4 + $0x60] sm:$0xff]
  %v1794 = vld [vmem:[%s4 + $0x68] sm:$0xff]
  %v1795 = vld [vmem:[%s4 + $0x70] sm:$0xff]
  %v1796 = vld [vmem:[%s4 + $0x78] sm:$0xff]
  %v1797 = vld [vmem:[%s4 + $0x80] sm:$0xff]
  %v1798 = vld [vmem:[%s4 + $0x88] sm:$0xff]
  %v1799 = vld [vmem:[%s4 + $0x90] sm:$0xff]
  %v1800 = vld [vmem:[%s4 + $0x98] sm:$0xff]
  %v1801 = vld [vmem:[%s4 + $0xa0] sm:$0xff]
  %v1802 = vld [vmem:[%s4 + $0xa8] sm:$0xff]
  %v1803 = vld [vmem:[%s4 + $0xb0] sm:$0xff]
  %v1804 = vld [vmem:[%s4 + $0xb8] sm:$0xff]
  %v1805 = vld [vmem:[%s4 + $0xc0] sm:$0xff]
  %v1806 = vld [vmem:[%s4 + $0xc8] sm:$0xff]
  %v1807 = vld [vmem:[%s4 + $0xd0] sm:$0xff]
  %v1808 = vld [vmem:[%s4 + $0xd8] sm:$0xff]
  %v1809 = vld [vmem:[%s4 + $0xe0] sm:$0xff]
  %v1810 = vld [vmem:[%s4 + $0xe8] sm:$0xff]
  %v1811 = vld [vmem:[%s4 + $0xf0] sm:$0xff]
  %v1812 = vld [vmem:[%s4 + $0xf8] sm:$0xff]
  %v1813 = vld [vmem:[%s4 + $0x100] sm:$0xff]
  %v1814 = vld [vmem:[%s4 + $0x108] sm:$0xff]
  %v1815 = vld [vmem:[%s4 + $0x110] sm:$0xff]
  %v1816 = vld [vmem:[%s4 + $0x118] sm:$0xff]
  %v1818 = vsel %vm523, %v1752, 0
  %v1821 = vsel %vm523, %v1780, 0
  %1823 = vmatprep.subr.mxu0 0.0
  %1824 = vmatpush1.msra.mxu0 %v1781
  %1825 = vmatprep.subr.mxu0 0.0
  %1826 = vmatpush1.msra.mxu0 %v1782
  %1827 = vmatprep.subr.mxu0 0.0
  %1828 = vmatpush1.msra.mxu0 %v1783
  %1829 = vmatprep.subr.mxu0 0.0
  %1830 = vmatpush1.msra.mxu0 %v1784
  %1831 = vmatprep.subr.mxu0 0.0
  %1832 = vmatpush1.msra.mxu0 %v1785
  %1833 = vmatprep.subr.mxu0 0.0
  %1834 = vmatpush1.msra.mxu0 %v1786
  %1835 = vmatprep.subr.mxu0 0.0
  %1836 = vmatpush1.msra.mxu0 %v1787
  %1837 = vmatprep.subr.mxu0 0.0
  %1838 = vmatpush1.msra.mxu0 %v1788
  %1839 = vmatprep.subr.mxu0 0.0
  %1840 = vmatpush1.msra.mxu0 %v1789
  %1841 = vmatprep.subr.mxu0 0.0
  %1842 = vmatpush1.msra.mxu0 %v1790
  %1843 = vmatprep.subr.mxu0 0.0
  %1844 = vmatpush1.msra.mxu0 %v1791
  %1845 = vmatprep.subr.mxu0 0.0
  %1846 = vmatpush1.msra.mxu0 %v1792
  %1847 = vmatprep.subr.mxu0 0.0
  %1848 = vmatpush1.msra.mxu0 %v1793
  %1849 = vmatprep.subr.mxu0 0.0
  %1850 = vmatpush1.msra.mxu0 %v1794
  %1851 = vmatprep.subr.mxu0 0.0
  %1852 = vmatpush1.msra.mxu0 %v1795
  %1853 = vmatprep.subr.mxu0 0.0
  %1854 = vmatpush1.msra.mxu0 %v1796
  %1855 = vmatprep.subr.mxu0 0.0
  %1856 = vmatpush1.msra.mxu0 %v1797
  %1857 = vmatprep.subr.mxu0 0.0
  %1858 = vmatpush1.msra.mxu0 %v1798
  %1859 = vmatprep.subr.mxu0 0.0
  %1860 = vmatpush1.msra.mxu0 %v1799
  %1861 = vmatprep.subr.mxu0 0.0
  %1862 = vmatpush1.msra.mxu0 %v1800
  %1863 = vmatprep.subr.mxu0 0.0
  %1864 = vmatpush1.msra.mxu0 %v1801
  %1865 = vmatprep.subr.mxu0 0.0
  %1866 = vmatpush1.msra.mxu0 %v1802
  %1867 = vmatprep.subr.mxu0 0.0
  %1868 = vmatpush1.msra.mxu0 %v1803
  %1869 = vmatprep.subr.mxu0 0.0
  %1870 = vmatpush1.msra.mxu0 %v1804
  %1871 = vmatprep.subr.mxu0 0.0
  %1872 = vmatpush1.msra.mxu0 %v1805
  %1873 = vmatprep.subr.mxu0 0.0
  %1874 = vmatpush1.msra.mxu0 %v1806
  %1875 = vmatprep.subr.mxu0 0.0
  %1876 = vmatpush1.msra.mxu0 %v1807
  %1877 = vmatprep.subr.mxu0 0.0
  %1878 = vmatpush1.msra.mxu0 %v1808
  %1879 = vmatprep.subr.mxu0 0.0
  %1880 = vmatpush1.msra.mxu0 %v1809
  %1881 = vmatprep.subr.mxu0 0.0
  %1882 = vmatpush1.msra.mxu0 %v1810
  %1883 = vmatprep.subr.mxu0 0.0
  %1884 = vmatpush1.msra.mxu0 %v1811
  %1885 = vmatprep.subr.mxu0 0.0
  %1886 = vmatpush1.msra.mxu0 %v1812
  %1887 = vmatprep.mubr.f32.mxu0 %v1751
  %1888 = vmatmul.mubr.f32.gmra.mrb[0].mxu0 %v1749
  %v1889 = vpop.f32.mrb[0].mxu0
  %v1890 = vadd.f32 0.0, %v1889
  %v1891 = vpop.f32.mrb[0].mxu0
  %1892 = vmatprep.mubr.f32.mxu0 %v1779
  %1893 = vmatmul.mubr.f32.gmra.mrb[0].mxu0 %v1777
  %v1894 = vpop.f32.mrb[0].mxu0
  %v1895 = vadd.f32 0.0, %v1894
  %v1896 = vpop.f32.mrb[0].mxu0
  %1897 = vdwg.mxu0
  %1898 = vmatprep.subr.mxu0 0.0
  %1899 = vmatpush1.msra.mxu0 %v1813
  %1900 = vmatprep.subr.mxu0 0.0
  %1901 = vmatpush1.msra.mxu0 %v1814
  %1902 = vmatprep.subr.mxu0 0.0
  %1903 = vmatpush1.msra.mxu0 %v1815
  %1904 = vmatprep.subr.mxu0 0.0
  %1905 = vmatpush1.msra.mxu0 %v1816
  %1906 = vmatprep.subr.mxu0 0.0
  %1907 = vmatpush1.msra.mxu0 0.0
  %1908 = vmatprep.subr.mxu0 0.0
  %1909 = vmatpush1.msra.mxu0 0.0
  %1910 = vmatprep.subr.mxu0 0.0
  %1911 = vmatpush1.msra.mxu0 0.0
  %1912 = vmatprep.subr.mxu0 0.0
  %1913 = vmatpush1.msra.mxu0 0.0
  %1914 = vmatprep.subr.mxu0 0.0
  %1915 = vmatpush1.msra.mxu0 0.0
  %1916 = vmatprep.subr.mxu0 0.0
  %1917 = vmatpush1.msra.mxu0 0.0
  %1918 = vmatprep.subr.mxu0 0.0
  %1919 = vmatpush1.msra.mxu0 0.0
  %1920 = vmatprep.subr.mxu0 0.0
  %1921 = vmatpush1.msra.mxu0 0.0
  %1922 = vmatprep.subr.mxu0 0.0
  %1923 = vmatpush1.msra.mxu0 0.0
  %1924 = vmatprep.subr.mxu0 0.0
  %1925 = vmatpush1.msra.mxu0 0.0
  %1926 = vmatprep.subr.mxu0 0.0
  %1927 = vmatpush1.msra.mxu0 0.0
  %1928 = vmatprep.subr.mxu0 0.0
  %1929 = vmatpush1.msra.mxu0 0.0
  %1930 = vmatprep.subr.mxu0 0.0
  %1931 = vmatpush1.msra.mxu0 0.0
  %1932 = vmatprep.subr.mxu0 0.0
  %1933 = vmatpush1.msra.mxu0 0.0
  %1934 = vmatprep.subr.mxu0 0.0
  %1935 = vmatpush1.msra.mxu0 0.0
  %1936 = vmatprep.subr.mxu0 0.0
  %1937 = vmatpush1.msra.mxu0 0.0
  %1938 = vmatprep.subr.mxu0 0.0
  %1939 = vmatpush1.msra.mxu0 0.0
  %1940 = vmatprep.subr.mxu0 0.0
  %1941 = vmatpush1.msra.mxu0 0.0
  %1942 = vmatprep.subr.mxu0 0.0
  %1943 = vmatpush1.msra.mxu0 0.0
  %1944 = vmatprep.subr.mxu0 0.0
  %1945 = vmatpush1.msra.mxu0 0.0
  %1946 = vmatprep.subr.mxu0 0.0
  %1947 = vmatpush1.msra.mxu0 0.0
  %1948 = vmatprep.subr.mxu0 0.0
  %1949 = vmatpush1.msra.mxu0 0.0
  %1950 = vmatprep.subr.mxu0 0.0
  %1951 = vmatpush1.msra.mxu0 0.0
  %1952 = vmatprep.subr.mxu0 0.0
  %1953 = vmatpush1.msra.mxu0 0.0
  %1954 = vmatprep.subr.mxu0 0.0
  %1955 = vmatpush1.msra.mxu0 0.0
  %1956 = vmatprep.subr.mxu0 0.0
  %1957 = vmatpush1.msra.mxu0 0.0
  %1958 = vmatprep.subr.mxu0 0.0
  %1959 = vmatpush1.msra.mxu0 0.0
  %1960 = vmatprep.subr.mxu0 0.0
  %1961 = vmatpush1.msra.mxu0 0.0
  %1962 = vmatprep.mubr.f32.mxu0 0.0
  %1963 = vmatmul.mubr.f32.gmra.mrb[0].mxu0 %v1818
  %v1964 = vpop.f32.mrb[0].mxu0
  %v1965 = vadd.f32 %v1890, %v1964
  %v1966 = vpop.f32.mrb[0].mxu0
  %1967 = vmatprep.mubr.f32.mxu0 0.0
  %1968 = vmatmul.mubr.f32.gmra.mrb[0].mxu0 %v1821
  %v1969 = vpop.f32.mrb[0].mxu0
  %v1970 = vadd.f32 %v1895, %v1969
  %v1971 = vpop.f32.mrb[0].mxu0
  %1972 = vdwg.mxu0
  %1974 = vrot.lane.b32.xlu0 %v1965, 16
  %v1975 = vpop.permute.xlu0 %1974
  %v1977 = vsub.f32 %v1046, %v1975
  %1979 = vrot.lane.b32.xlu0 %v1970, 16
  %v1980 = vpop.permute.xlu0 %1979
  %v1982 = vadd.f32 %v1977, %v1980
  %v1983 = vmul.f32 %v1699, %v1699
  %v1984 = vmul.f32 %v1704, %v1704
  %1986 = vrot.lane.b32.xlu0 %v1984, 96
  %v1987 = vpop.permute.xlu0 %1986
  %v1989 = vadd.f32 %v1983, %v1987
  %1991 = vrot.lane.b32.xlu0 %v1989, 96
  %v1992 = vpop.permute.xlu0 %1991
  %v1994 = vsel %vm1101, %v1992, 0.0
  %1995 = vadd.xlane.f32.xlu0 %v1994
  %v1996 = vpop.xlane.xlu0 %1995
  %v1997 = vrsqrt.pop %v1996
  %v1998 = vmul.f32 %v1996, %v1997
  %vm1999 = vcmp.eq.f32.partialorder %v1996, inf
  %v2000 = vsel %vm1999, %v1996, %v1998
  %vm2001 = vcmp.eq.f32.partialorder %v1996, 0.0
  %v2002 = vand.u32 %v1996, 2147483648
  %v2003 = vsel %vm2001, %v2002, %v2000
  %v2004 = vmul.f32 %v1663, %v1663
  %v2005 = vmul.f32 %v1668, %v1668
  %2007 = vrot.lane.b32.xlu0 %v2005, 96
  %v2008 = vpop.permute.xlu0 %2007
  %v2010 = vadd.f32 %v2004, %v2008
  %2012 = vrot.lane.b32.xlu0 %v2010, 112
  %v2013 = vpop.permute.xlu0 %2012
  %v2015 = vsel %vm1101, %v2013, 0.0
  %2016 = vadd.xlane.f32.xlu0 %v2015
  %v2017 = vpop.xlane.xlu0 %2016
  %v2018 = vrsqrt.pop %v2017
  %v2019 = vmul.f32 %v2017, %v2018
  %vm2020 = vcmp.eq.f32.partialorder %v2017, inf
  %v2021 = vsel %vm2020, %v2017, %v2019
  %vm2022 = vcmp.eq.f32.partialorder %v2017, 0.0
  %v2023 = vand.u32 %v2017, 2147483648
  %v2024 = vsel %vm2022, %v2023, %v2021
  %v2025 = vadd.f32 %v2003, %v2024
  %v2026 = vrsqrt.pop %v1607
  %v2027 = vmul.f32 %v1607, %v2026
  %vm2028 = vcmp.eq.f32.partialorder %v1607, inf
  %v2029 = vsel %vm2028, %v1607, %v2027
  %vm2030 = vcmp.eq.f32.partialorder %v1607, 0.0
  %v2031 = vand.u32 %v1607, 2147483648
  %v2032 = vsel %vm2030, %v2031, %v2029
  %v2033 = vadd.f32 %v2025, %v2032
  %v2034 = vmul.f32 %v1710, %v1710
  %v2035 = vmul.f32 %v1716, %v1716
  %v2036 = vadd.f32 %v2034, %v2035
  %2038 = vrot.lane.b32.xlu0 %v2036, 48
  %v2039 = vpop.permute.xlu0 %2038
  %v2041 = vsel %vm1101, %v2039, 0.0
  %2042 = vadd.xlane.f32.xlu0 %v2041
  %v2043 = vpop.xlane.xlu0 %2042
  %v2044 = vrsqrt.pop %v2043
  %v2045 = vmul.f32 %v2043, %v2044
  %vm2046 = vcmp.eq.f32.partialorder %v2043, inf
  %v2047 = vsel %vm2046, %v2043, %v2045
  %vm2048 = vcmp.eq.f32.partialorder %v2043, 0.0
  %v2049 = vand.u32 %v2043, 2147483648
  %v2050 = vsel %vm2048, %v2049, %v2047
  %v2051 = vadd.f32 %v2033, %v2050
  %v2052 = vld [vmem:[%s4 + $0x120] sm:$0xff]
  %v2053 = vld [vmem:[%s4 + $0x128] sm:$0xff]
  %2055 = vrot.lane.b32.xlu0 %v1982, 112
  %v2056 = vpop.permute.xlu0 %2055
  %v2057 = vsel %vm1101, %v2056, 0
  %2059 = vmatprep.subr.mxu0 0.0
  %2060 = vmatpush1.msra.mxu0 %v2052
  %2061 = vmatprep.subr.mxu0 0.0
  %2062 = vmatpush1.msra.mxu0 %v2053
  %2063 = vmatprep.subr.mxu0 0.0
  %2064 = vmatpush1.msra.mxu0 0.0
  %2065 = vmatprep.subr.mxu0 0.0
  %2066 = vmatpush1.msra.mxu0 0.0
  %2067 = vmatprep.subr.mxu0 0.0
  %2068 = vmatpush1.msra.mxu0 0.0
  %2069 = vmatprep.subr.mxu0 0.0
  %2070 = vmatpush1.msra.mxu0 0.0
  %2071 = vmatprep.subr.mxu0 0.0
  %2072 = vmatpush1.msra.mxu0 0.0
  %2073 = vmatprep.subr.mxu0 0.0
  %2074 = vmatpush1.msra.mxu0 0.0
  %2075 = vmatprep.subr.mxu0 0.0
  %2076 = vmatpush1.msra.mxu0 0.0
  %2077 = vmatprep.subr.mxu0 0.0
  %2078 = vmatpush1.msra.mxu0 0.0
  %2079 = vmatprep.subr.mxu0 0.0
  %2080 = vmatpush1.msra.mxu0 0.0
  %2081 = vmatprep.subr.mxu0 0.0
  %2082 = vmatpush1.msra.mxu0 0.0
  %2083 = vmatprep.subr.mxu0 0.0
  %2084 = vmatpush1.msra.mxu0 0.0
  %2085 = vmatprep.subr.mxu0 0.0
  %2086 = vmatpush1.msra.mxu0 0.0
  %2087 = vmatprep.subr.mxu0 0.0
  %2088 = vmatpush1.msra.mxu0 0.0
  %2089 = vmatprep.subr.mxu0 0.0
  %2090 = vmatpush1.msra.mxu0 0.0
  %2091 = vmatprep.subr.mxu0 0.0
  %2092 = vmatpush1.msra.mxu0 0.0
  %2093 = vmatprep.subr.mxu0 0.0
  %2094 = vmatpush1.msra.mxu0 0.0
  %2095 = vmatprep.subr.mxu0 0.0
  %2096 = vmatpush1.msra.mxu0 0.0
  %2097 = vmatprep.subr.mxu0 0.0
  %2098 = vmatpush1.msra.mxu0 0.0
  %2099 = vmatprep.subr.mxu0 0.0
  %2100 = vmatpush1.msra.mxu0 0.0
  %2101 = vmatprep.subr.mxu0 0.0
  %2102 = vmatpush1.msra.mxu0 0.0
  %2103 = vmatprep.subr.mxu0 0.0
  %2104 = vmatpush1.msra.mxu0 0.0
  %2105 = vmatprep.subr.mxu0 0.0
  %2106 = vmatpush1.msra.mxu0 0.0
  %2107 = vmatprep.subr.mxu0 0.0
  %2108 = vmatpush1.msra.mxu0 0.0
  %2109 = vmatprep.subr.mxu0 0.0
  %2110 = vmatpush1.msra.mxu0 0.0
  %2111 = vmatprep.subr.mxu0 0.0
  %2112 = vmatpush1.msra.mxu0 0.0
  %2113 = vmatprep.subr.mxu0 0.0
  %2114 = vmatpush1.msra.mxu0 0.0
  %2115 = vmatprep.subr.mxu0 0.0
  %2116 = vmatpush1.msra.mxu0 0.0
  %2117 = vmatprep.subr.mxu0 0.0
  %2118 = vmatpush1.msra.mxu0 0.0
  %2119 = vmatprep.subr.mxu0 0.0
  %2120 = vmatpush1.msra.mxu0 0.0
  %2121 = vmatprep.subr.mxu0 0.0
  %2122 = vmatpush1.msra.mxu0 0.0
  %2123 = vmatprep.mubr.f32.mxu0 0.0
  %2124 = vmatmul.mubr.f32.gmra.mrb[0].mxu0 %v2057
  %v2125 = vpop.f32.mrb[0].mxu0
  %v2126 = vadd.f32 %v1253, %v2125
  %v2127 = vpop.f32.mrb[0].mxu0
  %2128 = vdwg.mxu0
  %v2129 = vsub.f32 %v2126, %v1497
  %v2130 = vsub.f32 %v1977, %v1046
  %2132 = vrot.lane.b32.xlu0 %v2126, 32
  %v2133 = vpop.permute.xlu0 %2132
  %2136 = vrot.lane.b32.xlu0 %v1977, 32
  %v2137 = vpop.permute.xlu0 %2136
  %2140 = vrot.lane.b32.xlu0 %v2129, 64
  %v2141 = vpop.permute.xlu0 %2140
  %2144 = vrot.lane.b32.xlu0 %v2130, 64
  %v2145 = vpop.permute.xlu0 %2144
  %2148 = vrot.lane.b32.xlu0 %v966, 64
  %v2149 = vpop.permute.xlu0 %2148
  %v2151 = vsel %vm1101, %v1497, %v1046
  %v2152 = vsel %vm523, %v2151, %v2133
  %vm2153 = vcmask 392192
  %v2154 = vsel %vm2153, %v2152, %v2137
  %vm2155 = vcmask 523264
  %v2156 = vsel %vm2155, %v2154, %v2141
  %vm2157 = vcmask 654336
  %v2158 = vsel %vm2157, %v2156, %v2145
  %v2159 = vsel %vm1604, %v2158, %v2149
  %v2160 = vld [vmem:[%s3] sm:$0xff]
  %v2161 = vld [vmem:[%s3 + $0x8] sm:$0xff]
  %v2162 = vld [vmem:[%s3 + $0x10] sm:$0xff]
  %v2163 = vld [vmem:[%s3 + $0x18] sm:$0xff]
  %v2164 = vld [vmem:[%s3 + $0x20] sm:$0xff]
  %v2165 = vld [vmem:[%s3 + $0x28] sm:$0xff]
  %v2166 = vld [vmem:[%s3 + $0x30] sm:$0xff]
  %v2167 = vld [vmem:[%s3 + $0x38] sm:$0xff]
  %v2168 = vld [vmem:[%s3 + $0x40] sm:$0xff]
  %v2169 = vld [vmem:[%s3 + $0x48] sm:$0xff]
  %v2170 = vld [vmem:[%s3 + $0x50] sm:$0xff]
  %v2171 = vld [vmem:[%s3 + $0x58] sm:$0xff]
  %v2172 = vld [vmem:[%s3 + $0x60] sm:$0xff]
  %v2173 = vld [vmem:[%s3 + $0x68] sm:$0xff]
  %v2174 = vld [vmem:[%s3 + $0x70] sm:$0xff]
  %v2175 = vld [vmem:[%s3 + $0x78] sm:$0xff]
  %v2176 = vld [vmem:[%s3 + $0x80] sm:$0xff]
  %v2177 = vld [vmem:[%s3 + $0x88] sm:$0xff]
  %v2178 = vld [vmem:[%s3 + $0x90] sm:$0xff]
  %v2179 = vld [vmem:[%s3 + $0x98] sm:$0xff]
  %v2180 = vld [vmem:[%s3 + $0xa0] sm:$0xff]
  %v2181 = vld [vmem:[%s3 + $0xa8] sm:$0xff]
  %v2182 = vld [vmem:[%s3 + $0xb0] sm:$0xff]
  %v2183 = vld [vmem:[%s3 + $0xb8] sm:$0xff]
  %v2184 = vld [vmem:[%s3 + $0xc0] sm:$0xff]
  %v2185 = vld [vmem:[%s3 + $0xc8] sm:$0xff]
  %v2186 = vld [vmem:[%s3 + $0xd0] sm:$0xff]
  %v2187 = vld [vmem:[%s3 + $0xd8] sm:$0xff]
  %v2188 = vld [vmem:[%s3 + $0xe0] sm:$0xff]
  %v2189 = vld [vmem:[%s3 + $0xe8] sm:$0xff]
  %v2190 = vld [vmem:[%s3 + $0xf0] sm:$0xff]
  %v2191 = vld [vmem:[%s3 + $0xf8] sm:$0xff]
  %s2192 = scalar_lea.vmem %s3, 256
  %v2193 = vld [vmem:[%s2192] ss:$8 sm:$0x3]
  %v2195 = vlaneseq
  %v2196 = vshrl.u32 %v2195, 7
  %v2197 = vsub.s32 0, %v2196
  %v2198 = vrot.slane %v2193, %v2197
  %v2199 = vlaneseq
  %v2200 = vshrl.u32 %v2199, 7
  %v2201 = vsub.s32 1, %v2200
  %v2202 = vrot.slane %v2193, %v2201
  %2205 = vmatprep.subr.mxu0 %v2161
  %2206 = vmatpush1.msra.mxu0 %v2160
  %2207 = vmatprep.subr.mxu0 %v2163
  %2208 = vmatpush1.msra.mxu0 %v2162
  %2209 = vmatprep.subr.mxu0 %v2165
  %2210 = vmatpush1.msra.mxu0 %v2164
  %2211 = vmatprep.subr.mxu0 %v2167
  %2212 = vmatpush1.msra.mxu0 %v2166
  %2213 = vmatprep.subr.mxu0 %v2169
  %2214 = vmatpush1.msra.mxu0 %v2168
  %2215 = vmatprep.subr.mxu0 %v2171
  %2216 = vmatpush1.msra.mxu0 %v2170
  %2217 = vmatprep.subr.mxu0 %v2173
  %2218 = vmatpush1.msra.mxu0 %v2172
  %2219 = vmatprep.subr.mxu0 %v2175
  %2220 = vmatpush1.msra.mxu0 %v2174
  %2221 = vmatprep.subr.mxu0 %v2177
  %2222 = vmatpush1.msra.mxu0 %v2176
  %2223 = vmatprep.subr.mxu0 %v2179
  %2224 = vmatpush1.msra.mxu0 %v2178
  %2225 = vmatprep.subr.mxu0 %v2181
  %2226 = vmatpush1.msra.mxu0 %v2180
  %2227 = vmatprep.subr.mxu0 %v2183
  %2228 = vmatpush1.msra.mxu0 %v2182
  %2229 = vmatprep.subr.mxu0 %v2185
  %2230 = vmatpush1.msra.mxu0 %v2184
  %2231 = vmatprep.subr.mxu0 %v2187
  %2232 = vmatpush1.msra.mxu0 %v2186
  %2233 = vmatprep.subr.mxu0 %v2189
  %2234 = vmatpush1.msra.mxu0 %v2188
  %2235 = vmatprep.subr.mxu0 %v2191
  %2236 = vmatpush1.msra.mxu0 %v2190
  %2237 = vmatprep.subr.mxu0 0.0
  %2238 = vmatpush1.msra.mxu0 0.0
  %2239 = vmatprep.subr.mxu0 0.0
  %2240 = vmatpush1.msra.mxu0 0.0
  %2241 = vmatprep.subr.mxu0 0.0
  %2242 = vmatpush1.msra.mxu0 0.0
  %2243 = vmatprep.subr.mxu0 0.0
  %2244 = vmatpush1.msra.mxu0 0.0
  %2245 = vmatprep.subr.mxu0 0.0
  %2246 = vmatpush1.msra.mxu0 0.0
  %2247 = vmatprep.subr.mxu0 0.0
  %2248 = vmatpush1.msra.mxu0 0.0
  %2249 = vmatprep.subr.mxu0 0.0
  %2250 = vmatpush1.msra.mxu0 0.0
  %2251 = vmatprep.subr.mxu0 0.0
  %2252 = vmatpush1.msra.mxu0 0.0
  %2253 = vmatprep.subr.mxu0 0.0
  %2254 = vmatpush1.msra.mxu0 0.0
  %2255 = vmatprep.subr.mxu0 0.0
  %2256 = vmatpush1.msra.mxu0 0.0
  %2257 = vmatprep.subr.mxu0 0.0
  %2258 = vmatpush1.msra.mxu0 0.0
  %2259 = vmatprep.subr.mxu0 0.0
  %2260 = vmatpush1.msra.mxu0 0.0
  %2261 = vmatprep.subr.mxu0 0.0
  %2262 = vmatpush1.msra.mxu0 0.0
  %2263 = vmatprep.subr.mxu0 0.0
  %2264 = vmatpush1.msra.mxu0 0.0
  %2265 = vmatprep.subr.mxu0 0.0
  %2266 = vmatpush1.msra.mxu0 0.0
  %2267 = vmatprep.subr.mxu0 0.0
  %2268 = vmatpush1.msra.mxu0 0.0
  %2269 = vmatprep.mubr.f32.mxu0 0.0
  %2270 = vmatmul.mubr.f32.gmra.mrb[0].mxu0 %v2159
  %v2271 = vpop.f32.mrb[0].mxu0
  %v2272 = vadd.f32 %v2198, %v2271
  %v2273 = vpop.f32.mrb[0].mxu0
  %v2274 = vadd.f32 %v2202, %v2273
  %2275 = vdwg.mxu0
  %v2276 = vadd.f32 %v2272, %v2274
  %v2277 = vxor.u32 %v2276, 2147483648
  %v2278 = vmul.f32 %v2277, 1.442695
  %v2279 = vpow.pop %v2278
  %v2280 = vadd.f32 %v2279, 1.0
  %v2281 = vrcp.pop %v2280
  %v2282 = vmul.f32 1.0, %v2281
  %2284 = vrot.lane.b32.xlu0 %v2274, 64
  %v2285 = vpop.permute.xlu0 %2284
  %v2287 = vmul.f32 %v2282, %v2285
  %2289 = vrot.lane.b32.xlu0 %v2287, 64
  %v2290 = vpop.permute.xlu0 %2289
  %v2292 = vadd.f32 %v2272, %v2290
  %v2293 = vtanh.pop %v2292
  %v2294 = vsub.f32 1.0, %v2282
  %2296 = vrot.lane.b32.xlu0 %v2293, 96
  %v2297 = vpop.permute.xlu0 %2296
  %v2299 = vmul.f32 %v2294, %v2297
  %v2300 = vmul.f32 %v2282, %v966
  %v2301 = vadd.f32 %v2299, %v2300
  %v2302 = vld [vmem:[%s2 + $0x48] sm:$0xff]
  %v2303 = vld [vmem:[%s2 + $0x50] sm:$0xff]
  %v2304 = vld [vmem:[%s2 + $0x58] sm:$0xff]
  %v2305 = vld [vmem:[%s2 + $0x60] sm:$0xff]
  %v2306 = vld [vmem:[%s2 + $0x68] sm:$0xff]
  %v2307 = vld [vmem:[%s2 + $0x70] sm:$0xff]
  %v2308 = vld [vmem:[%s2 + $0x78] sm:$0xff]
  %v2309 = vld [vmem:[%s2 + $0x80] sm:$0xff]
  %v2310 = vld [vmem:[%s2 + $0x88] sm:$0xff]
  %v2311 = vld [vmem:[%s2 + $0x90] sm:$0xff]
  %v2312 = vld [vmem:[%s2 + $0x98] sm:$0xff]
  %v2313 = vld [vmem:[%s2 + $0xa0] sm:$0xff]
  %2315 = vrot.lane.b32.xlu0 %v2301, 96
  %v2316 = vpop.permute.xlu0 %2315
  %v2317 = vsel %vm523, %v2316, 0
  %2319 = vmatprep.subr.mxu0 %v2303
  %2320 = vmatpush1.msra.mxu0 %v2302
  %2321 = vmatprep.subr.mxu0 %v2306
  %2322 = vmatpush1.msra.mxu0 %v2305
  %2323 = vmatprep.subr.mxu0 %v2309
  %2324 = vmatpush1.msra.mxu0 %v2308
  %2325 = vmatprep.subr.mxu0 %v2312
  %2326 = vmatpush1.msra.mxu0 %v2311
  %2327 = vmatprep.subr.mxu0 0.0
  %2328 = vmatpush1.msra.mxu0 0.0
  %2329 = vmatprep.subr.mxu0 0.0
  %2330 = vmatpush1.msra.mxu0 0.0
  %2331 = vmatprep.subr.mxu0 0.0
  %2332 = vmatpush1.msra.mxu0 0.0
  %2333 = vmatprep.subr.mxu0 0.0
  %2334 = vmatpush1.msra.mxu0 0.0
  %2335 = vmatprep.subr.mxu0 0.0
  %2336 = vmatpush1.msra.mxu0 0.0
  %2337 = vmatprep.subr.mxu0 0.0
  %2338 = vmatpush1.msra.mxu0 0.0
  %2339 = vmatprep.subr.mxu0 0.0
  %2340 = vmatpush1.msra.mxu0 0.0
  %2341 = vmatprep.subr.mxu0 0.0
  %2342 = vmatpush1.msra.mxu0 0.0
  %2343 = vmatprep.subr.mxu0 0.0
  %2344 = vmatpush1.msra.mxu0 0.0
  %2345 = vmatprep.subr.mxu0 0.0
  %2346 = vmatpush1.msra.mxu0 0.0
  %2347 = vmatprep.subr.mxu0 0.0
  %2348 = vmatpush1.msra.mxu0 0.0
  %2349 = vmatprep.subr.mxu0 0.0
  %2350 = vmatpush1.msra.mxu0 0.0
  %2351 = vmatprep.subr.mxu0 0.0
  %2352 = vmatpush1.msra.mxu0 0.0
  %2353 = vmatprep.subr.mxu0 0.0
  %2354 = vmatpush1.msra.mxu0 0.0
  %2355 = vmatprep.subr.mxu0 0.0
  %2356 = vmatpush1.msra.mxu0 0.0
  %2357 = vmatprep.subr.mxu0 0.0
  %2358 = vmatpush1.msra.mxu0 0.0
  %2359 = vmatprep.subr.mxu0 0.0
  %2360 = vmatpush1.msra.mxu0 0.0
  %2361 = vmatprep.subr.mxu0 0.0
  %2362 = vmatpush1.msra.mxu0 0.0
  %2363 = vmatprep.subr.mxu0 0.0
  %2364 = vmatpush1.msra.mxu0 0.0
  %2365 = vmatprep.subr.mxu0 0.0
  %2366 = vmatpush1.msra.mxu0 0.0
  %2367 = vmatprep.subr.mxu0 0.0
  %2368 = vmatpush1.msra.mxu0 0.0
  %2369 = vmatprep.subr.mxu0 0.0
  %2370 = vmatpush1.msra.mxu0 0.0
  %2371 = vmatprep.subr.mxu0 0.0
  %2372 = vmatpush1.msra.mxu0 0.0
  %2373 = vmatprep.subr.mxu0 0.0
  %2374 = vmatpush1.msra.mxu0 0.0
  %2375 = vmatprep.subr.mxu0 0.0
  %2376 = vmatpush1.msra.mxu0 0.0
  %2377 = vmatprep.subr.mxu0 0.0
  %2378 = vmatpush1.msra.mxu0 0.0
  %2379 = vmatprep.subr.mxu0 0.0
  %2380 = vmatpush1.msra.mxu0 0.0
  %2381 = vmatprep.subr.mxu0 0.0
  %2382 = vmatpush1.msra.mxu0 0.0
  %2383 = vmatprep.mubr.f32.mxu0 0.0
  %2384 = vmatmul.mubr.f32.gmra.mrb[0].mxu0 %v2317
  %v2385 = vpop.f32.mrb[0].mxu0
  %v2386 = vadd.f32 0.0, %v2385
  %v2387 = vpop.f32.mrb[0].mxu0
  %v2388 = vadd.f32 0.0, %v2387
  %2389 = vdwg.mxu0
  %2390 = vmatprep.subr.mxu0 0.0
  %2391 = vmatpush1.msra.mxu0 %v2304
  %2392 = vmatprep.subr.mxu0 0.0
  %2393 = vmatpush1.msra.mxu0 %v2307
  %2394 = vmatprep.subr.mxu0 0.0
  %2395 = vmatpush1.msra.mxu0 %v2310
  %2396 = vmatprep.subr.mxu0 0.0
  %2397 = vmatpush1.msra.mxu0 %v2313
  %2398 = vmatprep.subr.mxu0 0.0
  %2399 = vmatpush1.msra.mxu0 0.0
  %2400 = vmatprep.subr.mxu0 0.0
  %2401 = vmatpush1.msra.mxu0 0.0
  %2402 = vmatprep.subr.mxu0 0.0
  %2403 = vmatpush1.msra.mxu0 0.0
  %2404 = vmatprep.subr.mxu0 0.0
  %2405 = vmatpush1.msra.mxu0 0.0
  %2406 = vmatprep.subr.mxu0 0.0
  %2407 = vmatpush1.msra.mxu0 0.0
  %2408 = vmatprep.subr.mxu0 0.0
  %2409 = vmatpush1.msra.mxu0 0.0
  %2410 = vmatprep.subr.mxu0 0.0
  %2411 = vmatpush1.msra.mxu0 0.0
  %2412 = vmatprep.subr.mxu0 0.0
  %2413 = vmatpush1.msra.mxu0 0.0
  %2414 = vmatprep.subr.mxu0 0.0
  %2415 = vmatpush1.msra.mxu0 0.0
  %2416 = vmatprep.subr.mxu0 0.0
  %2417 = vmatpush1.msra.mxu0 0.0
  %2418 = vmatprep.subr.mxu0 0.0
  %2419 = vmatpush1.msra.mxu0 0.0
  %2420 = vmatprep.subr.mxu0 0.0
  %2421 = vmatpush1.msra.mxu0 0.0
  %2422 = vmatprep.subr.mxu0 0.0
  %2423 = vmatpush1.msra.mxu0 0.0
  %2424 = vmatprep.subr.mxu0 0.0
  %2425 = vmatpush1.msra.mxu0 0.0
  %2426 = vmatprep.subr.mxu0 0.0
  %2427 = vmatpush1.msra.mxu0 0.0
  %2428 = vmatprep.subr.mxu0 0.0
  %2429 = vmatpush1.msra.mxu0 0.0
  %2430 = vmatprep.subr.mxu0 0.0
  %2431 = vmatpush1.msra.mxu0 0.0
  %2432 = vmatprep.subr.mxu0 0.0
  %2433 = vmatpush1.msra.mxu0 0.0
  %2434 = vmatprep.subr.mxu0 0.0
  %2435 = vmatpush1.msra.mxu0 0.0
  %2436 = vmatprep.subr.mxu0 0.0
  %2437 = vmatpush1.msra.mxu0 0.0
  %2438 = vmatprep.subr.mxu0 0.0
  %2439 = vmatpush1.msra.mxu0 0.0
  %2440 = vmatprep.subr.mxu0 0.0
  %2441 = vmatpush1.msra.mxu0 0.0
  %2442 = vmatprep.subr.mxu0 0.0
  %2443 = vmatpush1.msra.mxu0 0.0
  %2444 = vmatprep.subr.mxu0 0.0
  %2445 = vmatpush1.msra.mxu0 0.0
  %2446 = vmatprep.subr.mxu0 0.0
  %2447 = vmatpush1.msra.mxu0 0.0
  %2448 = vmatprep.subr.mxu0 0.0
  %2449 = vmatpush1.msra.mxu0 0.0
  %2450 = vmatprep.subr.mxu0 0.0
  %2451 = vmatpush1.msra.mxu0 0.0
  %2452 = vmatprep.subr.mxu0 0.0
  %2453 = vmatpush1.msra.mxu0 0.0
  %2454 = vmatprep.mubr.f32.mxu0 0.0
  %2455 = vmatmul.mubr.f32.gmra.mrb[0].mxu0 %v2317
  %v2456 = vpop.f32.mrb[0].mxu0
  %v2457 = vadd.f32 0.0, %v2456
  %v2458 = vpop.f32.mrb[0].mxu0
  %2459 = vdwg.mxu0
  %v2460 = vsel %vm1101, %v2126, 0
  %2462 = vmatprep.subr.mxu0 %v1422
  %2463 = vmatpush1.msra.mxu0 %v1421
  %2464 = vmatprep.subr.mxu0 %v1425
  %2465 = vmatpush1.msra.mxu0 %v1424
  %2466 = vmatprep.subr.mxu0 0.0
  %2467 = vmatpush1.msra.mxu0 0.0
  %2468 = vmatprep.subr.mxu0 0.0
  %2469 = vmatpush1.msra.mxu0 0.0
  %2470 = vmatprep.subr.mxu0 0.0
  %2471 = vmatpush1.msra.mxu0 0.0
  %2472 = vmatprep.subr.mxu0 0.0
  %2473 = vmatpush1.msra.mxu0 0.0
  %2474 = vmatprep.subr.mxu0 0.0
  %2475 = vmatpush1.msra.mxu0 0.0
  %2476 = vmatprep.subr.mxu0 0.0
  %2477 = vmatpush1.msra.mxu0 0.0
  %2478 = vmatprep.subr.mxu0 0.0
  %2479 = vmatpush1.msra.mxu0 0.0
  %2480 = vmatprep.subr.mxu0 0.0
  %2481 = vmatpush1.msra.mxu0 0.0
  %2482 = vmatprep.subr.mxu0 0.0
  %2483 = vmatpush1.msra.mxu0 0.0
  %2484 = vmatprep.subr.mxu0 0.0
  %2485 = vmatpush1.msra.mxu0 0.0
  %2486 = vmatprep.subr.mxu0 0.0
  %2487 = vmatpush1.msra.mxu0 0.0
  %2488 = vmatprep.subr.mxu0 0.0
  %2489 = vmatpush1.msra.mxu0 0.0
  %2490 = vmatprep.subr.mxu0 0.0
  %2491 = vmatpush1.msra.mxu0 0.0
  %2492 = vmatprep.subr.mxu0 0.0
  %2493 = vmatpush1.msra.mxu0 0.0
  %2494 = vmatprep.subr.mxu0 0.0
  %2495 = vmatpush1.msra.mxu0 0.0
  %2496 = vmatprep.subr.mxu0 0.0
  %2497 = vmatpush1.msra.mxu0 0.0
  %2498 = vmatprep.subr.mxu0 0.0
  %2499 = vmatpush1.msra.mxu0 0.0
  %2500 = vmatprep.subr.mxu0 0.0
  %2501 = vmatpush1.msra.mxu0 0.0
  %2502 = vmatprep.subr.mxu0 0.0
  %2503 = vmatpush1.msra.mxu0 0.0
  %2504 = vmatprep.subr.mxu0 0.0
  %2505 = vmatpush1.msra.mxu0 0.0
  %2506 = vmatprep.subr.mxu0 0.0
  %2507 = vmatpush1.msra.mxu0 0.0
  %2508 = vmatprep.subr.mxu0 0.0
  %2509 = vmatpush1.msra.mxu0 0.0
  %2510 = vmatprep.subr.mxu0 0.0
  %2511 = vmatpush1.msra.mxu0 0.0
  %2512 = vmatprep.subr.mxu0 0.0
  %2513 = vmatpush1.msra.mxu0 0.0
  %2514 = vmatprep.subr.mxu0 0.0
  %2515 = vmatpush1.msra.mxu0 0.0
  %2516 = vmatprep.subr.mxu0 0.0
  %2517 = vmatpush1.msra.mxu0 0.0
  %2518 = vmatprep.subr.mxu0 0.0
  %2519 = vmatpush1.msra.mxu0 0.0
  %2520 = vmatprep.subr.mxu0 0.0
  %2521 = vmatpush1.msra.mxu0 0.0
  %2522 = vmatprep.subr.mxu0 0.0
  %2523 = vmatpush1.msra.mxu0 0.0
  %2524 = vmatprep.subr.mxu0 0.0
  %2525 = vmatpush1.msra.mxu0 0.0
  %2526 = vmatprep.mubr.f32.mxu0 0.0
  %2527 = vmatmul.mubr.f32.gmra.mrb[0].mxu0 %v2460
  %v2528 = vpop.f32.mrb[0].mxu0
  %v2529 = vadd.f32 %v2386, %v2528
  %v2530 = vpop.f32.mrb[0].mxu0
  %v2531 = vadd.f32 %v2388, %v2530
  %2532 = vdwg.mxu0
  %2533 = vmatprep.subr.mxu0 0.0
  %2534 = vmatpush1.msra.mxu0 %v1423
  %2535 = vmatprep.subr.mxu0 0.0
  %2536 = vmatpush1.msra.mxu0 %v1426
  %2537 = vmatprep.subr.mxu0 0.0
  %2538 = vmatpush1.msra.mxu0 0.0
  %2539 = vmatprep.subr.mxu0 0.0
  %2540 = vmatpush1.msra.mxu0 0.0
  %2541 = vmatprep.subr.mxu0 0.0
  %2542 = vmatpush1.msra.mxu0 0.0
  %2543 = vmatprep.subr.mxu0 0.0
  %2544 = vmatpush1.msra.mxu0 0.0
  %2545 = vmatprep.subr.mxu0 0.0
  %2546 = vmatpush1.msra.mxu0 0.0
  %2547 = vmatprep.subr.mxu0 0.0
  %2548 = vmatpush1.msra.mxu0 0.0
  %2549 = vmatprep.subr.mxu0 0.0
  %2550 = vmatpush1.msra.mxu0 0.0
  %2551 = vmatprep.subr.mxu0 0.0
  %2552 = vmatpush1.msra.mxu0 0.0
  %2553 = vmatprep.subr.mxu0 0.0
  %2554 = vmatpush1.msra.mxu0 0.0
  %2555 = vmatprep.subr.mxu0 0.0
  %2556 = vmatpush1.msra.mxu0 0.0
  %2557 = vmatprep.subr.mxu0 0.0
  %2558 = vmatpush1.msra.mxu0 0.0
  %2559 = vmatprep.subr.mxu0 0.0
  %2560 = vmatpush1.msra.mxu0 0.0
  %2561 = vmatprep.subr.mxu0 0.0
  %2562 = vmatpush1.msra.mxu0 0.0
  %2563 = vmatprep.subr.mxu0 0.0
  %2564 = vmatpush1.msra.mxu0 0.0
  %2565 = vmatprep.subr.mxu0 0.0
  %2566 = vmatpush1.msra.mxu0 0.0
  %2567 = vmatprep.subr.mxu0 0.0
  %2568 = vmatpush1.msra.mxu0 0.0
  %2569 = vmatprep.subr.mxu0 0.0
  %2570 = vmatpush1.msra.mxu0 0.0
  %2571 = vmatprep.subr.mxu0 0.0
  %2572 = vmatpush1.msra.mxu0 0.0
  %2573 = vmatprep.subr.mxu0 0.0
  %2574 = vmatpush1.msra.mxu0 0.0
  %2575 = vmatprep.subr.mxu0 0.0
  %2576 = vmatpush1.msra.mxu0 0.0
  %2577 = vmatprep.subr.mxu0 0.0
  %2578 = vmatpush1.msra.mxu0 0.0
  %2579 = vmatprep.subr.mxu0 0.0
  %2580 = vmatpush1.msra.mxu0 0.0
  %2581 = vmatprep.subr.mxu0 0.0
  %2582 = vmatpush1.msra.mxu0 0.0
  %2583 = vmatprep.subr.mxu0 0.0
  %2584 = vmatpush1.msra.mxu0 0.0
  %2585 = vmatprep.subr.mxu0 0.0
  %2586 = vmatpush1.msra.mxu0 0.0
  %2587 = vmatprep.subr.mxu0 0.0
  %2588 = vmatpush1.msra.mxu0 0.0
  %2589 = vmatprep.subr.mxu0 0.0
  %2590 = vmatpush1.msra.mxu0 0.0
  %2591 = vmatprep.subr.mxu0 0.0
  %2592 = vmatpush1.msra.mxu0 0.0
  %2593 = vmatprep.subr.mxu0 0.0
  %2594 = vmatpush1.msra.mxu0 0.0
  %2595 = vmatprep.subr.mxu0 0.0
  %2596 = vmatpush1.msra.mxu0 0.0
  %2597 = vmatprep.mubr.f32.mxu0 0.0
  %2598 = vmatmul.mubr.f32.gmra.mrb[0].mxu0 %v2460
  %v2599 = vpop.f32.mrb[0].mxu0
  %v2600 = vadd.f32 %v2457, %v2599
  %v2601 = vpop.f32.mrb[0].mxu0
  %2602 = vdwg.mxu0
  %v2603 = vadd.f32 %v2529, %v1418
  %v2604 = vadd.f32 %v2531, %v1419
  %v2605 = vadd.f32 %v2600, %v1420
  %v2606 = vadd.f32 %v2051, 0.0
  %v2607 = vsub.f32 %v2603, %v1497
  %v2608 = vmul.f32 %v2607, %v2607
  %v2609 = vsel %vm1101, %v2608, 0.0
  %2610 = vadd.xlane.f32.xlu0 %v2609
  %v2611 = vpop.xlane.xlu0 %2610
  %v2612 = vrsqrt.pop %v2611
  %v2613 = vmul.f32 %v2611, %v2612
  %vm2614 = vcmp.eq.f32.partialorder %v2611, inf
  %v2615 = vsel %vm2614, %v2611, %v2613
  %vm2616 = vcmp.eq.f32.partialorder %v2611, 0.0
  %v2617 = vand.u32 %v2611, 2147483648
  %v2618 = vsel %vm2616, %v2617, %v2615
  %v2619 = vmul.f32 %v2130, %v2130
  %2621 = vrot.lane.b32.xlu0 %v2619, 112
  %v2622 = vpop.permute.xlu0 %2621
  %v2624 = vsel %vm881, %v2622, 0.0
  %2625 = vadd.xlane.f32.xlu0 %v2624
  %v2626 = vpop.xlane.xlu0 %2625
  %v2627 = vrsqrt.pop %v2626
  %v2628 = vmul.f32 %v2626, %v2627
  %vm2629 = vcmp.eq.f32.partialorder %v2626, inf
  %v2630 = vsel %vm2629, %v2626, %v2628
  %vm2631 = vcmp.eq.f32.partialorder %v2626, 0.0
  %v2632 = vand.u32 %v2626, 2147483648
  %v2633 = vsel %vm2631, %v2632, %v2630
  %v2634 = vadd.f32 %v2618, %v2633
  %2635 = vrot.lane.b32.xlu0 %v2619, 104
  %v2636 = vpop.permute.xlu0 %2635
  %v2638 = vsel %vm881, %v2636, 0.0
  %2639 = vadd.xlane.f32.xlu0 %v2638
  %v2640 = vpop.xlane.xlu0 %2639
  %v2641 = vrsqrt.pop %v2640
  %v2642 = vmul.f32 %v2640, %v2641
  %vm2643 = vcmp.eq.f32.partialorder %v2640, inf
  %v2644 = vsel %vm2643, %v2640, %v2642
  %vm2645 = vcmp.eq.f32.partialorder %v2640, 0.0
  %v2646 = vand.u32 %v2640, 2147483648
  %v2647 = vsel %vm2645, %v2646, %v2644
  %v2648 = vadd.f32 %v2634, %v2647
  %v2649 = vadd.f32 %v2648, 0.0
  %v2650 = vsub.f32 %v2604, %v1049
  %v2651 = vsub.f32 %v2605, %v1050
  %v2652 = vmul.f32 %v2650, %v1052
  %v2653 = vmul.f32 %v2651, %v1051
  %v2654 = vmul.f32 %v2652, %v2652
  %v2655 = vmul.f32 %v2653, %v2653
  %v2656 = vadd.f32 %v2654, %v2655
  %v2657 = vadd.f32 %v2656, 1e-20
  %v2658 = vrsqrt.pop %v2657
  %v2659 = vmul.f32 %v2652, %v2658
  %v2660 = vmul.f32 %v2653, %v2658
  %v2661 = vmul.f32 %v1053, %v2659
  %v2662 = vmul.f32 %v2661, %v2659
  %v2663 = vmul.f32 %v1054, %v2660
  %v2664 = vmul.f32 %v2663, %v2660
  %v2665 = vadd.f32 %v2662, %v2664
  %v2666 = vmul.f32 %v1051, %v2650
  %v2667 = vmul.f32 %v2666, %v2659
  %v2668 = vmul.f32 %v1052, %v2651
  %v2669 = vmul.f32 %v2668, %v2660
  %v2670 = vadd.f32 %v2667, %v2669
  %v2671 = vrcp.pop %v2665
  %v2672 = vmul.f32 %v2670, %v2671
  %v2673 = vmax.f32 %v2672, 1.0
  %v2674 = vmul.f32 %v2673, %v2659
  %v2675 = vmul.f32 %v1051, %v2674
  %v2676 = vmul.f32 %v2673, %v2660
  %v2677 = vmul.f32 %v1052, %v2676
  %v2678 = vsub.f32 %v2650, %v2675
  %v2679 = vsub.f32 %v2651, %v2677
  %v2680 = vmul.f32 %v2678, %v2678
  %v2681 = vmul.f32 %v2679, %v2679
  %v2682 = vadd.f32 %v2680, %v2681
  %v2683 = vsel %vm1604, %v2682, 0.0
  %2684 = vadd.xlane.f32.xlu0 %v2683
  %v2685 = vpop.xlane.xlu0 %2684
  %v2686 = vmul.f32 %v2603, %v2603
  %2688 = vrot.lane.b32.xlu0 %v2686, 96
  %v2689 = vpop.permute.xlu0 %2688
  %v2691 = vadd.f32 %v2686, %v2689
  %v2692 = vadd.f32 %v2691, 1e-20
  %v2693 = vrsqrt.pop %v2692
  %v2694 = vmul.f32 %v2603, %v2693
  %2696 = vrot.lane.b32.xlu0 %v2693, 32
  %v2697 = vpop.permute.xlu0 %2696
  %v2699 = vmul.f32 %v2603, %v2697
  %vm2700 = vcmp.gt.f32.partialorder %v2603, 0.0
  %v2701 = vand.u32 2147483647, %v2603
  %v2702 = vmul.f32 %v2603, 0.4346312
  %2704 = vrot.lane.b32.xlu0 %v2702, 32
  %v2705 = vpop.permute.xlu0 %2704
  %vm2707 = vcmp.le.f32.partialorder %v2701, %v2705
  %v2708 = vsel %vm2707, 1, 0
  %2709 = vrot.lane.b32.xlu0 %v2708, 96
  %v2710 = vpop.permute.xlu0 %2709
  %vm2711 = vcmp.ne.s32.totalorder %v2710, 0
  %vm2712 = vmand %vm2700, %vm2711
  %vm2713 = vcmp.ge.f32.partialorder %v2603, 0.0
  %v2714 = vsel %vm2713, 1.0, -1.0
  %v2715 = vsel %vm2712, %v2694, 0.9171208
  %v2716 = vmul.f32 %v2714, 0.39860934
  %2718 = vrot.lane.b32.xlu0 %v2699, 96
  %v2719 = vpop.permute.xlu0 %2718
  %2722 = vrot.lane.b32.xlu0 %v2716, 96
  %v2723 = vpop.permute.xlu0 %2722
  %v2725 = vsel %vm2712, %v2719, %v2723
  %v2726 = vmul.f32 %v2603, %v2715
  %2728 = vrot.lane.b32.xlu0 %v2725, 32
  %v2729 = vpop.permute.xlu0 %2728
  %v2731 = vmul.f32 %v2603, %v2729
  %2733 = vrot.lane.b32.xlu0 %v2731, 96
  %v2734 = vpop.permute.xlu0 %2733
  %v2736 = vadd.f32 %v2726, %v2734
  %v2737 = vmax.f32 %v2736, 0.001
  %v2738 = vmin.f32 %v2737, 18.0
  %v2739 = vmul.f32 %v2738, %v2715
  %v2740 = vmul.f32 %v2738, %v2725
  %v2741 = vsub.f32 %v2603, %v2739
  %2743 = vrot.lane.b32.xlu0 %v2740, 32
  %v2744 = vpop.permute.xlu0 %2743
  %v2746 = vsub.f32 %v2603, %v2744
  %v2747 = vadd.f32 %v2603, 0.0001
  %v2748 = vmul.f32 %v2747, %v2747
  %2750 = vrot.lane.b32.xlu0 %v2748, 96
  %v2751 = vpop.permute.xlu0 %2750
  %v2753 = vadd.f32 %v2748, %v2751
  %v2754 = vadd.f32 %v2753, 1e-20
  %v2755 = vrsqrt.pop %v2754
  %v2756 = vmul.f32 %v2747, %v2755
  %2758 = vrot.lane.b32.xlu0 %v2755, 32
  %v2759 = vpop.permute.xlu0 %2758
  %v2761 = vmul.f32 %v2747, %v2759
  %v2762 = vmul.f32 %v2603, %v2756
  %v2763 = vmul.f32 %v2603, %v2761
  %2765 = vrot.lane.b32.xlu0 %v2763, 96
  %v2766 = vpop.permute.xlu0 %2765
  %v2768 = vadd.f32 %v2762, %v2766
  %v2769 = vmax.f32 %v2768, 0.0
  %v2770 = vmin.f32 %v2769, 6.0
  %v2771 = vmul.f32 %v2770, %v2756
  %2773 = vrot.lane.b32.xlu0 %v2761, 96
  %v2774 = vpop.permute.xlu0 %2773
  %v2776 = vmul.f32 %v2770, %v2774
  %v2777 = vsub.f32 %v2603, %v2771
  %2779 = vrot.lane.b32.xlu0 %v2776, 32
  %v2780 = vpop.permute.xlu0 %2779
  %v2782 = vsub.f32 %v2603, %v2780
  %v2783 = vsub.f32 %v2603, %v1707
  %v2784 = vmax.f32 %v2783, 0.0
  %v2785 = vsub.f32 %v1713, %v2603
  %v2786 = vmax.f32 %v2785, 0.0
  %v2787 = vmin.f32 %v2603, %v1707
  %v2788 = vmax.f32 %v2603, %v1713
  %v2789 = vsub.f32 0.0, %v2788
  %2791 = vrot.lane.b32.xlu0 %v2777, 96
  %v2792 = vpop.permute.xlu0 %2791
  %2795 = vrot.lane.b32.xlu0 %v2678, 32
  %v2796 = vpop.permute.xlu0 %2795
  %2799 = vrot.lane.b32.xlu0 %v2782, 64
  %v2800 = vpop.permute.xlu0 %2799
  %2803 = vrot.lane.b32.xlu0 %v2746, 96
  %v2804 = vpop.permute.xlu0 %2803
  %2807 = vrot.lane.b32.xlu0 %v2679, 32
  %v2808 = vpop.permute.xlu0 %2807
  %2811 = vrot.lane.b32.xlu0 %v2784, 48
  %v2812 = vpop.permute.xlu0 %2811
  %2815 = vrot.lane.b32.xlu0 %v2786, 64
  %v2816 = vpop.permute.xlu0 %2815
  %v2818 = vsel %vm1101, %v2792, %v2741
  %v2819 = vsel %vm523, %v2818, %v2796
  %v2820 = vsel %vm1101, %v2800, %v2804
  %v2821 = vsel %vm523, %v2820, %v2808
  %v2822 = vsel %vm1101, %v2812, %v2816
  %2824 = vrot.lane.b32.xlu0 %v2771, 96
  %v2825 = vpop.permute.xlu0 %2824
  %2828 = vrot.lane.b32.xlu0 %v2675, 32
  %v2829 = vpop.permute.xlu0 %2828
  %2831 = vrot.lane.b32.xlu0 %v2776, 96
  %v2832 = vpop.permute.xlu0 %2831
  %2835 = vrot.lane.b32.xlu0 %v2677, 32
  %v2836 = vpop.permute.xlu0 %2835
  %2839 = vrot.lane.b32.xlu0 %v2787, 48
  %v2840 = vpop.permute.xlu0 %2839
  %2843 = vrot.lane.b32.xlu0 %v2789, 64
  %v2844 = vpop.permute.xlu0 %2843
  %v2846 = vsel %vm1101, %v2825, %v2739
  %v2847 = vsel %vm523, %v2846, %v2829
  %v2848 = vsel %vm1101, %v2832, %v2740
  %v2849 = vsel %vm523, %v2848, %v2836
  %v2850 = vsel %vm1101, %v2840, %v2844
  %v2852 = vsel %vm523, %v2822, 0
  %v2855 = vsel %vm523, %v2850, 0
  %2857 = vmatprep.subr.mxu0 0.0
  %2858 = vmatpush1.msra.mxu0 %v1781
  %2859 = vmatprep.subr.mxu0 0.0
  %2860 = vmatpush1.msra.mxu0 %v1782
  %2861 = vmatprep.subr.mxu0 0.0
  %2862 = vmatpush1.msra.mxu0 %v1783
  %2863 = vmatprep.subr.mxu0 0.0
  %2864 = vmatpush1.msra.mxu0 %v1784
  %2865 = vmatprep.subr.mxu0 0.0
  %2866 = vmatpush1.msra.mxu0 %v1785
  %2867 = vmatprep.subr.mxu0 0.0
  %2868 = vmatpush1.msra.mxu0 %v1786
  %2869 = vmatprep.subr.mxu0 0.0
  %2870 = vmatpush1.msra.mxu0 %v1787
  %2871 = vmatprep.subr.mxu0 0.0
  %2872 = vmatpush1.msra.mxu0 %v1788
  %2873 = vmatprep.subr.mxu0 0.0
  %2874 = vmatpush1.msra.mxu0 %v1789
  %2875 = vmatprep.subr.mxu0 0.0
  %2876 = vmatpush1.msra.mxu0 %v1790
  %2877 = vmatprep.subr.mxu0 0.0
  %2878 = vmatpush1.msra.mxu0 %v1791
  %2879 = vmatprep.subr.mxu0 0.0
  %2880 = vmatpush1.msra.mxu0 %v1792
  %2881 = vmatprep.subr.mxu0 0.0
  %2882 = vmatpush1.msra.mxu0 %v1793
  %2883 = vmatprep.subr.mxu0 0.0
  %2884 = vmatpush1.msra.mxu0 %v1794
  %2885 = vmatprep.subr.mxu0 0.0
  %2886 = vmatpush1.msra.mxu0 %v1795
  %2887 = vmatprep.subr.mxu0 0.0
  %2888 = vmatpush1.msra.mxu0 %v1796
  %2889 = vmatprep.subr.mxu0 0.0
  %2890 = vmatpush1.msra.mxu0 %v1797
  %2891 = vmatprep.subr.mxu0 0.0
  %2892 = vmatpush1.msra.mxu0 %v1798
  %2893 = vmatprep.subr.mxu0 0.0
  %2894 = vmatpush1.msra.mxu0 %v1799
  %2895 = vmatprep.subr.mxu0 0.0
  %2896 = vmatpush1.msra.mxu0 %v1800
  %2897 = vmatprep.subr.mxu0 0.0
  %2898 = vmatpush1.msra.mxu0 %v1801
  %2899 = vmatprep.subr.mxu0 0.0
  %2900 = vmatpush1.msra.mxu0 %v1802
  %2901 = vmatprep.subr.mxu0 0.0
  %2902 = vmatpush1.msra.mxu0 %v1803
  %2903 = vmatprep.subr.mxu0 0.0
  %2904 = vmatpush1.msra.mxu0 %v1804
  %2905 = vmatprep.subr.mxu0 0.0
  %2906 = vmatpush1.msra.mxu0 %v1805
  %2907 = vmatprep.subr.mxu0 0.0
  %2908 = vmatpush1.msra.mxu0 %v1806
  %2909 = vmatprep.subr.mxu0 0.0
  %2910 = vmatpush1.msra.mxu0 %v1807
  %2911 = vmatprep.subr.mxu0 0.0
  %2912 = vmatpush1.msra.mxu0 %v1808
  %2913 = vmatprep.subr.mxu0 0.0
  %2914 = vmatpush1.msra.mxu0 %v1809
  %2915 = vmatprep.subr.mxu0 0.0
  %2916 = vmatpush1.msra.mxu0 %v1810
  %2917 = vmatprep.subr.mxu0 0.0
  %2918 = vmatpush1.msra.mxu0 %v1811
  %2919 = vmatprep.subr.mxu0 0.0
  %2920 = vmatpush1.msra.mxu0 %v1812
  %2921 = vmatprep.mubr.f32.mxu0 %v2821
  %2922 = vmatmul.mubr.f32.gmra.mrb[0].mxu0 %v2819
  %v2923 = vpop.f32.mrb[0].mxu0
  %v2924 = vadd.f32 0.0, %v2923
  %v2925 = vpop.f32.mrb[0].mxu0
  %2926 = vmatprep.mubr.f32.mxu0 %v2849
  %2927 = vmatmul.mubr.f32.gmra.mrb[0].mxu0 %v2847
  %v2928 = vpop.f32.mrb[0].mxu0
  %v2929 = vadd.f32 0.0, %v2928
  %v2930 = vpop.f32.mrb[0].mxu0
  %2931 = vdwg.mxu0
  %2932 = vmatprep.subr.mxu0 0.0
  %2933 = vmatpush1.msra.mxu0 %v1813
  %2934 = vmatprep.subr.mxu0 0.0
  %2935 = vmatpush1.msra.mxu0 %v1814
  %2936 = vmatprep.subr.mxu0 0.0
  %2937 = vmatpush1.msra.mxu0 %v1815
  %2938 = vmatprep.subr.mxu0 0.0
  %2939 = vmatpush1.msra.mxu0 %v1816
  %2940 = vmatprep.subr.mxu0 0.0
  %2941 = vmatpush1.msra.mxu0 0.0
  %2942 = vmatprep.subr.mxu0 0.0
  %2943 = vmatpush1.msra.mxu0 0.0
  %2944 = vmatprep.subr.mxu0 0.0
  %2945 = vmatpush1.msra.mxu0 0.0
  %2946 = vmatprep.subr.mxu0 0.0
  %2947 = vmatpush1.msra.mxu0 0.0
  %2948 = vmatprep.subr.mxu0 0.0
  %2949 = vmatpush1.msra.mxu0 0.0
  %2950 = vmatprep.subr.mxu0 0.0
  %2951 = vmatpush1.msra.mxu0 0.0
  %2952 = vmatprep.subr.mxu0 0.0
  %2953 = vmatpush1.msra.mxu0 0.0
  %2954 = vmatprep.subr.mxu0 0.0
  %2955 = vmatpush1.msra.mxu0 0.0
  %2956 = vmatprep.subr.mxu0 0.0
  %2957 = vmatpush1.msra.mxu0 0.0
  %2958 = vmatprep.subr.mxu0 0.0
  %2959 = vmatpush1.msra.mxu0 0.0
  %2960 = vmatprep.subr.mxu0 0.0
  %2961 = vmatpush1.msra.mxu0 0.0
  %2962 = vmatprep.subr.mxu0 0.0
  %2963 = vmatpush1.msra.mxu0 0.0
  %2964 = vmatprep.subr.mxu0 0.0
  %2965 = vmatpush1.msra.mxu0 0.0
  %2966 = vmatprep.subr.mxu0 0.0
  %2967 = vmatpush1.msra.mxu0 0.0
  %2968 = vmatprep.subr.mxu0 0.0
  %2969 = vmatpush1.msra.mxu0 0.0
  %2970 = vmatprep.subr.mxu0 0.0
  %2971 = vmatpush1.msra.mxu0 0.0
  %2972 = vmatprep.subr.mxu0 0.0
  %2973 = vmatpush1.msra.mxu0 0.0
  %2974 = vmatprep.subr.mxu0 0.0
  %2975 = vmatpush1.msra.mxu0 0.0
  %2976 = vmatprep.subr.mxu0 0.0
  %2977 = vmatpush1.msra.mxu0 0.0
  %2978 = vmatprep.subr.mxu0 0.0
  %2979 = vmatpush1.msra.mxu0 0.0
  %2980 = vmatprep.subr.mxu0 0.0
  %2981 = vmatpush1.msra.mxu0 0.0
  %2982 = vmatprep.subr.mxu0 0.0
  %2983 = vmatpush1.msra.mxu0 0.0
  %2984 = vmatprep.subr.mxu0 0.0
  %2985 = vmatpush1.msra.mxu0 0.0
  %2986 = vmatprep.subr.mxu0 0.0
  %2987 = vmatpush1.msra.mxu0 0.0
  %2988 = vmatprep.subr.mxu0 0.0
  %2989 = vmatpush1.msra.mxu0 0.0
  %2990 = vmatprep.subr.mxu0 0.0
  %2991 = vmatpush1.msra.mxu0 0.0
  %2992 = vmatprep.subr.mxu0 0.0
  %2993 = vmatpush1.msra.mxu0 0.0
  %2994 = vmatprep.subr.mxu0 0.0
  %2995 = vmatpush1.msra.mxu0 0.0
  %2996 = vmatprep.mubr.f32.mxu0 0.0
  %2997 = vmatmul.mubr.f32.gmra.mrb[0].mxu0 %v2852
  %v2998 = vpop.f32.mrb[0].mxu0
  %v2999 = vadd.f32 %v2924, %v2998
  %v3000 = vpop.f32.mrb[0].mxu0
  %3001 = vmatprep.mubr.f32.mxu0 0.0
  %3002 = vmatmul.mubr.f32.gmra.mrb[0].mxu0 %v2855
  %v3003 = vpop.f32.mrb[0].mxu0
  %v3004 = vadd.f32 %v2929, %v3003
  %v3005 = vpop.f32.mrb[0].mxu0
  %3006 = vdwg.mxu0
  %3008 = vrot.lane.b32.xlu0 %v2999, 16
  %v3009 = vpop.permute.xlu0 %3008
  %v3011 = vsub.f32 %v1977, %v3009
  %3013 = vrot.lane.b32.xlu0 %v3004, 16
  %v3014 = vpop.permute.xlu0 %3013
  %v3016 = vadd.f32 %v3011, %v3014
  %v3017 = vmul.f32 %v2777, %v2777
  %v3018 = vmul.f32 %v2782, %v2782
  %3020 = vrot.lane.b32.xlu0 %v3018, 96
  %v3021 = vpop.permute.xlu0 %3020
  %v3023 = vadd.f32 %v3017, %v3021
  %3025 = vrot.lane.b32.xlu0 %v3023, 96
  %v3026 = vpop.permute.xlu0 %3025
  %v3028 = vsel %vm1101, %v3026, 0.0
  %3029 = vadd.xlane.f32.xlu0 %v3028
  %v3030 = vpop.xlane.xlu0 %3029
  %v3031 = vrsqrt.pop %v3030
  %v3032 = vmul.f32 %v3030, %v3031
  %vm3033 = vcmp.eq.f32.partialorder %v3030, inf
  %v3034 = vsel %vm3033, %v3030, %v3032
  %vm3035 = vcmp.eq.f32.partialorder %v3030, 0.0
  %v3036 = vand.u32 %v3030, 2147483648
  %v3037 = vsel %vm3035, %v3036, %v3034
  %v3038 = vmul.f32 %v2741, %v2741
  %v3039 = vmul.f32 %v2746, %v2746
  %3041 = vrot.lane.b32.xlu0 %v3039, 96
  %v3042 = vpop.permute.xlu0 %3041
  %v3044 = vadd.f32 %v3038, %v3042
  %3046 = vrot.lane.b32.xlu0 %v3044, 112
  %v3047 = vpop.permute.xlu0 %3046
  %v3049 = vsel %vm1101, %v3047, 0.0
  %3050 = vadd.xlane.f32.xlu0 %v3049
  %v3051 = vpop.xlane.xlu0 %3050
  %v3052 = vrsqrt.pop %v3051
  %v3053 = vmul.f32 %v3051, %v3052
  %vm3054 = vcmp.eq.f32.partialorder %v3051, inf
  %v3055 = vsel %vm3054, %v3051, %v3053
  %vm3056 = vcmp.eq.f32.partialorder %v3051, 0.0
  %v3057 = vand.u32 %v3051, 2147483648
  %v3058 = vsel %vm3056, %v3057, %v3055
  %v3059 = vadd.f32 %v3037, %v3058
  %v3060 = vrsqrt.pop %v2685
  %v3061 = vmul.f32 %v2685, %v3060
  %vm3062 = vcmp.eq.f32.partialorder %v2685, inf
  %v3063 = vsel %vm3062, %v2685, %v3061
  %vm3064 = vcmp.eq.f32.partialorder %v2685, 0.0
  %v3065 = vand.u32 %v2685, 2147483648
  %v3066 = vsel %vm3064, %v3065, %v3063
  %v3067 = vadd.f32 %v3059, %v3066
  %v3068 = vmul.f32 %v2784, %v2784
  %v3069 = vmul.f32 %v2786, %v2786
  %v3070 = vadd.f32 %v3068, %v3069
  %3072 = vrot.lane.b32.xlu0 %v3070, 48
  %v3073 = vpop.permute.xlu0 %3072
  %v3075 = vsel %vm1101, %v3073, 0.0
  %3076 = vadd.xlane.f32.xlu0 %v3075
  %v3077 = vpop.xlane.xlu0 %3076
  %v3078 = vrsqrt.pop %v3077
  %v3079 = vmul.f32 %v3077, %v3078
  %vm3080 = vcmp.eq.f32.partialorder %v3077, inf
  %v3081 = vsel %vm3080, %v3077, %v3079
  %vm3082 = vcmp.eq.f32.partialorder %v3077, 0.0
  %v3083 = vand.u32 %v3077, 2147483648
  %v3084 = vsel %vm3082, %v3083, %v3081
  %v3085 = vadd.f32 %v3067, %v3084
  %3087 = vrot.lane.b32.xlu0 %v3016, 112
  %v3088 = vpop.permute.xlu0 %3087
  %v3089 = vsel %vm1101, %v3088, 0
  %3091 = vmatprep.subr.mxu0 0.0
  %3092 = vmatpush1.msra.mxu0 %v2052
  %3093 = vmatprep.subr.mxu0 0.0
  %3094 = vmatpush1.msra.mxu0 %v2053
  %3095 = vmatprep.subr.mxu0 0.0
  %3096 = vmatpush1.msra.mxu0 0.0
  %3097 = vmatprep.subr.mxu0 0.0
  %3098 = vmatpush1.msra.mxu0 0.0
  %3099 = vmatprep.subr.mxu0 0.0
  %3100 = vmatpush1.msra.mxu0 0.0
  %3101 = vmatprep.subr.mxu0 0.0
  %3102 = vmatpush1.msra.mxu0 0.0
  %3103 = vmatprep.subr.mxu0 0.0
  %3104 = vmatpush1.msra.mxu0 0.0
  %3105 = vmatprep.subr.mxu0 0.0
  %3106 = vmatpush1.msra.mxu0 0.0
  %3107 = vmatprep.subr.mxu0 0.0
  %3108 = vmatpush1.msra.mxu0 0.0
  %3109 = vmatprep.subr.mxu0 0.0
  %3110 = vmatpush1.msra.mxu0 0.0
  %3111 = vmatprep.subr.mxu0 0.0
  %3112 = vmatpush1.msra.mxu0 0.0
  %3113 = vmatprep.subr.mxu0 0.0
  %3114 = vmatpush1.msra.mxu0 0.0
  %3115 = vmatprep.subr.mxu0 0.0
  %3116 = vmatpush1.msra.mxu0 0.0
  %3117 = vmatprep.subr.mxu0 0.0
  %3118 = vmatpush1.msra.mxu0 0.0
  %3119 = vmatprep.subr.mxu0 0.0
  %3120 = vmatpush1.msra.mxu0 0.0
  %3121 = vmatprep.subr.mxu0 0.0
  %3122 = vmatpush1.msra.mxu0 0.0
  %3123 = vmatprep.subr.mxu0 0.0
  %3124 = vmatpush1.msra.mxu0 0.0
  %3125 = vmatprep.subr.mxu0 0.0
  %3126 = vmatpush1.msra.mxu0 0.0
  %3127 = vmatprep.subr.mxu0 0.0
  %3128 = vmatpush1.msra.mxu0 0.0
  %3129 = vmatprep.subr.mxu0 0.0
  %3130 = vmatpush1.msra.mxu0 0.0
  %3131 = vmatprep.subr.mxu0 0.0
  %3132 = vmatpush1.msra.mxu0 0.0
  %3133 = vmatprep.subr.mxu0 0.0
  %3134 = vmatpush1.msra.mxu0 0.0
  %3135 = vmatprep.subr.mxu0 0.0
  %3136 = vmatpush1.msra.mxu0 0.0
  %3137 = vmatprep.subr.mxu0 0.0
  %3138 = vmatpush1.msra.mxu0 0.0
  %3139 = vmatprep.subr.mxu0 0.0
  %3140 = vmatpush1.msra.mxu0 0.0
  %3141 = vmatprep.subr.mxu0 0.0
  %3142 = vmatpush1.msra.mxu0 0.0
  %3143 = vmatprep.subr.mxu0 0.0
  %3144 = vmatpush1.msra.mxu0 0.0
  %3145 = vmatprep.subr.mxu0 0.0
  %3146 = vmatpush1.msra.mxu0 0.0
  %3147 = vmatprep.subr.mxu0 0.0
  %3148 = vmatpush1.msra.mxu0 0.0
  %3149 = vmatprep.subr.mxu0 0.0
  %3150 = vmatpush1.msra.mxu0 0.0
  %3151 = vmatprep.subr.mxu0 0.0
  %3152 = vmatpush1.msra.mxu0 0.0
  %3153 = vmatprep.subr.mxu0 0.0
  %3154 = vmatpush1.msra.mxu0 0.0
  %3155 = vmatprep.mubr.f32.mxu0 0.0
  %3156 = vmatmul.mubr.f32.gmra.mrb[0].mxu0 %v3089
  %v3157 = vpop.f32.mrb[0].mxu0
  %v3158 = vadd.f32 %v1253, %v3157
  %v3159 = vpop.f32.mrb[0].mxu0
  %3160 = vdwg.mxu0
  %v3161 = vsub.f32 %v3158, %v2603
  %v3162 = vsub.f32 %v3011, %v1977
  %3164 = vrot.lane.b32.xlu0 %v3158, 32
  %v3165 = vpop.permute.xlu0 %3164
  %3168 = vrot.lane.b32.xlu0 %v3011, 32
  %v3169 = vpop.permute.xlu0 %3168
  %3172 = vrot.lane.b32.xlu0 %v3161, 64
  %v3173 = vpop.permute.xlu0 %3172
  %3176 = vrot.lane.b32.xlu0 %v3162, 64
  %v3177 = vpop.permute.xlu0 %3176
  %3179 = vrot.lane.b32.xlu0 %v2301, 64
  %v3180 = vpop.permute.xlu0 %3179
  %v3182 = vsel %vm1101, %v2603, %v1977
  %v3183 = vsel %vm523, %v3182, %v3165
  %v3184 = vsel %vm2153, %v3183, %v3169
  %v3185 = vsel %vm2155, %v3184, %v3173
  %v3186 = vsel %vm2157, %v3185, %v3177
  %v3187 = vsel %vm1604, %v3186, %v3180
  %3188 = vmatprep.subr.mxu0 %v2161
  %3189 = vmatpush1.msra.mxu0 %v2160
  %3190 = vmatprep.subr.mxu0 %v2163
  %3191 = vmatpush1.msra.mxu0 %v2162
  %3192 = vmatprep.subr.mxu0 %v2165
  %3193 = vmatpush1.msra.mxu0 %v2164
  %3194 = vmatprep.subr.mxu0 %v2167
  %3195 = vmatpush1.msra.mxu0 %v2166
  %3196 = vmatprep.subr.mxu0 %v2169
  %3197 = vmatpush1.msra.mxu0 %v2168
  %3198 = vmatprep.subr.mxu0 %v2171
  %3199 = vmatpush1.msra.mxu0 %v2170
  %3200 = vmatprep.subr.mxu0 %v2173
  %3201 = vmatpush1.msra.mxu0 %v2172
  %3202 = vmatprep.subr.mxu0 %v2175
  %3203 = vmatpush1.msra.mxu0 %v2174
  %3204 = vmatprep.subr.mxu0 %v2177
  %3205 = vmatpush1.msra.mxu0 %v2176
  %3206 = vmatprep.subr.mxu0 %v2179
  %3207 = vmatpush1.msra.mxu0 %v2178
  %3208 = vmatprep.subr.mxu0 %v2181
  %3209 = vmatpush1.msra.mxu0 %v2180
  %3210 = vmatprep.subr.mxu0 %v2183
  %3211 = vmatpush1.msra.mxu0 %v2182
  %3212 = vmatprep.subr.mxu0 %v2185
  %3213 = vmatpush1.msra.mxu0 %v2184
  %3214 = vmatprep.subr.mxu0 %v2187
  %3215 = vmatpush1.msra.mxu0 %v2186
  %3216 = vmatprep.subr.mxu0 %v2189
  %3217 = vmatpush1.msra.mxu0 %v2188
  %3218 = vmatprep.subr.mxu0 %v2191
  %3219 = vmatpush1.msra.mxu0 %v2190
  %3220 = vmatprep.subr.mxu0 0.0
  %3221 = vmatpush1.msra.mxu0 0.0
  %3222 = vmatprep.subr.mxu0 0.0
  %3223 = vmatpush1.msra.mxu0 0.0
  %3224 = vmatprep.subr.mxu0 0.0
  %3225 = vmatpush1.msra.mxu0 0.0
  %3226 = vmatprep.subr.mxu0 0.0
  %3227 = vmatpush1.msra.mxu0 0.0
  %3228 = vmatprep.subr.mxu0 0.0
  %3229 = vmatpush1.msra.mxu0 0.0
  %3230 = vmatprep.subr.mxu0 0.0
  %3231 = vmatpush1.msra.mxu0 0.0
  %3232 = vmatprep.subr.mxu0 0.0
  %3233 = vmatpush1.msra.mxu0 0.0
  %3234 = vmatprep.subr.mxu0 0.0
  %3235 = vmatpush1.msra.mxu0 0.0
  %3236 = vmatprep.subr.mxu0 0.0
  %3237 = vmatpush1.msra.mxu0 0.0
  %3238 = vmatprep.subr.mxu0 0.0
  %3239 = vmatpush1.msra.mxu0 0.0
  %3240 = vmatprep.subr.mxu0 0.0
  %3241 = vmatpush1.msra.mxu0 0.0
  %3242 = vmatprep.subr.mxu0 0.0
  %3243 = vmatpush1.msra.mxu0 0.0
  %3244 = vmatprep.subr.mxu0 0.0
  %3245 = vmatpush1.msra.mxu0 0.0
  %3246 = vmatprep.subr.mxu0 0.0
  %3247 = vmatpush1.msra.mxu0 0.0
  %3248 = vmatprep.subr.mxu0 0.0
  %3249 = vmatpush1.msra.mxu0 0.0
  %3250 = vmatprep.subr.mxu0 0.0
  %3251 = vmatpush1.msra.mxu0 0.0
  %3252 = vmatprep.mubr.f32.mxu0 0.0
  %3253 = vmatmul.mubr.f32.gmra.mrb[0].mxu0 %v3187
  %v3254 = vpop.f32.mrb[0].mxu0
  %v3255 = vadd.f32 %v2198, %v3254
  %v3256 = vpop.f32.mrb[0].mxu0
  %v3257 = vadd.f32 %v2202, %v3256
  %3258 = vdwg.mxu0
  %v3259 = vadd.f32 %v3255, %v3257
  %v3260 = vxor.u32 %v3259, 2147483648
  %v3261 = vmul.f32 %v3260, 1.442695
  %v3262 = vpow.pop %v3261
  %v3263 = vadd.f32 %v3262, 1.0
  %v3264 = vrcp.pop %v3263
  %v3265 = vmul.f32 1.0, %v3264
  %3267 = vrot.lane.b32.xlu0 %v3257, 64
  %v3268 = vpop.permute.xlu0 %3267
  %v3270 = vmul.f32 %v3265, %v3268
  %3272 = vrot.lane.b32.xlu0 %v3270, 64
  %v3273 = vpop.permute.xlu0 %3272
  %v3275 = vadd.f32 %v3255, %v3273
  %v3276 = vtanh.pop %v3275
  %v3277 = vsub.f32 1.0, %v3265
  %3279 = vrot.lane.b32.xlu0 %v3276, 96
  %v3280 = vpop.permute.xlu0 %3279
  %v3282 = vmul.f32 %v3277, %v3280
  %v3283 = vmul.f32 %v3265, %v2301
  %v3284 = vadd.f32 %v3282, %v3283
  %3286 = vrot.lane.b32.xlu0 %v3284, 96
  %v3287 = vpop.permute.xlu0 %3286
  %v3288 = vsel %vm523, %v3287, 0
  %3290 = vmatprep.subr.mxu0 %v2303
  %3291 = vmatpush1.msra.mxu0 %v2302
  %3292 = vmatprep.subr.mxu0 %v2306
  %3293 = vmatpush1.msra.mxu0 %v2305
  %3294 = vmatprep.subr.mxu0 %v2309
  %3295 = vmatpush1.msra.mxu0 %v2308
  %3296 = vmatprep.subr.mxu0 %v2312
  %3297 = vmatpush1.msra.mxu0 %v2311
  %3298 = vmatprep.subr.mxu0 0.0
  %3299 = vmatpush1.msra.mxu0 0.0
  %3300 = vmatprep.subr.mxu0 0.0
  %3301 = vmatpush1.msra.mxu0 0.0
  %3302 = vmatprep.subr.mxu0 0.0
  %3303 = vmatpush1.msra.mxu0 0.0
  %3304 = vmatprep.subr.mxu0 0.0
  %3305 = vmatpush1.msra.mxu0 0.0
  %3306 = vmatprep.subr.mxu0 0.0
  %3307 = vmatpush1.msra.mxu0 0.0
  %3308 = vmatprep.subr.mxu0 0.0
  %3309 = vmatpush1.msra.mxu0 0.0
  %3310 = vmatprep.subr.mxu0 0.0
  %3311 = vmatpush1.msra.mxu0 0.0
  %3312 = vmatprep.subr.mxu0 0.0
  %3313 = vmatpush1.msra.mxu0 0.0
  %3314 = vmatprep.subr.mxu0 0.0
  %3315 = vmatpush1.msra.mxu0 0.0
  %3316 = vmatprep.subr.mxu0 0.0
  %3317 = vmatpush1.msra.mxu0 0.0
  %3318 = vmatprep.subr.mxu0 0.0
  %3319 = vmatpush1.msra.mxu0 0.0
  %3320 = vmatprep.subr.mxu0 0.0
  %3321 = vmatpush1.msra.mxu0 0.0
  %3322 = vmatprep.subr.mxu0 0.0
  %3323 = vmatpush1.msra.mxu0 0.0
  %3324 = vmatprep.subr.mxu0 0.0
  %3325 = vmatpush1.msra.mxu0 0.0
  %3326 = vmatprep.subr.mxu0 0.0
  %3327 = vmatpush1.msra.mxu0 0.0
  %3328 = vmatprep.subr.mxu0 0.0
  %3329 = vmatpush1.msra.mxu0 0.0
  %3330 = vmatprep.subr.mxu0 0.0
  %3331 = vmatpush1.msra.mxu0 0.0
  %3332 = vmatprep.subr.mxu0 0.0
  %3333 = vmatpush1.msra.mxu0 0.0
  %3334 = vmatprep.subr.mxu0 0.0
  %3335 = vmatpush1.msra.mxu0 0.0
  %3336 = vmatprep.subr.mxu0 0.0
  %3337 = vmatpush1.msra.mxu0 0.0
  %3338 = vmatprep.subr.mxu0 0.0
  %3339 = vmatpush1.msra.mxu0 0.0
  %3340 = vmatprep.subr.mxu0 0.0
  %3341 = vmatpush1.msra.mxu0 0.0
  %3342 = vmatprep.subr.mxu0 0.0
  %3343 = vmatpush1.msra.mxu0 0.0
  %3344 = vmatprep.subr.mxu0 0.0
  %3345 = vmatpush1.msra.mxu0 0.0
  %3346 = vmatprep.subr.mxu0 0.0
  %3347 = vmatpush1.msra.mxu0 0.0
  %3348 = vmatprep.subr.mxu0 0.0
  %3349 = vmatpush1.msra.mxu0 0.0
  %3350 = vmatprep.subr.mxu0 0.0
  %3351 = vmatpush1.msra.mxu0 0.0
  %3352 = vmatprep.subr.mxu0 0.0
  %3353 = vmatpush1.msra.mxu0 0.0
  %3354 = vmatprep.mubr.f32.mxu0 0.0
  %3355 = vmatmul.mubr.f32.gmra.mrb[0].mxu0 %v3288
  %v3356 = vpop.f32.mrb[0].mxu0
  %v3357 = vadd.f32 0.0, %v3356
  %v3358 = vpop.f32.mrb[0].mxu0
  %v3359 = vadd.f32 0.0, %v3358
  %3360 = vdwg.mxu0
  %3361 = vmatprep.subr.mxu0 0.0
  %3362 = vmatpush1.msra.mxu0 %v2304
  %3363 = vmatprep.subr.mxu0 0.0
  %3364 = vmatpush1.msra.mxu0 %v2307
  %3365 = vmatprep.subr.mxu0 0.0
  %3366 = vmatpush1.msra.mxu0 %v2310
  %3367 = vmatprep.subr.mxu0 0.0
  %3368 = vmatpush1.msra.mxu0 %v2313
  %3369 = vmatprep.subr.mxu0 0.0
  %3370 = vmatpush1.msra.mxu0 0.0
  %3371 = vmatprep.subr.mxu0 0.0
  %3372 = vmatpush1.msra.mxu0 0.0
  %3373 = vmatprep.subr.mxu0 0.0
  %3374 = vmatpush1.msra.mxu0 0.0
  %3375 = vmatprep.subr.mxu0 0.0
  %3376 = vmatpush1.msra.mxu0 0.0
  %3377 = vmatprep.subr.mxu0 0.0
  %3378 = vmatpush1.msra.mxu0 0.0
  %3379 = vmatprep.subr.mxu0 0.0
  %3380 = vmatpush1.msra.mxu0 0.0
  %3381 = vmatprep.subr.mxu0 0.0
  %3382 = vmatpush1.msra.mxu0 0.0
  %3383 = vmatprep.subr.mxu0 0.0
  %3384 = vmatpush1.msra.mxu0 0.0
  %3385 = vmatprep.subr.mxu0 0.0
  %3386 = vmatpush1.msra.mxu0 0.0
  %3387 = vmatprep.subr.mxu0 0.0
  %3388 = vmatpush1.msra.mxu0 0.0
  %3389 = vmatprep.subr.mxu0 0.0
  %3390 = vmatpush1.msra.mxu0 0.0
  %3391 = vmatprep.subr.mxu0 0.0
  %3392 = vmatpush1.msra.mxu0 0.0
  %3393 = vmatprep.subr.mxu0 0.0
  %3394 = vmatpush1.msra.mxu0 0.0
  %3395 = vmatprep.subr.mxu0 0.0
  %3396 = vmatpush1.msra.mxu0 0.0
  %3397 = vmatprep.subr.mxu0 0.0
  %3398 = vmatpush1.msra.mxu0 0.0
  %3399 = vmatprep.subr.mxu0 0.0
  %3400 = vmatpush1.msra.mxu0 0.0
  %3401 = vmatprep.subr.mxu0 0.0
  %3402 = vmatpush1.msra.mxu0 0.0
  %3403 = vmatprep.subr.mxu0 0.0
  %3404 = vmatpush1.msra.mxu0 0.0
  %3405 = vmatprep.subr.mxu0 0.0
  %3406 = vmatpush1.msra.mxu0 0.0
  %3407 = vmatprep.subr.mxu0 0.0
  %3408 = vmatpush1.msra.mxu0 0.0
  %3409 = vmatprep.subr.mxu0 0.0
  %3410 = vmatpush1.msra.mxu0 0.0
  %3411 = vmatprep.subr.mxu0 0.0
  %3412 = vmatpush1.msra.mxu0 0.0
  %3413 = vmatprep.subr.mxu0 0.0
  %3414 = vmatpush1.msra.mxu0 0.0
  %3415 = vmatprep.subr.mxu0 0.0
  %3416 = vmatpush1.msra.mxu0 0.0
  %3417 = vmatprep.subr.mxu0 0.0
  %3418 = vmatpush1.msra.mxu0 0.0
  %3419 = vmatprep.subr.mxu0 0.0
  %3420 = vmatpush1.msra.mxu0 0.0
  %3421 = vmatprep.subr.mxu0 0.0
  %3422 = vmatpush1.msra.mxu0 0.0
  %3423 = vmatprep.subr.mxu0 0.0
  %3424 = vmatpush1.msra.mxu0 0.0
  %3425 = vmatprep.mubr.f32.mxu0 0.0
  %3426 = vmatmul.mubr.f32.gmra.mrb[0].mxu0 %v3288
  %v3427 = vpop.f32.mrb[0].mxu0
  %v3428 = vadd.f32 0.0, %v3427
  %v3429 = vpop.f32.mrb[0].mxu0
  %3430 = vdwg.mxu0
  %v3431 = vsel %vm1101, %v3158, 0
  %3433 = vmatprep.subr.mxu0 %v1422
  %3434 = vmatpush1.msra.mxu0 %v1421
  %3435 = vmatprep.subr.mxu0 %v1425
  %3436 = vmatpush1.msra.mxu0 %v1424
  %3437 = vmatprep.subr.mxu0 0.0
  %3438 = vmatpush1.msra.mxu0 0.0
  %3439 = vmatprep.subr.mxu0 0.0
  %3440 = vmatpush1.msra.mxu0 0.0
  %3441 = vmatprep.subr.mxu0 0.0
  %3442 = vmatpush1.msra.mxu0 0.0
  %3443 = vmatprep.subr.mxu0 0.0
  %3444 = vmatpush1.msra.mxu0 0.0
  %3445 = vmatprep.subr.mxu0 0.0
  %3446 = vmatpush1.msra.mxu0 0.0
  %3447 = vmatprep.subr.mxu0 0.0
  %3448 = vmatpush1.msra.mxu0 0.0
  %3449 = vmatprep.subr.mxu0 0.0
  %3450 = vmatpush1.msra.mxu0 0.0
  %3451 = vmatprep.subr.mxu0 0.0
  %3452 = vmatpush1.msra.mxu0 0.0
  %3453 = vmatprep.subr.mxu0 0.0
  %3454 = vmatpush1.msra.mxu0 0.0
  %3455 = vmatprep.subr.mxu0 0.0
  %3456 = vmatpush1.msra.mxu0 0.0
  %3457 = vmatprep.subr.mxu0 0.0
  %3458 = vmatpush1.msra.mxu0 0.0
  %3459 = vmatprep.subr.mxu0 0.0
  %3460 = vmatpush1.msra.mxu0 0.0
  %3461 = vmatprep.subr.mxu0 0.0
  %3462 = vmatpush1.msra.mxu0 0.0
  %3463 = vmatprep.subr.mxu0 0.0
  %3464 = vmatpush1.msra.mxu0 0.0
  %3465 = vmatprep.subr.mxu0 0.0
  %3466 = vmatpush1.msra.mxu0 0.0
  %3467 = vmatprep.subr.mxu0 0.0
  %3468 = vmatpush1.msra.mxu0 0.0
  %3469 = vmatprep.subr.mxu0 0.0
  %3470 = vmatpush1.msra.mxu0 0.0
  %3471 = vmatprep.subr.mxu0 0.0
  %3472 = vmatpush1.msra.mxu0 0.0
  %3473 = vmatprep.subr.mxu0 0.0
  %3474 = vmatpush1.msra.mxu0 0.0
  %3475 = vmatprep.subr.mxu0 0.0
  %3476 = vmatpush1.msra.mxu0 0.0
  %3477 = vmatprep.subr.mxu0 0.0
  %3478 = vmatpush1.msra.mxu0 0.0
  %3479 = vmatprep.subr.mxu0 0.0
  %3480 = vmatpush1.msra.mxu0 0.0
  %3481 = vmatprep.subr.mxu0 0.0
  %3482 = vmatpush1.msra.mxu0 0.0
  %3483 = vmatprep.subr.mxu0 0.0
  %3484 = vmatpush1.msra.mxu0 0.0
  %3485 = vmatprep.subr.mxu0 0.0
  %3486 = vmatpush1.msra.mxu0 0.0
  %3487 = vmatprep.subr.mxu0 0.0
  %3488 = vmatpush1.msra.mxu0 0.0
  %3489 = vmatprep.subr.mxu0 0.0
  %3490 = vmatpush1.msra.mxu0 0.0
  %3491 = vmatprep.subr.mxu0 0.0
  %3492 = vmatpush1.msra.mxu0 0.0
  %3493 = vmatprep.subr.mxu0 0.0
  %3494 = vmatpush1.msra.mxu0 0.0
  %3495 = vmatprep.subr.mxu0 0.0
  %3496 = vmatpush1.msra.mxu0 0.0
  %3497 = vmatprep.mubr.f32.mxu0 0.0
  %3498 = vmatmul.mubr.f32.gmra.mrb[0].mxu0 %v3431
  %v3499 = vpop.f32.mrb[0].mxu0
  %v3500 = vadd.f32 %v3357, %v3499
  %v3501 = vpop.f32.mrb[0].mxu0
  %v3502 = vadd.f32 %v3359, %v3501
  %3503 = vdwg.mxu0
  %3504 = vmatprep.subr.mxu0 0.0
  %3505 = vmatpush1.msra.mxu0 %v1423
  %3506 = vmatprep.subr.mxu0 0.0
  %3507 = vmatpush1.msra.mxu0 %v1426
  %3508 = vmatprep.subr.mxu0 0.0
  %3509 = vmatpush1.msra.mxu0 0.0
  %3510 = vmatprep.subr.mxu0 0.0
  %3511 = vmatpush1.msra.mxu0 0.0
  %3512 = vmatprep.subr.mxu0 0.0
  %3513 = vmatpush1.msra.mxu0 0.0
  %3514 = vmatprep.subr.mxu0 0.0
  %3515 = vmatpush1.msra.mxu0 0.0
  %3516 = vmatprep.subr.mxu0 0.0
  %3517 = vmatpush1.msra.mxu0 0.0
  %3518 = vmatprep.subr.mxu0 0.0
  %3519 = vmatpush1.msra.mxu0 0.0
  %3520 = vmatprep.subr.mxu0 0.0
  %3521 = vmatpush1.msra.mxu0 0.0
  %3522 = vmatprep.subr.mxu0 0.0
  %3523 = vmatpush1.msra.mxu0 0.0
  %3524 = vmatprep.subr.mxu0 0.0
  %3525 = vmatpush1.msra.mxu0 0.0
  %3526 = vmatprep.subr.mxu0 0.0
  %3527 = vmatpush1.msra.mxu0 0.0
  %3528 = vmatprep.subr.mxu0 0.0
  %3529 = vmatpush1.msra.mxu0 0.0
  %3530 = vmatprep.subr.mxu0 0.0
  %3531 = vmatpush1.msra.mxu0 0.0
  %3532 = vmatprep.subr.mxu0 0.0
  %3533 = vmatpush1.msra.mxu0 0.0
  %3534 = vmatprep.subr.mxu0 0.0
  %3535 = vmatpush1.msra.mxu0 0.0
  %3536 = vmatprep.subr.mxu0 0.0
  %3537 = vmatpush1.msra.mxu0 0.0
  %3538 = vmatprep.subr.mxu0 0.0
  %3539 = vmatpush1.msra.mxu0 0.0
  %3540 = vmatprep.subr.mxu0 0.0
  %3541 = vmatpush1.msra.mxu0 0.0
  %3542 = vmatprep.subr.mxu0 0.0
  %3543 = vmatpush1.msra.mxu0 0.0
  %3544 = vmatprep.subr.mxu0 0.0
  %3545 = vmatpush1.msra.mxu0 0.0
  %3546 = vmatprep.subr.mxu0 0.0
  %3547 = vmatpush1.msra.mxu0 0.0
  %3548 = vmatprep.subr.mxu0 0.0
  %3549 = vmatpush1.msra.mxu0 0.0
  %3550 = vmatprep.subr.mxu0 0.0
  %3551 = vmatpush1.msra.mxu0 0.0
  %3552 = vmatprep.subr.mxu0 0.0
  %3553 = vmatpush1.msra.mxu0 0.0
  %3554 = vmatprep.subr.mxu0 0.0
  %3555 = vmatpush1.msra.mxu0 0.0
  %3556 = vmatprep.subr.mxu0 0.0
  %3557 = vmatpush1.msra.mxu0 0.0
  %3558 = vmatprep.subr.mxu0 0.0
  %3559 = vmatpush1.msra.mxu0 0.0
  %3560 = vmatprep.subr.mxu0 0.0
  %3561 = vmatpush1.msra.mxu0 0.0
  %3562 = vmatprep.subr.mxu0 0.0
  %3563 = vmatpush1.msra.mxu0 0.0
  %3564 = vmatprep.subr.mxu0 0.0
  %3565 = vmatpush1.msra.mxu0 0.0
  %3566 = vmatprep.subr.mxu0 0.0
  %3567 = vmatpush1.msra.mxu0 0.0
  %3568 = vmatprep.mubr.f32.mxu0 0.0
  %3569 = vmatmul.mubr.f32.gmra.mrb[0].mxu0 %v3431
  %v3570 = vpop.f32.mrb[0].mxu0
  %v3571 = vadd.f32 %v3428, %v3570
  %v3572 = vpop.f32.mrb[0].mxu0
  %3573 = vdwg.mxu0
  %v3574 = vadd.f32 %v3500, %v1418
  %v3575 = vadd.f32 %v3502, %v1419
  %v3576 = vadd.f32 %v3571, %v1420
  %v3577 = vadd.f32 %v2606, %v3085
  %v3578 = vsub.f32 %v3574, %v2603
  %v3579 = vmul.f32 %v3578, %v3578
  %v3580 = vsel %vm1101, %v3579, 0.0
  %3581 = vadd.xlane.f32.xlu0 %v3580
  %v3582 = vpop.xlane.xlu0 %3581
  %v3583 = vrsqrt.pop %v3582
  %v3584 = vmul.f32 %v3582, %v3583
  %vm3585 = vcmp.eq.f32.partialorder %v3582, inf
  %v3586 = vsel %vm3585, %v3582, %v3584
  %vm3587 = vcmp.eq.f32.partialorder %v3582, 0.0
  %v3588 = vand.u32 %v3582, 2147483648
  %v3589 = vsel %vm3587, %v3588, %v3586
  %v3590 = vmul.f32 %v3162, %v3162
  %3592 = vrot.lane.b32.xlu0 %v3590, 112
  %v3593 = vpop.permute.xlu0 %3592
  %v3595 = vsel %vm881, %v3593, 0.0
  %3596 = vadd.xlane.f32.xlu0 %v3595
  %v3597 = vpop.xlane.xlu0 %3596
  %v3598 = vrsqrt.pop %v3597
  %v3599 = vmul.f32 %v3597, %v3598
  %vm3600 = vcmp.eq.f32.partialorder %v3597, inf
  %v3601 = vsel %vm3600, %v3597, %v3599
  %vm3602 = vcmp.eq.f32.partialorder %v3597, 0.0
  %v3603 = vand.u32 %v3597, 2147483648
  %v3604 = vsel %vm3602, %v3603, %v3601
  %v3605 = vadd.f32 %v3589, %v3604
  %3606 = vrot.lane.b32.xlu0 %v3590, 104
  %v3607 = vpop.permute.xlu0 %3606
  %v3609 = vsel %vm881, %v3607, 0.0
  %3610 = vadd.xlane.f32.xlu0 %v3609
  %v3611 = vpop.xlane.xlu0 %3610
  %v3612 = vrsqrt.pop %v3611
  %v3613 = vmul.f32 %v3611, %v3612
  %vm3614 = vcmp.eq.f32.partialorder %v3611, inf
  %v3615 = vsel %vm3614, %v3611, %v3613
  %vm3616 = vcmp.eq.f32.partialorder %v3611, 0.0
  %v3617 = vand.u32 %v3611, 2147483648
  %v3618 = vsel %vm3616, %v3617, %v3615
  %v3619 = vadd.f32 %v3605, %v3618
  %v3620 = vadd.f32 %v2649, %v3619
  %v3621 = vsub.f32 %v3575, %v1049
  %v3622 = vsub.f32 %v3576, %v1050
  %v3623 = vmul.f32 %v3621, %v1052
  %v3624 = vmul.f32 %v3622, %v1051
  %v3625 = vmul.f32 %v3623, %v3623
  %v3626 = vmul.f32 %v3624, %v3624
  %v3627 = vadd.f32 %v3625, %v3626
  %v3628 = vadd.f32 %v3627, 1e-20
  %v3629 = vrsqrt.pop %v3628
  %v3630 = vmul.f32 %v3623, %v3629
  %v3631 = vmul.f32 %v3624, %v3629
  %v3632 = vmul.f32 %v1053, %v3630
  %v3633 = vmul.f32 %v3632, %v3630
  %v3634 = vmul.f32 %v1054, %v3631
  %v3635 = vmul.f32 %v3634, %v3631
  %v3636 = vadd.f32 %v3633, %v3635
  %v3637 = vmul.f32 %v1051, %v3621
  %v3638 = vmul.f32 %v3637, %v3630
  %v3639 = vmul.f32 %v1052, %v3622
  %v3640 = vmul.f32 %v3639, %v3631
  %v3641 = vadd.f32 %v3638, %v3640
  %v3642 = vrcp.pop %v3636
  %v3643 = vmul.f32 %v3641, %v3642
  %v3644 = vmax.f32 %v3643, 1.0
  %v3645 = vmul.f32 %v3644, %v3630
  %v3646 = vmul.f32 %v1051, %v3645
  %v3647 = vmul.f32 %v3644, %v3631
  %v3648 = vmul.f32 %v1052, %v3647
  %v3649 = vsub.f32 %v3621, %v3646
  %v3650 = vsub.f32 %v3622, %v3648
  %v3651 = vmul.f32 %v3649, %v3649
  %v3652 = vmul.f32 %v3650, %v3650
  %v3653 = vadd.f32 %v3651, %v3652
  %v3654 = vsel %vm1604, %v3653, 0.0
  %3655 = vadd.xlane.f32.xlu0 %v3654
  %v3656 = vpop.xlane.xlu0 %3655
  %v3657 = vmul.f32 %v3574, %v3574
  %3659 = vrot.lane.b32.xlu0 %v3657, 96
  %v3660 = vpop.permute.xlu0 %3659
  %v3662 = vadd.f32 %v3657, %v3660
  %v3663 = vadd.f32 %v3662, 1e-20
  %v3664 = vrsqrt.pop %v3663
  %v3665 = vmul.f32 %v3574, %v3664
  %3667 = vrot.lane.b32.xlu0 %v3664, 32
  %v3668 = vpop.permute.xlu0 %3667
  %v3670 = vmul.f32 %v3574, %v3668
  %vm3671 = vcmp.gt.f32.partialorder %v3574, 0.0
  %v3672 = vand.u32 2147483647, %v3574
  %v3673 = vmul.f32 %v3574, 0.4346312
  %3675 = vrot.lane.b32.xlu0 %v3673, 32
  %v3676 = vpop.permute.xlu0 %3675
  %vm3678 = vcmp.le.f32.partialorder %v3672, %v3676
  %v3679 = vsel %vm3678, 1, 0
  %3680 = vrot.lane.b32.xlu0 %v3679, 96
  %v3681 = vpop.permute.xlu0 %3680
  %vm3682 = vcmp.ne.s32.totalorder %v3681, 0
  %vm3683 = vmand %vm3671, %vm3682
  %vm3684 = vcmp.ge.f32.partialorder %v3574, 0.0
  %v3685 = vsel %vm3684, 1.0, -1.0
  %v3686 = vsel %vm3683, %v3665, 0.9171208
  %v3687 = vmul.f32 %v3685, 0.39860934
  %3689 = vrot.lane.b32.xlu0 %v3670, 96
  %v3690 = vpop.permute.xlu0 %3689
  %3693 = vrot.lane.b32.xlu0 %v3687, 96
  %v3694 = vpop.permute.xlu0 %3693
  %v3696 = vsel %vm3683, %v3690, %v3694
  %v3697 = vmul.f32 %v3574, %v3686
  %3699 = vrot.lane.b32.xlu0 %v3696, 32
  %v3700 = vpop.permute.xlu0 %3699
  %v3702 = vmul.f32 %v3574, %v3700
  %3704 = vrot.lane.b32.xlu0 %v3702, 96
  %v3705 = vpop.permute.xlu0 %3704
  %v3707 = vadd.f32 %v3697, %v3705
  %v3708 = vmax.f32 %v3707, 0.001
  %v3709 = vmin.f32 %v3708, 18.0
  %v3710 = vmul.f32 %v3709, %v3686
  %v3711 = vmul.f32 %v3709, %v3696
  %v3712 = vsub.f32 %v3574, %v3710
  %3714 = vrot.lane.b32.xlu0 %v3711, 32
  %v3715 = vpop.permute.xlu0 %3714
  %v3717 = vsub.f32 %v3574, %v3715
  %v3718 = vadd.f32 %v3574, 0.0001
  %v3719 = vmul.f32 %v3718, %v3718
  %3721 = vrot.lane.b32.xlu0 %v3719, 96
  %v3722 = vpop.permute.xlu0 %3721
  %v3724 = vadd.f32 %v3719, %v3722
  %v3725 = vadd.f32 %v3724, 1e-20
  %v3726 = vrsqrt.pop %v3725
  %v3727 = vmul.f32 %v3718, %v3726
  %3729 = vrot.lane.b32.xlu0 %v3726, 32
  %v3730 = vpop.permute.xlu0 %3729
  %v3732 = vmul.f32 %v3718, %v3730
  %v3733 = vmul.f32 %v3574, %v3727
  %v3734 = vmul.f32 %v3574, %v3732
  %3736 = vrot.lane.b32.xlu0 %v3734, 96
  %v3737 = vpop.permute.xlu0 %3736
  %v3739 = vadd.f32 %v3733, %v3737
  %v3740 = vmax.f32 %v3739, 0.0
  %v3741 = vmin.f32 %v3740, 6.0
  %v3742 = vmul.f32 %v3741, %v3727
  %3744 = vrot.lane.b32.xlu0 %v3732, 96
  %v3745 = vpop.permute.xlu0 %3744
  %v3747 = vmul.f32 %v3741, %v3745
  %v3748 = vsub.f32 %v3574, %v3742
  %3750 = vrot.lane.b32.xlu0 %v3747, 32
  %v3751 = vpop.permute.xlu0 %3750
  %v3753 = vsub.f32 %v3574, %v3751
  %v3754 = vsub.f32 %v3574, %v1707
  %v3755 = vmax.f32 %v3754, 0.0
  %v3756 = vsub.f32 %v1713, %v3574
  %v3757 = vmax.f32 %v3756, 0.0
  %v3758 = vmin.f32 %v3574, %v1707
  %v3759 = vmax.f32 %v3574, %v1713
  %v3760 = vsub.f32 0.0, %v3759
  %3762 = vrot.lane.b32.xlu0 %v3748, 96
  %v3763 = vpop.permute.xlu0 %3762
  %3766 = vrot.lane.b32.xlu0 %v3649, 32
  %v3767 = vpop.permute.xlu0 %3766
  %3770 = vrot.lane.b32.xlu0 %v3753, 64
  %v3771 = vpop.permute.xlu0 %3770
  %3774 = vrot.lane.b32.xlu0 %v3717, 96
  %v3775 = vpop.permute.xlu0 %3774
  %3778 = vrot.lane.b32.xlu0 %v3650, 32
  %v3779 = vpop.permute.xlu0 %3778
  %3782 = vrot.lane.b32.xlu0 %v3755, 48
  %v3783 = vpop.permute.xlu0 %3782
  %3786 = vrot.lane.b32.xlu0 %v3757, 64
  %v3787 = vpop.permute.xlu0 %3786
  %v3789 = vsel %vm1101, %v3763, %v3712
  %v3790 = vsel %vm523, %v3789, %v3767
  %v3791 = vsel %vm1101, %v3771, %v3775
  %v3792 = vsel %vm523, %v3791, %v3779
  %v3793 = vsel %vm1101, %v3783, %v3787
  %3795 = vrot.lane.b32.xlu0 %v3742, 96
  %v3796 = vpop.permute.xlu0 %3795
  %3799 = vrot.lane.b32.xlu0 %v3646, 32
  %v3800 = vpop.permute.xlu0 %3799
  %3802 = vrot.lane.b32.xlu0 %v3747, 96
  %v3803 = vpop.permute.xlu0 %3802
  %3806 = vrot.lane.b32.xlu0 %v3648, 32
  %v3807 = vpop.permute.xlu0 %3806
  %3810 = vrot.lane.b32.xlu0 %v3758, 48
  %v3811 = vpop.permute.xlu0 %3810
  %3814 = vrot.lane.b32.xlu0 %v3760, 64
  %v3815 = vpop.permute.xlu0 %3814
  %v3817 = vsel %vm1101, %v3796, %v3710
  %v3818 = vsel %vm523, %v3817, %v3800
  %v3819 = vsel %vm1101, %v3803, %v3711
  %v3820 = vsel %vm523, %v3819, %v3807
  %v3821 = vsel %vm1101, %v3811, %v3815
  %v3823 = vsel %vm523, %v3793, 0
  %v3826 = vsel %vm523, %v3821, 0
  %3828 = vmatprep.subr.mxu0 0.0
  %3829 = vmatpush1.msra.mxu0 %v1781
  %3830 = vmatprep.subr.mxu0 0.0
  %3831 = vmatpush1.msra.mxu0 %v1782
  %3832 = vmatprep.subr.mxu0 0.0
  %3833 = vmatpush1.msra.mxu0 %v1783
  %3834 = vmatprep.subr.mxu0 0.0
  %3835 = vmatpush1.msra.mxu0 %v1784
  %3836 = vmatprep.subr.mxu0 0.0
  %3837 = vmatpush1.msra.mxu0 %v1785
  %3838 = vmatprep.subr.mxu0 0.0
  %3839 = vmatpush1.msra.mxu0 %v1786
  %3840 = vmatprep.subr.mxu0 0.0
  %3841 = vmatpush1.msra.mxu0 %v1787
  %3842 = vmatprep.subr.mxu0 0.0
  %3843 = vmatpush1.msra.mxu0 %v1788
  %3844 = vmatprep.subr.mxu0 0.0
  %3845 = vmatpush1.msra.mxu0 %v1789
  %3846 = vmatprep.subr.mxu0 0.0
  %3847 = vmatpush1.msra.mxu0 %v1790
  %3848 = vmatprep.subr.mxu0 0.0
  %3849 = vmatpush1.msra.mxu0 %v1791
  %3850 = vmatprep.subr.mxu0 0.0
  %3851 = vmatpush1.msra.mxu0 %v1792
  %3852 = vmatprep.subr.mxu0 0.0
  %3853 = vmatpush1.msra.mxu0 %v1793
  %3854 = vmatprep.subr.mxu0 0.0
  %3855 = vmatpush1.msra.mxu0 %v1794
  %3856 = vmatprep.subr.mxu0 0.0
  %3857 = vmatpush1.msra.mxu0 %v1795
  %3858 = vmatprep.subr.mxu0 0.0
  %3859 = vmatpush1.msra.mxu0 %v1796
  %3860 = vmatprep.subr.mxu0 0.0
  %3861 = vmatpush1.msra.mxu0 %v1797
  %3862 = vmatprep.subr.mxu0 0.0
  %3863 = vmatpush1.msra.mxu0 %v1798
  %3864 = vmatprep.subr.mxu0 0.0
  %3865 = vmatpush1.msra.mxu0 %v1799
  %3866 = vmatprep.subr.mxu0 0.0
  %3867 = vmatpush1.msra.mxu0 %v1800
  %3868 = vmatprep.subr.mxu0 0.0
  %3869 = vmatpush1.msra.mxu0 %v1801
  %3870 = vmatprep.subr.mxu0 0.0
  %3871 = vmatpush1.msra.mxu0 %v1802
  %3872 = vmatprep.subr.mxu0 0.0
  %3873 = vmatpush1.msra.mxu0 %v1803
  %3874 = vmatprep.subr.mxu0 0.0
  %3875 = vmatpush1.msra.mxu0 %v1804
  %3876 = vmatprep.subr.mxu0 0.0
  %3877 = vmatpush1.msra.mxu0 %v1805
  %3878 = vmatprep.subr.mxu0 0.0
  %3879 = vmatpush1.msra.mxu0 %v1806
  %3880 = vmatprep.subr.mxu0 0.0
  %3881 = vmatpush1.msra.mxu0 %v1807
  %3882 = vmatprep.subr.mxu0 0.0
  %3883 = vmatpush1.msra.mxu0 %v1808
  %3884 = vmatprep.subr.mxu0 0.0
  %3885 = vmatpush1.msra.mxu0 %v1809
  %3886 = vmatprep.subr.mxu0 0.0
  %3887 = vmatpush1.msra.mxu0 %v1810
  %3888 = vmatprep.subr.mxu0 0.0
  %3889 = vmatpush1.msra.mxu0 %v1811
  %3890 = vmatprep.subr.mxu0 0.0
  %3891 = vmatpush1.msra.mxu0 %v1812
  %3892 = vmatprep.mubr.f32.mxu0 %v3792
  %3893 = vmatmul.mubr.f32.gmra.mrb[0].mxu0 %v3790
  %v3894 = vpop.f32.mrb[0].mxu0
  %v3895 = vadd.f32 0.0, %v3894
  %v3896 = vpop.f32.mrb[0].mxu0
  %3897 = vmatprep.mubr.f32.mxu0 %v3820
  %3898 = vmatmul.mubr.f32.gmra.mrb[0].mxu0 %v3818
  %v3899 = vpop.f32.mrb[0].mxu0
  %v3900 = vadd.f32 0.0, %v3899
  %v3901 = vpop.f32.mrb[0].mxu0
  %3902 = vdwg.mxu0
  %3903 = vmatprep.subr.mxu0 0.0
  %3904 = vmatpush1.msra.mxu0 %v1813
  %3905 = vmatprep.subr.mxu0 0.0
  %3906 = vmatpush1.msra.mxu0 %v1814
  %3907 = vmatprep.subr.mxu0 0.0
  %3908 = vmatpush1.msra.mxu0 %v1815
  %3909 = vmatprep.subr.mxu0 0.0
  %3910 = vmatpush1.msra.mxu0 %v1816
  %3911 = vmatprep.subr.mxu0 0.0
  %3912 = vmatpush1.msra.mxu0 0.0
  %3913 = vmatprep.subr.mxu0 0.0
  %3914 = vmatpush1.msra.mxu0 0.0
  %3915 = vmatprep.subr.mxu0 0.0
  %3916 = vmatpush1.msra.mxu0 0.0
  %3917 = vmatprep.subr.mxu0 0.0
  %3918 = vmatpush1.msra.mxu0 0.0
  %3919 = vmatprep.subr.mxu0 0.0
  %3920 = vmatpush1.msra.mxu0 0.0
  %3921 = vmatprep.subr.mxu0 0.0
  %3922 = vmatpush1.msra.mxu0 0.0
  %3923 = vmatprep.subr.mxu0 0.0
  %3924 = vmatpush1.msra.mxu0 0.0
  %3925 = vmatprep.subr.mxu0 0.0
  %3926 = vmatpush1.msra.mxu0 0.0
  %3927 = vmatprep.subr.mxu0 0.0
  %3928 = vmatpush1.msra.mxu0 0.0
  %3929 = vmatprep.subr.mxu0 0.0
  %3930 = vmatpush1.msra.mxu0 0.0
  %3931 = vmatprep.subr.mxu0 0.0
  %3932 = vmatpush1.msra.mxu0 0.0
  %3933 = vmatprep.subr.mxu0 0.0
  %3934 = vmatpush1.msra.mxu0 0.0
  %3935 = vmatprep.subr.mxu0 0.0
  %3936 = vmatpush1.msra.mxu0 0.0
  %3937 = vmatprep.subr.mxu0 0.0
  %3938 = vmatpush1.msra.mxu0 0.0
  %3939 = vmatprep.subr.mxu0 0.0
  %3940 = vmatpush1.msra.mxu0 0.0
  %3941 = vmatprep.subr.mxu0 0.0
  %3942 = vmatpush1.msra.mxu0 0.0
  %3943 = vmatprep.subr.mxu0 0.0
  %3944 = vmatpush1.msra.mxu0 0.0
  %3945 = vmatprep.subr.mxu0 0.0
  %3946 = vmatpush1.msra.mxu0 0.0
  %3947 = vmatprep.subr.mxu0 0.0
  %3948 = vmatpush1.msra.mxu0 0.0
  %3949 = vmatprep.subr.mxu0 0.0
  %3950 = vmatpush1.msra.mxu0 0.0
  %3951 = vmatprep.subr.mxu0 0.0
  %3952 = vmatpush1.msra.mxu0 0.0
  %3953 = vmatprep.subr.mxu0 0.0
  %3954 = vmatpush1.msra.mxu0 0.0
  %3955 = vmatprep.subr.mxu0 0.0
  %3956 = vmatpush1.msra.mxu0 0.0
  %3957 = vmatprep.subr.mxu0 0.0
  %3958 = vmatpush1.msra.mxu0 0.0
  %3959 = vmatprep.subr.mxu0 0.0
  %3960 = vmatpush1.msra.mxu0 0.0
  %3961 = vmatprep.subr.mxu0 0.0
  %3962 = vmatpush1.msra.mxu0 0.0
  %3963 = vmatprep.subr.mxu0 0.0
  %3964 = vmatpush1.msra.mxu0 0.0
  %3965 = vmatprep.subr.mxu0 0.0
  %3966 = vmatpush1.msra.mxu0 0.0
  %3967 = vmatprep.mubr.f32.mxu0 0.0
  %3968 = vmatmul.mubr.f32.gmra.mrb[0].mxu0 %v3823
  %v3969 = vpop.f32.mrb[0].mxu0
  %v3970 = vadd.f32 %v3895, %v3969
  %v3971 = vpop.f32.mrb[0].mxu0
  %3972 = vmatprep.mubr.f32.mxu0 0.0
  %3973 = vmatmul.mubr.f32.gmra.mrb[0].mxu0 %v3826
  %v3974 = vpop.f32.mrb[0].mxu0
  %v3975 = vadd.f32 %v3900, %v3974
  %v3976 = vpop.f32.mrb[0].mxu0
  %3977 = vdwg.mxu0
  %3979 = vrot.lane.b32.xlu0 %v3970, 16
  %v3980 = vpop.permute.xlu0 %3979
  %v3982 = vsub.f32 %v3011, %v3980
  %3984 = vrot.lane.b32.xlu0 %v3975, 16
  %v3985 = vpop.permute.xlu0 %3984
  %v3987 = vadd.f32 %v3982, %v3985
  %v3988 = vmul.f32 %v3748, %v3748
  %v3989 = vmul.f32 %v3753, %v3753
  %3991 = vrot.lane.b32.xlu0 %v3989, 96
  %v3992 = vpop.permute.xlu0 %3991
  %v3994 = vadd.f32 %v3988, %v3992
  %3996 = vrot.lane.b32.xlu0 %v3994, 96
  %v3997 = vpop.permute.xlu0 %3996
  %v3999 = vsel %vm1101, %v3997, 0.0
  %4000 = vadd.xlane.f32.xlu0 %v3999
  %v4001 = vpop.xlane.xlu0 %4000
  %v4002 = vrsqrt.pop %v4001
  %v4003 = vmul.f32 %v4001, %v4002
  %vm4004 = vcmp.eq.f32.partialorder %v4001, inf
  %v4005 = vsel %vm4004, %v4001, %v4003
  %vm4006 = vcmp.eq.f32.partialorder %v4001, 0.0
  %v4007 = vand.u32 %v4001, 2147483648
  %v4008 = vsel %vm4006, %v4007, %v4005
  %v4009 = vmul.f32 %v3712, %v3712
  %v4010 = vmul.f32 %v3717, %v3717
  %4012 = vrot.lane.b32.xlu0 %v4010, 96
  %v4013 = vpop.permute.xlu0 %4012
  %v4015 = vadd.f32 %v4009, %v4013
  %4017 = vrot.lane.b32.xlu0 %v4015, 112
  %v4018 = vpop.permute.xlu0 %4017
  %v4020 = vsel %vm1101, %v4018, 0.0
  %4021 = vadd.xlane.f32.xlu0 %v4020
  %v4022 = vpop.xlane.xlu0 %4021
  %v4023 = vrsqrt.pop %v4022
  %v4024 = vmul.f32 %v4022, %v4023
  %vm4025 = vcmp.eq.f32.partialorder %v4022, inf
  %v4026 = vsel %vm4025, %v4022, %v4024
  %vm4027 = vcmp.eq.f32.partialorder %v4022, 0.0
  %v4028 = vand.u32 %v4022, 2147483648
  %v4029 = vsel %vm4027, %v4028, %v4026
  %v4030 = vadd.f32 %v4008, %v4029
  %v4031 = vrsqrt.pop %v3656
  %v4032 = vmul.f32 %v3656, %v4031
  %vm4033 = vcmp.eq.f32.partialorder %v3656, inf
  %v4034 = vsel %vm4033, %v3656, %v4032
  %vm4035 = vcmp.eq.f32.partialorder %v3656, 0.0
  %v4036 = vand.u32 %v3656, 2147483648
  %v4037 = vsel %vm4035, %v4036, %v4034
  %v4038 = vadd.f32 %v4030, %v4037
  %v4039 = vmul.f32 %v3755, %v3755
  %v4040 = vmul.f32 %v3757, %v3757
  %v4041 = vadd.f32 %v4039, %v4040
  %4043 = vrot.lane.b32.xlu0 %v4041, 48
  %v4044 = vpop.permute.xlu0 %4043
  %v4046 = vsel %vm1101, %v4044, 0.0
  %4047 = vadd.xlane.f32.xlu0 %v4046
  %v4048 = vpop.xlane.xlu0 %4047
  %v4049 = vrsqrt.pop %v4048
  %v4050 = vmul.f32 %v4048, %v4049
  %vm4051 = vcmp.eq.f32.partialorder %v4048, inf
  %v4052 = vsel %vm4051, %v4048, %v4050
  %vm4053 = vcmp.eq.f32.partialorder %v4048, 0.0
  %v4054 = vand.u32 %v4048, 2147483648
  %v4055 = vsel %vm4053, %v4054, %v4052
  %v4056 = vadd.f32 %v4038, %v4055
  %4058 = vrot.lane.b32.xlu0 %v3987, 112
  %v4059 = vpop.permute.xlu0 %4058
  %v4060 = vsel %vm1101, %v4059, 0
  %4062 = vmatprep.subr.mxu0 0.0
  %4063 = vmatpush1.msra.mxu0 %v2052
  %4064 = vmatprep.subr.mxu0 0.0
  %4065 = vmatpush1.msra.mxu0 %v2053
  %4066 = vmatprep.subr.mxu0 0.0
  %4067 = vmatpush1.msra.mxu0 0.0
  %4068 = vmatprep.subr.mxu0 0.0
  %4069 = vmatpush1.msra.mxu0 0.0
  %4070 = vmatprep.subr.mxu0 0.0
  %4071 = vmatpush1.msra.mxu0 0.0
  %4072 = vmatprep.subr.mxu0 0.0
  %4073 = vmatpush1.msra.mxu0 0.0
  %4074 = vmatprep.subr.mxu0 0.0
  %4075 = vmatpush1.msra.mxu0 0.0
  %4076 = vmatprep.subr.mxu0 0.0
  %4077 = vmatpush1.msra.mxu0 0.0
  %4078 = vmatprep.subr.mxu0 0.0
  %4079 = vmatpush1.msra.mxu0 0.0
  %4080 = vmatprep.subr.mxu0 0.0
  %4081 = vmatpush1.msra.mxu0 0.0
  %4082 = vmatprep.subr.mxu0 0.0
  %4083 = vmatpush1.msra.mxu0 0.0
  %4084 = vmatprep.subr.mxu0 0.0
  %4085 = vmatpush1.msra.mxu0 0.0
  %4086 = vmatprep.subr.mxu0 0.0
  %4087 = vmatpush1.msra.mxu0 0.0
  %4088 = vmatprep.subr.mxu0 0.0
  %4089 = vmatpush1.msra.mxu0 0.0
  %4090 = vmatprep.subr.mxu0 0.0
  %4091 = vmatpush1.msra.mxu0 0.0
  %4092 = vmatprep.subr.mxu0 0.0
  %4093 = vmatpush1.msra.mxu0 0.0
  %4094 = vmatprep.subr.mxu0 0.0
  %4095 = vmatpush1.msra.mxu0 0.0
  %4096 = vmatprep.subr.mxu0 0.0
  %4097 = vmatpush1.msra.mxu0 0.0
  %4098 = vmatprep.subr.mxu0 0.0
  %4099 = vmatpush1.msra.mxu0 0.0
  %4100 = vmatprep.subr.mxu0 0.0
  %4101 = vmatpush1.msra.mxu0 0.0
  %4102 = vmatprep.subr.mxu0 0.0
  %4103 = vmatpush1.msra.mxu0 0.0
  %4104 = vmatprep.subr.mxu0 0.0
  %4105 = vmatpush1.msra.mxu0 0.0
  %4106 = vmatprep.subr.mxu0 0.0
  %4107 = vmatpush1.msra.mxu0 0.0
  %4108 = vmatprep.subr.mxu0 0.0
  %4109 = vmatpush1.msra.mxu0 0.0
  %4110 = vmatprep.subr.mxu0 0.0
  %4111 = vmatpush1.msra.mxu0 0.0
  %4112 = vmatprep.subr.mxu0 0.0
  %4113 = vmatpush1.msra.mxu0 0.0
  %4114 = vmatprep.subr.mxu0 0.0
  %4115 = vmatpush1.msra.mxu0 0.0
  %4116 = vmatprep.subr.mxu0 0.0
  %4117 = vmatpush1.msra.mxu0 0.0
  %4118 = vmatprep.subr.mxu0 0.0
  %4119 = vmatpush1.msra.mxu0 0.0
  %4120 = vmatprep.subr.mxu0 0.0
  %4121 = vmatpush1.msra.mxu0 0.0
  %4122 = vmatprep.subr.mxu0 0.0
  %4123 = vmatpush1.msra.mxu0 0.0
  %4124 = vmatprep.subr.mxu0 0.0
  %4125 = vmatpush1.msra.mxu0 0.0
  %4126 = vmatprep.mubr.f32.mxu0 0.0
  %4127 = vmatmul.mubr.f32.gmra.mrb[0].mxu0 %v4060
  %v4128 = vpop.f32.mrb[0].mxu0
  %v4129 = vadd.f32 %v1253, %v4128
  %v4130 = vpop.f32.mrb[0].mxu0
  %4131 = vdwg.mxu0
  %v4132 = vsub.f32 %v4129, %v3574
  %v4133 = vsub.f32 %v3982, %v3011
  %4135 = vrot.lane.b32.xlu0 %v4129, 32
  %v4136 = vpop.permute.xlu0 %4135
  %4139 = vrot.lane.b32.xlu0 %v3982, 32
  %v4140 = vpop.permute.xlu0 %4139
  %4143 = vrot.lane.b32.xlu0 %v4132, 64
  %v4144 = vpop.permute.xlu0 %4143
  %4147 = vrot.lane.b32.xlu0 %v4133, 64
  %v4148 = vpop.permute.xlu0 %4147
  %4150 = vrot.lane.b32.xlu0 %v3284, 64
  %v4151 = vpop.permute.xlu0 %4150
  %v4153 = vsel %vm1101, %v3574, %v3011
  %v4154 = vsel %vm523, %v4153, %v4136
  %v4155 = vsel %vm2153, %v4154, %v4140
  %v4156 = vsel %vm2155, %v4155, %v4144
  %v4157 = vsel %vm2157, %v4156, %v4148
  %v4158 = vsel %vm1604, %v4157, %v4151
  %4159 = vmatprep.subr.mxu0 %v2161
  %4160 = vmatpush1.msra.mxu0 %v2160
  %4161 = vmatprep.subr.mxu0 %v2163
  %4162 = vmatpush1.msra.mxu0 %v2162
  %4163 = vmatprep.subr.mxu0 %v2165
  %4164 = vmatpush1.msra.mxu0 %v2164
  %4165 = vmatprep.subr.mxu0 %v2167
  %4166 = vmatpush1.msra.mxu0 %v2166
  %4167 = vmatprep.subr.mxu0 %v2169
  %4168 = vmatpush1.msra.mxu0 %v2168
  %4169 = vmatprep.subr.mxu0 %v2171
  %4170 = vmatpush1.msra.mxu0 %v2170
  %4171 = vmatprep.subr.mxu0 %v2173
  %4172 = vmatpush1.msra.mxu0 %v2172
  %4173 = vmatprep.subr.mxu0 %v2175
  %4174 = vmatpush1.msra.mxu0 %v2174
  %4175 = vmatprep.subr.mxu0 %v2177
  %4176 = vmatpush1.msra.mxu0 %v2176
  %4177 = vmatprep.subr.mxu0 %v2179
  %4178 = vmatpush1.msra.mxu0 %v2178
  %4179 = vmatprep.subr.mxu0 %v2181
  %4180 = vmatpush1.msra.mxu0 %v2180
  %4181 = vmatprep.subr.mxu0 %v2183
  %4182 = vmatpush1.msra.mxu0 %v2182
  %4183 = vmatprep.subr.mxu0 %v2185
  %4184 = vmatpush1.msra.mxu0 %v2184
  %4185 = vmatprep.subr.mxu0 %v2187
  %4186 = vmatpush1.msra.mxu0 %v2186
  %4187 = vmatprep.subr.mxu0 %v2189
  %4188 = vmatpush1.msra.mxu0 %v2188
  %4189 = vmatprep.subr.mxu0 %v2191
  %4190 = vmatpush1.msra.mxu0 %v2190
  %4191 = vmatprep.subr.mxu0 0.0
  %4192 = vmatpush1.msra.mxu0 0.0
  %4193 = vmatprep.subr.mxu0 0.0
  %4194 = vmatpush1.msra.mxu0 0.0
  %4195 = vmatprep.subr.mxu0 0.0
  %4196 = vmatpush1.msra.mxu0 0.0
  %4197 = vmatprep.subr.mxu0 0.0
  %4198 = vmatpush1.msra.mxu0 0.0
  %4199 = vmatprep.subr.mxu0 0.0
  %4200 = vmatpush1.msra.mxu0 0.0
  %4201 = vmatprep.subr.mxu0 0.0
  %4202 = vmatpush1.msra.mxu0 0.0
  %4203 = vmatprep.subr.mxu0 0.0
  %4204 = vmatpush1.msra.mxu0 0.0
  %4205 = vmatprep.subr.mxu0 0.0
  %4206 = vmatpush1.msra.mxu0 0.0
  %4207 = vmatprep.subr.mxu0 0.0
  %4208 = vmatpush1.msra.mxu0 0.0
  %4209 = vmatprep.subr.mxu0 0.0
  %4210 = vmatpush1.msra.mxu0 0.0
  %4211 = vmatprep.subr.mxu0 0.0
  %4212 = vmatpush1.msra.mxu0 0.0
  %4213 = vmatprep.subr.mxu0 0.0
  %4214 = vmatpush1.msra.mxu0 0.0
  %4215 = vmatprep.subr.mxu0 0.0
  %4216 = vmatpush1.msra.mxu0 0.0
  %4217 = vmatprep.subr.mxu0 0.0
  %4218 = vmatpush1.msra.mxu0 0.0
  %4219 = vmatprep.subr.mxu0 0.0
  %4220 = vmatpush1.msra.mxu0 0.0
  %4221 = vmatprep.subr.mxu0 0.0
  %4222 = vmatpush1.msra.mxu0 0.0
  %4223 = vmatprep.mubr.f32.mxu0 0.0
  %4224 = vmatmul.mubr.f32.gmra.mrb[0].mxu0 %v4158
  %v4225 = vpop.f32.mrb[0].mxu0
  %v4226 = vadd.f32 %v2198, %v4225
  %v4227 = vpop.f32.mrb[0].mxu0
  %v4228 = vadd.f32 %v2202, %v4227
  %4229 = vdwg.mxu0
  %v4230 = vadd.f32 %v4226, %v4228
  %v4231 = vxor.u32 %v4230, 2147483648
  %v4232 = vmul.f32 %v4231, 1.442695
  %v4233 = vpow.pop %v4232
  %v4234 = vadd.f32 %v4233, 1.0
  %v4235 = vrcp.pop %v4234
  %v4236 = vmul.f32 1.0, %v4235
  %4238 = vrot.lane.b32.xlu0 %v4228, 64
  %v4239 = vpop.permute.xlu0 %4238
  %v4241 = vmul.f32 %v4236, %v4239
  %4243 = vrot.lane.b32.xlu0 %v4241, 64
  %v4244 = vpop.permute.xlu0 %4243
  %v4246 = vadd.f32 %v4226, %v4244
  %v4247 = vtanh.pop %v4246
  %v4248 = vsub.f32 1.0, %v4236
  %4250 = vrot.lane.b32.xlu0 %v4247, 96
  %v4251 = vpop.permute.xlu0 %4250
  %v4253 = vmul.f32 %v4248, %v4251
  %v4254 = vmul.f32 %v4236, %v3284
  %v4255 = vadd.f32 %v4253, %v4254
  %4257 = vrot.lane.b32.xlu0 %v4255, 96
  %v4258 = vpop.permute.xlu0 %4257
  %v4259 = vsel %vm523, %v4258, 0
  %4261 = vmatprep.subr.mxu0 %v2303
  %4262 = vmatpush1.msra.mxu0 %v2302
  %4263 = vmatprep.subr.mxu0 %v2306
  %4264 = vmatpush1.msra.mxu0 %v2305
  %4265 = vmatprep.subr.mxu0 %v2309
  %4266 = vmatpush1.msra.mxu0 %v2308
  %4267 = vmatprep.subr.mxu0 %v2312
  %4268 = vmatpush1.msra.mxu0 %v2311
  %4269 = vmatprep.subr.mxu0 0.0
  %4270 = vmatpush1.msra.mxu0 0.0
  %4271 = vmatprep.subr.mxu0 0.0
  %4272 = vmatpush1.msra.mxu0 0.0
  %4273 = vmatprep.subr.mxu0 0.0
  %4274 = vmatpush1.msra.mxu0 0.0
  %4275 = vmatprep.subr.mxu0 0.0
  %4276 = vmatpush1.msra.mxu0 0.0
  %4277 = vmatprep.subr.mxu0 0.0
  %4278 = vmatpush1.msra.mxu0 0.0
  %4279 = vmatprep.subr.mxu0 0.0
  %4280 = vmatpush1.msra.mxu0 0.0
  %4281 = vmatprep.subr.mxu0 0.0
  %4282 = vmatpush1.msra.mxu0 0.0
  %4283 = vmatprep.subr.mxu0 0.0
  %4284 = vmatpush1.msra.mxu0 0.0
  %4285 = vmatprep.subr.mxu0 0.0
  %4286 = vmatpush1.msra.mxu0 0.0
  %4287 = vmatprep.subr.mxu0 0.0
  %4288 = vmatpush1.msra.mxu0 0.0
  %4289 = vmatprep.subr.mxu0 0.0
  %4290 = vmatpush1.msra.mxu0 0.0
  %4291 = vmatprep.subr.mxu0 0.0
  %4292 = vmatpush1.msra.mxu0 0.0
  %4293 = vmatprep.subr.mxu0 0.0
  %4294 = vmatpush1.msra.mxu0 0.0
  %4295 = vmatprep.subr.mxu0 0.0
  %4296 = vmatpush1.msra.mxu0 0.0
  %4297 = vmatprep.subr.mxu0 0.0
  %4298 = vmatpush1.msra.mxu0 0.0
  %4299 = vmatprep.subr.mxu0 0.0
  %4300 = vmatpush1.msra.mxu0 0.0
  %4301 = vmatprep.subr.mxu0 0.0
  %4302 = vmatpush1.msra.mxu0 0.0
  %4303 = vmatprep.subr.mxu0 0.0
  %4304 = vmatpush1.msra.mxu0 0.0
  %4305 = vmatprep.subr.mxu0 0.0
  %4306 = vmatpush1.msra.mxu0 0.0
  %4307 = vmatprep.subr.mxu0 0.0
  %4308 = vmatpush1.msra.mxu0 0.0
  %4309 = vmatprep.subr.mxu0 0.0
  %4310 = vmatpush1.msra.mxu0 0.0
  %4311 = vmatprep.subr.mxu0 0.0
  %4312 = vmatpush1.msra.mxu0 0.0
  %4313 = vmatprep.subr.mxu0 0.0
  %4314 = vmatpush1.msra.mxu0 0.0
  %4315 = vmatprep.subr.mxu0 0.0
  %4316 = vmatpush1.msra.mxu0 0.0
  %4317 = vmatprep.subr.mxu0 0.0
  %4318 = vmatpush1.msra.mxu0 0.0
  %4319 = vmatprep.subr.mxu0 0.0
  %4320 = vmatpush1.msra.mxu0 0.0
  %4321 = vmatprep.subr.mxu0 0.0
  %4322 = vmatpush1.msra.mxu0 0.0
  %4323 = vmatprep.subr.mxu0 0.0
  %4324 = vmatpush1.msra.mxu0 0.0
  %4325 = vmatprep.mubr.f32.mxu0 0.0
  %4326 = vmatmul.mubr.f32.gmra.mrb[0].mxu0 %v4259
  %v4327 = vpop.f32.mrb[0].mxu0
  %v4328 = vadd.f32 0.0, %v4327
  %v4329 = vpop.f32.mrb[0].mxu0
  %v4330 = vadd.f32 0.0, %v4329
  %4331 = vdwg.mxu0
  %4332 = vmatprep.subr.mxu0 0.0
  %4333 = vmatpush1.msra.mxu0 %v2304
  %4334 = vmatprep.subr.mxu0 0.0
  %4335 = vmatpush1.msra.mxu0 %v2307
  %4336 = vmatprep.subr.mxu0 0.0
  %4337 = vmatpush1.msra.mxu0 %v2310
  %4338 = vmatprep.subr.mxu0 0.0
  %4339 = vmatpush1.msra.mxu0 %v2313
  %4340 = vmatprep.subr.mxu0 0.0
  %4341 = vmatpush1.msra.mxu0 0.0
  %4342 = vmatprep.subr.mxu0 0.0
  %4343 = vmatpush1.msra.mxu0 0.0
  %4344 = vmatprep.subr.mxu0 0.0
  %4345 = vmatpush1.msra.mxu0 0.0
  %4346 = vmatprep.subr.mxu0 0.0
  %4347 = vmatpush1.msra.mxu0 0.0
  %4348 = vmatprep.subr.mxu0 0.0
  %4349 = vmatpush1.msra.mxu0 0.0
  %4350 = vmatprep.subr.mxu0 0.0
  %4351 = vmatpush1.msra.mxu0 0.0
  %4352 = vmatprep.subr.mxu0 0.0
  %4353 = vmatpush1.msra.mxu0 0.0
  %4354 = vmatprep.subr.mxu0 0.0
  %4355 = vmatpush1.msra.mxu0 0.0
  %4356 = vmatprep.subr.mxu0 0.0
  %4357 = vmatpush1.msra.mxu0 0.0
  %4358 = vmatprep.subr.mxu0 0.0
  %4359 = vmatpush1.msra.mxu0 0.0
  %4360 = vmatprep.subr.mxu0 0.0
  %4361 = vmatpush1.msra.mxu0 0.0
  %4362 = vmatprep.subr.mxu0 0.0
  %4363 = vmatpush1.msra.mxu0 0.0
  %4364 = vmatprep.subr.mxu0 0.0
  %4365 = vmatpush1.msra.mxu0 0.0
  %4366 = vmatprep.subr.mxu0 0.0
  %4367 = vmatpush1.msra.mxu0 0.0
  %4368 = vmatprep.subr.mxu0 0.0
  %4369 = vmatpush1.msra.mxu0 0.0
  %4370 = vmatprep.subr.mxu0 0.0
  %4371 = vmatpush1.msra.mxu0 0.0
  %4372 = vmatprep.subr.mxu0 0.0
  %4373 = vmatpush1.msra.mxu0 0.0
  %4374 = vmatprep.subr.mxu0 0.0
  %4375 = vmatpush1.msra.mxu0 0.0
  %4376 = vmatprep.subr.mxu0 0.0
  %4377 = vmatpush1.msra.mxu0 0.0
  %4378 = vmatprep.subr.mxu0 0.0
  %4379 = vmatpush1.msra.mxu0 0.0
  %4380 = vmatprep.subr.mxu0 0.0
  %4381 = vmatpush1.msra.mxu0 0.0
  %4382 = vmatprep.subr.mxu0 0.0
  %4383 = vmatpush1.msra.mxu0 0.0
  %4384 = vmatprep.subr.mxu0 0.0
  %4385 = vmatpush1.msra.mxu0 0.0
  %4386 = vmatprep.subr.mxu0 0.0
  %4387 = vmatpush1.msra.mxu0 0.0
  %4388 = vmatprep.subr.mxu0 0.0
  %4389 = vmatpush1.msra.mxu0 0.0
  %4390 = vmatprep.subr.mxu0 0.0
  %4391 = vmatpush1.msra.mxu0 0.0
  %4392 = vmatprep.subr.mxu0 0.0
  %4393 = vmatpush1.msra.mxu0 0.0
  %4394 = vmatprep.subr.mxu0 0.0
  %4395 = vmatpush1.msra.mxu0 0.0
  %4396 = vmatprep.mubr.f32.mxu0 0.0
  %4397 = vmatmul.mubr.f32.gmra.mrb[0].mxu0 %v4259
  %v4398 = vpop.f32.mrb[0].mxu0
  %v4399 = vadd.f32 0.0, %v4398
  %v4400 = vpop.f32.mrb[0].mxu0
  %4401 = vdwg.mxu0
  %v4402 = vsel %vm1101, %v4129, 0
  %4404 = vmatprep.subr.mxu0 %v1422
  %4405 = vmatpush1.msra.mxu0 %v1421
  %4406 = vmatprep.subr.mxu0 %v1425
  %4407 = vmatpush1.msra.mxu0 %v1424
  %4408 = vmatprep.subr.mxu0 0.0
  %4409 = vmatpush1.msra.mxu0 0.0
  %4410 = vmatprep.subr.mxu0 0.0
  %4411 = vmatpush1.msra.mxu0 0.0
  %4412 = vmatprep.subr.mxu0 0.0
  %4413 = vmatpush1.msra.mxu0 0.0
  %4414 = vmatprep.subr.mxu0 0.0
  %4415 = vmatpush1.msra.mxu0 0.0
  %4416 = vmatprep.subr.mxu0 0.0
  %4417 = vmatpush1.msra.mxu0 0.0
  %4418 = vmatprep.subr.mxu0 0.0
  %4419 = vmatpush1.msra.mxu0 0.0
  %4420 = vmatprep.subr.mxu0 0.0
  %4421 = vmatpush1.msra.mxu0 0.0
  %4422 = vmatprep.subr.mxu0 0.0
  %4423 = vmatpush1.msra.mxu0 0.0
  %4424 = vmatprep.subr.mxu0 0.0
  %4425 = vmatpush1.msra.mxu0 0.0
  %4426 = vmatprep.subr.mxu0 0.0
  %4427 = vmatpush1.msra.mxu0 0.0
  %4428 = vmatprep.subr.mxu0 0.0
  %4429 = vmatpush1.msra.mxu0 0.0
  %4430 = vmatprep.subr.mxu0 0.0
  %4431 = vmatpush1.msra.mxu0 0.0
  %4432 = vmatprep.subr.mxu0 0.0
  %4433 = vmatpush1.msra.mxu0 0.0
  %4434 = vmatprep.subr.mxu0 0.0
  %4435 = vmatpush1.msra.mxu0 0.0
  %4436 = vmatprep.subr.mxu0 0.0
  %4437 = vmatpush1.msra.mxu0 0.0
  %4438 = vmatprep.subr.mxu0 0.0
  %4439 = vmatpush1.msra.mxu0 0.0
  %4440 = vmatprep.subr.mxu0 0.0
  %4441 = vmatpush1.msra.mxu0 0.0
  %4442 = vmatprep.subr.mxu0 0.0
  %4443 = vmatpush1.msra.mxu0 0.0
  %4444 = vmatprep.subr.mxu0 0.0
  %4445 = vmatpush1.msra.mxu0 0.0
  %4446 = vmatprep.subr.mxu0 0.0
  %4447 = vmatpush1.msra.mxu0 0.0
  %4448 = vmatprep.subr.mxu0 0.0
  %4449 = vmatpush1.msra.mxu0 0.0
  %4450 = vmatprep.subr.mxu0 0.0
  %4451 = vmatpush1.msra.mxu0 0.0
  %4452 = vmatprep.subr.mxu0 0.0
  %4453 = vmatpush1.msra.mxu0 0.0
  %4454 = vmatprep.subr.mxu0 0.0
  %4455 = vmatpush1.msra.mxu0 0.0
  %4456 = vmatprep.subr.mxu0 0.0
  %4457 = vmatpush1.msra.mxu0 0.0
  %4458 = vmatprep.subr.mxu0 0.0
  %4459 = vmatpush1.msra.mxu0 0.0
  %4460 = vmatprep.subr.mxu0 0.0
  %4461 = vmatpush1.msra.mxu0 0.0
  %4462 = vmatprep.subr.mxu0 0.0
  %4463 = vmatpush1.msra.mxu0 0.0
  %4464 = vmatprep.subr.mxu0 0.0
  %4465 = vmatpush1.msra.mxu0 0.0
  %4466 = vmatprep.subr.mxu0 0.0
  %4467 = vmatpush1.msra.mxu0 0.0
  %4468 = vmatprep.mubr.f32.mxu0 0.0
  %4469 = vmatmul.mubr.f32.gmra.mrb[0].mxu0 %v4402
  %v4470 = vpop.f32.mrb[0].mxu0
  %v4471 = vadd.f32 %v4328, %v4470
  %v4472 = vpop.f32.mrb[0].mxu0
  %v4473 = vadd.f32 %v4330, %v4472
  %4474 = vdwg.mxu0
  %4475 = vmatprep.subr.mxu0 0.0
  %4476 = vmatpush1.msra.mxu0 %v1423
  %4477 = vmatprep.subr.mxu0 0.0
  %4478 = vmatpush1.msra.mxu0 %v1426
  %4479 = vmatprep.subr.mxu0 0.0
  %4480 = vmatpush1.msra.mxu0 0.0
  %4481 = vmatprep.subr.mxu0 0.0
  %4482 = vmatpush1.msra.mxu0 0.0
  %4483 = vmatprep.subr.mxu0 0.0
  %4484 = vmatpush1.msra.mxu0 0.0
  %4485 = vmatprep.subr.mxu0 0.0
  %4486 = vmatpush1.msra.mxu0 0.0
  %4487 = vmatprep.subr.mxu0 0.0
  %4488 = vmatpush1.msra.mxu0 0.0
  %4489 = vmatprep.subr.mxu0 0.0
  %4490 = vmatpush1.msra.mxu0 0.0
  %4491 = vmatprep.subr.mxu0 0.0
  %4492 = vmatpush1.msra.mxu0 0.0
  %4493 = vmatprep.subr.mxu0 0.0
  %4494 = vmatpush1.msra.mxu0 0.0
  %4495 = vmatprep.subr.mxu0 0.0
  %4496 = vmatpush1.msra.mxu0 0.0
  %4497 = vmatprep.subr.mxu0 0.0
  %4498 = vmatpush1.msra.mxu0 0.0
  %4499 = vmatprep.subr.mxu0 0.0
  %4500 = vmatpush1.msra.mxu0 0.0
  %4501 = vmatprep.subr.mxu0 0.0
  %4502 = vmatpush1.msra.mxu0 0.0
  %4503 = vmatprep.subr.mxu0 0.0
  %4504 = vmatpush1.msra.mxu0 0.0
  %4505 = vmatprep.subr.mxu0 0.0
  %4506 = vmatpush1.msra.mxu0 0.0
  %4507 = vmatprep.subr.mxu0 0.0
  %4508 = vmatpush1.msra.mxu0 0.0
  %4509 = vmatprep.subr.mxu0 0.0
  %4510 = vmatpush1.msra.mxu0 0.0
  %4511 = vmatprep.subr.mxu0 0.0
  %4512 = vmatpush1.msra.mxu0 0.0
  %4513 = vmatprep.subr.mxu0 0.0
  %4514 = vmatpush1.msra.mxu0 0.0
  %4515 = vmatprep.subr.mxu0 0.0
  %4516 = vmatpush1.msra.mxu0 0.0
  %4517 = vmatprep.subr.mxu0 0.0
  %4518 = vmatpush1.msra.mxu0 0.0
  %4519 = vmatprep.subr.mxu0 0.0
  %4520 = vmatpush1.msra.mxu0 0.0
  %4521 = vmatprep.subr.mxu0 0.0
  %4522 = vmatpush1.msra.mxu0 0.0
  %4523 = vmatprep.subr.mxu0 0.0
  %4524 = vmatpush1.msra.mxu0 0.0
  %4525 = vmatprep.subr.mxu0 0.0
  %4526 = vmatpush1.msra.mxu0 0.0
  %4527 = vmatprep.subr.mxu0 0.0
  %4528 = vmatpush1.msra.mxu0 0.0
  %4529 = vmatprep.subr.mxu0 0.0
  %4530 = vmatpush1.msra.mxu0 0.0
  %4531 = vmatprep.subr.mxu0 0.0
  %4532 = vmatpush1.msra.mxu0 0.0
  %4533 = vmatprep.subr.mxu0 0.0
  %4534 = vmatpush1.msra.mxu0 0.0
  %4535 = vmatprep.subr.mxu0 0.0
  %4536 = vmatpush1.msra.mxu0 0.0
  %4537 = vmatprep.subr.mxu0 0.0
  %4538 = vmatpush1.msra.mxu0 0.0
  %4539 = vmatprep.mubr.f32.mxu0 0.0
  %4540 = vmatmul.mubr.f32.gmra.mrb[0].mxu0 %v4402
  %v4541 = vpop.f32.mrb[0].mxu0
  %v4542 = vadd.f32 %v4399, %v4541
  %v4543 = vpop.f32.mrb[0].mxu0
  %4544 = vdwg.mxu0
  %v4545 = vadd.f32 %v4471, %v1418
  %v4546 = vadd.f32 %v4473, %v1419
  %v4547 = vadd.f32 %v4542, %v1420
  %v4548 = vadd.f32 %v3577, %v4056
  %v4549 = vsub.f32 %v4545, %v3574
  %v4550 = vmul.f32 %v4549, %v4549
  %v4551 = vsel %vm1101, %v4550, 0.0
  %4552 = vadd.xlane.f32.xlu0 %v4551
  %v4553 = vpop.xlane.xlu0 %4552
  %v4554 = vrsqrt.pop %v4553
  %v4555 = vmul.f32 %v4553, %v4554
  %vm4556 = vcmp.eq.f32.partialorder %v4553, inf
  %v4557 = vsel %vm4556, %v4553, %v4555
  %vm4558 = vcmp.eq.f32.partialorder %v4553, 0.0
  %v4559 = vand.u32 %v4553, 2147483648
  %v4560 = vsel %vm4558, %v4559, %v4557
  %v4561 = vmul.f32 %v4133, %v4133
  %4563 = vrot.lane.b32.xlu0 %v4561, 112
  %v4564 = vpop.permute.xlu0 %4563
  %v4566 = vsel %vm881, %v4564, 0.0
  %4567 = vadd.xlane.f32.xlu0 %v4566
  %v4568 = vpop.xlane.xlu0 %4567
  %v4569 = vrsqrt.pop %v4568
  %v4570 = vmul.f32 %v4568, %v4569
  %vm4571 = vcmp.eq.f32.partialorder %v4568, inf
  %v4572 = vsel %vm4571, %v4568, %v4570
  %vm4573 = vcmp.eq.f32.partialorder %v4568, 0.0
  %v4574 = vand.u32 %v4568, 2147483648
  %v4575 = vsel %vm4573, %v4574, %v4572
  %v4576 = vadd.f32 %v4560, %v4575
  %4577 = vrot.lane.b32.xlu0 %v4561, 104
  %v4578 = vpop.permute.xlu0 %4577
  %v4580 = vsel %vm881, %v4578, 0.0
  %4581 = vadd.xlane.f32.xlu0 %v4580
  %v4582 = vpop.xlane.xlu0 %4581
  %v4583 = vrsqrt.pop %v4582
  %v4584 = vmul.f32 %v4582, %v4583
  %vm4585 = vcmp.eq.f32.partialorder %v4582, inf
  %v4586 = vsel %vm4585, %v4582, %v4584
  %vm4587 = vcmp.eq.f32.partialorder %v4582, 0.0
  %v4588 = vand.u32 %v4582, 2147483648
  %v4589 = vsel %vm4587, %v4588, %v4586
  %v4590 = vadd.f32 %v4576, %v4589
  %v4591 = vadd.f32 %v3620, %v4590
  %v4592 = vsub.f32 %v4546, %v1049
  %v4593 = vsub.f32 %v4547, %v1050
  %v4594 = vmul.f32 %v4592, %v1052
  %v4595 = vmul.f32 %v4593, %v1051
  %v4596 = vmul.f32 %v4594, %v4594
  %v4597 = vmul.f32 %v4595, %v4595
  %v4598 = vadd.f32 %v4596, %v4597
  %v4599 = vadd.f32 %v4598, 1e-20
  %v4600 = vrsqrt.pop %v4599
  %v4601 = vmul.f32 %v4594, %v4600
  %v4602 = vmul.f32 %v4595, %v4600
  %v4603 = vmul.f32 %v1053, %v4601
  %v4604 = vmul.f32 %v4603, %v4601
  %v4605 = vmul.f32 %v1054, %v4602
  %v4606 = vmul.f32 %v4605, %v4602
  %v4607 = vadd.f32 %v4604, %v4606
  %v4608 = vmul.f32 %v1051, %v4592
  %v4609 = vmul.f32 %v4608, %v4601
  %v4610 = vmul.f32 %v1052, %v4593
  %v4611 = vmul.f32 %v4610, %v4602
  %v4612 = vadd.f32 %v4609, %v4611
  %v4613 = vrcp.pop %v4607
  %v4614 = vmul.f32 %v4612, %v4613
  %v4615 = vmax.f32 %v4614, 1.0
  %v4616 = vmul.f32 %v4615, %v4601
  %v4617 = vmul.f32 %v1051, %v4616
  %v4618 = vmul.f32 %v4615, %v4602
  %v4619 = vmul.f32 %v1052, %v4618
  %v4620 = vsub.f32 %v4592, %v4617
  %v4621 = vsub.f32 %v4593, %v4619
  %v4622 = vmul.f32 %v4620, %v4620
  %v4623 = vmul.f32 %v4621, %v4621
  %v4624 = vadd.f32 %v4622, %v4623
  %v4625 = vsel %vm1604, %v4624, 0.0
  %4626 = vadd.xlane.f32.xlu0 %v4625
  %v4627 = vpop.xlane.xlu0 %4626
  %v4628 = vmul.f32 %v4545, %v4545
  %4630 = vrot.lane.b32.xlu0 %v4628, 96
  %v4631 = vpop.permute.xlu0 %4630
  %v4633 = vadd.f32 %v4628, %v4631
  %v4634 = vadd.f32 %v4633, 1e-20
  %v4635 = vrsqrt.pop %v4634
  %v4636 = vmul.f32 %v4545, %v4635
  %4638 = vrot.lane.b32.xlu0 %v4635, 32
  %v4639 = vpop.permute.xlu0 %4638
  %v4641 = vmul.f32 %v4545, %v4639
  %vm4642 = vcmp.gt.f32.partialorder %v4545, 0.0
  %v4643 = vand.u32 2147483647, %v4545
  %v4644 = vmul.f32 %v4545, 0.4346312
  %4646 = vrot.lane.b32.xlu0 %v4644, 32
  %v4647 = vpop.permute.xlu0 %4646
  %vm4649 = vcmp.le.f32.partialorder %v4643, %v4647
  %v4650 = vsel %vm4649, 1, 0
  %4651 = vrot.lane.b32.xlu0 %v4650, 96
  %v4652 = vpop.permute.xlu0 %4651
  %vm4653 = vcmp.ne.s32.totalorder %v4652, 0
  %vm4654 = vmand %vm4642, %vm4653
  %vm4655 = vcmp.ge.f32.partialorder %v4545, 0.0
  %v4656 = vsel %vm4655, 1.0, -1.0
  %v4657 = vsel %vm4654, %v4636, 0.9171208
  %v4658 = vmul.f32 %v4656, 0.39860934
  %4660 = vrot.lane.b32.xlu0 %v4641, 96
  %v4661 = vpop.permute.xlu0 %4660
  %4664 = vrot.lane.b32.xlu0 %v4658, 96
  %v4665 = vpop.permute.xlu0 %4664
  %v4667 = vsel %vm4654, %v4661, %v4665
  %v4668 = vmul.f32 %v4545, %v4657
  %4670 = vrot.lane.b32.xlu0 %v4667, 32
  %v4671 = vpop.permute.xlu0 %4670
  %v4673 = vmul.f32 %v4545, %v4671
  %4675 = vrot.lane.b32.xlu0 %v4673, 96
  %v4676 = vpop.permute.xlu0 %4675
  %v4678 = vadd.f32 %v4668, %v4676
  %v4679 = vmax.f32 %v4678, 0.001
  %v4680 = vmin.f32 %v4679, 18.0
  %v4681 = vmul.f32 %v4680, %v4657
  %v4682 = vmul.f32 %v4680, %v4667
  %v4683 = vsub.f32 %v4545, %v4681
  %4685 = vrot.lane.b32.xlu0 %v4682, 32
  %v4686 = vpop.permute.xlu0 %4685
  %v4688 = vsub.f32 %v4545, %v4686
  %v4689 = vadd.f32 %v4545, 0.0001
  %v4690 = vmul.f32 %v4689, %v4689
  %4692 = vrot.lane.b32.xlu0 %v4690, 96
  %v4693 = vpop.permute.xlu0 %4692
  %v4695 = vadd.f32 %v4690, %v4693
  %v4696 = vadd.f32 %v4695, 1e-20
  %v4697 = vrsqrt.pop %v4696
  %v4698 = vmul.f32 %v4689, %v4697
  %4700 = vrot.lane.b32.xlu0 %v4697, 32
  %v4701 = vpop.permute.xlu0 %4700
  %v4703 = vmul.f32 %v4689, %v4701
  %v4704 = vmul.f32 %v4545, %v4698
  %v4705 = vmul.f32 %v4545, %v4703
  %4707 = vrot.lane.b32.xlu0 %v4705, 96
  %v4708 = vpop.permute.xlu0 %4707
  %v4710 = vadd.f32 %v4704, %v4708
  %v4711 = vmax.f32 %v4710, 0.0
  %v4712 = vmin.f32 %v4711, 6.0
  %v4713 = vmul.f32 %v4712, %v4698
  %4715 = vrot.lane.b32.xlu0 %v4703, 96
  %v4716 = vpop.permute.xlu0 %4715
  %v4718 = vmul.f32 %v4712, %v4716
  %v4719 = vsub.f32 %v4545, %v4713
  %4721 = vrot.lane.b32.xlu0 %v4718, 32
  %v4722 = vpop.permute.xlu0 %4721
  %v4724 = vsub.f32 %v4545, %v4722
  %v4725 = vsub.f32 %v4545, %v1707
  %v4726 = vmax.f32 %v4725, 0.0
  %v4727 = vsub.f32 %v1713, %v4545
  %v4728 = vmax.f32 %v4727, 0.0
  %v4729 = vmin.f32 %v4545, %v1707
  %v4730 = vmax.f32 %v4545, %v1713
  %v4731 = vsub.f32 0.0, %v4730
  %4733 = vrot.lane.b32.xlu0 %v4719, 96
  %v4734 = vpop.permute.xlu0 %4733
  %4737 = vrot.lane.b32.xlu0 %v4620, 32
  %v4738 = vpop.permute.xlu0 %4737
  %4741 = vrot.lane.b32.xlu0 %v4724, 64
  %v4742 = vpop.permute.xlu0 %4741
  %4745 = vrot.lane.b32.xlu0 %v4688, 96
  %v4746 = vpop.permute.xlu0 %4745
  %4749 = vrot.lane.b32.xlu0 %v4621, 32
  %v4750 = vpop.permute.xlu0 %4749
  %4753 = vrot.lane.b32.xlu0 %v4726, 48
  %v4754 = vpop.permute.xlu0 %4753
  %4757 = vrot.lane.b32.xlu0 %v4728, 64
  %v4758 = vpop.permute.xlu0 %4757
  %v4760 = vsel %vm1101, %v4734, %v4683
  %v4761 = vsel %vm523, %v4760, %v4738
  %v4762 = vsel %vm1101, %v4742, %v4746
  %v4763 = vsel %vm523, %v4762, %v4750
  %v4764 = vsel %vm1101, %v4754, %v4758
  %4766 = vrot.lane.b32.xlu0 %v4713, 96
  %v4767 = vpop.permute.xlu0 %4766
  %4770 = vrot.lane.b32.xlu0 %v4617, 32
  %v4771 = vpop.permute.xlu0 %4770
  %4773 = vrot.lane.b32.xlu0 %v4718, 96
  %v4774 = vpop.permute.xlu0 %4773
  %4777 = vrot.lane.b32.xlu0 %v4619, 32
  %v4778 = vpop.permute.xlu0 %4777
  %4781 = vrot.lane.b32.xlu0 %v4729, 48
  %v4782 = vpop.permute.xlu0 %4781
  %4785 = vrot.lane.b32.xlu0 %v4731, 64
  %v4786 = vpop.permute.xlu0 %4785
  %v4788 = vsel %vm1101, %v4767, %v4681
  %v4789 = vsel %vm523, %v4788, %v4771
  %v4790 = vsel %vm1101, %v4774, %v4682
  %v4791 = vsel %vm523, %v4790, %v4778
  %v4792 = vsel %vm1101, %v4782, %v4786
  %v4794 = vsel %vm523, %v4764, 0
  %v4797 = vsel %vm523, %v4792, 0
  %4799 = vmatprep.subr.mxu0 0.0
  %4800 = vmatpush1.msra.mxu0 %v1781
  %4801 = vmatprep.subr.mxu0 0.0
  %4802 = vmatpush1.msra.mxu0 %v1782
  %4803 = vmatprep.subr.mxu0 0.0
  %4804 = vmatpush1.msra.mxu0 %v1783
  %4805 = vmatprep.subr.mxu0 0.0
  %4806 = vmatpush1.msra.mxu0 %v1784
  %4807 = vmatprep.subr.mxu0 0.0
  %4808 = vmatpush1.msra.mxu0 %v1785
  %4809 = vmatprep.subr.mxu0 0.0
  %4810 = vmatpush1.msra.mxu0 %v1786
  %4811 = vmatprep.subr.mxu0 0.0
  %4812 = vmatpush1.msra.mxu0 %v1787
  %4813 = vmatprep.subr.mxu0 0.0
  %4814 = vmatpush1.msra.mxu0 %v1788
  %4815 = vmatprep.subr.mxu0 0.0
  %4816 = vmatpush1.msra.mxu0 %v1789
  %4817 = vmatprep.subr.mxu0 0.0
  %4818 = vmatpush1.msra.mxu0 %v1790
  %4819 = vmatprep.subr.mxu0 0.0
  %4820 = vmatpush1.msra.mxu0 %v1791
  %4821 = vmatprep.subr.mxu0 0.0
  %4822 = vmatpush1.msra.mxu0 %v1792
  %4823 = vmatprep.subr.mxu0 0.0
  %4824 = vmatpush1.msra.mxu0 %v1793
  %4825 = vmatprep.subr.mxu0 0.0
  %4826 = vmatpush1.msra.mxu0 %v1794
  %4827 = vmatprep.subr.mxu0 0.0
  %4828 = vmatpush1.msra.mxu0 %v1795
  %4829 = vmatprep.subr.mxu0 0.0
  %4830 = vmatpush1.msra.mxu0 %v1796
  %4831 = vmatprep.subr.mxu0 0.0
  %4832 = vmatpush1.msra.mxu0 %v1797
  %4833 = vmatprep.subr.mxu0 0.0
  %4834 = vmatpush1.msra.mxu0 %v1798
  %4835 = vmatprep.subr.mxu0 0.0
  %4836 = vmatpush1.msra.mxu0 %v1799
  %4837 = vmatprep.subr.mxu0 0.0
  %4838 = vmatpush1.msra.mxu0 %v1800
  %4839 = vmatprep.subr.mxu0 0.0
  %4840 = vmatpush1.msra.mxu0 %v1801
  %4841 = vmatprep.subr.mxu0 0.0
  %4842 = vmatpush1.msra.mxu0 %v1802
  %4843 = vmatprep.subr.mxu0 0.0
  %4844 = vmatpush1.msra.mxu0 %v1803
  %4845 = vmatprep.subr.mxu0 0.0
  %4846 = vmatpush1.msra.mxu0 %v1804
  %4847 = vmatprep.subr.mxu0 0.0
  %4848 = vmatpush1.msra.mxu0 %v1805
  %4849 = vmatprep.subr.mxu0 0.0
  %4850 = vmatpush1.msra.mxu0 %v1806
  %4851 = vmatprep.subr.mxu0 0.0
  %4852 = vmatpush1.msra.mxu0 %v1807
  %4853 = vmatprep.subr.mxu0 0.0
  %4854 = vmatpush1.msra.mxu0 %v1808
  %4855 = vmatprep.subr.mxu0 0.0
  %4856 = vmatpush1.msra.mxu0 %v1809
  %4857 = vmatprep.subr.mxu0 0.0
  %4858 = vmatpush1.msra.mxu0 %v1810
  %4859 = vmatprep.subr.mxu0 0.0
  %4860 = vmatpush1.msra.mxu0 %v1811
  %4861 = vmatprep.subr.mxu0 0.0
  %4862 = vmatpush1.msra.mxu0 %v1812
  %4863 = vmatprep.mubr.f32.mxu0 %v4763
  %4864 = vmatmul.mubr.f32.gmra.mrb[0].mxu0 %v4761
  %v4865 = vpop.f32.mrb[0].mxu0
  %v4866 = vadd.f32 0.0, %v4865
  %v4867 = vpop.f32.mrb[0].mxu0
  %4868 = vmatprep.mubr.f32.mxu0 %v4791
  %4869 = vmatmul.mubr.f32.gmra.mrb[0].mxu0 %v4789
  %v4870 = vpop.f32.mrb[0].mxu0
  %v4871 = vadd.f32 0.0, %v4870
  %v4872 = vpop.f32.mrb[0].mxu0
  %4873 = vdwg.mxu0
  %4874 = vmatprep.subr.mxu0 0.0
  %4875 = vmatpush1.msra.mxu0 %v1813
  %4876 = vmatprep.subr.mxu0 0.0
  %4877 = vmatpush1.msra.mxu0 %v1814
  %4878 = vmatprep.subr.mxu0 0.0
  %4879 = vmatpush1.msra.mxu0 %v1815
  %4880 = vmatprep.subr.mxu0 0.0
  %4881 = vmatpush1.msra.mxu0 %v1816
  %4882 = vmatprep.subr.mxu0 0.0
  %4883 = vmatpush1.msra.mxu0 0.0
  %4884 = vmatprep.subr.mxu0 0.0
  %4885 = vmatpush1.msra.mxu0 0.0
  %4886 = vmatprep.subr.mxu0 0.0
  %4887 = vmatpush1.msra.mxu0 0.0
  %4888 = vmatprep.subr.mxu0 0.0
  %4889 = vmatpush1.msra.mxu0 0.0
  %4890 = vmatprep.subr.mxu0 0.0
  %4891 = vmatpush1.msra.mxu0 0.0
  %4892 = vmatprep.subr.mxu0 0.0
  %4893 = vmatpush1.msra.mxu0 0.0
  %4894 = vmatprep.subr.mxu0 0.0
  %4895 = vmatpush1.msra.mxu0 0.0
  %4896 = vmatprep.subr.mxu0 0.0
  %4897 = vmatpush1.msra.mxu0 0.0
  %4898 = vmatprep.subr.mxu0 0.0
  %4899 = vmatpush1.msra.mxu0 0.0
  %4900 = vmatprep.subr.mxu0 0.0
  %4901 = vmatpush1.msra.mxu0 0.0
  %4902 = vmatprep.subr.mxu0 0.0
  %4903 = vmatpush1.msra.mxu0 0.0
  %4904 = vmatprep.subr.mxu0 0.0
  %4905 = vmatpush1.msra.mxu0 0.0
  %4906 = vmatprep.subr.mxu0 0.0
  %4907 = vmatpush1.msra.mxu0 0.0
  %4908 = vmatprep.subr.mxu0 0.0
  %4909 = vmatpush1.msra.mxu0 0.0
  %4910 = vmatprep.subr.mxu0 0.0
  %4911 = vmatpush1.msra.mxu0 0.0
  %4912 = vmatprep.subr.mxu0 0.0
  %4913 = vmatpush1.msra.mxu0 0.0
  %4914 = vmatprep.subr.mxu0 0.0
  %4915 = vmatpush1.msra.mxu0 0.0
  %4916 = vmatprep.subr.mxu0 0.0
  %4917 = vmatpush1.msra.mxu0 0.0
  %4918 = vmatprep.subr.mxu0 0.0
  %4919 = vmatpush1.msra.mxu0 0.0
  %4920 = vmatprep.subr.mxu0 0.0
  %4921 = vmatpush1.msra.mxu0 0.0
  %4922 = vmatprep.subr.mxu0 0.0
  %4923 = vmatpush1.msra.mxu0 0.0
  %4924 = vmatprep.subr.mxu0 0.0
  %4925 = vmatpush1.msra.mxu0 0.0
  %4926 = vmatprep.subr.mxu0 0.0
  %4927 = vmatpush1.msra.mxu0 0.0
  %4928 = vmatprep.subr.mxu0 0.0
  %4929 = vmatpush1.msra.mxu0 0.0
  %4930 = vmatprep.subr.mxu0 0.0
  %4931 = vmatpush1.msra.mxu0 0.0
  %4932 = vmatprep.subr.mxu0 0.0
  %4933 = vmatpush1.msra.mxu0 0.0
  %4934 = vmatprep.subr.mxu0 0.0
  %4935 = vmatpush1.msra.mxu0 0.0
  %4936 = vmatprep.subr.mxu0 0.0
  %4937 = vmatpush1.msra.mxu0 0.0
  %4938 = vmatprep.mubr.f32.mxu0 0.0
  %4939 = vmatmul.mubr.f32.gmra.mrb[0].mxu0 %v4794
  %v4940 = vpop.f32.mrb[0].mxu0
  %v4941 = vadd.f32 %v4866, %v4940
  %v4942 = vpop.f32.mrb[0].mxu0
  %4943 = vmatprep.mubr.f32.mxu0 0.0
  %4944 = vmatmul.mubr.f32.gmra.mrb[0].mxu0 %v4797
  %v4945 = vpop.f32.mrb[0].mxu0
  %v4946 = vadd.f32 %v4871, %v4945
  %v4947 = vpop.f32.mrb[0].mxu0
  %4948 = vdwg.mxu0
  %4950 = vrot.lane.b32.xlu0 %v4941, 16
  %v4951 = vpop.permute.xlu0 %4950
  %v4953 = vsub.f32 %v3982, %v4951
  %4955 = vrot.lane.b32.xlu0 %v4946, 16
  %v4956 = vpop.permute.xlu0 %4955
  %v4958 = vadd.f32 %v4953, %v4956
  %v4959 = vmul.f32 %v4719, %v4719
  %v4960 = vmul.f32 %v4724, %v4724
  %4962 = vrot.lane.b32.xlu0 %v4960, 96
  %v4963 = vpop.permute.xlu0 %4962
  %v4965 = vadd.f32 %v4959, %v4963
  %4967 = vrot.lane.b32.xlu0 %v4965, 96
  %v4968 = vpop.permute.xlu0 %4967
  %v4970 = vsel %vm1101, %v4968, 0.0
  %4971 = vadd.xlane.f32.xlu0 %v4970
  %v4972 = vpop.xlane.xlu0 %4971
  %v4973 = vrsqrt.pop %v4972
  %v4974 = vmul.f32 %v4972, %v4973
  %vm4975 = vcmp.eq.f32.partialorder %v4972, inf
  %v4976 = vsel %vm4975, %v4972, %v4974
  %vm4977 = vcmp.eq.f32.partialorder %v4972, 0.0
  %v4978 = vand.u32 %v4972, 2147483648
  %v4979 = vsel %vm4977, %v4978, %v4976
  %v4980 = vmul.f32 %v4683, %v4683
  %v4981 = vmul.f32 %v4688, %v4688
  %4983 = vrot.lane.b32.xlu0 %v4981, 96
  %v4984 = vpop.permute.xlu0 %4983
  %v4986 = vadd.f32 %v4980, %v4984
  %4988 = vrot.lane.b32.xlu0 %v4986, 112
  %v4989 = vpop.permute.xlu0 %4988
  %v4991 = vsel %vm1101, %v4989, 0.0
  %4992 = vadd.xlane.f32.xlu0 %v4991
  %v4993 = vpop.xlane.xlu0 %4992
  %v4994 = vrsqrt.pop %v4993
  %v4995 = vmul.f32 %v4993, %v4994
  %vm4996 = vcmp.eq.f32.partialorder %v4993, inf
  %v4997 = vsel %vm4996, %v4993, %v4995
  %vm4998 = vcmp.eq.f32.partialorder %v4993, 0.0
  %v4999 = vand.u32 %v4993, 2147483648
  %v5000 = vsel %vm4998, %v4999, %v4997
  %v5001 = vadd.f32 %v4979, %v5000
  %v5002 = vrsqrt.pop %v4627
  %v5003 = vmul.f32 %v4627, %v5002
  %vm5004 = vcmp.eq.f32.partialorder %v4627, inf
  %v5005 = vsel %vm5004, %v4627, %v5003
  %vm5006 = vcmp.eq.f32.partialorder %v4627, 0.0
  %v5007 = vand.u32 %v4627, 2147483648
  %v5008 = vsel %vm5006, %v5007, %v5005
  %v5009 = vadd.f32 %v5001, %v5008
  %v5010 = vmul.f32 %v4726, %v4726
  %v5011 = vmul.f32 %v4728, %v4728
  %v5012 = vadd.f32 %v5010, %v5011
  %5014 = vrot.lane.b32.xlu0 %v5012, 48
  %v5015 = vpop.permute.xlu0 %5014
  %v5017 = vsel %vm1101, %v5015, 0.0
  %5018 = vadd.xlane.f32.xlu0 %v5017
  %v5019 = vpop.xlane.xlu0 %5018
  %v5020 = vrsqrt.pop %v5019
  %v5021 = vmul.f32 %v5019, %v5020
  %vm5022 = vcmp.eq.f32.partialorder %v5019, inf
  %v5023 = vsel %vm5022, %v5019, %v5021
  %vm5024 = vcmp.eq.f32.partialorder %v5019, 0.0
  %v5025 = vand.u32 %v5019, 2147483648
  %v5026 = vsel %vm5024, %v5025, %v5023
  %v5027 = vadd.f32 %v5009, %v5026
  %5029 = vrot.lane.b32.xlu0 %v4958, 112
  %v5030 = vpop.permute.xlu0 %5029
  %v5031 = vsel %vm1101, %v5030, 0
  %5033 = vmatprep.subr.mxu0 0.0
  %5034 = vmatpush1.msra.mxu0 %v2052
  %5035 = vmatprep.subr.mxu0 0.0
  %5036 = vmatpush1.msra.mxu0 %v2053
  %5037 = vmatprep.subr.mxu0 0.0
  %5038 = vmatpush1.msra.mxu0 0.0
  %5039 = vmatprep.subr.mxu0 0.0
  %5040 = vmatpush1.msra.mxu0 0.0
  %5041 = vmatprep.subr.mxu0 0.0
  %5042 = vmatpush1.msra.mxu0 0.0
  %5043 = vmatprep.subr.mxu0 0.0
  %5044 = vmatpush1.msra.mxu0 0.0
  %5045 = vmatprep.subr.mxu0 0.0
  %5046 = vmatpush1.msra.mxu0 0.0
  %5047 = vmatprep.subr.mxu0 0.0
  %5048 = vmatpush1.msra.mxu0 0.0
  %5049 = vmatprep.subr.mxu0 0.0
  %5050 = vmatpush1.msra.mxu0 0.0
  %5051 = vmatprep.subr.mxu0 0.0
  %5052 = vmatpush1.msra.mxu0 0.0
  %5053 = vmatprep.subr.mxu0 0.0
  %5054 = vmatpush1.msra.mxu0 0.0
  %5055 = vmatprep.subr.mxu0 0.0
  %5056 = vmatpush1.msra.mxu0 0.0
  %5057 = vmatprep.subr.mxu0 0.0
  %5058 = vmatpush1.msra.mxu0 0.0
  %5059 = vmatprep.subr.mxu0 0.0
  %5060 = vmatpush1.msra.mxu0 0.0
  %5061 = vmatprep.subr.mxu0 0.0
  %5062 = vmatpush1.msra.mxu0 0.0
  %5063 = vmatprep.subr.mxu0 0.0
  %5064 = vmatpush1.msra.mxu0 0.0
  %5065 = vmatprep.subr.mxu0 0.0
  %5066 = vmatpush1.msra.mxu0 0.0
  %5067 = vmatprep.subr.mxu0 0.0
  %5068 = vmatpush1.msra.mxu0 0.0
  %5069 = vmatprep.subr.mxu0 0.0
  %5070 = vmatpush1.msra.mxu0 0.0
  %5071 = vmatprep.subr.mxu0 0.0
  %5072 = vmatpush1.msra.mxu0 0.0
  %5073 = vmatprep.subr.mxu0 0.0
  %5074 = vmatpush1.msra.mxu0 0.0
  %5075 = vmatprep.subr.mxu0 0.0
  %5076 = vmatpush1.msra.mxu0 0.0
  %5077 = vmatprep.subr.mxu0 0.0
  %5078 = vmatpush1.msra.mxu0 0.0
  %5079 = vmatprep.subr.mxu0 0.0
  %5080 = vmatpush1.msra.mxu0 0.0
  %5081 = vmatprep.subr.mxu0 0.0
  %5082 = vmatpush1.msra.mxu0 0.0
  %5083 = vmatprep.subr.mxu0 0.0
  %5084 = vmatpush1.msra.mxu0 0.0
  %5085 = vmatprep.subr.mxu0 0.0
  %5086 = vmatpush1.msra.mxu0 0.0
  %5087 = vmatprep.subr.mxu0 0.0
  %5088 = vmatpush1.msra.mxu0 0.0
  %5089 = vmatprep.subr.mxu0 0.0
  %5090 = vmatpush1.msra.mxu0 0.0
  %5091 = vmatprep.subr.mxu0 0.0
  %5092 = vmatpush1.msra.mxu0 0.0
  %5093 = vmatprep.subr.mxu0 0.0
  %5094 = vmatpush1.msra.mxu0 0.0
  %5095 = vmatprep.subr.mxu0 0.0
  %5096 = vmatpush1.msra.mxu0 0.0
  %5097 = vmatprep.mubr.f32.mxu0 0.0
  %5098 = vmatmul.mubr.f32.gmra.mrb[0].mxu0 %v5031
  %v5099 = vpop.f32.mrb[0].mxu0
  %v5100 = vadd.f32 %v1253, %v5099
  %v5101 = vpop.f32.mrb[0].mxu0
  %5102 = vdwg.mxu0
  %v5103 = vsub.f32 %v5100, %v4545
  %v5104 = vsub.f32 %v4953, %v3982
  %5106 = vrot.lane.b32.xlu0 %v5100, 32
  %v5107 = vpop.permute.xlu0 %5106
  %5110 = vrot.lane.b32.xlu0 %v4953, 32
  %v5111 = vpop.permute.xlu0 %5110
  %5114 = vrot.lane.b32.xlu0 %v5103, 64
  %v5115 = vpop.permute.xlu0 %5114
  %5118 = vrot.lane.b32.xlu0 %v5104, 64
  %v5119 = vpop.permute.xlu0 %5118
  %5121 = vrot.lane.b32.xlu0 %v4255, 64
  %v5122 = vpop.permute.xlu0 %5121
  %v5124 = vsel %vm1101, %v4545, %v3982
  %v5125 = vsel %vm523, %v5124, %v5107
  %v5126 = vsel %vm2153, %v5125, %v5111
  %v5127 = vsel %vm2155, %v5126, %v5115
  %v5128 = vsel %vm2157, %v5127, %v5119
  %v5129 = vsel %vm1604, %v5128, %v5122
  %5130 = vmatprep.subr.mxu0 %v2161
  %5131 = vmatpush1.msra.mxu0 %v2160
  %5132 = vmatprep.subr.mxu0 %v2163
  %5133 = vmatpush1.msra.mxu0 %v2162
  %5134 = vmatprep.subr.mxu0 %v2165
  %5135 = vmatpush1.msra.mxu0 %v2164
  %5136 = vmatprep.subr.mxu0 %v2167
  %5137 = vmatpush1.msra.mxu0 %v2166
  %5138 = vmatprep.subr.mxu0 %v2169
  %5139 = vmatpush1.msra.mxu0 %v2168
  %5140 = vmatprep.subr.mxu0 %v2171
  %5141 = vmatpush1.msra.mxu0 %v2170
  %5142 = vmatprep.subr.mxu0 %v2173
  %5143 = vmatpush1.msra.mxu0 %v2172
  %5144 = vmatprep.subr.mxu0 %v2175
  %5145 = vmatpush1.msra.mxu0 %v2174
  %5146 = vmatprep.subr.mxu0 %v2177
  %5147 = vmatpush1.msra.mxu0 %v2176
  %5148 = vmatprep.subr.mxu0 %v2179
  %5149 = vmatpush1.msra.mxu0 %v2178
  %5150 = vmatprep.subr.mxu0 %v2181
  %5151 = vmatpush1.msra.mxu0 %v2180
  %5152 = vmatprep.subr.mxu0 %v2183
  %5153 = vmatpush1.msra.mxu0 %v2182
  %5154 = vmatprep.subr.mxu0 %v2185
  %5155 = vmatpush1.msra.mxu0 %v2184
  %5156 = vmatprep.subr.mxu0 %v2187
  %5157 = vmatpush1.msra.mxu0 %v2186
  %5158 = vmatprep.subr.mxu0 %v2189
  %5159 = vmatpush1.msra.mxu0 %v2188
  %5160 = vmatprep.subr.mxu0 %v2191
  %5161 = vmatpush1.msra.mxu0 %v2190
  %5162 = vmatprep.subr.mxu0 0.0
  %5163 = vmatpush1.msra.mxu0 0.0
  %5164 = vmatprep.subr.mxu0 0.0
  %5165 = vmatpush1.msra.mxu0 0.0
  %5166 = vmatprep.subr.mxu0 0.0
  %5167 = vmatpush1.msra.mxu0 0.0
  %5168 = vmatprep.subr.mxu0 0.0
  %5169 = vmatpush1.msra.mxu0 0.0
  %5170 = vmatprep.subr.mxu0 0.0
  %5171 = vmatpush1.msra.mxu0 0.0
  %5172 = vmatprep.subr.mxu0 0.0
  %5173 = vmatpush1.msra.mxu0 0.0
  %5174 = vmatprep.subr.mxu0 0.0
  %5175 = vmatpush1.msra.mxu0 0.0
  %5176 = vmatprep.subr.mxu0 0.0
  %5177 = vmatpush1.msra.mxu0 0.0
  %5178 = vmatprep.subr.mxu0 0.0
  %5179 = vmatpush1.msra.mxu0 0.0
  %5180 = vmatprep.subr.mxu0 0.0
  %5181 = vmatpush1.msra.mxu0 0.0
  %5182 = vmatprep.subr.mxu0 0.0
  %5183 = vmatpush1.msra.mxu0 0.0
  %5184 = vmatprep.subr.mxu0 0.0
  %5185 = vmatpush1.msra.mxu0 0.0
  %5186 = vmatprep.subr.mxu0 0.0
  %5187 = vmatpush1.msra.mxu0 0.0
  %5188 = vmatprep.subr.mxu0 0.0
  %5189 = vmatpush1.msra.mxu0 0.0
  %5190 = vmatprep.subr.mxu0 0.0
  %5191 = vmatpush1.msra.mxu0 0.0
  %5192 = vmatprep.subr.mxu0 0.0
  %5193 = vmatpush1.msra.mxu0 0.0
  %5194 = vmatprep.mubr.f32.mxu0 0.0
  %5195 = vmatmul.mubr.f32.gmra.mrb[0].mxu0 %v5129
  %v5196 = vpop.f32.mrb[0].mxu0
  %v5197 = vadd.f32 %v2198, %v5196
  %v5198 = vpop.f32.mrb[0].mxu0
  %v5199 = vadd.f32 %v2202, %v5198
  %5200 = vdwg.mxu0
  %v5201 = vadd.f32 %v5197, %v5199
  %v5202 = vxor.u32 %v5201, 2147483648
  %v5203 = vmul.f32 %v5202, 1.442695
  %v5204 = vpow.pop %v5203
  %v5205 = vadd.f32 %v5204, 1.0
  %v5206 = vrcp.pop %v5205
  %v5207 = vmul.f32 1.0, %v5206
  %5209 = vrot.lane.b32.xlu0 %v5199, 64
  %v5210 = vpop.permute.xlu0 %5209
  %v5212 = vmul.f32 %v5207, %v5210
  %5214 = vrot.lane.b32.xlu0 %v5212, 64
  %v5215 = vpop.permute.xlu0 %5214
  %v5217 = vadd.f32 %v5197, %v5215
  %v5218 = vtanh.pop %v5217
  %v5219 = vsub.f32 1.0, %v5207
  %5221 = vrot.lane.b32.xlu0 %v5218, 96
  %v5222 = vpop.permute.xlu0 %5221
  %v5224 = vmul.f32 %v5219, %v5222
  %v5225 = vmul.f32 %v5207, %v4255
  %v5226 = vadd.f32 %v5224, %v5225
  %5228 = vrot.lane.b32.xlu0 %v5226, 96
  %v5229 = vpop.permute.xlu0 %5228
  %v5230 = vsel %vm523, %v5229, 0
  %5232 = vmatprep.subr.mxu0 %v2303
  %5233 = vmatpush1.msra.mxu0 %v2302
  %5234 = vmatprep.subr.mxu0 %v2306
  %5235 = vmatpush1.msra.mxu0 %v2305
  %5236 = vmatprep.subr.mxu0 %v2309
  %5237 = vmatpush1.msra.mxu0 %v2308
  %5238 = vmatprep.subr.mxu0 %v2312
  %5239 = vmatpush1.msra.mxu0 %v2311
  %5240 = vmatprep.subr.mxu0 0.0
  %5241 = vmatpush1.msra.mxu0 0.0
  %5242 = vmatprep.subr.mxu0 0.0
  %5243 = vmatpush1.msra.mxu0 0.0
  %5244 = vmatprep.subr.mxu0 0.0
  %5245 = vmatpush1.msra.mxu0 0.0
  %5246 = vmatprep.subr.mxu0 0.0
  %5247 = vmatpush1.msra.mxu0 0.0
  %5248 = vmatprep.subr.mxu0 0.0
  %5249 = vmatpush1.msra.mxu0 0.0
  %5250 = vmatprep.subr.mxu0 0.0
  %5251 = vmatpush1.msra.mxu0 0.0
  %5252 = vmatprep.subr.mxu0 0.0
  %5253 = vmatpush1.msra.mxu0 0.0
  %5254 = vmatprep.subr.mxu0 0.0
  %5255 = vmatpush1.msra.mxu0 0.0
  %5256 = vmatprep.subr.mxu0 0.0
  %5257 = vmatpush1.msra.mxu0 0.0
  %5258 = vmatprep.subr.mxu0 0.0
  %5259 = vmatpush1.msra.mxu0 0.0
  %5260 = vmatprep.subr.mxu0 0.0
  %5261 = vmatpush1.msra.mxu0 0.0
  %5262 = vmatprep.subr.mxu0 0.0
  %5263 = vmatpush1.msra.mxu0 0.0
  %5264 = vmatprep.subr.mxu0 0.0
  %5265 = vmatpush1.msra.mxu0 0.0
  %5266 = vmatprep.subr.mxu0 0.0
  %5267 = vmatpush1.msra.mxu0 0.0
  %5268 = vmatprep.subr.mxu0 0.0
  %5269 = vmatpush1.msra.mxu0 0.0
  %5270 = vmatprep.subr.mxu0 0.0
  %5271 = vmatpush1.msra.mxu0 0.0
  %5272 = vmatprep.subr.mxu0 0.0
  %5273 = vmatpush1.msra.mxu0 0.0
  %5274 = vmatprep.subr.mxu0 0.0
  %5275 = vmatpush1.msra.mxu0 0.0
  %5276 = vmatprep.subr.mxu0 0.0
  %5277 = vmatpush1.msra.mxu0 0.0
  %5278 = vmatprep.subr.mxu0 0.0
  %5279 = vmatpush1.msra.mxu0 0.0
  %5280 = vmatprep.subr.mxu0 0.0
  %5281 = vmatpush1.msra.mxu0 0.0
  %5282 = vmatprep.subr.mxu0 0.0
  %5283 = vmatpush1.msra.mxu0 0.0
  %5284 = vmatprep.subr.mxu0 0.0
  %5285 = vmatpush1.msra.mxu0 0.0
  %5286 = vmatprep.subr.mxu0 0.0
  %5287 = vmatpush1.msra.mxu0 0.0
  %5288 = vmatprep.subr.mxu0 0.0
  %5289 = vmatpush1.msra.mxu0 0.0
  %5290 = vmatprep.subr.mxu0 0.0
  %5291 = vmatpush1.msra.mxu0 0.0
  %5292 = vmatprep.subr.mxu0 0.0
  %5293 = vmatpush1.msra.mxu0 0.0
  %5294 = vmatprep.subr.mxu0 0.0
  %5295 = vmatpush1.msra.mxu0 0.0
  %5296 = vmatprep.mubr.f32.mxu0 0.0
  %5297 = vmatmul.mubr.f32.gmra.mrb[0].mxu0 %v5230
  %v5298 = vpop.f32.mrb[0].mxu0
  %v5299 = vadd.f32 0.0, %v5298
  %v5300 = vpop.f32.mrb[0].mxu0
  %v5301 = vadd.f32 0.0, %v5300
  %5302 = vdwg.mxu0
  %5303 = vmatprep.subr.mxu0 0.0
  %5304 = vmatpush1.msra.mxu0 %v2304
  %5305 = vmatprep.subr.mxu0 0.0
  %5306 = vmatpush1.msra.mxu0 %v2307
  %5307 = vmatprep.subr.mxu0 0.0
  %5308 = vmatpush1.msra.mxu0 %v2310
  %5309 = vmatprep.subr.mxu0 0.0
  %5310 = vmatpush1.msra.mxu0 %v2313
  %5311 = vmatprep.subr.mxu0 0.0
  %5312 = vmatpush1.msra.mxu0 0.0
  %5313 = vmatprep.subr.mxu0 0.0
  %5314 = vmatpush1.msra.mxu0 0.0
  %5315 = vmatprep.subr.mxu0 0.0
  %5316 = vmatpush1.msra.mxu0 0.0
  %5317 = vmatprep.subr.mxu0 0.0
  %5318 = vmatpush1.msra.mxu0 0.0
  %5319 = vmatprep.subr.mxu0 0.0
  %5320 = vmatpush1.msra.mxu0 0.0
  %5321 = vmatprep.subr.mxu0 0.0
  %5322 = vmatpush1.msra.mxu0 0.0
  %5323 = vmatprep.subr.mxu0 0.0
  %5324 = vmatpush1.msra.mxu0 0.0
  %5325 = vmatprep.subr.mxu0 0.0
  %5326 = vmatpush1.msra.mxu0 0.0
  %5327 = vmatprep.subr.mxu0 0.0
  %5328 = vmatpush1.msra.mxu0 0.0
  %5329 = vmatprep.subr.mxu0 0.0
  %5330 = vmatpush1.msra.mxu0 0.0
  %5331 = vmatprep.subr.mxu0 0.0
  %5332 = vmatpush1.msra.mxu0 0.0
  %5333 = vmatprep.subr.mxu0 0.0
  %5334 = vmatpush1.msra.mxu0 0.0
  %5335 = vmatprep.subr.mxu0 0.0
  %5336 = vmatpush1.msra.mxu0 0.0
  %5337 = vmatprep.subr.mxu0 0.0
  %5338 = vmatpush1.msra.mxu0 0.0
  %5339 = vmatprep.subr.mxu0 0.0
  %5340 = vmatpush1.msra.mxu0 0.0
  %5341 = vmatprep.subr.mxu0 0.0
  %5342 = vmatpush1.msra.mxu0 0.0
  %5343 = vmatprep.subr.mxu0 0.0
  %5344 = vmatpush1.msra.mxu0 0.0
  %5345 = vmatprep.subr.mxu0 0.0
  %5346 = vmatpush1.msra.mxu0 0.0
  %5347 = vmatprep.subr.mxu0 0.0
  %5348 = vmatpush1.msra.mxu0 0.0
  %5349 = vmatprep.subr.mxu0 0.0
  %5350 = vmatpush1.msra.mxu0 0.0
  %5351 = vmatprep.subr.mxu0 0.0
  %5352 = vmatpush1.msra.mxu0 0.0
  %5353 = vmatprep.subr.mxu0 0.0
  %5354 = vmatpush1.msra.mxu0 0.0
  %5355 = vmatprep.subr.mxu0 0.0
  %5356 = vmatpush1.msra.mxu0 0.0
  %5357 = vmatprep.subr.mxu0 0.0
  %5358 = vmatpush1.msra.mxu0 0.0
  %5359 = vmatprep.subr.mxu0 0.0
  %5360 = vmatpush1.msra.mxu0 0.0
  %5361 = vmatprep.subr.mxu0 0.0
  %5362 = vmatpush1.msra.mxu0 0.0
  %5363 = vmatprep.subr.mxu0 0.0
  %5364 = vmatpush1.msra.mxu0 0.0
  %5365 = vmatprep.subr.mxu0 0.0
  %5366 = vmatpush1.msra.mxu0 0.0
  %5367 = vmatprep.mubr.f32.mxu0 0.0
  %5368 = vmatmul.mubr.f32.gmra.mrb[0].mxu0 %v5230
  %v5369 = vpop.f32.mrb[0].mxu0
  %v5370 = vadd.f32 0.0, %v5369
  %v5371 = vpop.f32.mrb[0].mxu0
  %5372 = vdwg.mxu0
  %v5373 = vsel %vm1101, %v5100, 0
  %5375 = vmatprep.subr.mxu0 %v1422
  %5376 = vmatpush1.msra.mxu0 %v1421
  %5377 = vmatprep.subr.mxu0 %v1425
  %5378 = vmatpush1.msra.mxu0 %v1424
  %5379 = vmatprep.subr.mxu0 0.0
  %5380 = vmatpush1.msra.mxu0 0.0
  %5381 = vmatprep.subr.mxu0 0.0
  %5382 = vmatpush1.msra.mxu0 0.0
  %5383 = vmatprep.subr.mxu0 0.0
  %5384 = vmatpush1.msra.mxu0 0.0
  %5385 = vmatprep.subr.mxu0 0.0
  %5386 = vmatpush1.msra.mxu0 0.0
  %5387 = vmatprep.subr.mxu0 0.0
  %5388 = vmatpush1.msra.mxu0 0.0
  %5389 = vmatprep.subr.mxu0 0.0
  %5390 = vmatpush1.msra.mxu0 0.0
  %5391 = vmatprep.subr.mxu0 0.0
  %5392 = vmatpush1.msra.mxu0 0.0
  %5393 = vmatprep.subr.mxu0 0.0
  %5394 = vmatpush1.msra.mxu0 0.0
  %5395 = vmatprep.subr.mxu0 0.0
  %5396 = vmatpush1.msra.mxu0 0.0
  %5397 = vmatprep.subr.mxu0 0.0
  %5398 = vmatpush1.msra.mxu0 0.0
  %5399 = vmatprep.subr.mxu0 0.0
  %5400 = vmatpush1.msra.mxu0 0.0
  %5401 = vmatprep.subr.mxu0 0.0
  %5402 = vmatpush1.msra.mxu0 0.0
  %5403 = vmatprep.subr.mxu0 0.0
  %5404 = vmatpush1.msra.mxu0 0.0
  %5405 = vmatprep.subr.mxu0 0.0
  %5406 = vmatpush1.msra.mxu0 0.0
  %5407 = vmatprep.subr.mxu0 0.0
  %5408 = vmatpush1.msra.mxu0 0.0
  %5409 = vmatprep.subr.mxu0 0.0
  %5410 = vmatpush1.msra.mxu0 0.0
  %5411 = vmatprep.subr.mxu0 0.0
  %5412 = vmatpush1.msra.mxu0 0.0
  %5413 = vmatprep.subr.mxu0 0.0
  %5414 = vmatpush1.msra.mxu0 0.0
  %5415 = vmatprep.subr.mxu0 0.0
  %5416 = vmatpush1.msra.mxu0 0.0
  %5417 = vmatprep.subr.mxu0 0.0
  %5418 = vmatpush1.msra.mxu0 0.0
  %5419 = vmatprep.subr.mxu0 0.0
  %5420 = vmatpush1.msra.mxu0 0.0
  %5421 = vmatprep.subr.mxu0 0.0
  %5422 = vmatpush1.msra.mxu0 0.0
  %5423 = vmatprep.subr.mxu0 0.0
  %5424 = vmatpush1.msra.mxu0 0.0
  %5425 = vmatprep.subr.mxu0 0.0
  %5426 = vmatpush1.msra.mxu0 0.0
  %5427 = vmatprep.subr.mxu0 0.0
  %5428 = vmatpush1.msra.mxu0 0.0
  %5429 = vmatprep.subr.mxu0 0.0
  %5430 = vmatpush1.msra.mxu0 0.0
  %5431 = vmatprep.subr.mxu0 0.0
  %5432 = vmatpush1.msra.mxu0 0.0
  %5433 = vmatprep.subr.mxu0 0.0
  %5434 = vmatpush1.msra.mxu0 0.0
  %5435 = vmatprep.subr.mxu0 0.0
  %5436 = vmatpush1.msra.mxu0 0.0
  %5437 = vmatprep.subr.mxu0 0.0
  %5438 = vmatpush1.msra.mxu0 0.0
  %5439 = vmatprep.mubr.f32.mxu0 0.0
  %5440 = vmatmul.mubr.f32.gmra.mrb[0].mxu0 %v5373
  %v5441 = vpop.f32.mrb[0].mxu0
  %v5442 = vadd.f32 %v5299, %v5441
  %v5443 = vpop.f32.mrb[0].mxu0
  %v5444 = vadd.f32 %v5301, %v5443
  %5445 = vdwg.mxu0
  %5446 = vmatprep.subr.mxu0 0.0
  %5447 = vmatpush1.msra.mxu0 %v1423
  %5448 = vmatprep.subr.mxu0 0.0
  %5449 = vmatpush1.msra.mxu0 %v1426
  %5450 = vmatprep.subr.mxu0 0.0
  %5451 = vmatpush1.msra.mxu0 0.0
  %5452 = vmatprep.subr.mxu0 0.0
  %5453 = vmatpush1.msra.mxu0 0.0
  %5454 = vmatprep.subr.mxu0 0.0
  %5455 = vmatpush1.msra.mxu0 0.0
  %5456 = vmatprep.subr.mxu0 0.0
  %5457 = vmatpush1.msra.mxu0 0.0
  %5458 = vmatprep.subr.mxu0 0.0
  %5459 = vmatpush1.msra.mxu0 0.0
  %5460 = vmatprep.subr.mxu0 0.0
  %5461 = vmatpush1.msra.mxu0 0.0
  %5462 = vmatprep.subr.mxu0 0.0
  %5463 = vmatpush1.msra.mxu0 0.0
  %5464 = vmatprep.subr.mxu0 0.0
  %5465 = vmatpush1.msra.mxu0 0.0
  %5466 = vmatprep.subr.mxu0 0.0
  %5467 = vmatpush1.msra.mxu0 0.0
  %5468 = vmatprep.subr.mxu0 0.0
  %5469 = vmatpush1.msra.mxu0 0.0
  %5470 = vmatprep.subr.mxu0 0.0
  %5471 = vmatpush1.msra.mxu0 0.0
  %5472 = vmatprep.subr.mxu0 0.0
  %5473 = vmatpush1.msra.mxu0 0.0
  %5474 = vmatprep.subr.mxu0 0.0
  %5475 = vmatpush1.msra.mxu0 0.0
  %5476 = vmatprep.subr.mxu0 0.0
  %5477 = vmatpush1.msra.mxu0 0.0
  %5478 = vmatprep.subr.mxu0 0.0
  %5479 = vmatpush1.msra.mxu0 0.0
  %5480 = vmatprep.subr.mxu0 0.0
  %5481 = vmatpush1.msra.mxu0 0.0
  %5482 = vmatprep.subr.mxu0 0.0
  %5483 = vmatpush1.msra.mxu0 0.0
  %5484 = vmatprep.subr.mxu0 0.0
  %5485 = vmatpush1.msra.mxu0 0.0
  %5486 = vmatprep.subr.mxu0 0.0
  %5487 = vmatpush1.msra.mxu0 0.0
  %5488 = vmatprep.subr.mxu0 0.0
  %5489 = vmatpush1.msra.mxu0 0.0
  %5490 = vmatprep.subr.mxu0 0.0
  %5491 = vmatpush1.msra.mxu0 0.0
  %5492 = vmatprep.subr.mxu0 0.0
  %5493 = vmatpush1.msra.mxu0 0.0
  %5494 = vmatprep.subr.mxu0 0.0
  %5495 = vmatpush1.msra.mxu0 0.0
  %5496 = vmatprep.subr.mxu0 0.0
  %5497 = vmatpush1.msra.mxu0 0.0
  %5498 = vmatprep.subr.mxu0 0.0
  %5499 = vmatpush1.msra.mxu0 0.0
  %5500 = vmatprep.subr.mxu0 0.0
  %5501 = vmatpush1.msra.mxu0 0.0
  %5502 = vmatprep.subr.mxu0 0.0
  %5503 = vmatpush1.msra.mxu0 0.0
  %5504 = vmatprep.subr.mxu0 0.0
  %5505 = vmatpush1.msra.mxu0 0.0
  %5506 = vmatprep.subr.mxu0 0.0
  %5507 = vmatpush1.msra.mxu0 0.0
  %5508 = vmatprep.subr.mxu0 0.0
  %5509 = vmatpush1.msra.mxu0 0.0
  %5510 = vmatprep.mubr.f32.mxu0 0.0
  %5511 = vmatmul.mubr.f32.gmra.mrb[0].mxu0 %v5373
  %v5512 = vpop.f32.mrb[0].mxu0
  %v5513 = vadd.f32 %v5370, %v5512
  %v5514 = vpop.f32.mrb[0].mxu0
  %5515 = vdwg.mxu0
  %v5516 = vadd.f32 %v5442, %v1418
  %v5517 = vadd.f32 %v5444, %v1419
  %v5518 = vadd.f32 %v5513, %v1420
  %v5519 = vadd.f32 %v4548, %v5027
  %v5520 = vsub.f32 %v5516, %v4545
  %v5521 = vmul.f32 %v5520, %v5520
  %v5522 = vsel %vm1101, %v5521, 0.0
  %5523 = vadd.xlane.f32.xlu0 %v5522
  %v5524 = vpop.xlane.xlu0 %5523
  %v5525 = vrsqrt.pop %v5524
  %v5526 = vmul.f32 %v5524, %v5525
  %vm5527 = vcmp.eq.f32.partialorder %v5524, inf
  %v5528 = vsel %vm5527, %v5524, %v5526
  %vm5529 = vcmp.eq.f32.partialorder %v5524, 0.0
  %v5530 = vand.u32 %v5524, 2147483648
  %v5531 = vsel %vm5529, %v5530, %v5528
  %v5532 = vmul.f32 %v5104, %v5104
  %5534 = vrot.lane.b32.xlu0 %v5532, 112
  %v5535 = vpop.permute.xlu0 %5534
  %v5537 = vsel %vm881, %v5535, 0.0
  %5538 = vadd.xlane.f32.xlu0 %v5537
  %v5539 = vpop.xlane.xlu0 %5538
  %v5540 = vrsqrt.pop %v5539
  %v5541 = vmul.f32 %v5539, %v5540
  %vm5542 = vcmp.eq.f32.partialorder %v5539, inf
  %v5543 = vsel %vm5542, %v5539, %v5541
  %vm5544 = vcmp.eq.f32.partialorder %v5539, 0.0
  %v5545 = vand.u32 %v5539, 2147483648
  %v5546 = vsel %vm5544, %v5545, %v5543
  %v5547 = vadd.f32 %v5531, %v5546
  %5548 = vrot.lane.b32.xlu0 %v5532, 104
  %v5549 = vpop.permute.xlu0 %5548
  %v5551 = vsel %vm881, %v5549, 0.0
  %5552 = vadd.xlane.f32.xlu0 %v5551
  %v5553 = vpop.xlane.xlu0 %5552
  %v5554 = vrsqrt.pop %v5553
  %v5555 = vmul.f32 %v5553, %v5554
  %vm5556 = vcmp.eq.f32.partialorder %v5553, inf
  %v5557 = vsel %vm5556, %v5553, %v5555
  %vm5558 = vcmp.eq.f32.partialorder %v5553, 0.0
  %v5559 = vand.u32 %v5553, 2147483648
  %v5560 = vsel %vm5558, %v5559, %v5557
  %v5561 = vadd.f32 %v5547, %v5560
  %v5562 = vadd.f32 %v4591, %v5561
  %v5563 = vsub.f32 %v5517, %v1049
  %v5564 = vsub.f32 %v5518, %v1050
  %v5565 = vmul.f32 %v5563, %v1052
  %v5566 = vmul.f32 %v5564, %v1051
  %v5567 = vmul.f32 %v5565, %v5565
  %v5568 = vmul.f32 %v5566, %v5566
  %v5569 = vadd.f32 %v5567, %v5568
  %v5570 = vadd.f32 %v5569, 1e-20
  %v5571 = vrsqrt.pop %v5570
  %v5572 = vmul.f32 %v5565, %v5571
  %v5573 = vmul.f32 %v5566, %v5571
  %v5574 = vmul.f32 %v1053, %v5572
  %v5575 = vmul.f32 %v5574, %v5572
  %v5576 = vmul.f32 %v1054, %v5573
  %v5577 = vmul.f32 %v5576, %v5573
  %v5578 = vadd.f32 %v5575, %v5577
  %v5579 = vmul.f32 %v1051, %v5563
  %v5580 = vmul.f32 %v5579, %v5572
  %v5581 = vmul.f32 %v1052, %v5564
  %v5582 = vmul.f32 %v5581, %v5573
  %v5583 = vadd.f32 %v5580, %v5582
  %v5584 = vrcp.pop %v5578
  %v5585 = vmul.f32 %v5583, %v5584
  %v5586 = vmax.f32 %v5585, 1.0
  %v5587 = vmul.f32 %v5586, %v5572
  %v5588 = vmul.f32 %v1051, %v5587
  %v5589 = vmul.f32 %v5586, %v5573
  %v5590 = vmul.f32 %v1052, %v5589
  %v5591 = vsub.f32 %v5563, %v5588
  %v5592 = vsub.f32 %v5564, %v5590
  %v5593 = vmul.f32 %v5591, %v5591
  %v5594 = vmul.f32 %v5592, %v5592
  %v5595 = vadd.f32 %v5593, %v5594
  %v5596 = vsel %vm1604, %v5595, 0.0
  %5597 = vadd.xlane.f32.xlu0 %v5596
  %v5598 = vpop.xlane.xlu0 %5597
  %v5599 = vmul.f32 %v5516, %v5516
  %5601 = vrot.lane.b32.xlu0 %v5599, 96
  %v5602 = vpop.permute.xlu0 %5601
  %v5604 = vadd.f32 %v5599, %v5602
  %v5605 = vadd.f32 %v5604, 1e-20
  %v5606 = vrsqrt.pop %v5605
  %v5607 = vmul.f32 %v5516, %v5606
  %5609 = vrot.lane.b32.xlu0 %v5606, 32
  %v5610 = vpop.permute.xlu0 %5609
  %v5612 = vmul.f32 %v5516, %v5610
  %vm5613 = vcmp.gt.f32.partialorder %v5516, 0.0
  %v5614 = vand.u32 2147483647, %v5516
  %v5615 = vmul.f32 %v5516, 0.4346312
  %5617 = vrot.lane.b32.xlu0 %v5615, 32
  %v5618 = vpop.permute.xlu0 %5617
  %vm5620 = vcmp.le.f32.partialorder %v5614, %v5618
  %v5621 = vsel %vm5620, 1, 0
  %5622 = vrot.lane.b32.xlu0 %v5621, 96
  %v5623 = vpop.permute.xlu0 %5622
  %vm5624 = vcmp.ne.s32.totalorder %v5623, 0
  %vm5625 = vmand %vm5613, %vm5624
  %vm5626 = vcmp.ge.f32.partialorder %v5516, 0.0
  %v5627 = vsel %vm5626, 1.0, -1.0
  %v5628 = vsel %vm5625, %v5607, 0.9171208
  %v5629 = vmul.f32 %v5627, 0.39860934
  %5631 = vrot.lane.b32.xlu0 %v5612, 96
  %v5632 = vpop.permute.xlu0 %5631
  %5635 = vrot.lane.b32.xlu0 %v5629, 96
  %v5636 = vpop.permute.xlu0 %5635
  %v5638 = vsel %vm5625, %v5632, %v5636
  %v5639 = vmul.f32 %v5516, %v5628
  %5641 = vrot.lane.b32.xlu0 %v5638, 32
  %v5642 = vpop.permute.xlu0 %5641
  %v5644 = vmul.f32 %v5516, %v5642
  %5646 = vrot.lane.b32.xlu0 %v5644, 96
  %v5647 = vpop.permute.xlu0 %5646
  %v5649 = vadd.f32 %v5639, %v5647
  %v5650 = vmax.f32 %v5649, 0.001
  %v5651 = vmin.f32 %v5650, 18.0
  %v5652 = vmul.f32 %v5651, %v5628
  %v5653 = vmul.f32 %v5651, %v5638
  %v5654 = vsub.f32 %v5516, %v5652
  %5656 = vrot.lane.b32.xlu0 %v5653, 32
  %v5657 = vpop.permute.xlu0 %5656
  %v5659 = vsub.f32 %v5516, %v5657
  %v5660 = vadd.f32 %v5516, 0.0001
  %v5661 = vmul.f32 %v5660, %v5660
  %5663 = vrot.lane.b32.xlu0 %v5661, 96
  %v5664 = vpop.permute.xlu0 %5663
  %v5666 = vadd.f32 %v5661, %v5664
  %v5667 = vadd.f32 %v5666, 1e-20
  %v5668 = vrsqrt.pop %v5667
  %v5669 = vmul.f32 %v5660, %v5668
  %5671 = vrot.lane.b32.xlu0 %v5668, 32
  %v5672 = vpop.permute.xlu0 %5671
  %v5674 = vmul.f32 %v5660, %v5672
  %v5675 = vmul.f32 %v5516, %v5669
  %v5676 = vmul.f32 %v5516, %v5674
  %5678 = vrot.lane.b32.xlu0 %v5676, 96
  %v5679 = vpop.permute.xlu0 %5678
  %v5681 = vadd.f32 %v5675, %v5679
  %v5682 = vmax.f32 %v5681, 0.0
  %v5683 = vmin.f32 %v5682, 6.0
  %v5684 = vmul.f32 %v5683, %v5669
  %5686 = vrot.lane.b32.xlu0 %v5674, 96
  %v5687 = vpop.permute.xlu0 %5686
  %v5689 = vmul.f32 %v5683, %v5687
  %v5690 = vsub.f32 %v5516, %v5684
  %5692 = vrot.lane.b32.xlu0 %v5689, 32
  %v5693 = vpop.permute.xlu0 %5692
  %v5695 = vsub.f32 %v5516, %v5693
  %v5696 = vsub.f32 %v5516, %v1707
  %v5697 = vmax.f32 %v5696, 0.0
  %v5698 = vsub.f32 %v1713, %v5516
  %v5699 = vmax.f32 %v5698, 0.0
  %v5700 = vmin.f32 %v5516, %v1707
  %v5701 = vmax.f32 %v5516, %v1713
  %v5702 = vsub.f32 0.0, %v5701
  %5704 = vrot.lane.b32.xlu0 %v5690, 96
  %v5705 = vpop.permute.xlu0 %5704
  %5708 = vrot.lane.b32.xlu0 %v5591, 32
  %v5709 = vpop.permute.xlu0 %5708
  %5712 = vrot.lane.b32.xlu0 %v5695, 64
  %v5713 = vpop.permute.xlu0 %5712
  %5716 = vrot.lane.b32.xlu0 %v5659, 96
  %v5717 = vpop.permute.xlu0 %5716
  %5720 = vrot.lane.b32.xlu0 %v5592, 32
  %v5721 = vpop.permute.xlu0 %5720
  %5724 = vrot.lane.b32.xlu0 %v5697, 48
  %v5725 = vpop.permute.xlu0 %5724
  %5728 = vrot.lane.b32.xlu0 %v5699, 64
  %v5729 = vpop.permute.xlu0 %5728
  %v5731 = vsel %vm1101, %v5705, %v5654
  %v5732 = vsel %vm523, %v5731, %v5709
  %v5733 = vsel %vm1101, %v5713, %v5717
  %v5734 = vsel %vm523, %v5733, %v5721
  %v5735 = vsel %vm1101, %v5725, %v5729
  %5737 = vrot.lane.b32.xlu0 %v5684, 96
  %v5738 = vpop.permute.xlu0 %5737
  %5741 = vrot.lane.b32.xlu0 %v5588, 32
  %v5742 = vpop.permute.xlu0 %5741
  %5744 = vrot.lane.b32.xlu0 %v5689, 96
  %v5745 = vpop.permute.xlu0 %5744
  %5748 = vrot.lane.b32.xlu0 %v5590, 32
  %v5749 = vpop.permute.xlu0 %5748
  %5752 = vrot.lane.b32.xlu0 %v5700, 48
  %v5753 = vpop.permute.xlu0 %5752
  %5756 = vrot.lane.b32.xlu0 %v5702, 64
  %v5757 = vpop.permute.xlu0 %5756
  %v5759 = vsel %vm1101, %v5738, %v5652
  %v5760 = vsel %vm523, %v5759, %v5742
  %v5761 = vsel %vm1101, %v5745, %v5653
  %v5762 = vsel %vm523, %v5761, %v5749
  %v5763 = vsel %vm1101, %v5753, %v5757
  %v5765 = vsel %vm523, %v5735, 0
  %v5768 = vsel %vm523, %v5763, 0
  %5770 = vmatprep.subr.mxu0 0.0
  %5771 = vmatpush1.msra.mxu0 %v1781
  %5772 = vmatprep.subr.mxu0 0.0
  %5773 = vmatpush1.msra.mxu0 %v1782
  %5774 = vmatprep.subr.mxu0 0.0
  %5775 = vmatpush1.msra.mxu0 %v1783
  %5776 = vmatprep.subr.mxu0 0.0
  %5777 = vmatpush1.msra.mxu0 %v1784
  %5778 = vmatprep.subr.mxu0 0.0
  %5779 = vmatpush1.msra.mxu0 %v1785
  %5780 = vmatprep.subr.mxu0 0.0
  %5781 = vmatpush1.msra.mxu0 %v1786
  %5782 = vmatprep.subr.mxu0 0.0
  %5783 = vmatpush1.msra.mxu0 %v1787
  %5784 = vmatprep.subr.mxu0 0.0
  %5785 = vmatpush1.msra.mxu0 %v1788
  %5786 = vmatprep.subr.mxu0 0.0
  %5787 = vmatpush1.msra.mxu0 %v1789
  %5788 = vmatprep.subr.mxu0 0.0
  %5789 = vmatpush1.msra.mxu0 %v1790
  %5790 = vmatprep.subr.mxu0 0.0
  %5791 = vmatpush1.msra.mxu0 %v1791
  %5792 = vmatprep.subr.mxu0 0.0
  %5793 = vmatpush1.msra.mxu0 %v1792
  %5794 = vmatprep.subr.mxu0 0.0
  %5795 = vmatpush1.msra.mxu0 %v1793
  %5796 = vmatprep.subr.mxu0 0.0
  %5797 = vmatpush1.msra.mxu0 %v1794
  %5798 = vmatprep.subr.mxu0 0.0
  %5799 = vmatpush1.msra.mxu0 %v1795
  %5800 = vmatprep.subr.mxu0 0.0
  %5801 = vmatpush1.msra.mxu0 %v1796
  %5802 = vmatprep.subr.mxu0 0.0
  %5803 = vmatpush1.msra.mxu0 %v1797
  %5804 = vmatprep.subr.mxu0 0.0
  %5805 = vmatpush1.msra.mxu0 %v1798
  %5806 = vmatprep.subr.mxu0 0.0
  %5807 = vmatpush1.msra.mxu0 %v1799
  %5808 = vmatprep.subr.mxu0 0.0
  %5809 = vmatpush1.msra.mxu0 %v1800
  %5810 = vmatprep.subr.mxu0 0.0
  %5811 = vmatpush1.msra.mxu0 %v1801
  %5812 = vmatprep.subr.mxu0 0.0
  %5813 = vmatpush1.msra.mxu0 %v1802
  %5814 = vmatprep.subr.mxu0 0.0
  %5815 = vmatpush1.msra.mxu0 %v1803
  %5816 = vmatprep.subr.mxu0 0.0
  %5817 = vmatpush1.msra.mxu0 %v1804
  %5818 = vmatprep.subr.mxu0 0.0
  %5819 = vmatpush1.msra.mxu0 %v1805
  %5820 = vmatprep.subr.mxu0 0.0
  %5821 = vmatpush1.msra.mxu0 %v1806
  %5822 = vmatprep.subr.mxu0 0.0
  %5823 = vmatpush1.msra.mxu0 %v1807
  %5824 = vmatprep.subr.mxu0 0.0
  %5825 = vmatpush1.msra.mxu0 %v1808
  %5826 = vmatprep.subr.mxu0 0.0
  %5827 = vmatpush1.msra.mxu0 %v1809
  %5828 = vmatprep.subr.mxu0 0.0
  %5829 = vmatpush1.msra.mxu0 %v1810
  %5830 = vmatprep.subr.mxu0 0.0
  %5831 = vmatpush1.msra.mxu0 %v1811
  %5832 = vmatprep.subr.mxu0 0.0
  %5833 = vmatpush1.msra.mxu0 %v1812
  %5834 = vmatprep.mubr.f32.mxu0 %v5734
  %5835 = vmatmul.mubr.f32.gmra.mrb[0].mxu0 %v5732
  %v5836 = vpop.f32.mrb[0].mxu0
  %v5837 = vadd.f32 0.0, %v5836
  %v5838 = vpop.f32.mrb[0].mxu0
  %5839 = vmatprep.mubr.f32.mxu0 %v5762
  %5840 = vmatmul.mubr.f32.gmra.mrb[0].mxu0 %v5760
  %v5841 = vpop.f32.mrb[0].mxu0
  %v5842 = vadd.f32 0.0, %v5841
  %v5843 = vpop.f32.mrb[0].mxu0
  %5844 = vdwg.mxu0
  %5845 = vmatprep.subr.mxu0 0.0
  %5846 = vmatpush1.msra.mxu0 %v1813
  %5847 = vmatprep.subr.mxu0 0.0
  %5848 = vmatpush1.msra.mxu0 %v1814
  %5849 = vmatprep.subr.mxu0 0.0
  %5850 = vmatpush1.msra.mxu0 %v1815
  %5851 = vmatprep.subr.mxu0 0.0
  %5852 = vmatpush1.msra.mxu0 %v1816
  %5853 = vmatprep.subr.mxu0 0.0
  %5854 = vmatpush1.msra.mxu0 0.0
  %5855 = vmatprep.subr.mxu0 0.0
  %5856 = vmatpush1.msra.mxu0 0.0
  %5857 = vmatprep.subr.mxu0 0.0
  %5858 = vmatpush1.msra.mxu0 0.0
  %5859 = vmatprep.subr.mxu0 0.0
  %5860 = vmatpush1.msra.mxu0 0.0
  %5861 = vmatprep.subr.mxu0 0.0
  %5862 = vmatpush1.msra.mxu0 0.0
  %5863 = vmatprep.subr.mxu0 0.0
  %5864 = vmatpush1.msra.mxu0 0.0
  %5865 = vmatprep.subr.mxu0 0.0
  %5866 = vmatpush1.msra.mxu0 0.0
  %5867 = vmatprep.subr.mxu0 0.0
  %5868 = vmatpush1.msra.mxu0 0.0
  %5869 = vmatprep.subr.mxu0 0.0
  %5870 = vmatpush1.msra.mxu0 0.0
  %5871 = vmatprep.subr.mxu0 0.0
  %5872 = vmatpush1.msra.mxu0 0.0
  %5873 = vmatprep.subr.mxu0 0.0
  %5874 = vmatpush1.msra.mxu0 0.0
  %5875 = vmatprep.subr.mxu0 0.0
  %5876 = vmatpush1.msra.mxu0 0.0
  %5877 = vmatprep.subr.mxu0 0.0
  %5878 = vmatpush1.msra.mxu0 0.0
  %5879 = vmatprep.subr.mxu0 0.0
  %5880 = vmatpush1.msra.mxu0 0.0
  %5881 = vmatprep.subr.mxu0 0.0
  %5882 = vmatpush1.msra.mxu0 0.0
  %5883 = vmatprep.subr.mxu0 0.0
  %5884 = vmatpush1.msra.mxu0 0.0
  %5885 = vmatprep.subr.mxu0 0.0
  %5886 = vmatpush1.msra.mxu0 0.0
  %5887 = vmatprep.subr.mxu0 0.0
  %5888 = vmatpush1.msra.mxu0 0.0
  %5889 = vmatprep.subr.mxu0 0.0
  %5890 = vmatpush1.msra.mxu0 0.0
  %5891 = vmatprep.subr.mxu0 0.0
  %5892 = vmatpush1.msra.mxu0 0.0
  %5893 = vmatprep.subr.mxu0 0.0
  %5894 = vmatpush1.msra.mxu0 0.0
  %5895 = vmatprep.subr.mxu0 0.0
  %5896 = vmatpush1.msra.mxu0 0.0
  %5897 = vmatprep.subr.mxu0 0.0
  %5898 = vmatpush1.msra.mxu0 0.0
  %5899 = vmatprep.subr.mxu0 0.0
  %5900 = vmatpush1.msra.mxu0 0.0
  %5901 = vmatprep.subr.mxu0 0.0
  %5902 = vmatpush1.msra.mxu0 0.0
  %5903 = vmatprep.subr.mxu0 0.0
  %5904 = vmatpush1.msra.mxu0 0.0
  %5905 = vmatprep.subr.mxu0 0.0
  %5906 = vmatpush1.msra.mxu0 0.0
  %5907 = vmatprep.subr.mxu0 0.0
  %5908 = vmatpush1.msra.mxu0 0.0
  %5909 = vmatprep.mubr.f32.mxu0 0.0
  %5910 = vmatmul.mubr.f32.gmra.mrb[0].mxu0 %v5765
  %v5911 = vpop.f32.mrb[0].mxu0
  %v5912 = vadd.f32 %v5837, %v5911
  %v5913 = vpop.f32.mrb[0].mxu0
  %5914 = vmatprep.mubr.f32.mxu0 0.0
  %5915 = vmatmul.mubr.f32.gmra.mrb[0].mxu0 %v5768
  %v5916 = vpop.f32.mrb[0].mxu0
  %v5917 = vadd.f32 %v5842, %v5916
  %v5918 = vpop.f32.mrb[0].mxu0
  %5919 = vdwg.mxu0
  %5921 = vrot.lane.b32.xlu0 %v5912, 16
  %v5922 = vpop.permute.xlu0 %5921
  %v5924 = vsub.f32 %v4953, %v5922
  %5926 = vrot.lane.b32.xlu0 %v5917, 16
  %v5927 = vpop.permute.xlu0 %5926
  %v5929 = vadd.f32 %v5924, %v5927
  %v5930 = vmul.f32 %v5690, %v5690
  %v5931 = vmul.f32 %v5695, %v5695
  %5933 = vrot.lane.b32.xlu0 %v5931, 96
  %v5934 = vpop.permute.xlu0 %5933
  %v5936 = vadd.f32 %v5930, %v5934
  %5938 = vrot.lane.b32.xlu0 %v5936, 96
  %v5939 = vpop.permute.xlu0 %5938
  %v5941 = vsel %vm1101, %v5939, 0.0
  %5942 = vadd.xlane.f32.xlu0 %v5941
  %v5943 = vpop.xlane.xlu0 %5942
  %v5944 = vrsqrt.pop %v5943
  %v5945 = vmul.f32 %v5943, %v5944
  %vm5946 = vcmp.eq.f32.partialorder %v5943, inf
  %v5947 = vsel %vm5946, %v5943, %v5945
  %vm5948 = vcmp.eq.f32.partialorder %v5943, 0.0
  %v5949 = vand.u32 %v5943, 2147483648
  %v5950 = vsel %vm5948, %v5949, %v5947
  %v5951 = vmul.f32 %v5654, %v5654
  %v5952 = vmul.f32 %v5659, %v5659
  %5954 = vrot.lane.b32.xlu0 %v5952, 96
  %v5955 = vpop.permute.xlu0 %5954
  %v5957 = vadd.f32 %v5951, %v5955
  %5959 = vrot.lane.b32.xlu0 %v5957, 112
  %v5960 = vpop.permute.xlu0 %5959
  %v5962 = vsel %vm1101, %v5960, 0.0
  %5963 = vadd.xlane.f32.xlu0 %v5962
  %v5964 = vpop.xlane.xlu0 %5963
  %v5965 = vrsqrt.pop %v5964
  %v5966 = vmul.f32 %v5964, %v5965
  %vm5967 = vcmp.eq.f32.partialorder %v5964, inf
  %v5968 = vsel %vm5967, %v5964, %v5966
  %vm5969 = vcmp.eq.f32.partialorder %v5964, 0.0
  %v5970 = vand.u32 %v5964, 2147483648
  %v5971 = vsel %vm5969, %v5970, %v5968
  %v5972 = vadd.f32 %v5950, %v5971
  %v5973 = vrsqrt.pop %v5598
  %v5974 = vmul.f32 %v5598, %v5973
  %vm5975 = vcmp.eq.f32.partialorder %v5598, inf
  %v5976 = vsel %vm5975, %v5598, %v5974
  %vm5977 = vcmp.eq.f32.partialorder %v5598, 0.0
  %v5978 = vand.u32 %v5598, 2147483648
  %v5979 = vsel %vm5977, %v5978, %v5976
  %v5980 = vadd.f32 %v5972, %v5979
  %v5981 = vmul.f32 %v5697, %v5697
  %v5982 = vmul.f32 %v5699, %v5699
  %v5983 = vadd.f32 %v5981, %v5982
  %5985 = vrot.lane.b32.xlu0 %v5983, 48
  %v5986 = vpop.permute.xlu0 %5985
  %v5988 = vsel %vm1101, %v5986, 0.0
  %5989 = vadd.xlane.f32.xlu0 %v5988
  %v5990 = vpop.xlane.xlu0 %5989
  %v5991 = vrsqrt.pop %v5990
  %v5992 = vmul.f32 %v5990, %v5991
  %vm5993 = vcmp.eq.f32.partialorder %v5990, inf
  %v5994 = vsel %vm5993, %v5990, %v5992
  %vm5995 = vcmp.eq.f32.partialorder %v5990, 0.0
  %v5996 = vand.u32 %v5990, 2147483648
  %v5997 = vsel %vm5995, %v5996, %v5994
  %v5998 = vadd.f32 %v5980, %v5997
  %6000 = vrot.lane.b32.xlu0 %v5929, 112
  %v6001 = vpop.permute.xlu0 %6000
  %v6002 = vsel %vm1101, %v6001, 0
  %6004 = vmatprep.subr.mxu0 0.0
  %6005 = vmatpush1.msra.mxu0 %v2052
  %6006 = vmatprep.subr.mxu0 0.0
  %6007 = vmatpush1.msra.mxu0 %v2053
  %6008 = vmatprep.subr.mxu0 0.0
  %6009 = vmatpush1.msra.mxu0 0.0
  %6010 = vmatprep.subr.mxu0 0.0
  %6011 = vmatpush1.msra.mxu0 0.0
  %6012 = vmatprep.subr.mxu0 0.0
  %6013 = vmatpush1.msra.mxu0 0.0
  %6014 = vmatprep.subr.mxu0 0.0
  %6015 = vmatpush1.msra.mxu0 0.0
  %6016 = vmatprep.subr.mxu0 0.0
  %6017 = vmatpush1.msra.mxu0 0.0
  %6018 = vmatprep.subr.mxu0 0.0
  %6019 = vmatpush1.msra.mxu0 0.0
  %6020 = vmatprep.subr.mxu0 0.0
  %6021 = vmatpush1.msra.mxu0 0.0
  %6022 = vmatprep.subr.mxu0 0.0
  %6023 = vmatpush1.msra.mxu0 0.0
  %6024 = vmatprep.subr.mxu0 0.0
  %6025 = vmatpush1.msra.mxu0 0.0
  %6026 = vmatprep.subr.mxu0 0.0
  %6027 = vmatpush1.msra.mxu0 0.0
  %6028 = vmatprep.subr.mxu0 0.0
  %6029 = vmatpush1.msra.mxu0 0.0
  %6030 = vmatprep.subr.mxu0 0.0
  %6031 = vmatpush1.msra.mxu0 0.0
  %6032 = vmatprep.subr.mxu0 0.0
  %6033 = vmatpush1.msra.mxu0 0.0
  %6034 = vmatprep.subr.mxu0 0.0
  %6035 = vmatpush1.msra.mxu0 0.0
  %6036 = vmatprep.subr.mxu0 0.0
  %6037 = vmatpush1.msra.mxu0 0.0
  %6038 = vmatprep.subr.mxu0 0.0
  %6039 = vmatpush1.msra.mxu0 0.0
  %6040 = vmatprep.subr.mxu0 0.0
  %6041 = vmatpush1.msra.mxu0 0.0
  %6042 = vmatprep.subr.mxu0 0.0
  %6043 = vmatpush1.msra.mxu0 0.0
  %6044 = vmatprep.subr.mxu0 0.0
  %6045 = vmatpush1.msra.mxu0 0.0
  %6046 = vmatprep.subr.mxu0 0.0
  %6047 = vmatpush1.msra.mxu0 0.0
  %6048 = vmatprep.subr.mxu0 0.0
  %6049 = vmatpush1.msra.mxu0 0.0
  %6050 = vmatprep.subr.mxu0 0.0
  %6051 = vmatpush1.msra.mxu0 0.0
  %6052 = vmatprep.subr.mxu0 0.0
  %6053 = vmatpush1.msra.mxu0 0.0
  %6054 = vmatprep.subr.mxu0 0.0
  %6055 = vmatpush1.msra.mxu0 0.0
  %6056 = vmatprep.subr.mxu0 0.0
  %6057 = vmatpush1.msra.mxu0 0.0
  %6058 = vmatprep.subr.mxu0 0.0
  %6059 = vmatpush1.msra.mxu0 0.0
  %6060 = vmatprep.subr.mxu0 0.0
  %6061 = vmatpush1.msra.mxu0 0.0
  %6062 = vmatprep.subr.mxu0 0.0
  %6063 = vmatpush1.msra.mxu0 0.0
  %6064 = vmatprep.subr.mxu0 0.0
  %6065 = vmatpush1.msra.mxu0 0.0
  %6066 = vmatprep.subr.mxu0 0.0
  %6067 = vmatpush1.msra.mxu0 0.0
  %6068 = vmatprep.mubr.f32.mxu0 0.0
  %6069 = vmatmul.mubr.f32.gmra.mrb[0].mxu0 %v6002
  %v6070 = vpop.f32.mrb[0].mxu0
  %v6071 = vadd.f32 %v1253, %v6070
  %v6072 = vpop.f32.mrb[0].mxu0
  %6073 = vdwg.mxu0
  %v6074 = vsub.f32 %v6071, %v5516
  %v6075 = vsub.f32 %v5924, %v4953
  %6077 = vrot.lane.b32.xlu0 %v6071, 32
  %v6078 = vpop.permute.xlu0 %6077
  %6081 = vrot.lane.b32.xlu0 %v5924, 32
  %v6082 = vpop.permute.xlu0 %6081
  %6085 = vrot.lane.b32.xlu0 %v6074, 64
  %v6086 = vpop.permute.xlu0 %6085
  %6089 = vrot.lane.b32.xlu0 %v6075, 64
  %v6090 = vpop.permute.xlu0 %6089
  %6092 = vrot.lane.b32.xlu0 %v5226, 64
  %v6093 = vpop.permute.xlu0 %6092
  %v6095 = vsel %vm1101, %v5516, %v4953
  %v6096 = vsel %vm523, %v6095, %v6078
  %v6097 = vsel %vm2153, %v6096, %v6082
  %v6098 = vsel %vm2155, %v6097, %v6086
  %v6099 = vsel %vm2157, %v6098, %v6090
  %v6100 = vsel %vm1604, %v6099, %v6093
  %6101 = vmatprep.subr.mxu0 %v2161
  %6102 = vmatpush1.msra.mxu0 %v2160
  %6103 = vmatprep.subr.mxu0 %v2163
  %6104 = vmatpush1.msra.mxu0 %v2162
  %6105 = vmatprep.subr.mxu0 %v2165
  %6106 = vmatpush1.msra.mxu0 %v2164
  %6107 = vmatprep.subr.mxu0 %v2167
  %6108 = vmatpush1.msra.mxu0 %v2166
  %6109 = vmatprep.subr.mxu0 %v2169
  %6110 = vmatpush1.msra.mxu0 %v2168
  %6111 = vmatprep.subr.mxu0 %v2171
  %6112 = vmatpush1.msra.mxu0 %v2170
  %6113 = vmatprep.subr.mxu0 %v2173
  %6114 = vmatpush1.msra.mxu0 %v2172
  %6115 = vmatprep.subr.mxu0 %v2175
  %6116 = vmatpush1.msra.mxu0 %v2174
  %6117 = vmatprep.subr.mxu0 %v2177
  %6118 = vmatpush1.msra.mxu0 %v2176
  %6119 = vmatprep.subr.mxu0 %v2179
  %6120 = vmatpush1.msra.mxu0 %v2178
  %6121 = vmatprep.subr.mxu0 %v2181
  %6122 = vmatpush1.msra.mxu0 %v2180
  %6123 = vmatprep.subr.mxu0 %v2183
  %6124 = vmatpush1.msra.mxu0 %v2182
  %6125 = vmatprep.subr.mxu0 %v2185
  %6126 = vmatpush1.msra.mxu0 %v2184
  %6127 = vmatprep.subr.mxu0 %v2187
  %6128 = vmatpush1.msra.mxu0 %v2186
  %6129 = vmatprep.subr.mxu0 %v2189
  %6130 = vmatpush1.msra.mxu0 %v2188
  %6131 = vmatprep.subr.mxu0 %v2191
  %6132 = vmatpush1.msra.mxu0 %v2190
  %6133 = vmatprep.subr.mxu0 0.0
  %6134 = vmatpush1.msra.mxu0 0.0
  %6135 = vmatprep.subr.mxu0 0.0
  %6136 = vmatpush1.msra.mxu0 0.0
  %6137 = vmatprep.subr.mxu0 0.0
  %6138 = vmatpush1.msra.mxu0 0.0
  %6139 = vmatprep.subr.mxu0 0.0
  %6140 = vmatpush1.msra.mxu0 0.0
  %6141 = vmatprep.subr.mxu0 0.0
  %6142 = vmatpush1.msra.mxu0 0.0
  %6143 = vmatprep.subr.mxu0 0.0
  %6144 = vmatpush1.msra.mxu0 0.0
  %6145 = vmatprep.subr.mxu0 0.0
  %6146 = vmatpush1.msra.mxu0 0.0
  %6147 = vmatprep.subr.mxu0 0.0
  %6148 = vmatpush1.msra.mxu0 0.0
  %6149 = vmatprep.subr.mxu0 0.0
  %6150 = vmatpush1.msra.mxu0 0.0
  %6151 = vmatprep.subr.mxu0 0.0
  %6152 = vmatpush1.msra.mxu0 0.0
  %6153 = vmatprep.subr.mxu0 0.0
  %6154 = vmatpush1.msra.mxu0 0.0
  %6155 = vmatprep.subr.mxu0 0.0
  %6156 = vmatpush1.msra.mxu0 0.0
  %6157 = vmatprep.subr.mxu0 0.0
  %6158 = vmatpush1.msra.mxu0 0.0
  %6159 = vmatprep.subr.mxu0 0.0
  %6160 = vmatpush1.msra.mxu0 0.0
  %6161 = vmatprep.subr.mxu0 0.0
  %6162 = vmatpush1.msra.mxu0 0.0
  %6163 = vmatprep.subr.mxu0 0.0
  %6164 = vmatpush1.msra.mxu0 0.0
  %6165 = vmatprep.mubr.f32.mxu0 0.0
  %6166 = vmatmul.mubr.f32.gmra.mrb[0].mxu0 %v6100
  %v6167 = vpop.f32.mrb[0].mxu0
  %v6168 = vadd.f32 %v2198, %v6167
  %v6169 = vpop.f32.mrb[0].mxu0
  %v6170 = vadd.f32 %v2202, %v6169
  %6171 = vdwg.mxu0
  %v6172 = vadd.f32 %v6168, %v6170
  %v6173 = vxor.u32 %v6172, 2147483648
  %v6174 = vmul.f32 %v6173, 1.442695
  %v6175 = vpow.pop %v6174
  %v6176 = vadd.f32 %v6175, 1.0
  %v6177 = vrcp.pop %v6176
  %v6178 = vmul.f32 1.0, %v6177
  %6180 = vrot.lane.b32.xlu0 %v6170, 64
  %v6181 = vpop.permute.xlu0 %6180
  %v6183 = vmul.f32 %v6178, %v6181
  %6185 = vrot.lane.b32.xlu0 %v6183, 64
  %v6186 = vpop.permute.xlu0 %6185
  %v6188 = vadd.f32 %v6168, %v6186
  %v6189 = vtanh.pop %v6188
  %v6190 = vsub.f32 1.0, %v6178
  %6192 = vrot.lane.b32.xlu0 %v6189, 96
  %v6193 = vpop.permute.xlu0 %6192
  %v6195 = vmul.f32 %v6190, %v6193
  %v6196 = vmul.f32 %v6178, %v5226
  %v6197 = vadd.f32 %v6195, %v6196
  %6199 = vrot.lane.b32.xlu0 %v6197, 96
  %v6200 = vpop.permute.xlu0 %6199
  %v6201 = vsel %vm523, %v6200, 0
  %6203 = vmatprep.subr.mxu0 %v2303
  %6204 = vmatpush1.msra.mxu0 %v2302
  %6205 = vmatprep.subr.mxu0 %v2306
  %6206 = vmatpush1.msra.mxu0 %v2305
  %6207 = vmatprep.subr.mxu0 %v2309
  %6208 = vmatpush1.msra.mxu0 %v2308
  %6209 = vmatprep.subr.mxu0 %v2312
  %6210 = vmatpush1.msra.mxu0 %v2311
  %6211 = vmatprep.subr.mxu0 0.0
  %6212 = vmatpush1.msra.mxu0 0.0
  %6213 = vmatprep.subr.mxu0 0.0
  %6214 = vmatpush1.msra.mxu0 0.0
  %6215 = vmatprep.subr.mxu0 0.0
  %6216 = vmatpush1.msra.mxu0 0.0
  %6217 = vmatprep.subr.mxu0 0.0
  %6218 = vmatpush1.msra.mxu0 0.0
  %6219 = vmatprep.subr.mxu0 0.0
  %6220 = vmatpush1.msra.mxu0 0.0
  %6221 = vmatprep.subr.mxu0 0.0
  %6222 = vmatpush1.msra.mxu0 0.0
  %6223 = vmatprep.subr.mxu0 0.0
  %6224 = vmatpush1.msra.mxu0 0.0
  %6225 = vmatprep.subr.mxu0 0.0
  %6226 = vmatpush1.msra.mxu0 0.0
  %6227 = vmatprep.subr.mxu0 0.0
  %6228 = vmatpush1.msra.mxu0 0.0
  %6229 = vmatprep.subr.mxu0 0.0
  %6230 = vmatpush1.msra.mxu0 0.0
  %6231 = vmatprep.subr.mxu0 0.0
  %6232 = vmatpush1.msra.mxu0 0.0
  %6233 = vmatprep.subr.mxu0 0.0
  %6234 = vmatpush1.msra.mxu0 0.0
  %6235 = vmatprep.subr.mxu0 0.0
  %6236 = vmatpush1.msra.mxu0 0.0
  %6237 = vmatprep.subr.mxu0 0.0
  %6238 = vmatpush1.msra.mxu0 0.0
  %6239 = vmatprep.subr.mxu0 0.0
  %6240 = vmatpush1.msra.mxu0 0.0
  %6241 = vmatprep.subr.mxu0 0.0
  %6242 = vmatpush1.msra.mxu0 0.0
  %6243 = vmatprep.subr.mxu0 0.0
  %6244 = vmatpush1.msra.mxu0 0.0
  %6245 = vmatprep.subr.mxu0 0.0
  %6246 = vmatpush1.msra.mxu0 0.0
  %6247 = vmatprep.subr.mxu0 0.0
  %6248 = vmatpush1.msra.mxu0 0.0
  %6249 = vmatprep.subr.mxu0 0.0
  %6250 = vmatpush1.msra.mxu0 0.0
  %6251 = vmatprep.subr.mxu0 0.0
  %6252 = vmatpush1.msra.mxu0 0.0
  %6253 = vmatprep.subr.mxu0 0.0
  %6254 = vmatpush1.msra.mxu0 0.0
  %6255 = vmatprep.subr.mxu0 0.0
  %6256 = vmatpush1.msra.mxu0 0.0
  %6257 = vmatprep.subr.mxu0 0.0
  %6258 = vmatpush1.msra.mxu0 0.0
  %6259 = vmatprep.subr.mxu0 0.0
  %6260 = vmatpush1.msra.mxu0 0.0
  %6261 = vmatprep.subr.mxu0 0.0
  %6262 = vmatpush1.msra.mxu0 0.0
  %6263 = vmatprep.subr.mxu0 0.0
  %6264 = vmatpush1.msra.mxu0 0.0
  %6265 = vmatprep.subr.mxu0 0.0
  %6266 = vmatpush1.msra.mxu0 0.0
  %6267 = vmatprep.mubr.f32.mxu0 0.0
  %6268 = vmatmul.mubr.f32.gmra.mrb[0].mxu0 %v6201
  %v6269 = vpop.f32.mrb[0].mxu0
  %v6270 = vadd.f32 0.0, %v6269
  %v6271 = vpop.f32.mrb[0].mxu0
  %6272 = vdwg.mxu0
  %v6273 = vsel %vm1101, %v6071, 0
  %6275 = vmatprep.subr.mxu0 %v1422
  %6276 = vmatpush1.msra.mxu0 %v1421
  %6277 = vmatprep.subr.mxu0 %v1425
  %6278 = vmatpush1.msra.mxu0 %v1424
  %6279 = vmatprep.subr.mxu0 0.0
  %6280 = vmatpush1.msra.mxu0 0.0
  %6281 = vmatprep.subr.mxu0 0.0
  %6282 = vmatpush1.msra.mxu0 0.0
  %6283 = vmatprep.subr.mxu0 0.0
  %6284 = vmatpush1.msra.mxu0 0.0
  %6285 = vmatprep.subr.mxu0 0.0
  %6286 = vmatpush1.msra.mxu0 0.0
  %6287 = vmatprep.subr.mxu0 0.0
  %6288 = vmatpush1.msra.mxu0 0.0
  %6289 = vmatprep.subr.mxu0 0.0
  %6290 = vmatpush1.msra.mxu0 0.0
  %6291 = vmatprep.subr.mxu0 0.0
  %6292 = vmatpush1.msra.mxu0 0.0
  %6293 = vmatprep.subr.mxu0 0.0
  %6294 = vmatpush1.msra.mxu0 0.0
  %6295 = vmatprep.subr.mxu0 0.0
  %6296 = vmatpush1.msra.mxu0 0.0
  %6297 = vmatprep.subr.mxu0 0.0
  %6298 = vmatpush1.msra.mxu0 0.0
  %6299 = vmatprep.subr.mxu0 0.0
  %6300 = vmatpush1.msra.mxu0 0.0
  %6301 = vmatprep.subr.mxu0 0.0
  %6302 = vmatpush1.msra.mxu0 0.0
  %6303 = vmatprep.subr.mxu0 0.0
  %6304 = vmatpush1.msra.mxu0 0.0
  %6305 = vmatprep.subr.mxu0 0.0
  %6306 = vmatpush1.msra.mxu0 0.0
  %6307 = vmatprep.subr.mxu0 0.0
  %6308 = vmatpush1.msra.mxu0 0.0
  %6309 = vmatprep.subr.mxu0 0.0
  %6310 = vmatpush1.msra.mxu0 0.0
  %6311 = vmatprep.subr.mxu0 0.0
  %6312 = vmatpush1.msra.mxu0 0.0
  %6313 = vmatprep.subr.mxu0 0.0
  %6314 = vmatpush1.msra.mxu0 0.0
  %6315 = vmatprep.subr.mxu0 0.0
  %6316 = vmatpush1.msra.mxu0 0.0
  %6317 = vmatprep.subr.mxu0 0.0
  %6318 = vmatpush1.msra.mxu0 0.0
  %6319 = vmatprep.subr.mxu0 0.0
  %6320 = vmatpush1.msra.mxu0 0.0
  %6321 = vmatprep.subr.mxu0 0.0
  %6322 = vmatpush1.msra.mxu0 0.0
  %6323 = vmatprep.subr.mxu0 0.0
  %6324 = vmatpush1.msra.mxu0 0.0
  %6325 = vmatprep.subr.mxu0 0.0
  %6326 = vmatpush1.msra.mxu0 0.0
  %6327 = vmatprep.subr.mxu0 0.0
  %6328 = vmatpush1.msra.mxu0 0.0
  %6329 = vmatprep.subr.mxu0 0.0
  %6330 = vmatpush1.msra.mxu0 0.0
  %6331 = vmatprep.subr.mxu0 0.0
  %6332 = vmatpush1.msra.mxu0 0.0
  %6333 = vmatprep.subr.mxu0 0.0
  %6334 = vmatpush1.msra.mxu0 0.0
  %6335 = vmatprep.subr.mxu0 0.0
  %6336 = vmatpush1.msra.mxu0 0.0
  %6337 = vmatprep.subr.mxu0 0.0
  %6338 = vmatpush1.msra.mxu0 0.0
  %6339 = vmatprep.mubr.f32.mxu0 0.0
  %6340 = vmatmul.mubr.f32.gmra.mrb[0].mxu0 %v6273
  %v6341 = vpop.f32.mrb[0].mxu0
  %v6342 = vadd.f32 %v6270, %v6341
  %v6343 = vpop.f32.mrb[0].mxu0
  %6344 = vdwg.mxu0
  %v6345 = vadd.f32 %v6342, %v1418
  %v6346 = vadd.f32 %v5519, %v5998
  %v6347 = vsub.f32 %v6345, %v5516
  %v6348 = vmul.f32 %v6347, %v6347
  %v6349 = vsel %vm1101, %v6348, 0.0
  %6350 = vadd.xlane.f32.xlu0 %v6349
  %v6351 = vpop.xlane.xlu0 %6350
  %v6352 = vrsqrt.pop %v6351
  %v6353 = vmul.f32 %v6351, %v6352
  %vm6354 = vcmp.eq.f32.partialorder %v6351, inf
  %v6355 = vsel %vm6354, %v6351, %v6353
  %vm6356 = vcmp.eq.f32.partialorder %v6351, 0.0
  %v6357 = vand.u32 %v6351, 2147483648
  %v6358 = vsel %vm6356, %v6357, %v6355
  %v6359 = vmul.f32 %v6075, %v6075
  %6361 = vrot.lane.b32.xlu0 %v6359, 112
  %v6362 = vpop.permute.xlu0 %6361
  %v6364 = vsel %vm881, %v6362, 0.0
  %6365 = vadd.xlane.f32.xlu0 %v6364
  %v6366 = vpop.xlane.xlu0 %6365
  %v6367 = vrsqrt.pop %v6366
  %v6368 = vmul.f32 %v6366, %v6367
  %vm6369 = vcmp.eq.f32.partialorder %v6366, inf
  %v6370 = vsel %vm6369, %v6366, %v6368
  %vm6371 = vcmp.eq.f32.partialorder %v6366, 0.0
  %v6372 = vand.u32 %v6366, 2147483648
  %v6373 = vsel %vm6371, %v6372, %v6370
  %v6374 = vadd.f32 %v6358, %v6373
  %6375 = vrot.lane.b32.xlu0 %v6359, 104
  %v6376 = vpop.permute.xlu0 %6375
  %v6378 = vsel %vm881, %v6376, 0.0
  %6379 = vadd.xlane.f32.xlu0 %v6378
  %v6380 = vpop.xlane.xlu0 %6379
  %v6381 = vrsqrt.pop %v6380
  %v6382 = vmul.f32 %v6380, %v6381
  %vm6383 = vcmp.eq.f32.partialorder %v6380, inf
  %v6384 = vsel %vm6383, %v6380, %v6382
  %vm6385 = vcmp.eq.f32.partialorder %v6380, 0.0
  %v6386 = vand.u32 %v6380, 2147483648
  %v6387 = vsel %vm6385, %v6386, %v6384
  %v6388 = vadd.f32 %v6374, %v6387
  %v6389 = vadd.f32 %v5562, %v6388
  %v6390 = vmul.f32 %v6346, 0.2
  %v6391 = vmul.f32 %v6389, 0.2
  %v6392 = vsel %vm1101, %v6345, %v6390
  %vm6393 = vcmask 138240
  %v6394 = vsel %vm6393, %v6392, %v6391
  %vm6395 = vcmask 146432
  %6396 = vst.msk [vmem:[%s5] sm:$0xff] %vm6395, %v6394
  // Predicated region
  $region22: #{forward.1} parent=0 // pred_check
    _
  $region23: #{forward.1} parent=0 // pred_check_branch
    %6398 = sbr.rel (0) target = $region25
  $region24: #{forward.1} parent=0 // pred_region
    _
  $region25: #{forward.1} parent=0 // pred_fallthru
    _
  // Predicated region
  $region26: #{forward.1} parent=0 // pred_check
    _
  $region27: #{forward.1} parent=0 // pred_check_branch
    %6400 = sbr.rel (0) target = $region29
  $region28: #{forward.1} parent=0 // pred_region
    _
  $region29: #{forward.1} parent=0 // pred_fallthru
    _

</llo_original>
